<compile_context>
chip_gen: v5e
topology: v5e:2x2
jax: 0.10.0
libtpu: 0.0.40
codegen_flags: <defaults>
</compile_context>

<pallas_src>
import math
from functools import partial

import jax
import jax.numpy as jnp
from jax.experimental import pallas as pl
from jax.experimental.pallas import tpu as pltpu

K = 3              # conv kernel size (3x3, stride 1, pad 1)
LEAKY_SLOPE = 0.2
BN_EPS = 1e-5


def _round_up(x, m):
    return ((x + m - 1) // m) * m


def _par_conv_kernel(xm_ref, xtop_ref, xbot_ref, msum_ref, w_ref, b_ref,
                     y_ref, mout_ref, stat_ref,
                     xpad, mp, acc):
    # xm_ref   : (1, TH, W, Cin) bf16   mask*x, channels already concatenated
    # xtop_ref : (1, 1, W, Cin)  bf16   row above the tile (clamped at h==0)
    # xbot_ref : (1, 1, W, Cin)  bf16   row below the tile (clamped at last h)
    # msum_ref : (1, H, W)       f32    channel-summed mask, resident per batch
    # w_ref    : (3, Cin, 3*Cblk) bf16  dy-indexed, dx-stacked, lane-padded
    # b_ref    : (1, Cblk)        f32   lane-padded bias
    # y_ref    : (1, TH, W, Cout) bf16  renormalized conv output
    # mout_ref : (1, TH, W)       f32   binary per-pixel mask (lane-dense)
    # stat_ref : (1, 1, 2, Cout)  f32   per-tile sum / sum-of-squares (for BN)
    # xpad/mp/acc : VMEM scratch (padded conv input, padded mask, accumulator)
    TH, W, Cin = xm_ref.shape[1], xm_ref.shape[2], xm_ref.shape[3]
    Cout = y_ref.shape[3]
    Cblk = acc.shape[2]
    Hp2, Wpp = xpad.shape[0], xpad.shape[1]
    h = pl.program_id(1)
    nh = pl.num_programs(1)

    # ---- zero-padded main-conv input tile (halo rows always written, pad
    #      columns re-zeroed every step -> safe under "parallel" scheduling).
    xpad[:, 0:1, :] = jnp.zeros((Hp2, 1, Cin), xpad.dtype)
    xpad[:, W + 1:Wpp, :] = jnp.zeros((Hp2, Wpp - W - 1, Cin), xpad.dtype)
    xpad[0:1, 1:W + 1, :] = xtop_ref[0]
    xpad[1:TH + 1, 1:W + 1, :] = xm_ref[0]
    xpad[TH + 1:TH + 2, 1:W + 1, :] = xbot_ref[0]

    @pl.when(h == 0)
    def _():
        xpad[0:1, :, :] = jnp.zeros((1, Wpp, Cin), xpad.dtype)

    @pl.when(h == nh - 1)
    def _():
        xpad[TH + 1:TH + 2, :, :] = jnp.zeros((1, Wpp, Cin), xpad.dtype)

    # ---- lane-dense zero-padded mask tile (W on the 128-lane axis).
    mp[...] = jnp.zeros_like(mp)
    row0 = h * TH
    if TH % 8 == 0:
        row0 = pl.multiple_of(row0, 8)
    mp[1:TH + 1, 1:W + 1] = msum_ref[0, pl.ds(row0, TH), :]

    @pl.when(h > 0)
    def _():
        mp[0:1, 1:W + 1] = msum_ref[0, pl.ds(h * TH - 1, 1), :]

    @pl.when(h < nh - 1)
    def _():
        mp[TH + 1:TH + 2, 1:W + 1] = msum_ref[0, pl.ds(h * TH + TH, 1), :]

    # ---- main conv: one merged-Cin MXU matmul per dy tap; dx taps live on
    #      lane-aligned 128-wide output blocks so the 9 accumulation slices
    #      below never need a cross-lane relayout.
    for dy in range(K):
        lhs = xpad[dy:dy + TH].reshape(TH * Wpp, Cin)
        prod = jnp.dot(lhs, w_ref[dy], preferred_element_type=jnp.float32)
        prod = prod.reshape(TH, Wpp, K * Cblk)
        for dx in range(K):
            blk = prod[:, dx:dx + W, dx * Cblk:(dx + 1) * Cblk]
            if dy == 0 and dx == 0:
                acc[...] = blk
            else:
                acc[...] += blk

    # ---- all-ones 3x3 mask conv: 9 shifted adds on the small lane-dense slab.
    ms = None
    for dy in range(K):
        for dx in range(K):
            t = mp[dy:dy + TH, dx:dx + W]
            ms = t if ms is None else ms + t
    nz = ms != 0.0
    # Exact partial-conv renormalization (bias is divided too, matching the
    # reference PyTorch module); zero where the mask-window sum is zero.
    inv = jnp.where(nz, 1.0 / jnp.where(nz, ms, 1.0), 0.0)

    y = (acc[...] + b_ref[0][None, None, :]) * inv[:, :, None]   # one broadcast
    y_out = y[:, :, :Cout]

    # Per-tile BatchNorm partial sums (f32), reduced outside the kernel.
    stat_ref[0, 0, 0:1, :] = jnp.sum(y_out, axis=(0, 1))[None, :]
    stat_ref[0, 0, 1:2, :] = jnp.sum(y_out * y_out, axis=(0, 1))[None, :]

    y_ref[0] = y_out.astype(y_ref.dtype)
    mout_ref[0] = nz.astype(mout_ref.dtype)


def _bn_act_kernel(y_ref, scale_ref, shift_ref, o_ref, *, act):
    # y_ref : (1, ht, W*Cout) bf16 ; scale/shift : (1, W*Cout) f32 ; o_ref f32
    o = y_ref[...].astype(jnp.float32) * scale_ref[...] + shift_ref[...]
    if act == 'tanh':
        o = jnp.tanh(o)
    else:
        o = jnp.where(o > 0, o, LEAKY_SLOPE * o)      # LeakyReLU(0.2)
    o_ref[...] = o


def init_params(key, c_in, c_out):
    """Deterministic init matching the PyTorch __init__ distributions."""
    k1, k2, k3, k4 = jax.random.split(key, 4)
    fan_in, fan_out = c_in * K * K, c_out * K * K
    std = math.sqrt(2.0) * math.sqrt(2.0 / (fan_in + fan_out))  # xavier_normal, gain=sqrt(2)
    return dict(
        w=std * jax.random.normal(k1, (c_out, c_in, K, K), jnp.float32),
        b=0.02 + jax.random.normal(k2, (c_out,), jnp.float32),
        bn_gamma=0.02 + jax.random.normal(k3, (c_out,), jnp.float32),
        bn_beta=jax.random.normal(k4, (c_out,), jnp.float32),
    )


def _divisor_tiles(n):
    cands = {d for d in range(8, n + 1, 8) if n % d == 0}
    cands.add(n)
    return sorted(cands)


def up_module_forward(x, prev_x, mask, prev_mask, params,
                      bn_flag=True, act='leaky'):
    """NCHW in / NCHW out, mirroring the PyTorch up_module.forward."""
    N, Cx, Hs, Ws = x.shape
    Cp = prev_x.shape[1]
    H, W = prev_x.shape[2], prev_x.shape[3]
    Cin = Cx + Cp
    Cout = params['w'].shape[0]
    Cblk = Cout if Cout % 128 == 0 else _round_up(Cout, 128)
    Wpp = _round_up(W + 2, 16)      # bf16 sublane tile for the padded conv input
    Wlp = _round_up(W + 2, 128)     # lane-dense mask scratch width

    def to_nhwc(a):
        return jnp.transpose(a, (0, 2, 3, 1))

    def up2(a):                      # nearest x2 on the small coarse inputs
        return jnp.repeat(jnp.repeat(a, 2, axis=1), 2, axis=2)

    x_up, m_up = up2(to_nhwc(x)), up2(to_nhwc(mask))
    px, pm = to_nhwc(prev_x), to_nhwc(prev_mask)

    # Fused XLA producers of the kernel inputs: mask-multiply + channel concat
    # (one bf16 image -> one merged-Cin MXU contraction per tap) and the
    # channel-summed mask (exact small integers) as a lane-dense f32 array.
    xm = jnp.concatenate([x_up * m_up, px * pm], axis=-1).astype(jnp.bfloat16)
    msum = (jnp.sum(m_up, axis=-1) + jnp.sum(pm, axis=-1)).astype(jnp.float32)

    # torch (Cout, Cin, 3, 3) -> dy-indexed, dx-stacked (3, Cin, 3*Cblk); each
    # dx block zero-padded to a 128-lane boundary so in-kernel slices align.
    wt = jnp.transpose(params['w'], (2, 3, 1, 0))            # (ky, kx, Cin, Cout)
    wt = jnp.pad(wt, ((0, 0), (0, 0), (0, 0), (0, Cblk - Cout)))
    wflat = jnp.transpose(wt, (0, 2, 1, 3)).reshape(K, Cin, K * Cblk)
    wflat = wflat.astype(jnp.bfloat16)
    bias = jnp.pad(params['b'].astype(jnp.float32), (0, Cblk - Cout)).reshape(1, Cblk)

    # ---- per-generation VMEM budget -> H-tile size ---------------------------
    vmem_phys = 64 * 1024 * 1024
    try:
        vmem_phys = int(pltpu.get_tpu_info().vmem_capacity_bytes)
    except Exception:
        pass
    budget = int(0.6 * vmem_phys)                      # ~38 MiB v7x, ~77 MiB v5e/v6e
    vmem_limit = min(int(0.75 * vmem_phys), 100 * 1024 * 1024)

    def tile_bytes(th):
        b = 2 * th * W * Cin * 2                       # xm block (double buffered)
        b += 2 * 2 * W * Cin * 2                       # halo rows
        b += 2 * H * W * 4                             # resident channel-summed mask
        b += 2 * K * Cin * K * Cblk * 2                # weights
        b += 2 * (th * W * Cout * 2 + th * W * 4 + 2 * Cout * 4)   # outputs
        b += (th + 2) * Wpp * Cin * 2                  # xpad scratch
        b += (th + 2) * Wlp * 4                        # mask scratch
        b += th * W * Cblk * 4                         # accumulator scratch
        b += th * Wpp * K * Cblk * 4                   # per-dy matmul product (temp)
        return b

    tiles = _divisor_tiles(H)
    TH = tiles[0]
    for th in reversed(tiles):
        if tile_bytes(th) <= budget:
            TH = th
            break
    HT = H // TH

    y_conv, mout, stats = pl.pallas_call(
        _par_conv_kernel,
        out_shape=(jax.ShapeDtypeStruct((N, H, W, Cout), jnp.bfloat16),
                   jax.ShapeDtypeStruct((N, H, W), jnp.float32),
                   jax.ShapeDtypeStruct((N, HT, 2, Cout), jnp.float32)),
        grid=(N, HT),
        in_specs=[
            pl.BlockSpec((1, TH, W, Cin), lambda n, h: (n, h, 0, 0)),
            pl.BlockSpec((1, 1, W, Cin),
                         lambda n, h: (n, jnp.maximum(h * TH - 1, 0), 0, 0)),
            pl.BlockSpec((1, 1, W, Cin),
                         lambda n, h: (n, jnp.minimum(h * TH + TH, H - 1), 0, 0)),
            pl.BlockSpec((1, H, W), lambda n, h: (n, 0, 0)),
            pl.BlockSpec((K, Cin, K * Cblk), lambda n, h: (0, 0, 0)),
            pl.BlockSpec((1, Cblk), lambda n, h: (0, 0)),
        ],
        out_specs=(
            pl.BlockSpec((1, TH, W, Cout), lambda n, h: (n, h, 0, 0)),
            pl.BlockSpec((1, TH, W), lambda n, h: (n, h, 0)),
            pl.BlockSpec((1, 1, 2, Cout), lambda n, h: (n, h, 0, 0)),
        ),
        scratch_shapes=[
            pltpu.VMEM((TH + 2, Wpp, Cin), jnp.bfloat16),
            pltpu.VMEM((TH + 2, Wlp), jnp.float32),
            pltpu.VMEM((TH, W, Cblk), jnp.float32),
        ],
        compiler_params=pltpu.CompilerParams(
            dimension_semantics=("parallel", "parallel"),
            vmem_limit_bytes=vmem_limit),
    )(xm, xm, xm, msum, wflat, bias)

    # BatchNorm2d (training-mode batch statistics) from the per-tile partials.
    if bn_flag:
        cnt = float(N * H * W)
        s = jnp.sum(stats, axis=(0, 1))                    # (2, Cout)
        mean = s[0] / cnt
        # TODO(synk): E[x^2]-E[x]^2 in f32 can cancel for large channel means;
        # switch to a centered two-pass if exact BN parity is ever required.
        var = jnp.maximum(s[1] / cnt - mean * mean, 0.0)
        scale = params['bn_gamma'].astype(jnp.float32) * jax.lax.rsqrt(var + BN_EPS)
        shift = params['bn_beta'].astype(jnp.float32) - mean * scale
    else:
        scale = jnp.ones((Cout,), jnp.float32)
        shift = jnp.zeros((Cout,), jnp.float32)
    WC = W * Cout
    scale_f = jnp.tile(scale, W).reshape(1, WC)
    shift_f = jnp.tile(shift, W).reshape(1, WC)

    # Lane-dense normalize + activation on the (free) flattened view of y;
    # H tile from a ~2 MiB byte budget instead of "largest divisor of H".
    ht_tiles = _divisor_tiles(H)
    ht = ht_tiles[0]
    for cand in reversed(ht_tiles):
        if cand * WC * 4 <= 2 * 1024 * 1024:
            ht = cand
            break
    y_flat = pl.pallas_call(
        partial(_bn_act_kernel, act=act),
        out_shape=jax.ShapeDtypeStruct((N, H, WC), jnp.float32),
        grid=(N, H // ht),
        in_specs=[
            pl.BlockSpec((1, ht, WC), lambda n, h: (n, h, 0)),
            pl.BlockSpec((1, WC), lambda n, h: (0, 0)),
            pl.BlockSpec((1, WC), lambda n, h: (0, 0)),
        ],
        out_specs=pl.BlockSpec((1, ht, WC), lambda n, h: (n, h, 0)),
        compiler_params=pltpu.CompilerParams(
            dimension_semantics=("parallel", "parallel"),
            vmem_limit_bytes=vmem_limit),
    )(y_conv.reshape(N, H, WC), scale_f, shift_f)

    # NHWC -> NCHW; broadcast the per-pixel binary mask back to Cout channels
    # (kept only for interface parity with the PyTorch module).
    y = jnp.transpose(y_flat.reshape(N, H, W, Cout), (0, 3, 1, 2))
    mask_out = jnp.broadcast_to(mout[:, None, :, :], (N, Cout, H, W))
    return y, mask_out


def up_module_ref(x, prev_x, mask, prev_mask, params, bn_flag=True, act='leaky'):
    """Pure-JAX NCHW reference mirroring the PyTorch module (f32 path, except
    the deliberate bf16 cast of the conv inputs/weights used by the kernel)."""
    up = lambda a: jnp.repeat(jnp.repeat(a, 2, axis=2), 2, axis=3)
    xc = jnp.concatenate([up(x), prev_x], axis=1)
    mc = jnp.concatenate([up(mask), prev_mask], axis=1)
    xm = (xc * mc).astype(jnp.bfloat16).astype(jnp.float32)
    w = params['w'].astype(jnp.bfloat16).astype(jnp.float32)
    dn = ('NCHW', 'OIHW', 'NCHW')
    y = jax.lax.conv_general_dilated(xm, w, (1, 1), ((1, 1), (1, 1)),
                                     dimension_numbers=dn,
                                     precision=jax.lax.Precision.HIGHEST)
    y = y + params['b'][None, :, None, None]
    msum = jax.lax.conv_general_dilated(mc, jnp.ones_like(params['w']),
                                        (1, 1), ((1, 1), (1, 1)),
                                        dimension_numbers=dn,
                                        precision=jax.lax.Precision.HIGHEST)
    nz = msum != 0
    y = jnp.where(nz, y / jnp.where(nz, msum, 1.0), 0.0)
    m_out = nz.astype(jnp.float32)
    if bn_flag:
        mean = jnp.mean(y, axis=(0, 2, 3), keepdims=True)
        var = jnp.mean(jnp.square(y - mean), axis=(0, 2, 3), keepdims=True)
        y = (y - mean) * jax.lax.rsqrt(var + BN_EPS)
        y = y * params['bn_gamma'][None, :, None, None] + params['bn_beta'][None, :, None, None]
    if act == 'tanh':
        y = jnp.tanh(y)
    else:
        y = jnp.where(y > 0, y, LEAKY_SLOPE * y)
    return y, m_out


if __name__ == "__main__":
    key = jax.random.PRNGKey(0)
    kx, kpx, km, kpm, kparam = jax.random.split(key, 5)

    # coarse 8x8 feature map + 16x16 skip connection -> 16x16 output
    N, Cx, Cp, H0 = 2, 4, 4, 8            # Cin = Cx + Cp = 8
    Cout = 8
    x = jax.random.normal(kx, (N, Cx, H0, H0), jnp.float32)
    prev_x = jax.random.normal(kpx, (N, Cp, 2 * H0, 2 * H0), jnp.float32)
    mask = jax.random.bernoulli(km, 0.7, (N, Cx, H0, H0)).astype(jnp.float32)
    prev_mask = jax.random.bernoulli(kpm, 0.7, (N, Cp, 2 * H0, 2 * H0)).astype(jnp.float32)
    params = init_params(kparam, Cx + Cp, Cout)

    fwd = jax.jit(up_module_forward, static_argnames=("bn_flag", "act"))

    for bn_flag, act in ((True, 'leaky'), (False, 'tanh')):
        y, m_out = fwd(x, prev_x, mask, prev_mask, params,
                       bn_flag=bn_flag, act=act)
        jax.block_until_ready((y, m_out))
        assert y.shape == (N, Cout, 2 * H0, 2 * H0)
        assert m_out.shape == (N, Cout, 2 * H0, 2 * H0)

        y_ref, m_ref = up_module_ref(x, prev_x, mask, prev_mask, params,
                                     bn_flag=bn_flag, act=act)
        assert bool(jnp.array_equal(m_out, m_ref)), "mask output mismatch"
        max_err = float(jnp.max(jnp.abs(y - y_ref)))
        assert bool(jnp.allclose(y, y_ref, rtol=0.05, atol=0.1)), (
            f"conv output mismatch (bn={bn_flag}, act={act}), max abs err {max_err}")

    print("KERNEL_OK")
</pallas_src>

<mosaic_0001>
module attributes {stable_mosaic.version = 11 : i64} {
  func.func @_par_conv_kernel(%arg0: i32, %arg1: i32, %arg2: memref<1x16x16x8xbf16, #tpu.memory_space<vmem>>, %arg3: memref<1x1x16x8xbf16, #tpu.memory_space<vmem>>, %arg4: memref<1x1x16x8xbf16, #tpu.memory_space<vmem>>, %arg5: memref<1x16x16xf32, #tpu.memory_space<vmem>>, %arg6: memref<3x8x384xbf16, #tpu.memory_space<vmem>>, %arg7: memref<1x128xf32, #tpu.memory_space<vmem>>, %arg8: memref<1x16x16x8xbf16, #tpu.memory_space<vmem>>, %arg9: memref<1x16x16xf32, #tpu.memory_space<vmem>>, %arg10: memref<1x1x2x8xf32, #tpu.memory_space<vmem>>, %arg11: memref<18x32x8xbf16, #tpu.memory_space<vmem>>, %arg12: memref<18x128xf32, #tpu.memory_space<vmem>>, %arg13: memref<16x16x128xf32, #tpu.memory_space<vmem>>) attributes {dimension_semantics = [#tpu.dimension_semantics<parallel>, #tpu.dimension_semantics<parallel>], iteration_bounds = array<i64: 2, 1>, scalar_prefetch = 0 : i64, scratch_operands = 3 : i64, tpu.core_type = #tpu.core_type<tc>, window_params = [{transform_indices = @transform_0, window_bounds = array<i64: 1, 16, 16, 8>}, {transform_indices = @transform_1, window_bounds = array<i64: 1, 1, 16, 8>}, {transform_indices = @transform_2, window_bounds = array<i64: 1, 1, 16, 8>}, {transform_indices = @transform_3, window_bounds = array<i64: 1, 16, 16>}, {pipeline_mode = #tpu.pipeline_mode<synchronous>, transform_indices = @transform_4, window_bounds = array<i64: 3, 8, 384>}, {pipeline_mode = #tpu.pipeline_mode<synchronous>, transform_indices = @transform_5, window_bounds = array<i64: 1, 128>}, {transform_indices = @transform_6, window_bounds = array<i64: 1, 16, 16, 8>}, {transform_indices = @transform_7, window_bounds = array<i64: 1, 16, 16>}, {transform_indices = @transform_8, window_bounds = array<i64: 1, 1, 2, 8>}]} {
    %cst = arith.constant 0.000000e+00 : bf16
    %0 = vector.broadcast %cst : bf16 to vector<18x1x8xbf16>
    %c0 = arith.constant 0 : index
    %c0_0 = arith.constant 0 : index
    %c0_1 = arith.constant 0 : index
    %1 = vector.load %arg11[%c0, %c0_0, %c0_1] : memref<18x32x8xbf16, #tpu.memory_space<vmem>>, vector<18x1x8xbf16>
    tpu.vector_store %arg11[%c0, %c0_0, %c0_1], %0 {strides = array<i32>} : memref<18x32x8xbf16, #tpu.memory_space<vmem>>, vector<18x1x8xbf16>,
    %cst_2 = arith.constant 0.000000e+00 : bf16
    %2 = vector.broadcast %cst_2 : bf16 to vector<18x15x8xbf16>
    %c0_3 = arith.constant 0 : index
    %c17 = arith.constant 17 : index
    %c0_4 = arith.constant 0 : index
    %3 = vector.load %arg11[%c0_3, %c17, %c0_4] : memref<18x32x8xbf16, #tpu.memory_space<vmem>>, vector<18x15x8xbf16>
    tpu.vector_store %arg11[%c0_3, %c17, %c0_4], %2 {strides = array<i32>} : memref<18x32x8xbf16, #tpu.memory_space<vmem>>, vector<18x15x8xbf16>,
    %c0_5 = arith.constant 0 : index
    %c0_6 = arith.constant 0 : index
    %c0_7 = arith.constant 0 : index
    %c0_8 = arith.constant 0 : index
    %4 = vector.load %arg3[%c0_5, %c0_6, %c0_7, %c0_8] : memref<1x1x16x8xbf16, #tpu.memory_space<vmem>>, vector<1x1x16x8xbf16>
    %5 = vector.shape_cast %4 : vector<1x1x16x8xbf16> to vector<1x16x8xbf16>
    %c0_9 = arith.constant 0 : index
    %c1 = arith.constant 1 : index
    %c0_10 = arith.constant 0 : index
    %6 = vector.load %arg11[%c0_9, %c1, %c0_10] : memref<18x32x8xbf16, #tpu.memory_space<vmem>>, vector<1x16x8xbf16>
    tpu.vector_store %arg11[%c0_9, %c1, %c0_10], %5 {strides = array<i32>} : memref<18x32x8xbf16, #tpu.memory_space<vmem>>, vector<1x16x8xbf16>,
    %c0_11 = arith.constant 0 : index
    %c0_12 = arith.constant 0 : index
    %c0_13 = arith.constant 0 : index
    %c0_14 = arith.constant 0 : index
    %7 = vector.load %arg2[%c0_11, %c0_12, %c0_13, %c0_14] : memref<1x16x16x8xbf16, #tpu.memory_space<vmem>>, vector<1x16x16x8xbf16>
    %8 = vector.shape_cast %7 : vector<1x16x16x8xbf16> to vector<16x16x8xbf16>
    %c1_15 = arith.constant 1 : index
    %c1_16 = arith.constant 1 : index
    %c0_17 = arith.constant 0 : index
    %9 = vector.load %arg11[%c1_15, %c1_16, %c0_17] : memref<18x32x8xbf16, #tpu.memory_space<vmem>>, vector<16x16x8xbf16>
    tpu.vector_store %arg11[%c1_15, %c1_16, %c0_17], %8 {strides = array<i32>} : memref<18x32x8xbf16, #tpu.memory_space<vmem>>, vector<16x16x8xbf16>,
    %c0_18 = arith.constant 0 : index
    %c0_19 = arith.constant 0 : index
    %c0_20 = arith.constant 0 : index
    %c0_21 = arith.constant 0 : index
    %10 = vector.load %arg4[%c0_18, %c0_19, %c0_20, %c0_21] : memref<1x1x16x8xbf16, #tpu.memory_space<vmem>>, vector<1x1x16x8xbf16>
    %11 = vector.shape_cast %10 : vector<1x1x16x8xbf16> to vector<1x16x8xbf16>
    %c17_22 = arith.constant 17 : index
    %c1_23 = arith.constant 1 : index
    %c0_24 = arith.constant 0 : index
    %12 = vector.load %arg11[%c17_22, %c1_23, %c0_24] : memref<18x32x8xbf16, #tpu.memory_space<vmem>>, vector<1x16x8xbf16>
    tpu.vector_store %arg11[%c17_22, %c1_23, %c0_24], %11 {strides = array<i32>} : memref<18x32x8xbf16, #tpu.memory_space<vmem>>, vector<1x16x8xbf16>,
    %c0_i32 = arith.constant 0 : i32
    %13 = arith.cmpi eq, %arg1, %c0_i32 : i32
    %14 = arith.extui %13 : i1 to i32
    %c0_i32_25 = arith.constant 0 : i32
    %15 = arith.cmpi ne, %14, %c0_i32_25 : i32
    scf.if %15 {
      %cst_154 = arith.constant 0.000000e+00 : bf16
      %140 = vector.broadcast %cst_154 : bf16 to vector<1x32x8xbf16>
      %c0_155 = arith.constant 0 : index
      %c0_156 = arith.constant 0 : index
      %c0_157 = arith.constant 0 : index
      %141 = vector.load %arg11[%c0_155, %c0_156, %c0_157] : memref<18x32x8xbf16, #tpu.memory_space<vmem>>, vector<1x32x8xbf16>
      tpu.vector_store %arg11[%c0_155, %c0_156, %c0_157], %140 {strides = array<i32>} : memref<18x32x8xbf16, #tpu.memory_space<vmem>>, vector<1x32x8xbf16>,
    } else {
    }
    %c0_i32_26 = arith.constant 0 : i32
    %16 = arith.cmpi eq, %arg1, %c0_i32_26 : i32
    %17 = arith.extui %16 : i1 to i32
    %c0_i32_27 = arith.constant 0 : i32
    %18 = arith.cmpi ne, %17, %c0_i32_27 : i32
    scf.if %18 {
      %cst_154 = arith.constant 0.000000e+00 : bf16
      %140 = vector.broadcast %cst_154 : bf16 to vector<1x32x8xbf16>
      %c17_155 = arith.constant 17 : index
      %c0_156 = arith.constant 0 : index
      %c0_157 = arith.constant 0 : index
      %141 = vector.load %arg11[%c17_155, %c0_156, %c0_157] : memref<18x32x8xbf16, #tpu.memory_space<vmem>>, vector<1x32x8xbf16>
      tpu.vector_store %arg11[%c17_155, %c0_156, %c0_157], %140 {strides = array<i32>} : memref<18x32x8xbf16, #tpu.memory_space<vmem>>, vector<1x32x8xbf16>,
    } else {
    }
    %cst_28 = arith.constant 0.000000e+00 : f32
    %19 = vector.broadcast %cst_28 : f32 to vector<18x128xf32>
    %c0_29 = arith.constant 0 : index
    %c0_30 = arith.constant 0 : index
    %20 = vector.load %arg12[%c0_29, %c0_30] : memref<18x128xf32, #tpu.memory_space<vmem>>, vector<18x128xf32>
    tpu.vector_store %arg12[%c0_29, %c0_30], %19 {strides = array<i32>} : memref<18x128xf32, #tpu.memory_space<vmem>>, vector<18x128xf32>,
    %c16_i32 = arith.constant 16 : i32
    %21 = arith.muli %arg1, %c16_i32 : i32
    %22 = tpu.assume_multiple %21, 8 : i32
    %c0_31 = arith.constant 0 : index
    %23 = arith.index_cast %22 : i32 to index
    %c0_32 = arith.constant 0 : index
    %24 = vector.load %arg5[%c0_31, %23, %c0_32] : memref<1x16x16xf32, #tpu.memory_space<vmem>>, vector<1x16x16xf32>
    %25 = vector.shape_cast %24 : vector<1x16x16xf32> to vector<16x16xf32>
    %c1_33 = arith.constant 1 : index
    %c1_34 = arith.constant 1 : index
    %26 = vector.load %arg12[%c1_33, %c1_34] : memref<18x128xf32, #tpu.memory_space<vmem>>, vector<16x16xf32>
    tpu.vector_store %arg12[%c1_33, %c1_34], %25 {strides = array<i32>} : memref<18x128xf32, #tpu.memory_space<vmem>>, vector<16x16xf32>,
    %c0_i32_35 = arith.constant 0 : i32
    %27 = arith.cmpi sgt, %arg1, %c0_i32_35 : i32
    %28 = arith.extui %27 : i1 to i32
    %c0_i32_36 = arith.constant 0 : i32
    %29 = arith.cmpi ne, %28, %c0_i32_36 : i32
    scf.if %29 {
      %c16_i32_154 = arith.constant 16 : i32
      %140 = arith.muli %arg1, %c16_i32_154 : i32
      %c1_i32 = arith.constant 1 : i32
      %141 = arith.subi %140, %c1_i32 : i32
      %c0_155 = arith.constant 0 : index
      %142 = arith.index_cast %141 : i32 to index
      %c0_156 = arith.constant 0 : index
      %143 = vector.load %arg5[%c0_155, %142, %c0_156] : memref<1x16x16xf32, #tpu.memory_space<vmem>>, vector<1x1x16xf32>
      %144 = vector.shape_cast %143 : vector<1x1x16xf32> to vector<1x16xf32>
      %c0_157 = arith.constant 0 : index
      %c1_158 = arith.constant 1 : index
      %145 = vector.load %arg12[%c0_157, %c1_158] : memref<18x128xf32, #tpu.memory_space<vmem>>, vector<1x16xf32>
      tpu.vector_store %arg12[%c0_157, %c1_158], %144 {strides = array<i32>} : memref<18x128xf32, #tpu.memory_space<vmem>>, vector<1x16xf32>,
    } else {
    }
    %c0_i32_37 = arith.constant 0 : i32
    %30 = arith.cmpi slt, %arg1, %c0_i32_37 : i32
    %31 = arith.extui %30 : i1 to i32
    %c0_i32_38 = arith.constant 0 : i32
    %32 = arith.cmpi ne, %31, %c0_i32_38 : i32
    scf.if %32 {
      %c16_i32_154 = arith.constant 16 : i32
      %140 = arith.muli %arg1, %c16_i32_154 : i32
      %c16_i32_155 = arith.constant 16 : i32
      %141 = arith.addi %140, %c16_i32_155 : i32
      %c0_156 = arith.constant 0 : index
      %142 = arith.index_cast %141 : i32 to index
      %c0_157 = arith.constant 0 : index
      %143 = vector.load %arg5[%c0_156, %142, %c0_157] : memref<1x16x16xf32, #tpu.memory_space<vmem>>, vector<1x1x16xf32>
      %144 = vector.shape_cast %143 : vector<1x1x16xf32> to vector<1x16xf32>
      %c17_158 = arith.constant 17 : index
      %c1_159 = arith.constant 1 : index
      %145 = vector.load %arg12[%c17_158, %c1_159] : memref<18x128xf32, #tpu.memory_space<vmem>>, vector<1x16xf32>
      tpu.vector_store %arg12[%c17_158, %c1_159], %144 {strides = array<i32>} : memref<18x128xf32, #tpu.memory_space<vmem>>, vector<1x16xf32>,
    } else {
    }
    %c0_39 = arith.constant 0 : index
    %c0_40 = arith.constant 0 : index
    %c0_41 = arith.constant 0 : index
    %33 = vector.load %arg11[%c0_39, %c0_40, %c0_41] : memref<18x32x8xbf16, #tpu.memory_space<vmem>>, vector<16x32x8xbf16>
    %34 = vector.shape_cast %33 : vector<16x32x8xbf16> to vector<512x8xbf16>
    %c0_42 = arith.constant 0 : index
    %c0_43 = arith.constant 0 : index
    %c0_44 = arith.constant 0 : index
    %35 = vector.load %arg6[%c0_42, %c0_43, %c0_44] : memref<3x8x384xbf16, #tpu.memory_space<vmem>>, vector<1x8x384xbf16>
    %36 = vector.shape_cast %35 : vector<1x8x384xbf16> to vector<8x384xbf16>
    %cst_45 = arith.constant dense<0.000000e+00> : vector<512x384xf32>
    %37 = tpu.matmul %34, %36, %cst_45 {dimension_numbers = #tpu.dot_dimension_numbers<[1], [0], [0], [1], [0, 0, 1, 1], [], []>} : vector<512x8xbf16>, vector<8x384xbf16>, vector<512x384xf32> -> vector<512x384xf32>
    %38 = vector.shape_cast %37 : vector<512x384xf32> to vector<16x32x384xf32>
    %39 = vector.extract_strided_slice %38 {offsets = [0, 0, 0], sizes = [16, 16, 128], strides = [1, 1, 1]} : vector<16x32x384xf32> to vector<16x16x128xf32>
    %c0_46 = arith.constant 0 : index
    %c0_47 = arith.constant 0 : index
    %c0_48 = arith.constant 0 : index
    %40 = vector.load %arg13[%c0_46, %c0_47, %c0_48] : memref<16x16x128xf32, #tpu.memory_space<vmem>>, vector<16x16x128xf32>
    tpu.vector_store %arg13[%c0_46, %c0_47, %c0_48], %39 {strides = array<i32>} : memref<16x16x128xf32, #tpu.memory_space<vmem>>, vector<16x16x128xf32>,
    %41 = vector.extract_strided_slice %38 {offsets = [0, 1, 128], sizes = [16, 16, 128], strides = [1, 1, 1]} : vector<16x32x384xf32> to vector<16x16x128xf32>
    %c0_49 = arith.constant 0 : index
    %c0_50 = arith.constant 0 : index
    %c0_51 = arith.constant 0 : index
    %42 = vector.load %arg13[%c0_49, %c0_50, %c0_51] : memref<16x16x128xf32, #tpu.memory_space<vmem>>, vector<16x16x128xf32>
    %43 = arith.addf %42, %41 : vector<16x16x128xf32>
    %c0_52 = arith.constant 0 : index
    %c0_53 = arith.constant 0 : index
    %c0_54 = arith.constant 0 : index
    %44 = vector.load %arg13[%c0_52, %c0_53, %c0_54] : memref<16x16x128xf32, #tpu.memory_space<vmem>>, vector<16x16x128xf32>
    tpu.vector_store %arg13[%c0_52, %c0_53, %c0_54], %43 {strides = array<i32>} : memref<16x16x128xf32, #tpu.memory_space<vmem>>, vector<16x16x128xf32>,
    %45 = vector.extract_strided_slice %38 {offsets = [0, 2, 256], sizes = [16, 16, 128], strides = [1, 1, 1]} : vector<16x32x384xf32> to vector<16x16x128xf32>
    %c0_55 = arith.constant 0 : index
    %c0_56 = arith.constant 0 : index
    %c0_57 = arith.constant 0 : index
    %46 = vector.load %arg13[%c0_55, %c0_56, %c0_57] : memref<16x16x128xf32, #tpu.memory_space<vmem>>, vector<16x16x128xf32>
    %47 = arith.addf %46, %45 : vector<16x16x128xf32>
    %c0_58 = arith.constant 0 : index
    %c0_59 = arith.constant 0 : index
    %c0_60 = arith.constant 0 : index
    %48 = vector.load %arg13[%c0_58, %c0_59, %c0_60] : memref<16x16x128xf32, #tpu.memory_space<vmem>>, vector<16x16x128xf32>
    tpu.vector_store %arg13[%c0_58, %c0_59, %c0_60], %47 {strides = array<i32>} : memref<16x16x128xf32, #tpu.memory_space<vmem>>, vector<16x16x128xf32>,
    %c1_61 = arith.constant 1 : index
    %c0_62 = arith.constant 0 : index
    %c0_63 = arith.constant 0 : index
    %49 = vector.load %arg11[%c1_61, %c0_62, %c0_63] : memref<18x32x8xbf16, #tpu.memory_space<vmem>>, vector<16x32x8xbf16>
    %50 = vector.shape_cast %49 : vector<16x32x8xbf16> to vector<512x8xbf16>
    %c1_64 = arith.constant 1 : index
    %c0_65 = arith.constant 0 : index
    %c0_66 = arith.constant 0 : index
    %51 = vector.load %arg6[%c1_64, %c0_65, %c0_66] : memref<3x8x384xbf16, #tpu.memory_space<vmem>>, vector<1x8x384xbf16>
    %52 = vector.shape_cast %51 : vector<1x8x384xbf16> to vector<8x384xbf16>
    %cst_67 = arith.constant dense<0.000000e+00> : vector<512x384xf32>
    %53 = tpu.matmul %50, %52, %cst_67 {dimension_numbers = #tpu.dot_dimension_numbers<[1], [0], [0], [1], [0, 0, 1, 1], [], []>} : vector<512x8xbf16>, vector<8x384xbf16>, vector<512x384xf32> -> vector<512x384xf32>
    %54 = vector.shape_cast %53 : vector<512x384xf32> to vector<16x32x384xf32>
    %55 = vector.extract_strided_slice %54 {offsets = [0, 0, 0], sizes = [16, 16, 128], strides = [1, 1, 1]} : vector<16x32x384xf32> to vector<16x16x128xf32>
    %c0_68 = arith.constant 0 : index
    %c0_69 = arith.constant 0 : index
    %c0_70 = arith.constant 0 : index
    %56 = vector.load %arg13[%c0_68, %c0_69, %c0_70] : memref<16x16x128xf32, #tpu.memory_space<vmem>>, vector<16x16x128xf32>
    %57 = arith.addf %56, %55 : vector<16x16x128xf32>
    %c0_71 = arith.constant 0 : index
    %c0_72 = arith.constant 0 : index
    %c0_73 = arith.constant 0 : index
    %58 = vector.load %arg13[%c0_71, %c0_72, %c0_73] : memref<16x16x128xf32, #tpu.memory_space<vmem>>, vector<16x16x128xf32>
    tpu.vector_store %arg13[%c0_71, %c0_72, %c0_73], %57 {strides = array<i32>} : memref<16x16x128xf32, #tpu.memory_space<vmem>>, vector<16x16x128xf32>,
    %59 = vector.extract_strided_slice %54 {offsets = [0, 1, 128], sizes = [16, 16, 128], strides = [1, 1, 1]} : vector<16x32x384xf32> to vector<16x16x128xf32>
    %c0_74 = arith.constant 0 : index
    %c0_75 = arith.constant 0 : index
    %c0_76 = arith.constant 0 : index
    %60 = vector.load %arg13[%c0_74, %c0_75, %c0_76] : memref<16x16x128xf32, #tpu.memory_space<vmem>>, vector<16x16x128xf32>
    %61 = arith.addf %60, %59 : vector<16x16x128xf32>
    %c0_77 = arith.constant 0 : index
    %c0_78 = arith.constant 0 : index
    %c0_79 = arith.constant 0 : index
    %62 = vector.load %arg13[%c0_77, %c0_78, %c0_79] : memref<16x16x128xf32, #tpu.memory_space<vmem>>, vector<16x16x128xf32>
    tpu.vector_store %arg13[%c0_77, %c0_78, %c0_79], %61 {strides = array<i32>} : memref<16x16x128xf32, #tpu.memory_space<vmem>>, vector<16x16x128xf32>,
    %63 = vector.extract_strided_slice %54 {offsets = [0, 2, 256], sizes = [16, 16, 128], strides = [1, 1, 1]} : vector<16x32x384xf32> to vector<16x16x128xf32>
    %c0_80 = arith.constant 0 : index
    %c0_81 = arith.constant 0 : index
    %c0_82 = arith.constant 0 : index
    %64 = vector.load %arg13[%c0_80, %c0_81, %c0_82] : memref<16x16x128xf32, #tpu.memory_space<vmem>>, vector<16x16x128xf32>
    %65 = arith.addf %64, %63 : vector<16x16x128xf32>
    %c0_83 = arith.constant 0 : index
    %c0_84 = arith.constant 0 : index
    %c0_85 = arith.constant 0 : index
    %66 = vector.load %arg13[%c0_83, %c0_84, %c0_85] : memref<16x16x128xf32, #tpu.memory_space<vmem>>, vector<16x16x128xf32>
    tpu.vector_store %arg13[%c0_83, %c0_84, %c0_85], %65 {strides = array<i32>} : memref<16x16x128xf32, #tpu.memory_space<vmem>>, vector<16x16x128xf32>,
    %c2 = arith.constant 2 : index
    %c0_86 = arith.constant 0 : index
    %c0_87 = arith.constant 0 : index
    %67 = vector.load %arg11[%c2, %c0_86, %c0_87] : memref<18x32x8xbf16, #tpu.memory_space<vmem>>, vector<16x32x8xbf16>
    %68 = vector.shape_cast %67 : vector<16x32x8xbf16> to vector<512x8xbf16>
    %c2_88 = arith.constant 2 : index
    %c0_89 = arith.constant 0 : index
    %c0_90 = arith.constant 0 : index
    %69 = vector.load %arg6[%c2_88, %c0_89, %c0_90] : memref<3x8x384xbf16, #tpu.memory_space<vmem>>, vector<1x8x384xbf16>
    %70 = vector.shape_cast %69 : vector<1x8x384xbf16> to vector<8x384xbf16>
    %cst_91 = arith.constant dense<0.000000e+00> : vector<512x384xf32>
    %71 = tpu.matmul %68, %70, %cst_91 {dimension_numbers = #tpu.dot_dimension_numbers<[1], [0], [0], [1], [0, 0, 1, 1], [], []>} : vector<512x8xbf16>, vector<8x384xbf16>, vector<512x384xf32> -> vector<512x384xf32>
    %72 = vector.shape_cast %71 : vector<512x384xf32> to vector<16x32x384xf32>
    %73 = vector.extract_strided_slice %72 {offsets = [0, 0, 0], sizes = [16, 16, 128], strides = [1, 1, 1]} : vector<16x32x384xf32> to vector<16x16x128xf32>
    %c0_92 = arith.constant 0 : index
    %c0_93 = arith.constant 0 : index
    %c0_94 = arith.constant 0 : index
    %74 = vector.load %arg13[%c0_92, %c0_93, %c0_94] : memref<16x16x128xf32, #tpu.memory_space<vmem>>, vector<16x16x128xf32>
    %75 = arith.addf %74, %73 : vector<16x16x128xf32>
    %c0_95 = arith.constant 0 : index
    %c0_96 = arith.constant 0 : index
    %c0_97 = arith.constant 0 : index
    %76 = vector.load %arg13[%c0_95, %c0_96, %c0_97] : memref<16x16x128xf32, #tpu.memory_space<vmem>>, vector<16x16x128xf32>
    tpu.vector_store %arg13[%c0_95, %c0_96, %c0_97], %75 {strides = array<i32>} : memref<16x16x128xf32, #tpu.memory_space<vmem>>, vector<16x16x128xf32>,
    %77 = vector.extract_strided_slice %72 {offsets = [0, 1, 128], sizes = [16, 16, 128], strides = [1, 1, 1]} : vector<16x32x384xf32> to vector<16x16x128xf32>
    %c0_98 = arith.constant 0 : index
    %c0_99 = arith.constant 0 : index
    %c0_100 = arith.constant 0 : index
    %78 = vector.load %arg13[%c0_98, %c0_99, %c0_100] : memref<16x16x128xf32, #tpu.memory_space<vmem>>, vector<16x16x128xf32>
    %79 = arith.addf %78, %77 : vector<16x16x128xf32>
    %c0_101 = arith.constant 0 : index
    %c0_102 = arith.constant 0 : index
    %c0_103 = arith.constant 0 : index
    %80 = vector.load %arg13[%c0_101, %c0_102, %c0_103] : memref<16x16x128xf32, #tpu.memory_space<vmem>>, vector<16x16x128xf32>
    tpu.vector_store %arg13[%c0_101, %c0_102, %c0_103], %79 {strides = array<i32>} : memref<16x16x128xf32, #tpu.memory_space<vmem>>, vector<16x16x128xf32>,
    %81 = vector.extract_strided_slice %72 {offsets = [0, 2, 256], sizes = [16, 16, 128], strides = [1, 1, 1]} : vector<16x32x384xf32> to vector<16x16x128xf32>
    %c0_104 = arith.constant 0 : index
    %c0_105 = arith.constant 0 : index
    %c0_106 = arith.constant 0 : index
    %82 = vector.load %arg13[%c0_104, %c0_105, %c0_106] : memref<16x16x128xf32, #tpu.memory_space<vmem>>, vector<16x16x128xf32>
    %83 = arith.addf %82, %81 : vector<16x16x128xf32>
    %c0_107 = arith.constant 0 : index
    %c0_108 = arith.constant 0 : index
    %c0_109 = arith.constant 0 : index
    %84 = vector.load %arg13[%c0_107, %c0_108, %c0_109] : memref<16x16x128xf32, #tpu.memory_space<vmem>>, vector<16x16x128xf32>
    tpu.vector_store %arg13[%c0_107, %c0_108, %c0_109], %83 {strides = array<i32>} : memref<16x16x128xf32, #tpu.memory_space<vmem>>, vector<16x16x128xf32>,
    %c0_110 = arith.constant 0 : index
    %c0_111 = arith.constant 0 : index
    %85 = vector.load %arg12[%c0_110, %c0_111] : memref<18x128xf32, #tpu.memory_space<vmem>>, vector<16x16xf32>
    %c0_112 = arith.constant 0 : index
    %c1_113 = arith.constant 1 : index
    %86 = vector.load %arg12[%c0_112, %c1_113] : memref<18x128xf32, #tpu.memory_space<vmem>>, vector<16x16xf32>
    %87 = arith.addf %85, %86 : vector<16x16xf32>
    %c0_114 = arith.constant 0 : index
    %c2_115 = arith.constant 2 : index
    %88 = vector.load %arg12[%c0_114, %c2_115] : memref<18x128xf32, #tpu.memory_space<vmem>>, vector<16x16xf32>
    %89 = arith.addf %87, %88 : vector<16x16xf32>
    %c1_116 = arith.constant 1 : index
    %c0_117 = arith.constant 0 : index
    %90 = vector.load %arg12[%c1_116, %c0_117] : memref<18x128xf32, #tpu.memory_space<vmem>>, vector<16x16xf32>
    %91 = arith.addf %89, %90 : vector<16x16xf32>
    %c1_118 = arith.constant 1 : index
    %c1_119 = arith.constant 1 : index
    %92 = vector.load %arg12[%c1_118, %c1_119] : memref<18x128xf32, #tpu.memory_space<vmem>>, vector<16x16xf32>
    %93 = arith.addf %91, %92 : vector<16x16xf32>
    %c1_120 = arith.constant 1 : index
    %c2_121 = arith.constant 2 : index
    %94 = vector.load %arg12[%c1_120, %c2_121] : memref<18x128xf32, #tpu.memory_space<vmem>>, vector<16x16xf32>
    %95 = arith.addf %93, %94 : vector<16x16xf32>
    %c2_122 = arith.constant 2 : index
    %c0_123 = arith.constant 0 : index
    %96 = vector.load %arg12[%c2_122, %c0_123] : memref<18x128xf32, #tpu.memory_space<vmem>>, vector<16x16xf32>
    %97 = arith.addf %95, %96 : vector<16x16xf32>
    %c2_124 = arith.constant 2 : index
    %c1_125 = arith.constant 1 : index
    %98 = vector.load %arg12[%c2_124, %c1_125] : memref<18x128xf32, #tpu.memory_space<vmem>>, vector<16x16xf32>
    %99 = arith.addf %97, %98 : vector<16x16xf32>
    %c2_126 = arith.constant 2 : index
    %c2_127 = arith.constant 2 : index
    %100 = vector.load %arg12[%c2_126, %c2_127] : memref<18x128xf32, #tpu.memory_space<vmem>>, vector<16x16xf32>
    %101 = arith.addf %99, %100 : vector<16x16xf32>
    %cst_128 = arith.constant 0.000000e+00 : f32
    %102 = vector.broadcast %cst_128 : f32 to vector<16x16xf32>
    %103 = arith.cmpf one, %101, %102 : vector<16x16xf32>
    %cst_129 = arith.constant 1.000000e+00 : f32
    %104 = vector.broadcast %cst_129 : f32 to vector<16x16xf32>
    %105 = arith.select %103, %101, %104 : vector<16x16xi1>, vector<16x16xf32>
    %cst_130 = arith.constant 1.000000e+00 : f32
    %106 = vector.broadcast %cst_130 : f32 to vector<16x16xf32>
    %107 = arith.divf %106, %105 : vector<16x16xf32>
    %cst_131 = arith.constant 0.000000e+00 : f32
    %108 = vector.broadcast %cst_131 : f32 to vector<16x16xf32>
    %109 = arith.select %103, %107, %108 : vector<16x16xi1>, vector<16x16xf32>
    %c0_132 = arith.constant 0 : index
    %c0_133 = arith.constant 0 : index
    %c0_134 = arith.constant 0 : index
    %110 = vector.load %arg13[%c0_132, %c0_133, %c0_134] : memref<16x16x128xf32, #tpu.memory_space<vmem>>, vector<16x16x128xf32>
    %c0_135 = arith.constant 0 : index
    %c0_136 = arith.constant 0 : index
    %111 = vector.load %arg7[%c0_135, %c0_136] : memref<1x128xf32, #tpu.memory_space<vmem>>, vector<1x128xf32>
    %112 = vector.shape_cast %111 : vector<1x128xf32> to vector<128xf32>
    %113 = vector.shape_cast %112 : vector<128xf32> to vector<1x1x128xf32>
    %114 = vector.broadcast %113 : vector<1x1x128xf32> to vector<16x16x128xf32>
    %115 = arith.addf %110, %114 : vector<16x16x128xf32>
    %116 = vector.shape_cast %109 : vector<16x16xf32> to vector<16x16x1xf32>
    %117 = vector.broadcast %116 : vector<16x16x1xf32> to vector<16x16x128xf32>
    %118 = arith.mulf %115, %117 : vector<16x16x128xf32>
    %119 = vector.extract_strided_slice %118 {offsets = [0, 0, 0], sizes = [16, 16, 8], strides = [1, 1, 1]} : vector<16x16x128xf32> to vector<16x16x8xf32>
    %cst_137 = arith.constant dense<0.000000e+00> : vector<8xf32>
    %120 = vector.multi_reduction <add>, %119, %cst_137 [0, 1] : vector<16x16x8xf32> to vector<8xf32>
    %121 = vector.shape_cast %120 : vector<8xf32> to vector<1x8xf32>
    %c0_138 = arith.constant 0 : index
    %c0_139 = arith.constant 0 : index
    %c0_140 = arith.constant 0 : index
    %c0_141 = arith.constant 0 : index
    %122 = vector.load %arg10[%c0_138, %c0_139, %c0_140, %c0_141] : memref<1x1x2x8xf32, #tpu.memory_space<vmem>>, vector<1x1x1x8xf32>
    %123 = vector.shape_cast %122 : vector<1x1x1x8xf32> to vector<1x8xf32>
    %124 = vector.shape_cast %121 : vector<1x8xf32> to vector<1x1x1x8xf32>
    tpu.vector_store %arg10[%c0_138, %c0_139, %c0_140, %c0_141], %124 {strides = array<i32>} : memref<1x1x2x8xf32, #tpu.memory_space<vmem>>, vector<1x1x1x8xf32>,
    %125 = arith.mulf %119, %119 : vector<16x16x8xf32>
    %cst_142 = arith.constant dense<0.000000e+00> : vector<8xf32>
    %126 = vector.multi_reduction <add>, %125, %cst_142 [0, 1] : vector<16x16x8xf32> to vector<8xf32>
    %127 = vector.shape_cast %126 : vector<8xf32> to vector<1x8xf32>
    %c0_143 = arith.constant 0 : index
    %c0_144 = arith.constant 0 : index
    %c1_145 = arith.constant 1 : index
    %c0_146 = arith.constant 0 : index
    %128 = vector.load %arg10[%c0_143, %c0_144, %c1_145, %c0_146] : memref<1x1x2x8xf32, #tpu.memory_space<vmem>>, vector<1x1x1x8xf32>
    %129 = vector.shape_cast %128 : vector<1x1x1x8xf32> to vector<1x8xf32>
    %130 = vector.shape_cast %127 : vector<1x8xf32> to vector<1x1x1x8xf32>
    tpu.vector_store %arg10[%c0_143, %c0_144, %c1_145, %c0_146], %130 {strides = array<i32>} : memref<1x1x2x8xf32, #tpu.memory_space<vmem>>, vector<1x1x1x8xf32>,
    %131 = arith.truncf %119 : vector<16x16x8xf32> to vector<16x16x8xbf16>
    %c0_147 = arith.constant 0 : index
    %c0_148 = arith.constant 0 : index
    %c0_149 = arith.constant 0 : index
    %c0_150 = arith.constant 0 : index
    %132 = vector.load %arg8[%c0_147, %c0_148, %c0_149, %c0_150] : memref<1x16x16x8xbf16, #tpu.memory_space<vmem>>, vector<1x16x16x8xbf16>
    %133 = vector.shape_cast %132 : vector<1x16x16x8xbf16> to vector<16x16x8xbf16>
    %134 = vector.shape_cast %131 : vector<16x16x8xbf16> to vector<1x16x16x8xbf16>
    tpu.vector_store %arg8[%c0_147, %c0_148, %c0_149, %c0_150], %134 {strides = array<i32>} : memref<1x16x16x8xbf16, #tpu.memory_space<vmem>>, vector<1x16x16x8xbf16>,
    %135 = arith.extui %103 : vector<16x16xi1> to vector<16x16xi32>
    %136 = arith.sitofp %135 : vector<16x16xi32> to vector<16x16xf32>
    %c0_151 = arith.constant 0 : index
    %c0_152 = arith.constant 0 : index
    %c0_153 = arith.constant 0 : index
    %137 = vector.load %arg9[%c0_151, %c0_152, %c0_153] : memref<1x16x16xf32, #tpu.memory_space<vmem>>, vector<1x16x16xf32>
    %138 = vector.shape_cast %137 : vector<1x16x16xf32> to vector<16x16xf32>
    %139 = vector.shape_cast %136 : vector<16x16xf32> to vector<1x16x16xf32>
    tpu.vector_store %arg9[%c0_151, %c0_152, %c0_153], %139 {strides = array<i32>} : memref<1x16x16xf32, #tpu.memory_space<vmem>>, vector<1x16x16xf32>,
    return
  }
  func.func @transform_0(%arg0: i32, %arg1: i32) -> (i32, i32, i32, i32) {
    %c0_i32 = arith.constant 0 : i32
    %c0_i32_0 = arith.constant 0 : i32
    %c0_i32_1 = arith.constant 0 : i32
    return %arg0, %arg1, %c0_i32, %c0_i32_0 : i32, i32, i32, i32
  }
  func.func @transform_1(%arg0: i32, %arg1: i32) -> (i32, i32, i32, i32) {
    %c16_i32 = arith.constant 16 : i32
    %0 = arith.muli %arg1, %c16_i32 : i32
    %c1_i32 = arith.constant 1 : i32
    %1 = arith.subi %0, %c1_i32 : i32
    %c0_i32 = arith.constant 0 : i32
    %2 = arith.maxsi %1, %c0_i32 : i32
    %c0_i32_0 = arith.constant 0 : i32
    %c0_i32_1 = arith.constant 0 : i32
    %c0_i32_2 = arith.constant 0 : i32
    return %arg0, %2, %c0_i32_0, %c0_i32_1 : i32, i32, i32, i32
  }
  func.func @transform_2(%arg0: i32, %arg1: i32) -> (i32, i32, i32, i32) {
    %c16_i32 = arith.constant 16 : i32
    %0 = arith.muli %arg1, %c16_i32 : i32
    %c16_i32_0 = arith.constant 16 : i32
    %1 = arith.addi %0, %c16_i32_0 : i32
    %c15_i32 = arith.constant 15 : i32
    %2 = arith.minsi %1, %c15_i32 : i32
    %c0_i32 = arith.constant 0 : i32
    %c0_i32_1 = arith.constant 0 : i32
    %c0_i32_2 = arith.constant 0 : i32
    return %arg0, %2, %c0_i32, %c0_i32_1 : i32, i32, i32, i32
  }
  func.func @transform_3(%arg0: i32, %arg1: i32) -> (i32, i32, i32) {
    %c0_i32 = arith.constant 0 : i32
    %c0_i32_0 = arith.constant 0 : i32
    %c0_i32_1 = arith.constant 0 : i32
    return %arg0, %c0_i32, %c0_i32_0 : i32, i32, i32
  }
  func.func @transform_4(%arg0: i32, %arg1: i32) -> (i32, i32, i32) {
    %c0_i32 = arith.constant 0 : i32
    %c0_i32_0 = arith.constant 0 : i32
    %c0_i32_1 = arith.constant 0 : i32
    %c0_i32_2 = arith.constant 0 : i32
    return %c0_i32, %c0_i32_0, %c0_i32_1 : i32, i32, i32
  }
  func.func @transform_5(%arg0: i32, %arg1: i32) -> (i32, i32) {
    %c0_i32 = arith.constant 0 : i32
    %c0_i32_0 = arith.constant 0 : i32
    %c0_i32_1 = arith.constant 0 : i32
    return %c0_i32, %c0_i32_0 : i32, i32
  }
  func.func @transform_6(%arg0: i32, %arg1: i32) -> (i32, i32, i32, i32) {
    %c0_i32 = arith.constant 0 : i32
    %c0_i32_0 = arith.constant 0 : i32
    %c0_i32_1 = arith.constant 0 : i32
    return %arg0, %arg1, %c0_i32, %c0_i32_0 : i32, i32, i32, i32
  }
  func.func @transform_7(%arg0: i32, %arg1: i32) -> (i32, i32, i32) {
    %c0_i32 = arith.constant 0 : i32
    %c0_i32_0 = arith.constant 0 : i32
    return %arg0, %arg1, %c0_i32 : i32, i32, i32
  }
  func.func @transform_8(%arg0: i32, %arg1: i32) -> (i32, i32, i32, i32) {
    %c0_i32 = arith.constant 0 : i32
    %c0_i32_0 = arith.constant 0 : i32
    %c0_i32_1 = arith.constant 0 : i32
    return %arg0, %arg1, %c0_i32, %c0_i32_0 : i32, i32, i32, i32
  }
}

module attributes {stable_mosaic.version = 11 : i64} {
  func.func @_bn_act_kernel(%arg0: i32, %arg1: i32, %arg2: memref<1x16x128xbf16, #tpu.memory_space<vmem>>, %arg3: memref<1x128xf32, #tpu.memory_space<vmem>>, %arg4: memref<1x128xf32, #tpu.memory_space<vmem>>, %arg5: memref<1x16x128xf32, #tpu.memory_space<vmem>>) attributes {dimension_semantics = [#tpu.dimension_semantics<parallel>, #tpu.dimension_semantics<parallel>], iteration_bounds = array<i64: 2, 1>, scalar_prefetch = 0 : i64, scratch_operands = 0 : i64, tpu.core_type = #tpu.core_type<tc>, window_params = [{transform_indices = @transform_0, window_bounds = array<i64: 1, 16, 128>}, {pipeline_mode = #tpu.pipeline_mode<synchronous>, transform_indices = @transform_1, window_bounds = array<i64: 1, 128>}, {pipeline_mode = #tpu.pipeline_mode<synchronous>, transform_indices = @transform_2, window_bounds = array<i64: 1, 128>}, {transform_indices = @transform_3, window_bounds = array<i64: 1, 16, 128>}]} {
    %c0 = arith.constant 0 : index
    %c0_0 = arith.constant 0 : index
    %c0_1 = arith.constant 0 : index
    %0 = vector.load %arg2[%c0, %c0_0, %c0_1] : memref<1x16x128xbf16, #tpu.memory_space<vmem>>, vector<1x16x128xbf16>
    %1 = arith.extf %0 : vector<1x16x128xbf16> to vector<1x16x128xf32>
    %c0_2 = arith.constant 0 : index
    %c0_3 = arith.constant 0 : index
    %2 = vector.load %arg3[%c0_2, %c0_3] : memref<1x128xf32, #tpu.memory_space<vmem>>, vector<1x128xf32>
    %3 = vector.shape_cast %2 : vector<1x128xf32> to vector<1x1x128xf32>
    %4 = vector.broadcast %3 : vector<1x1x128xf32> to vector<1x16x128xf32>
    %5 = arith.mulf %1, %4 : vector<1x16x128xf32>
    %c0_4 = arith.constant 0 : index
    %c0_5 = arith.constant 0 : index
    %6 = vector.load %arg4[%c0_4, %c0_5] : memref<1x128xf32, #tpu.memory_space<vmem>>, vector<1x128xf32>
    %7 = vector.shape_cast %6 : vector<1x128xf32> to vector<1x1x128xf32>
    %8 = vector.broadcast %7 : vector<1x1x128xf32> to vector<1x16x128xf32>
    %9 = arith.addf %5, %8 : vector<1x16x128xf32>
    %cst = arith.constant 0.000000e+00 : f32
    %10 = vector.broadcast %cst : f32 to vector<1x16x128xf32>
    %11 = arith.cmpf ogt, %9, %10 : vector<1x16x128xf32>
    %cst_6 = arith.constant 2.000000e-01 : f32
    %12 = vector.broadcast %cst_6 : f32 to vector<1x16x128xf32>
    %13 = arith.mulf %12, %9 : vector<1x16x128xf32>
    %14 = arith.select %11, %9, %13 : vector<1x16x128xi1>, vector<1x16x128xf32>
    %c0_7 = arith.constant 0 : index
    %c0_8 = arith.constant 0 : index
    %c0_9 = arith.constant 0 : index
    %15 = vector.load %arg5[%c0_7, %c0_8, %c0_9] : memref<1x16x128xf32, #tpu.memory_space<vmem>>, vector<1x16x128xf32>
    tpu.vector_store %arg5[%c0_7, %c0_8, %c0_9], %14 {strides = array<i32>} : memref<1x16x128xf32, #tpu.memory_space<vmem>>, vector<1x16x128xf32>,
    return
  }
  func.func @transform_0(%arg0: i32, %arg1: i32) -> (i32, i32, i32) {
    %c0_i32 = arith.constant 0 : i32
    %c0_i32_0 = arith.constant 0 : i32
    return %arg0, %arg1, %c0_i32 : i32, i32, i32
  }
  func.func @transform_1(%arg0: i32, %arg1: i32) -> (i32, i32) {
    %c0_i32 = arith.constant 0 : i32
    %c0_i32_0 = arith.constant 0 : i32
    %c0_i32_1 = arith.constant 0 : i32
    return %c0_i32, %c0_i32_0 : i32, i32
  }
  func.func @transform_2(%arg0: i32, %arg1: i32) -> (i32, i32) {
    %c0_i32 = arith.constant 0 : i32
    %c0_i32_0 = arith.constant 0 : i32
    %c0_i32_1 = arith.constant 0 : i32
    return %c0_i32, %c0_i32_0 : i32, i32
  }
  func.func @transform_3(%arg0: i32, %arg1: i32) -> (i32, i32, i32) {
    %c0_i32 = arith.constant 0 : i32
    %c0_i32_0 = arith.constant 0 : i32
    return %arg0, %arg1, %c0_i32 : i32, i32, i32
  }
}

</mosaic_0001>

<llo_original>
// kernel: tile.13
$region0: #{tile.13}
  #allocation0 [shape = 's32[1]{0}', space=sflag, size = 0x4, scoped, tag = 'scoped memory for tile.13']
  %s0 = inlined_call_operand.vmem [shape: f32[8], index: 0, kind: input, shape index: {}]
  %s1 = inlined_call_operand.vmem [shape: f32[16,8], index: 1, kind: output, shape index: {}]
  // Predicated region
  $region2: #{tile.13} parent=0 // pred_check
    _
  $region3: #{tile.13} parent=0 // pred_check_branch
    %3 = sbr.rel (0) target = $region5
  $region4: #{tile.13} parent=0 // pred_region
    _
  $region5: #{tile.13} parent=0 // pred_fallthru
    _
  %v4 = vld [vmem:[%s0] ss:$0 sm:$0xff]
  %5 = vst [vmem:[%s1] sm:$0xff] %v4
  %s6 = scalar_lea.vmem %s1, 8
  %7 = vst [vmem:[%s6] sm:$0xff] %v4

// kernel: tile.14
$region0: #{tile.14}
  %s0 = inlined_call_operand.vmem [shape: f32[16,8], index: 0, kind: input, shape index: {}]
  %s1 = inlined_call_operand.vmem [shape: f32[1,128], index: 1, kind: output, shape index: {}]
  $region1: #{tile.14} parent=0
    #allocation0 [shape = 'u8[4096]{0}', space=vmem, size = 0x1000, scoped, tag = 'scoped mem for output reshape']
    %v2 = vld [vmem:[%s0] sm:$0x1]
    %vm3 = vcmask 64512
    %4 = vst.msk [vmem:[#allocation0] sm:$0x1] %vm3, %v2
    %s5 = scalar_lea.vmem %s0, 15
    %v6 = vld [vmem:[%s5] sm:$0x1]
    %7 = vrot.lane.b32.xlu0 %v6, 120
    %v8 = vpop.permute.xlu0 %7
    %vm9 = vcmask 1048512
    %10 = vst.msk [vmem:[#allocation0] sm:$0x1] %vm9, %v8
    %s11 = scalar_lea.vmem %s0, 14
    %v12 = vld [vmem:[%s11] sm:$0x1]
    %13 = vrot.lane.b32.xlu0 %v12, 112
    %v14 = vpop.permute.xlu0 %13
    %vm15 = vcmask 982912
    %16 = vst.msk [vmem:[#allocation0] sm:$0x1] %vm15, %v14
    %s17 = scalar_lea.vmem %s0, 13
    %v18 = vld [vmem:[%s17] sm:$0x1]
    %19 = vrot.lane.b32.xlu0 %v18, 104
    %v20 = vpop.permute.xlu0 %19
    %vm21 = vcmask 917312
    %22 = vst.msk [vmem:[#allocation0] sm:$0x1] %vm21, %v20
    %s23 = scalar_lea.vmem %s0, 12
    %v24 = vld [vmem:[%s23] sm:$0x1]
    %25 = vrot.lane.b32.xlu0 %v24, 96
    %v26 = vpop.permute.xlu0 %25
    %vm27 = vcmask 851712
    %28 = vst.msk [vmem:[#allocation0] sm:$0x1] %vm27, %v26
    %s29 = scalar_lea.vmem %s0, 11
    %v30 = vld [vmem:[%s29] sm:$0x1]
    %31 = vrot.lane.b32.xlu0 %v30, 88
    %v32 = vpop.permute.xlu0 %31
    %vm33 = vcmask 786112
    %34 = vst.msk [vmem:[#allocation0] sm:$0x1] %vm33, %v32
    %s35 = scalar_lea.vmem %s0, 10
    %v36 = vld [vmem:[%s35] sm:$0x1]
    %37 = vrot.lane.b32.xlu0 %v36, 80
    %v38 = vpop.permute.xlu0 %37
    %vm39 = vcmask 720512
    %40 = vst.msk [vmem:[#allocation0] sm:$0x1] %vm39, %v38
    %s41 = scalar_lea.vmem %s0, 9
    %v42 = vld [vmem:[%s41] sm:$0x1]
    %43 = vrot.lane.b32.xlu0 %v42, 72
    %v44 = vpop.permute.xlu0 %43
    %vm45 = vcmask 654912
    %46 = vst.msk [vmem:[#allocation0] sm:$0x1] %vm45, %v44
    %s47 = scalar_lea.vmem %s0, 8
    %v48 = vld [vmem:[%s47] sm:$0x1]
    %49 = vrot.lane.b32.xlu0 %v48, 64
    %v50 = vpop.permute.xlu0 %49
    %vm51 = vcmask 589312
    %52 = vst.msk [vmem:[#allocation0] sm:$0x1] %vm51, %v50
    %s53 = scalar_lea.vmem %s0, 7
    %v54 = vld [vmem:[%s53] sm:$0x1]
    %55 = vrot.lane.b32.xlu0 %v54, 56
    %v56 = vpop.permute.xlu0 %55
    %vm57 = vcmask 523712
    %58 = vst.msk [vmem:[#allocation0] sm:$0x1] %vm57, %v56
    %s59 = scalar_lea.vmem %s0, 6
    %v60 = vld [vmem:[%s59] sm:$0x1]
    %61 = vrot.lane.b32.xlu0 %v60, 48
    %v62 = vpop.permute.xlu0 %61
    %vm63 = vcmask 458112
    %64 = vst.msk [vmem:[#allocation0] sm:$0x1] %vm63, %v62
    %s65 = scalar_lea.vmem %s0, 5
    %v66 = vld [vmem:[%s65] sm:$0x1]
    %67 = vrot.lane.b32.xlu0 %v66, 40
    %v68 = vpop.permute.xlu0 %67
    %vm69 = vcmask 392512
    %70 = vst.msk [vmem:[#allocation0] sm:$0x1] %vm69, %v68
    %s71 = scalar_lea.vmem %s0, 4
    %v72 = vld [vmem:[%s71] sm:$0x1]
    %73 = vrot.lane.b32.xlu0 %v72, 32
    %v74 = vpop.permute.xlu0 %73
    %vm75 = vcmask 326912
    %76 = vst.msk [vmem:[#allocation0] sm:$0x1] %vm75, %v74
    %s77 = scalar_lea.vmem %s0, 3
    %v78 = vld [vmem:[%s77] sm:$0x1]
    %79 = vrot.lane.b32.xlu0 %v78, 24
    %v80 = vpop.permute.xlu0 %79
    %vm81 = vcmask 261312
    %82 = vst.msk [vmem:[#allocation0] sm:$0x1] %vm81, %v80
    %s83 = scalar_lea.vmem %s0, 2
    %v84 = vld [vmem:[%s83] sm:$0x1]
    %85 = vrot.lane.b32.xlu0 %v84, 16
    %v86 = vpop.permute.xlu0 %85
    %vm87 = vcmask 195712
    %88 = vst.msk [vmem:[#allocation0] sm:$0x1] %vm87, %v86
    %s89 = scalar_lea.vmem %s0, 1
    %v90 = vld [vmem:[%s89] sm:$0x1]
    %91 = vrot.lane.b32.xlu0 %v90, 8
    %v92 = vpop.permute.xlu0 %91
    %vm93 = vcmask 130112
    %94 = vst.msk [vmem:[#allocation0] sm:$0x1] %vm93, %v92
    %s96 = ssub.s32 2, 1
    %v97 = vld [vmem:[#allocation0] sm:%s96]
    %s99 = ssub.s32 2, 1
    %100 = vst [vmem:[%s1] sm:%s99] %v97

// kernel: up_module_forward.3
$region0: #{up_module_forward.3}
  #allocation0 [shape = 'u32[]', space=smem, size = 0x4, offset = 0x4, fixed_abs, tag = 'smem constant byte address 0x4 - core index']
  #allocation1 [shape = 'u32[72,128]{1,0:T(1,128)}', space=vmem, size = 0x9000, scoped, tag = 'internal scratch']
  %s0 = inlined_call_operand.vmem [shape: bf16[2,16,128], index: 0, kind: input, shape index: {}]
  %s1 = inlined_call_operand.vmem [shape: f32[1,128], index: 1, kind: input, shape index: {}]
  %s2 = inlined_call_operand.vmem [shape: f32[1,128], index: 2, kind: input, shape index: {}]
  %s3 = inlined_call_operand.vmem [shape: f32[2,16,128], index: 3, kind: output, shape index: {}]
  %s4 = sld [smem:[#allocation0]]
  $region45: #{up_module_forward.3} parent=0
    _
  %s6 = ssub.s32 1, %s4
  %s7 = scalar_select 0, %s6, %s4
  loop: start=0, step=1, limit=4
  $region2: #{up_module_forward.3} parent=0 // loop_pre_header
    _
  $region3: #{up_module_forward.3} parent=0 // loop_header
    %s9 = sphi 0, %s13
    %p10 = scmp.ge.s32.totalorder %s9, 4
    %s16 = sphi 0, %s28
    %s17 = sphi 0, %s24
    %s18 = sphi 0, %s16
    %s19 = sphi 0, %s17
    %s20 = sphi 0, %s18
    %s21 = sphi 0, %s19
    %s33 = sphi 0, %s35
    %s36 = sphi 0, %s33
    %s37 = sphi 0, %s36
    %s53 = sphi 0, %s37
    %s57 = sphi 0, %s57
    %s59 = sphi 0, %s57
    %s60 = sphi 0, %s59
    %s74 = sphi 0, %s60
    %s78 = sphi 0, %s78
    %s80 = sphi 0, %s78
    %s81 = sphi 0, %s80
    %s95 = sphi 0, %s81
    %s103 = sphi 0, %s105
    %s106 = sphi 0, %s103
    %s107 = sphi 0, %s106
    %s123 = sphi 0, %s107
  $region4: #{up_module_forward.3} parent=0 // loop_header_branch
    %12 = sbr.rel (%p10) target = $region8
  $region5: #{up_module_forward.3} parent=0 // loop_body
    %s14 = ssub.s32 %s9, 1
    %s15 = ssub.s32 %s9, 2
    %s22 = sadd.s32 1, %s17
    %p23 = scmp.ge.s32.totalorder %s22, 1
    %s24 = scalar_select %p23, 0, %s22
    %s25 = sadd.s32 1, %s16
    %s26 = scalar_select %p23, %s25, %s16
    %p27 = scmp.ge.s32.totalorder %s26, 2
    %s28 = scalar_select %p27, 0, %s26
    %s29 = ssub.s32 %s16, %s28
    %s30 = ssub.s32 %s17, %s24
    %s31 = sor.u32 %s29, %s30
    %p32 = scmp.eq.s32.totalorder %s31, 0
    %s34 = sadd.s32 %s33, 1
    %s35 = scalar_select %p32, %s33, %s34
    %p38 = pneg %p32
    %p39 = scmp.eq.s32.totalorder %s9, 1
    %p40 = por %p38, %p39
    %p41 = scmp.ne.s32.totalorder %s33, %s36
    %p42 = scmp.eq.s32.totalorder %s9, 0
    %p43 = por %p41, %p42
    %p44 = scmp.ne.s32.totalorder %s33, %s36
    %p45 = scmp.eq.s32.totalorder %s14, 1
    %p46 = por %p44, %p45
    %p47 = scmp.ne.s32.totalorder %s36, %s37
    %p48 = scmp.eq.s32.totalorder %s14, 0
    %p49 = por %p47, %p48
    %p50 = scmp.ne.s32.totalorder %s36, %s37
    %p51 = scmp.eq.s32.totalorder %s15, 1
    %p52 = por %p50, %p51
    %p54 = scmp.ne.s32.totalorder %s37, %s53
    %p55 = scmp.eq.s32.totalorder %s15, 0
    %p56 = por %p54, %p55
    %s58 = sadd.s32 %s57, 1
    %p61 = scmp.eq.s32.totalorder %s9, 1
    %p62 = scmp.ne.s32.totalorder %s57, %s59
    %p63 = scmp.eq.s32.totalorder %s9, 0
    %p64 = por %p62, %p63
    %p65 = scmp.ne.s32.totalorder %s57, %s59
    %p66 = scmp.eq.s32.totalorder %s14, 1
    %p67 = por %p65, %p66
    %p68 = scmp.ne.s32.totalorder %s59, %s60
    %p69 = scmp.eq.s32.totalorder %s14, 0
    %p70 = por %p68, %p69
    %p71 = scmp.ne.s32.totalorder %s59, %s60
    %p72 = scmp.eq.s32.totalorder %s15, 1
    %p73 = por %p71, %p72
    %p75 = scmp.ne.s32.totalorder %s60, %s74
    %p76 = scmp.eq.s32.totalorder %s15, 0
    %p77 = por %p75, %p76
    %s79 = sadd.s32 %s78, 1
    %p82 = scmp.eq.s32.totalorder %s9, 1
    %p83 = scmp.ne.s32.totalorder %s78, %s80
    %p84 = scmp.eq.s32.totalorder %s9, 0
    %p85 = por %p83, %p84
    %p86 = scmp.ne.s32.totalorder %s78, %s80
    %p87 = scmp.eq.s32.totalorder %s14, 1
    %p88 = por %p86, %p87
    %p89 = scmp.ne.s32.totalorder %s80, %s81
    %p90 = scmp.eq.s32.totalorder %s14, 0
    %p91 = por %p89, %p90
    %p92 = scmp.ne.s32.totalorder %s80, %s81
    %p93 = scmp.eq.s32.totalorder %s15, 1
    %p94 = por %p92, %p93
    %p96 = scmp.ne.s32.totalorder %s81, %s95
    %p97 = scmp.eq.s32.totalorder %s15, 0
    %p98 = por %p96, %p97
    %s99 = ssub.s32 %s16, %s28
    %s100 = ssub.s32 %s17, %s24
    %s101 = sor.u32 %s99, %s100
    %p102 = scmp.eq.s32.totalorder %s101, 0
    %s104 = sadd.s32 %s103, 1
    %s105 = scalar_select %p102, %s103, %s104
    %p108 = pneg %p102
    %p109 = scmp.eq.s32.totalorder %s9, 1
    %p110 = por %p108, %p109
    %p111 = scmp.ne.s32.totalorder %s103, %s106
    %p112 = scmp.eq.s32.totalorder %s9, 0
    %p113 = por %p111, %p112
    %p114 = scmp.ne.s32.totalorder %s103, %s106
    %p115 = scmp.eq.s32.totalorder %s14, 1
    %p116 = por %p114, %p115
    %p117 = scmp.ne.s32.totalorder %s106, %s107
    %p118 = scmp.eq.s32.totalorder %s14, 0
    %p119 = por %p117, %p118
    %p120 = scmp.ne.s32.totalorder %s106, %s107
    %p121 = scmp.eq.s32.totalorder %s15, 1
    %p122 = por %p120, %p121
    %p124 = scmp.ne.s32.totalorder %s107, %s123
    %p125 = scmp.eq.s32.totalorder %s15, 0
    %p126 = por %p124, %p125
    %p127 = scmp.le.s32.totalorder 1, %s9
    %p128 = scmp.lt.s32.totalorder %s9, 3
    %p129 = pnand %p127, %p128
    %p130 = pneg %p129
    // Predicated region
    $region9: #{up_module_forward.3} parent=5 // pred_check
      _
    $region10: #{up_module_forward.3} parent=5 // pred_check_branch
      %132 = sbr.rel (%p129) target = $region12
    $region11: #{up_module_forward.3} parent=5 // pred_region
      %s133 = ssub.s32 %s9, 1
      // Predicated region
      $region13: #{up_module_forward.3} parent=11 // pred_check
        %p134 = pneg %p70
      $region14: #{up_module_forward.3} parent=11 // pred_check_branch
        %136 = sbr.rel (%p134) target = $region16
      $region15: #{up_module_forward.3} parent=11 // pred_region
        _
      $region16: #{up_module_forward.3} parent=11 // pred_fallthru
        _
      // Predicated region
      $region17: #{up_module_forward.3} parent=11 // pred_check
        %p137 = pneg %p91
      $region18: #{up_module_forward.3} parent=11 // pred_check_branch
        %139 = sbr.rel (%p137) target = $region20
      $region19: #{up_module_forward.3} parent=11 // pred_region
        _
      $region20: #{up_module_forward.3} parent=11 // pred_fallthru
        _
    $region12: #{up_module_forward.3} parent=5 // pred_fallthru
      _
    %p140 = scmp.lt.s32.totalorder %s9, 2
    // Predicated region
    $region21: #{up_module_forward.3} parent=5 // pred_check
      %p141 = pneg %p140
    $region22: #{up_module_forward.3} parent=5 // pred_check_branch
      %143 = sbr.rel (%p141) target = $region24
    $region23: #{up_module_forward.3} parent=5 // pred_region
      // Predicated region
      $region25: #{up_module_forward.3} parent=23 // pred_check
        %p144 = pneg %p43
      $region26: #{up_module_forward.3} parent=23 // pred_check_branch
        %146 = sbr.rel (%p144) target = $region28
      $region27: #{up_module_forward.3} parent=23 // pred_region
        %s147 = smul.u32 2, %s17
        %p148 = scmp.lt.s32.totalorder %s16, 1
        %s149 = scalar_select %p148, %s16, 1
        %p150 = scmp.lt.s32.totalorder %s147, 1
        %s151 = scalar_select %p150, %s147, 1
        %s152 = smul.addr %s149, 2
        %s153 = sadd.s32 %s151, %s152
        %s154 = smul.addr %s153, 4
        %s155 = scalar_lea.vmem %s0, %s154
        %s156 = smul.u32 2, %s17
      $region28: #{up_module_forward.3} parent=23 // pred_fallthru
        _
    $region24: #{up_module_forward.3} parent=5 // pred_fallthru
      _
    %p157 = scmp.le.s32.totalorder 1, %s9
    %p158 = scmp.lt.s32.totalorder %s9, 3
    %p159 = pnand %p157, %p158
    %p160 = pneg %p159
    // Predicated region
    $region29: #{up_module_forward.3} parent=5 // pred_check
      _
    $region30: #{up_module_forward.3} parent=5 // pred_check_branch
      %162 = sbr.rel (%p159) target = $region32
    $region31: #{up_module_forward.3} parent=5 // pred_region
      %s163 = ssub.s32 %s9, 1
      %s164 = smul.u32 2, %s19
      %p165 = scmp.lt.s32.totalorder %s18, 1
      %s166 = scalar_select %p165, %s18, 1
      %p167 = scmp.lt.s32.totalorder %s164, 1
      %s168 = scalar_select %p167, %s164, 1
      %s169 = smul.addr %s166, 2
      %s170 = sadd.s32 %s168, %s169
      %s171 = smul.addr %s170, 4
      %s172 = scalar_lea.vmem %s0, %s171
      %p173 = pneg %p49
      %p174 = pneg %p46
      %p175 = pneg %p70
      %p176 = pneg %p67
      %p177 = pneg %p91
      %p178 = pneg %p88
      %p179 = pneg %p119
      %p180 = pneg %p116
      %s181 = smul.u32 2, %s19
      %p182 = scmp.lt.s32.totalorder %s18, 1
      %s183 = scalar_select %p182, %s18, 1
      %p184 = scmp.lt.s32.totalorder %s181, 1
      %s185 = scalar_select %p184, %s181, 1
      %s186 = smul.addr %s183, 2
      %s187 = sadd.s32 %s185, %s186
      %s188 = smul.addr %s187, 8
      %s189 = scalar_lea.vmem %s3, %s188
      %s190 = smul.u32 2, %s19
      %p191 = scmp.lt.s32.totalorder %s18, 1
      %s192 = scalar_select %p191, %s18, 1
      %p193 = scmp.lt.s32.totalorder %s190, 1
      %s194 = scalar_select %p193, %s190, 1
      %s195 = smul.addr %s192, 2
      %s196 = sadd.s32 %s194, %s195
      %s197 = smul.addr %s196, 4
      %s198 = scalar_lea.vmem %s0, %s197
      %s199 = smul.u32 2, %s19
      %s200 = smul.u32 2, %s19
      %p201 = scmp.lt.s32.totalorder %s18, 1
      %s202 = scalar_select %p201, %s18, 1
      %p203 = scmp.lt.s32.totalorder %s200, 1
      %s204 = scalar_select %p203, %s200, 1
      %s205 = smul.addr %s202, 2
      %s206 = sadd.s32 %s204, %s205
      %s207 = smul.addr %s206, 8
      %s208 = scalar_lea.vmem %s3, %s207
      %s209 = smul.u32 2, %s19
      %v210 = vld [vmem:[%s198] sm:$0xf]
      %v211 = vld [vmem:[%s198 + $0x4] sm:$0xf]
      %v212 = vunpack.c.l.bf16 %v210
      %v213 = vunpack.c.l.bf16 %v211
      %v214 = vld [vmem:[%s1] sm:$0x1]
      %v216 = vperm.slane %v214, 0
      %v218 = vmul.f32 %v212, %v216
      %v219 = vmul.f32 %v213, %v216
      %v220 = vld [vmem:[%s2] sm:$0x1]
      %v222 = vperm.slane %v220, 0
      %v224 = vadd.f32 %v218, %v222
      %v225 = vadd.f32 %v219, %v222
      %vm226 = vcmp.gt.f32.partialorder %v224, 0.0
      %vm227 = vcmp.gt.f32.partialorder %v225, 0.0
      %v228 = vmul.f32 %v224, 0.2
      %v229 = vmul.f32 %v225, 0.2
      %v230 = vsel %vm226, %v224, %v228
      %v231 = vsel %vm227, %v225, %v229
      %232 = vst [vmem:[%s208] sm:$0xff] %v230
      %233 = vst [vmem:[%s208 + $0x8] sm:$0xff] %v231
      %s234 = smul.u32 2, %s19
      %p235 = scmp.lt.s32.totalorder %s18, 1
      %s236 = scalar_select %p235, %s18, 1
      %p237 = scmp.lt.s32.totalorder %s234, 1
      %s238 = scalar_select %p237, %s234, 1
      %s239 = smul.addr %s236, 2
      %s240 = sadd.s32 %s238, %s239
      %s241 = smul.addr %s240, 8
      %s242 = scalar_lea.vmem %s3, %s241
      // Predicated region
      $region33: #{up_module_forward.3} parent=31 // pred_check
        %p243 = pneg %p116
      $region34: #{up_module_forward.3} parent=31 // pred_check_branch
        %245 = sbr.rel (%p243) target = $region36
      $region35: #{up_module_forward.3} parent=31 // pred_region
        %s246 = smul.u32 2, %s19
      $region36: #{up_module_forward.3} parent=31 // pred_fallthru
        _
    $region32: #{up_module_forward.3} parent=5 // pred_fallthru
      _
    %p247 = scmp.le.s32.totalorder 2, %s9
    // Predicated region
    $region37: #{up_module_forward.3} parent=5 // pred_check
      %p248 = pneg %p247
    $region38: #{up_module_forward.3} parent=5 // pred_check_branch
      %250 = sbr.rel (%p248) target = $region40
    $region39: #{up_module_forward.3} parent=5 // pred_region
      %s251 = ssub.s32 %s9, 2
      // Predicated region
      $region41: #{up_module_forward.3} parent=39 // pred_check
        %p252 = pneg %p122
      $region42: #{up_module_forward.3} parent=39 // pred_check_branch
        %254 = sbr.rel (%p252) target = $region44
      $region43: #{up_module_forward.3} parent=39 // pred_region
        %s255 = smul.u32 2, %s21
        %p256 = scmp.lt.s32.totalorder %s20, 1
        %s257 = scalar_select %p256, %s20, 1
        %p258 = scmp.lt.s32.totalorder %s255, 1
        %s259 = scalar_select %p258, %s255, 1
        %s260 = smul.addr %s257, 2
        %s261 = sadd.s32 %s259, %s260
        %s262 = smul.addr %s261, 8
        %s263 = scalar_lea.vmem %s3, %s262
      $region44: #{up_module_forward.3} parent=39 // pred_fallthru
        _
    $region40: #{up_module_forward.3} parent=5 // pred_fallthru
      _
  $region6: #{up_module_forward.3} parent=0 // loop_footer
    %s13 = sadd.s32 1, %s9
  $region7: #{up_module_forward.3} parent=0 // loop_footer_branch
    %8 = sbr.rel target = $region3
  $region8: #{up_module_forward.3} parent=0 // loop_exit
    _

// kernel: up_module_forward.2
$region0: #{up_module_forward.2}
  #allocation0 [shape = 'u32[]', space=smem, size = 0x4, offset = 0x4, fixed_abs, tag = 'smem constant byte address 0x4 - core index']
  #allocation1 [shape = 'u32[72,128]{1,0:T(1,128)}', space=vmem, size = 0x9000, scoped, tag = 'internal scratch']
  #allocation2 [shape = 'bf16[18,32,8]{2,1,0:T(8,128)(2,1)}', space=vmem, size = 0x24000, scoped, tag = 'scratch operand']
  #allocation3 [shape = 'f32[18,128]{1,0:T(8,128)}', space=vmem, size = 0x3000, scoped, tag = 'scratch operand']
  #allocation4 [shape = 'f32[16,16,128]{2,1,0:T(8,128)}', space=vmem, size = 0x20000, scoped, tag = 'scratch operand']
  %s0 = inlined_call_operand.vmem [shape: bf16[2,16,16,8], index: 0, kind: input, shape index: {}, may-alias: {0,1,2}]
  %s1 = inlined_call_operand.vmem [shape: bf16[2,16,16,8], index: 1, kind: input, shape index: {}, may-alias: {0,1,2}]
  %s2 = inlined_call_operand.vmem [shape: bf16[2,16,16,8], index: 2, kind: input, shape index: {}, may-alias: {0,1,2}]
  %s3 = inlined_call_operand.vmem [shape: f32[2,16,16], index: 3, kind: input, shape index: {}]
  %s4 = inlined_call_operand.vmem [shape: bf16[3,8,384], index: 4, kind: input, shape index: {}]
  %s5 = inlined_call_operand.vmem [shape: f32[1,128], index: 5, kind: input, shape index: {}]
  %s6 = inlined_call_operand.vmem [shape: bf16[2,16,16,8], index: 6, kind: output, shape index: {0}]
  %s7 = inlined_call_operand.vmem [shape: f32[2,16,16], index: 7, kind: output, shape index: {1}]
  %s8 = inlined_call_operand.vmem [shape: f32[2,1,2,8], index: 8, kind: output, shape index: {2}]
  %9 = xla_tuple %s6, %s7, %s8
  %s10 = sld [smem:[#allocation0]]
  $region85: #{up_module_forward.2} parent=0
    _
  %s12 = ssub.s32 1, %s10
  %s13 = scalar_select 0, %s12, %s10
  loop: start=0, step=1, limit=4
  $region2: #{up_module_forward.2} parent=0 // loop_pre_header
    _
  $region3: #{up_module_forward.2} parent=0 // loop_header
    %s15 = sphi 0, %s19
    %p16 = scmp.ge.s32.totalorder %s15, 4
    %s22 = sphi 0, %s34
    %s23 = sphi 0, %s30
    %s24 = sphi 0, %s22
    %s25 = sphi 0, %s23
    %s26 = sphi 0, %s24
    %s27 = sphi 0, %s25
    %s39 = sphi 0, %s41
    %s42 = sphi 0, %s39
    %s43 = sphi 0, %s42
    %s59 = sphi 0, %s43
    %s75 = sphi 0, %s77
    %s78 = sphi 0, %s75
    %s79 = sphi 0, %s78
    %s95 = sphi 0, %s79
    %s111 = sphi 0, %s113
    %s114 = sphi 0, %s111
    %s115 = sphi 0, %s114
    %s131 = sphi 0, %s115
    %s137 = sphi 0, %s139
    %s140 = sphi 0, %s137
    %s141 = sphi 0, %s140
    %s157 = sphi 0, %s141
    %s161 = sphi 0, %s161
    %s163 = sphi 0, %s161
    %s164 = sphi 0, %s163
    %s178 = sphi 0, %s164
    %s182 = sphi 0, %s182
    %s184 = sphi 0, %s182
    %s185 = sphi 0, %s184
    %s199 = sphi 0, %s185
    %s207 = sphi 0, %s209
    %s210 = sphi 0, %s207
    %s211 = sphi 0, %s210
    %s227 = sphi 0, %s211
    %s235 = sphi 0, %s237
    %s238 = sphi 0, %s235
    %s239 = sphi 0, %s238
    %s255 = sphi 0, %s239
    %s263 = sphi 0, %s265
    %s266 = sphi 0, %s263
    %s267 = sphi 0, %s266
    %s283 = sphi 0, %s267
  $region4: #{up_module_forward.2} parent=0 // loop_header_branch
    %18 = sbr.rel (%p16) target = $region8
  $region5: #{up_module_forward.2} parent=0 // loop_body
    %s20 = ssub.s32 %s15, 1
    %s21 = ssub.s32 %s15, 2
    %s28 = sadd.s32 1, %s23
    %p29 = scmp.ge.s32.totalorder %s28, 1
    %s30 = scalar_select %p29, 0, %s28
    %s31 = sadd.s32 1, %s22
    %s32 = scalar_select %p29, %s31, %s22
    %p33 = scmp.ge.s32.totalorder %s32, 2
    %s34 = scalar_select %p33, 0, %s32
    %s35 = ssub.s32 %s22, %s34
    %s36 = ssub.s32 %s23, %s30
    %s37 = sor.u32 %s35, %s36
    %p38 = scmp.eq.s32.totalorder %s37, 0
    %s40 = sadd.s32 %s39, 1
    %s41 = scalar_select %p38, %s39, %s40
    %p44 = pneg %p38
    %p45 = scmp.eq.s32.totalorder %s15, 1
    %p46 = por %p44, %p45
    %p47 = scmp.ne.s32.totalorder %s39, %s42
    %p48 = scmp.eq.s32.totalorder %s15, 0
    %p49 = por %p47, %p48
    %p50 = scmp.ne.s32.totalorder %s39, %s42
    %p51 = scmp.eq.s32.totalorder %s20, 1
    %p52 = por %p50, %p51
    %p53 = scmp.ne.s32.totalorder %s42, %s43
    %p54 = scmp.eq.s32.totalorder %s20, 0
    %p55 = por %p53, %p54
    %p56 = scmp.ne.s32.totalorder %s42, %s43
    %p57 = scmp.eq.s32.totalorder %s21, 1
    %p58 = por %p56, %p57
    %p60 = scmp.ne.s32.totalorder %s43, %s59
    %p61 = scmp.eq.s32.totalorder %s21, 0
    %p62 = por %p60, %p61
    %s63 = smul.u32 %s23, 16
    %s64 = ssub.s32 %s63, 1
    %p65 = scmp.gt.s32.totalorder %s64, 0
    %s66 = scalar_select %p65, %s64, 0
    %s67 = smul.u32 %s30, 16
    %s68 = ssub.s32 %s67, 1
    %p69 = scmp.gt.s32.totalorder %s68, 0
    %s70 = scalar_select %p69, %s68, 0
    %s71 = ssub.s32 %s22, %s34
    %s72 = ssub.s32 %s66, %s70
    %s73 = sor.u32 %s71, %s72
    %p74 = scmp.eq.s32.totalorder %s73, 0
    %s76 = sadd.s32 %s75, 1
    %s77 = scalar_select %p74, %s75, %s76
    %p80 = pneg %p74
    %p81 = scmp.eq.s32.totalorder %s15, 1
    %p82 = por %p80, %p81
    %p83 = scmp.ne.s32.totalorder %s75, %s78
    %p84 = scmp.eq.s32.totalorder %s15, 0
    %p85 = por %p83, %p84
    %p86 = scmp.ne.s32.totalorder %s75, %s78
    %p87 = scmp.eq.s32.totalorder %s20, 1
    %p88 = por %p86, %p87
    %p89 = scmp.ne.s32.totalorder %s78, %s79
    %p90 = scmp.eq.s32.totalorder %s20, 0
    %p91 = por %p89, %p90
    %p92 = scmp.ne.s32.totalorder %s78, %s79
    %p93 = scmp.eq.s32.totalorder %s21, 1
    %p94 = por %p92, %p93
    %p96 = scmp.ne.s32.totalorder %s79, %s95
    %p97 = scmp.eq.s32.totalorder %s21, 0
    %p98 = por %p96, %p97
    %s99 = smul.u32 %s23, 16
    %s100 = sadd.s32 %s99, 16
    %p101 = scmp.lt.s32.totalorder %s100, 15
    %s102 = scalar_select %p101, %s100, 15
    %s103 = smul.u32 %s30, 16
    %s104 = sadd.s32 %s103, 16
    %p105 = scmp.lt.s32.totalorder %s104, 15
    %s106 = scalar_select %p105, %s104, 15
    %s107 = ssub.s32 %s22, %s34
    %s108 = ssub.s32 %s102, %s106
    %s109 = sor.u32 %s107, %s108
    %p110 = scmp.eq.s32.totalorder %s109, 0
    %s112 = sadd.s32 %s111, 1
    %s113 = scalar_select %p110, %s111, %s112
    %p116 = pneg %p110
    %p117 = scmp.eq.s32.totalorder %s15, 1
    %p118 = por %p116, %p117
    %p119 = scmp.ne.s32.totalorder %s111, %s114
    %p120 = scmp.eq.s32.totalorder %s15, 0
    %p121 = por %p119, %p120
    %p122 = scmp.ne.s32.totalorder %s111, %s114
    %p123 = scmp.eq.s32.totalorder %s20, 1
    %p124 = por %p122, %p123
    %p125 = scmp.ne.s32.totalorder %s114, %s115
    %p126 = scmp.eq.s32.totalorder %s20, 0
    %p127 = por %p125, %p126
    %p128 = scmp.ne.s32.totalorder %s114, %s115
    %p129 = scmp.eq.s32.totalorder %s21, 1
    %p130 = por %p128, %p129
    %p132 = scmp.ne.s32.totalorder %s115, %s131
    %p133 = scmp.eq.s32.totalorder %s21, 0
    %p134 = por %p132, %p133
    %s135 = ssub.s32 %s22, %s34
    %p136 = scmp.eq.s32.totalorder %s135, 0
    %s138 = sadd.s32 %s137, 1
    %s139 = scalar_select %p136, %s137, %s138
    %p142 = pneg %p136
    %p143 = scmp.eq.s32.totalorder %s15, 1
    %p144 = por %p142, %p143
    %p145 = scmp.ne.s32.totalorder %s137, %s140
    %p146 = scmp.eq.s32.totalorder %s15, 0
    %p147 = por %p145, %p146
    %p148 = scmp.ne.s32.totalorder %s137, %s140
    %p149 = scmp.eq.s32.totalorder %s20, 1
    %p150 = por %p148, %p149
    %p151 = scmp.ne.s32.totalorder %s140, %s141
    %p152 = scmp.eq.s32.totalorder %s20, 0
    %p153 = por %p151, %p152
    %p154 = scmp.ne.s32.totalorder %s140, %s141
    %p155 = scmp.eq.s32.totalorder %s21, 1
    %p156 = por %p154, %p155
    %p158 = scmp.ne.s32.totalorder %s141, %s157
    %p159 = scmp.eq.s32.totalorder %s21, 0
    %p160 = por %p158, %p159
    %s162 = sadd.s32 %s161, 1
    %p165 = scmp.eq.s32.totalorder %s15, 1
    %p166 = scmp.ne.s32.totalorder %s161, %s163
    %p167 = scmp.eq.s32.totalorder %s15, 0
    %p168 = por %p166, %p167
    %p169 = scmp.ne.s32.totalorder %s161, %s163
    %p170 = scmp.eq.s32.totalorder %s20, 1
    %p171 = por %p169, %p170
    %p172 = scmp.ne.s32.totalorder %s163, %s164
    %p173 = scmp.eq.s32.totalorder %s20, 0
    %p174 = por %p172, %p173
    %p175 = scmp.ne.s32.totalorder %s163, %s164
    %p176 = scmp.eq.s32.totalorder %s21, 1
    %p177 = por %p175, %p176
    %p179 = scmp.ne.s32.totalorder %s164, %s178
    %p180 = scmp.eq.s32.totalorder %s21, 0
    %p181 = por %p179, %p180
    %s183 = sadd.s32 %s182, 1
    %p186 = scmp.eq.s32.totalorder %s15, 1
    %p187 = scmp.ne.s32.totalorder %s182, %s184
    %p188 = scmp.eq.s32.totalorder %s15, 0
    %p189 = por %p187, %p188
    %p190 = scmp.ne.s32.totalorder %s182, %s184
    %p191 = scmp.eq.s32.totalorder %s20, 1
    %p192 = por %p190, %p191
    %p193 = scmp.ne.s32.totalorder %s184, %s185
    %p194 = scmp.eq.s32.totalorder %s20, 0
    %p195 = por %p193, %p194
    %p196 = scmp.ne.s32.totalorder %s184, %s185
    %p197 = scmp.eq.s32.totalorder %s21, 1
    %p198 = por %p196, %p197
    %p200 = scmp.ne.s32.totalorder %s185, %s199
    %p201 = scmp.eq.s32.totalorder %s21, 0
    %p202 = por %p200, %p201
    %s203 = ssub.s32 %s22, %s34
    %s204 = ssub.s32 %s23, %s30
    %s205 = sor.u32 %s203, %s204
    %p206 = scmp.eq.s32.totalorder %s205, 0
    %s208 = sadd.s32 %s207, 1
    %s209 = scalar_select %p206, %s207, %s208
    %p212 = pneg %p206
    %p213 = scmp.eq.s32.totalorder %s15, 1
    %p214 = por %p212, %p213
    %p215 = scmp.ne.s32.totalorder %s207, %s210
    %p216 = scmp.eq.s32.totalorder %s15, 0
    %p217 = por %p215, %p216
    %p218 = scmp.ne.s32.totalorder %s207, %s210
    %p219 = scmp.eq.s32.totalorder %s20, 1
    %p220 = por %p218, %p219
    %p221 = scmp.ne.s32.totalorder %s210, %s211
    %p222 = scmp.eq.s32.totalorder %s20, 0
    %p223 = por %p221, %p222
    %p224 = scmp.ne.s32.totalorder %s210, %s211
    %p225 = scmp.eq.s32.totalorder %s21, 1
    %p226 = por %p224, %p225
    %p228 = scmp.ne.s32.totalorder %s211, %s227
    %p229 = scmp.eq.s32.totalorder %s21, 0
    %p230 = por %p228, %p229
    %s231 = ssub.s32 %s22, %s34
    %s232 = ssub.s32 %s23, %s30
    %s233 = sor.u32 %s231, %s232
    %p234 = scmp.eq.s32.totalorder %s233, 0
    %s236 = sadd.s32 %s235, 1
    %s237 = scalar_select %p234, %s235, %s236
    %p240 = pneg %p234
    %p241 = scmp.eq.s32.totalorder %s15, 1
    %p242 = por %p240, %p241
    %p243 = scmp.ne.s32.totalorder %s235, %s238
    %p244 = scmp.eq.s32.totalorder %s15, 0
    %p245 = por %p243, %p244
    %p246 = scmp.ne.s32.totalorder %s235, %s238
    %p247 = scmp.eq.s32.totalorder %s20, 1
    %p248 = por %p246, %p247
    %p249 = scmp.ne.s32.totalorder %s238, %s239
    %p250 = scmp.eq.s32.totalorder %s20, 0
    %p251 = por %p249, %p250
    %p252 = scmp.ne.s32.totalorder %s238, %s239
    %p253 = scmp.eq.s32.totalorder %s21, 1
    %p254 = por %p252, %p253
    %p256 = scmp.ne.s32.totalorder %s239, %s255
    %p257 = scmp.eq.s32.totalorder %s21, 0
    %p258 = por %p256, %p257
    %s259 = ssub.s32 %s22, %s34
    %s260 = ssub.s32 %s23, %s30
    %s261 = sor.u32 %s259, %s260
    %p262 = scmp.eq.s32.totalorder %s261, 0
    %s264 = sadd.s32 %s263, 1
    %s265 = scalar_select %p262, %s263, %s264
    %p268 = pneg %p262
    %p269 = scmp.eq.s32.totalorder %s15, 1
    %p270 = por %p268, %p269
    %p271 = scmp.ne.s32.totalorder %s263, %s266
    %p272 = scmp.eq.s32.totalorder %s15, 0
    %p273 = por %p271, %p272
    %p274 = scmp.ne.s32.totalorder %s263, %s266
    %p275 = scmp.eq.s32.totalorder %s20, 1
    %p276 = por %p274, %p275
    %p277 = scmp.ne.s32.totalorder %s266, %s267
    %p278 = scmp.eq.s32.totalorder %s20, 0
    %p279 = por %p277, %p278
    %p280 = scmp.ne.s32.totalorder %s266, %s267
    %p281 = scmp.eq.s32.totalorder %s21, 1
    %p282 = por %p280, %p281
    %p284 = scmp.ne.s32.totalorder %s267, %s283
    %p285 = scmp.eq.s32.totalorder %s21, 0
    %p286 = por %p284, %p285
    %p287 = scmp.le.s32.totalorder 1, %s15
    %p288 = scmp.lt.s32.totalorder %s15, 3
    %p289 = pnand %p287, %p288
    %p290 = pneg %p289
    // Predicated region
    $region9: #{up_module_forward.2} parent=5 // pred_check
      _
    $region10: #{up_module_forward.2} parent=5 // pred_check_branch
      %292 = sbr.rel (%p289) target = $region12
    $region11: #{up_module_forward.2} parent=5 // pred_region
      %s293 = ssub.s32 %s15, 1
      // Predicated region
      $region13: #{up_module_forward.2} parent=11 // pred_check
        %p294 = pneg %p174
      $region14: #{up_module_forward.2} parent=11 // pred_check_branch
        %296 = sbr.rel (%p294) target = $region16
      $region15: #{up_module_forward.2} parent=11 // pred_region
        _
      $region16: #{up_module_forward.2} parent=11 // pred_fallthru
        _
      // Predicated region
      $region17: #{up_module_forward.2} parent=11 // pred_check
        %p297 = pneg %p195
      $region18: #{up_module_forward.2} parent=11 // pred_check_branch
        %299 = sbr.rel (%p297) target = $region20
      $region19: #{up_module_forward.2} parent=11 // pred_region
        _
      $region20: #{up_module_forward.2} parent=11 // pred_fallthru
        _
    $region12: #{up_module_forward.2} parent=5 // pred_fallthru
      _
    %p300 = scmp.lt.s32.totalorder %s15, 2
    // Predicated region
    $region21: #{up_module_forward.2} parent=5 // pred_check
      %p301 = pneg %p300
    $region22: #{up_module_forward.2} parent=5 // pred_check_branch
      %303 = sbr.rel (%p301) target = $region24
    $region23: #{up_module_forward.2} parent=5 // pred_region
      // Predicated region
      $region25: #{up_module_forward.2} parent=23 // pred_check
        %p304 = pneg %p49
      $region26: #{up_module_forward.2} parent=23 // pred_check_branch
        %306 = sbr.rel (%p304) target = $region28
      $region27: #{up_module_forward.2} parent=23 // pred_region
        %s307 = smul.u32 16, %s23
        %p308 = scmp.lt.s32.totalorder %s22, 1
        %s309 = scalar_select %p308, %s22, 1
        %p310 = scmp.lt.s32.totalorder %s307, 15
        %s311 = scalar_select %p310, %s307, 15
        %s312 = smul.addr %s311, 2
        %s313 = smul.addr %s309, 32
        %s314 = sadd.s32 %s312, %s313
        %s315 = smul.addr %s314, 4
        %s316 = scalar_lea.vmem %s0, %s315
        %s317 = smul.u32 16, %s23
      $region28: #{up_module_forward.2} parent=23 // pred_fallthru
        _
      // Predicated region
      $region29: #{up_module_forward.2} parent=23 // pred_check
        %p318 = pneg %p85
      $region30: #{up_module_forward.2} parent=23 // pred_check_branch
        %320 = sbr.rel (%p318) target = $region32
      $region31: #{up_module_forward.2} parent=23 // pred_region
        %s321 = smul.u32 %s23, 16
        %s322 = ssub.s32 %s321, 1
        %p323 = scmp.gt.s32.totalorder %s322, 0
        %s324 = scalar_select %p323, %s322, 0
        %p325 = scmp.lt.s32.totalorder %s22, 1
        %s326 = scalar_select %p325, %s22, 1
        %p327 = scmp.lt.s32.totalorder %s324, 15
        %s328 = scalar_select %p327, %s324, 15
        %s329 = smul.addr %s328, 2
        %s330 = smul.addr %s326, 32
        %s331 = sadd.s32 %s329, %s330
        %s332 = smul.addr %s331, 4
        %s333 = scalar_lea.vmem %s1, %s332
        %s334 = smul.u32 %s23, 16
        %s335 = ssub.s32 %s334, 1
        %p336 = scmp.gt.s32.totalorder %s335, 0
        %s337 = scalar_select %p336, %s335, 0
      $region32: #{up_module_forward.2} parent=23 // pred_fallthru
        _
      // Predicated region
      $region33: #{up_module_forward.2} parent=23 // pred_check
        %p338 = pneg %p121
      $region34: #{up_module_forward.2} parent=23 // pred_check_branch
        %340 = sbr.rel (%p338) target = $region36
      $region35: #{up_module_forward.2} parent=23 // pred_region
        %s341 = smul.u32 %s23, 16
        %s342 = sadd.s32 %s341, 16
        %p343 = scmp.lt.s32.totalorder %s342, 15
        %s344 = scalar_select %p343, %s342, 15
        %p345 = scmp.lt.s32.totalorder %s22, 1
        %s346 = scalar_select %p345, %s22, 1
        %p347 = scmp.lt.s32.totalorder %s344, 15
        %s348 = scalar_select %p347, %s344, 15
        %s349 = smul.addr %s348, 2
        %s350 = smul.addr %s346, 32
        %s351 = sadd.s32 %s349, %s350
        %s352 = smul.addr %s351, 4
        %s353 = scalar_lea.vmem %s2, %s352
        %s354 = smul.u32 %s23, 16
        %s355 = sadd.s32 %s354, 16
        %p356 = scmp.lt.s32.totalorder %s355, 15
        %s357 = scalar_select %p356, %s355, 15
      $region36: #{up_module_forward.2} parent=23 // pred_fallthru
        _
      // Predicated region
      $region37: #{up_module_forward.2} parent=23 // pred_check
        %p358 = pneg %p147
      $region38: #{up_module_forward.2} parent=23 // pred_check_branch
        %360 = sbr.rel (%p358) target = $region40
      $region39: #{up_module_forward.2} parent=23 // pred_region
        %p361 = scmp.lt.s32.totalorder %s22, 1
        %s362 = scalar_select %p361, %s22, 1
        %s363 = smul.addr %s362, 2
        %s364 = smul.addr %s363, 8
        %s365 = scalar_lea.vmem %s3, %s364
      $region40: #{up_module_forward.2} parent=23 // pred_fallthru
        _
    $region24: #{up_module_forward.2} parent=5 // pred_fallthru
      _
    %p366 = scmp.le.s32.totalorder 1, %s15
    %p367 = scmp.lt.s32.totalorder %s15, 3
    %p368 = pnand %p366, %p367
    %p369 = pneg %p368
    // Predicated region
    $region41: #{up_module_forward.2} parent=5 // pred_check
      _
    $region42: #{up_module_forward.2} parent=5 // pred_check_branch
      %371 = sbr.rel (%p368) target = $region44
    $region43: #{up_module_forward.2} parent=5 // pred_region
      %s372 = ssub.s32 %s15, 1
      %s373 = smul.u32 16, %s25
      %p374 = scmp.lt.s32.totalorder %s24, 1
      %s375 = scalar_select %p374, %s24, 1
      %p376 = scmp.lt.s32.totalorder %s373, 15
      %s377 = scalar_select %p376, %s373, 15
      %s378 = smul.addr %s377, 2
      %s379 = smul.addr %s375, 32
      %s380 = sadd.s32 %s378, %s379
      %s381 = smul.addr %s380, 4
      %s382 = scalar_lea.vmem %s0, %s381
      %p383 = pneg %p55
      %p384 = pneg %p52
      %s385 = smul.u32 %s25, 16
      %s386 = ssub.s32 %s385, 1
      %p387 = scmp.gt.s32.totalorder %s386, 0
      %s388 = scalar_select %p387, %s386, 0
      %p389 = scmp.lt.s32.totalorder %s24, 1
      %s390 = scalar_select %p389, %s24, 1
      %p391 = scmp.lt.s32.totalorder %s388, 15
      %s392 = scalar_select %p391, %s388, 15
      %s393 = smul.addr %s392, 2
      %s394 = smul.addr %s390, 32
      %s395 = sadd.s32 %s393, %s394
      %s396 = smul.addr %s395, 4
      %s397 = scalar_lea.vmem %s1, %s396
      %p398 = pneg %p91
      %p399 = pneg %p88
      %s400 = smul.u32 %s25, 16
      %s401 = sadd.s32 %s400, 16
      %p402 = scmp.lt.s32.totalorder %s401, 15
      %s403 = scalar_select %p402, %s401, 15
      %p404 = scmp.lt.s32.totalorder %s24, 1
      %s405 = scalar_select %p404, %s24, 1
      %p406 = scmp.lt.s32.totalorder %s403, 15
      %s407 = scalar_select %p406, %s403, 15
      %s408 = smul.addr %s407, 2
      %s409 = smul.addr %s405, 32
      %s410 = sadd.s32 %s408, %s409
      %s411 = smul.addr %s410, 4
      %s412 = scalar_lea.vmem %s2, %s411
      %p413 = pneg %p127
      %p414 = pneg %p124
      %p415 = scmp.lt.s32.totalorder %s24, 1
      %s416 = scalar_select %p415, %s24, 1
      %s417 = smul.addr %s416, 2
      %s418 = smul.addr %s417, 8
      %s419 = scalar_lea.vmem %s3, %s418
      %p420 = pneg %p153
      %p421 = pneg %p150
      %p422 = pneg %p174
      %p423 = pneg %p171
      %p424 = pneg %p195
      %p425 = pneg %p192
      %p426 = pneg %p223
      %p427 = pneg %p220
      %s428 = smul.u32 16, %s25
      %p429 = scmp.lt.s32.totalorder %s24, 1
      %s430 = scalar_select %p429, %s24, 1
      %p431 = scmp.lt.s32.totalorder %s428, 15
      %s432 = scalar_select %p431, %s428, 15
      %s433 = smul.addr %s432, 2
      %s434 = smul.addr %s430, 32
      %s435 = sadd.s32 %s433, %s434
      %s436 = smul.addr %s435, 4
      %s437 = scalar_lea.vmem %s6, %s436
      %p438 = pneg %p251
      %p439 = pneg %p248
      %s440 = smul.u32 2, %s25
      %p441 = scmp.lt.s32.totalorder %s24, 1
      %s442 = scalar_select %p441, %s24, 1
      %p443 = scmp.lt.s32.totalorder %s440, 1
      %s444 = scalar_select %p443, %s440, 1
      %s445 = smul.addr %s442, 2
      %s446 = sadd.s32 %s444, %s445
      %s447 = smul.addr %s446, 8
      %s448 = scalar_lea.vmem %s7, %s447
      %p449 = pneg %p279
      %p450 = pneg %p276
      %p451 = scmp.lt.s32.totalorder %s24, 1
      %s452 = scalar_select %p451, %s24, 1
      %p453 = scmp.lt.s32.totalorder %s25, 0
      %s454 = scalar_select %p453, %s25, 0
      %s455 = sadd.s32 %s454, %s452
      %s456 = smul.addr %s455, 2
      %s457 = scalar_lea.vmem %s8, %s456
      %s458 = smul.u32 16, %s25
      %p459 = scmp.lt.s32.totalorder %s24, 1
      %s460 = scalar_select %p459, %s24, 1
      %p461 = scmp.lt.s32.totalorder %s458, 15
      %s462 = scalar_select %p461, %s458, 15
      %s463 = smul.addr %s462, 2
      %s464 = smul.addr %s460, 32
      %s465 = sadd.s32 %s463, %s464
      %s466 = smul.addr %s465, 4
      %s467 = scalar_lea.vmem %s0, %s466
      %s468 = smul.u32 16, %s25
      %s469 = smul.u32 %s25, 16
      %s470 = ssub.s32 %s469, 1
      %p471 = scmp.gt.s32.totalorder %s470, 0
      %s472 = scalar_select %p471, %s470, 0
      %p473 = scmp.lt.s32.totalorder %s24, 1
      %s474 = scalar_select %p473, %s24, 1
      %p475 = scmp.lt.s32.totalorder %s472, 15
      %s476 = scalar_select %p475, %s472, 15
      %s477 = smul.addr %s476, 2
      %s478 = smul.addr %s474, 32
      %s479 = sadd.s32 %s477, %s478
      %s480 = smul.addr %s479, 4
      %s481 = scalar_lea.vmem %s1, %s480
      %s482 = smul.u32 %s25, 16
      %s483 = ssub.s32 %s482, 1
      %p484 = scmp.gt.s32.totalorder %s483, 0
      %s485 = scalar_select %p484, %s483, 0
      %s486 = smul.u32 %s25, 16
      %s487 = sadd.s32 %s486, 16
      %p488 = scmp.lt.s32.totalorder %s487, 15
      %s489 = scalar_select %p488, %s487, 15
      %p490 = scmp.lt.s32.totalorder %s24, 1
      %s491 = scalar_select %p490, %s24, 1
      %p492 = scmp.lt.s32.totalorder %s489, 15
      %s493 = scalar_select %p492, %s489, 15
      %s494 = smul.addr %s493, 2
      %s495 = smul.addr %s491, 32
      %s496 = sadd.s32 %s494, %s495
      %s497 = smul.addr %s496, 4
      %s498 = scalar_lea.vmem %s2, %s497
      %s499 = smul.u32 %s25, 16
      %s500 = sadd.s32 %s499, 16
      %p501 = scmp.lt.s32.totalorder %s500, 15
      %s502 = scalar_select %p501, %s500, 15
      %p503 = scmp.lt.s32.totalorder %s24, 1
      %s504 = scalar_select %p503, %s24, 1
      %s505 = smul.addr %s504, 2
      %s506 = smul.addr %s505, 8
      %s507 = scalar_lea.vmem %s3, %s506
      %s508 = smul.u32 16, %s25
      %p509 = scmp.lt.s32.totalorder %s24, 1
      %s510 = scalar_select %p509, %s24, 1
      %p511 = scmp.lt.s32.totalorder %s508, 15
      %s512 = scalar_select %p511, %s508, 15
      %s513 = smul.addr %s512, 2
      %s514 = smul.addr %s510, 32
      %s515 = sadd.s32 %s513, %s514
      %s516 = smul.addr %s515, 4
      %s517 = scalar_lea.vmem %s6, %s516
      %s518 = smul.u32 16, %s25
      %s519 = smul.u32 2, %s25
      %p520 = scmp.lt.s32.totalorder %s24, 1
      %s521 = scalar_select %p520, %s24, 1
      %p522 = scmp.lt.s32.totalorder %s519, 1
      %s523 = scalar_select %p522, %s519, 1
      %s524 = smul.addr %s521, 2
      %s525 = sadd.s32 %s523, %s524
      %s526 = smul.addr %s525, 8
      %s527 = scalar_lea.vmem %s7, %s526
      %s528 = smul.u32 2, %s25
      %p529 = scmp.lt.s32.totalorder %s24, 1
      %s530 = scalar_select %p529, %s24, 1
      %p531 = scmp.lt.s32.totalorder %s25, 0
      %s532 = scalar_select %p531, %s25, 0
      %s533 = sadd.s32 %s532, %s530
      %s534 = smul.addr %s533, 2
      %s535 = scalar_lea.vmem %s8, %s534
      %vm537 = vcmask 57344
      %vm538 = vsmask.f32 256
      %vm539 = vmand %vm537, %vm538
      %v540 = vld [vmem:[#allocation2] sm:$0x1]
      %v541 = vsel %vm539, 0, %v540
      %542 = vst [vmem:[#allocation2] sm:$0x1] %v541
      %v543 = vld [vmem:[#allocation2 + $0x10] sm:$0x1]
      %v544 = vsel %vm539, 0, %v543
      %545 = vst [vmem:[#allocation2 + $0x10] sm:$0x1] %v544
      %v546 = vld [vmem:[#allocation2 + $0x20] sm:$0x1]
      %v547 = vsel %vm539, 0, %v546
      %548 = vst [vmem:[#allocation2 + $0x20] sm:$0x1] %v547
      %v549 = vld [vmem:[#allocation2 + $0x30] sm:$0x1]
      %v550 = vsel %vm539, 0, %v549
      %551 = vst [vmem:[#allocation2 + $0x30] sm:$0x1] %v550
      %v552 = vld [vmem:[#allocation2 + $0x40] sm:$0x1]
      %v553 = vsel %vm539, 0, %v552
      %554 = vst [vmem:[#allocation2 + $0x40] sm:$0x1] %v553
      %v555 = vld [vmem:[#allocation2 + $0x50] sm:$0x1]
      %v556 = vsel %vm539, 0, %v555
      %557 = vst [vmem:[#allocation2 + $0x50] sm:$0x1] %v556
      %v558 = vld [vmem:[#allocation2 + $0x60] sm:$0x1]
      %v559 = vsel %vm539, 0, %v558
      %560 = vst [vmem:[#allocation2 + $0x60] sm:$0x1] %v559
      %v561 = vld [vmem:[#allocation2 + $0x70] sm:$0x1]
      %v562 = vsel %vm539, 0, %v561
      %563 = vst [vmem:[#allocation2 + $0x70] sm:$0x1] %v562
      %v564 = vld [vmem:[#allocation2 + $0x80] sm:$0x1]
      %v565 = vsel %vm539, 0, %v564
      %566 = vst [vmem:[#allocation2 + $0x80] sm:$0x1] %v565
      %v567 = vld [vmem:[#allocation2 + $0x90] sm:$0x1]
      %v568 = vsel %vm539, 0, %v567
      %569 = vst [vmem:[#allocation2 + $0x90] sm:$0x1] %v568
      %v570 = vld [vmem:[#allocation2 + $0xa0] sm:$0x1]
      %v571 = vsel %vm539, 0, %v570
      %572 = vst [vmem:[#allocation2 + $0xa0] sm:$0x1] %v571
      %v573 = vld [vmem:[#allocation2 + $0xb0] sm:$0x1]
      %v574 = vsel %vm539, 0, %v573
      %575 = vst [vmem:[#allocation2 + $0xb0] sm:$0x1] %v574
      %v576 = vld [vmem:[#allocation2 + $0xc0] sm:$0x1]
      %v577 = vsel %vm539, 0, %v576
      %578 = vst [vmem:[#allocation2 + $0xc0] sm:$0x1] %v577
      %v579 = vld [vmem:[#allocation2 + $0xd0] sm:$0x1]
      %v580 = vsel %vm539, 0, %v579
      %581 = vst [vmem:[#allocation2 + $0xd0] sm:$0x1] %v580
      %v582 = vld [vmem:[#allocation2 + $0xe0] sm:$0x1]
      %v583 = vsel %vm539, 0, %v582
      %584 = vst [vmem:[#allocation2 + $0xe0] sm:$0x1] %v583
      %v585 = vld [vmem:[#allocation2 + $0xf0] sm:$0x1]
      %v586 = vsel %vm539, 0, %v585
      %587 = vst [vmem:[#allocation2 + $0xf0] sm:$0x1] %v586
      %v588 = vld [vmem:[#allocation2 + $0x100] sm:$0x1]
      %v589 = vsel %vm539, 0, %v588
      %590 = vst [vmem:[#allocation2 + $0x100] sm:$0x1] %v589
      %v591 = vld [vmem:[#allocation2 + $0x110] sm:$0x1]
      %v592 = vsel %vm539, 0, %v591
      %593 = vst [vmem:[#allocation2 + $0x110] sm:$0x1] %v592
      %vm594 = vcmask 60416
      %vm595 = vsmask.f32 7938
      %vm596 = vmand %vm594, %vm595
      %v597 = vld [vmem:[#allocation2 + $0x8] sm:$0xf]
      %v598 = vsel %vm596, 0, %v597
      %599 = vst [vmem:[#allocation2 + $0x8] sm:$0xf] %v598
      %vm600 = vcmask 60416
      %601 = vst.msk [vmem:[#allocation2 + $0xc] sm:$0xf] %vm600, 0
      %v602 = vld [vmem:[#allocation2 + $0x18] sm:$0xf]
      %v603 = vsel %vm596, 0, %v602
      %604 = vst [vmem:[#allocation2 + $0x18] sm:$0xf] %v603
      %605 = vst.msk [vmem:[#allocation2 + $0x1c] sm:$0xf] %vm600, 0
      %v606 = vld [vmem:[#allocation2 + $0x28] sm:$0xf]
      %v607 = vsel %vm596, 0, %v606
      %608 = vst [vmem:[#allocation2 + $0x28] sm:$0xf] %v607
      %609 = vst.msk [vmem:[#allocation2 + $0x2c] sm:$0xf] %vm600, 0
      %v610 = vld [vmem:[#allocation2 + $0x38] sm:$0xf]
      %v611 = vsel %vm596, 0, %v610
      %612 = vst [vmem:[#allocation2 + $0x38] sm:$0xf] %v611
      %613 = vst.msk [vmem:[#allocation2 + $0x3c] sm:$0xf] %vm600, 0
      %v614 = vld [vmem:[#allocation2 + $0x48] sm:$0xf]
      %v615 = vsel %vm596, 0, %v614
      %616 = vst [vmem:[#allocation2 + $0x48] sm:$0xf] %v615
      %617 = vst.msk [vmem:[#allocation2 + $0x4c] sm:$0xf] %vm600, 0
      %v618 = vld [vmem:[#allocation2 + $0x58] sm:$0xf]
      %v619 = vsel %vm596, 0, %v618
      %620 = vst [vmem:[#allocation2 + $0x58] sm:$0xf] %v619
      %621 = vst.msk [vmem:[#allocation2 + $0x5c] sm:$0xf] %vm600, 0
      %v622 = vld [vmem:[#allocation2 + $0x68] sm:$0xf]
      %v623 = vsel %vm596, 0, %v622
      %624 = vst [vmem:[#allocation2 + $0x68] sm:$0xf] %v623
      %625 = vst.msk [vmem:[#allocation2 + $0x6c] sm:$0xf] %vm600, 0
      %v626 = vld [vmem:[#allocation2 + $0x78] sm:$0xf]
      %v627 = vsel %vm596, 0, %v626
      %628 = vst [vmem:[#allocation2 + $0x78] sm:$0xf] %v627
      %629 = vst.msk [vmem:[#allocation2 + $0x7c] sm:$0xf] %vm600, 0
      %v630 = vld [vmem:[#allocation2 + $0x88] sm:$0xf]
      %v631 = vsel %vm596, 0, %v630
      %632 = vst [vmem:[#allocation2 + $0x88] sm:$0xf] %v631
      %633 = vst.msk [vmem:[#allocation2 + $0x8c] sm:$0xf] %vm600, 0
      %v634 = vld [vmem:[#allocation2 + $0x98] sm:$0xf]
      %v635 = vsel %vm596, 0, %v634
      %636 = vst [vmem:[#allocation2 + $0x98] sm:$0xf] %v635
      %637 = vst.msk [vmem:[#allocation2 + $0x9c] sm:$0xf] %vm600, 0
      %v638 = vld [vmem:[#allocation2 + $0xa8] sm:$0xf]
      %v639 = vsel %vm596, 0, %v638
      %640 = vst [vmem:[#allocation2 + $0xa8] sm:$0xf] %v639
      %641 = vst.msk [vmem:[#allocation2 + $0xac] sm:$0xf] %vm600, 0
      %v642 = vld [vmem:[#allocation2 + $0xb8] sm:$0xf]
      %v643 = vsel %vm596, 0, %v642
      %644 = vst [vmem:[#allocation2 + $0xb8] sm:$0xf] %v643
      %645 = vst.msk [vmem:[#allocation2 + $0xbc] sm:$0xf] %vm600, 0
      %v646 = vld [vmem:[#allocation2 + $0xc8] sm:$0xf]
      %v647 = vsel %vm596, 0, %v646
      %648 = vst [vmem:[#allocation2 + $0xc8] sm:$0xf] %v647
      %649 = vst.msk [vmem:[#allocation2 + $0xcc] sm:$0xf] %vm600, 0
      %v650 = vld [vmem:[#allocation2 + $0xd8] sm:$0xf]
      %v651 = vsel %vm596, 0, %v650
      %652 = vst [vmem:[#allocation2 + $0xd8] sm:$0xf] %v651
      %653 = vst.msk [vmem:[#allocation2 + $0xdc] sm:$0xf] %vm600, 0
      %v654 = vld [vmem:[#allocation2 + $0xe8] sm:$0xf]
      %v655 = vsel %vm596, 0, %v654
      %656 = vst [vmem:[#allocation2 + $0xe8] sm:$0xf] %v655
      %657 = vst.msk [vmem:[#allocation2 + $0xec] sm:$0xf] %vm600, 0
      %v658 = vld [vmem:[#allocation2 + $0xf8] sm:$0xf]
      %v659 = vsel %vm596, 0, %v658
      %660 = vst [vmem:[#allocation2 + $0xf8] sm:$0xf] %v659
      %661 = vst.msk [vmem:[#allocation2 + $0xfc] sm:$0xf] %vm600, 0
      %v662 = vld [vmem:[#allocation2 + $0x108] sm:$0xf]
      %v663 = vsel %vm596, 0, %v662
      %664 = vst [vmem:[#allocation2 + $0x108] sm:$0xf] %v663
      %665 = vst.msk [vmem:[#allocation2 + $0x10c] sm:$0xf] %vm600, 0
      %v666 = vld [vmem:[#allocation2 + $0x118] sm:$0xf]
      %v667 = vsel %vm596, 0, %v666
      %668 = vst [vmem:[#allocation2 + $0x118] sm:$0xf] %v667
      %669 = vst.msk [vmem:[#allocation2 + $0x11c] sm:$0xf] %vm600, 0
      %v670 = vld [vmem:[%s481] sm:$0xf]
      %v671 = vld [vmem:[%s481 + $0x4] sm:$0xf]
      %vm672 = vsmask.f32 4368
      %vm673 = vmor %vm538, %vm672
      %v675 = vshrl.u32 %v670, 16
      %v677 = vrot.slane %v675, 7
      %v678 = vshll.u32 %v670, 16
      %v680 = vor.u32 %v677, %v678
      %v681 = vrot.slane %v677, 4
      %v683 = vshrl.u32 %v671, 16
      %v685 = vrot.slane %v683, 7
      %v686 = vshll.u32 %v671, 16
      %v688 = vor.u32 %v685, %v686
      %v689 = vsel %vm673, %v681, %v688
      %v690 = vrot.slane %v685, 4
      %v694 = vld [vmem:[#allocation2] sm:$0xf]
      %v695 = vsel %vm596, %v680, %v694
      %696 = vst [vmem:[#allocation2] sm:$0xf] %v695
      %697 = vst.msk [vmem:[#allocation2 + $0x4] sm:$0xf] %vm600, %v689
      %v698 = vld [vmem:[#allocation2 + $0x8] sm:$0x1]
      %v699 = vsel %vm539, %v690, %v698
      %700 = vst [vmem:[#allocation2 + $0x8] sm:$0x1] %v699
      %v701 = vld [vmem:[%s467] sm:$0xf]
      %v702 = vld [vmem:[%s467 + $0x4] sm:$0xf]
      %v703 = vld [vmem:[%s467 + $0x8] sm:$0xf]
      %v704 = vld [vmem:[%s467 + $0xc] sm:$0xf]
      %v705 = vld [vmem:[%s467 + $0x10] sm:$0xf]
      %v706 = vld [vmem:[%s467 + $0x14] sm:$0xf]
      %v707 = vld [vmem:[%s467 + $0x18] sm:$0xf]
      %v708 = vld [vmem:[%s467 + $0x1c] sm:$0xf]
      %v709 = vld [vmem:[%s467 + $0x20] sm:$0xf]
      %v710 = vld [vmem:[%s467 + $0x24] sm:$0xf]
      %v711 = vld [vmem:[%s467 + $0x28] sm:$0xf]
      %v712 = vld [vmem:[%s467 + $0x2c] sm:$0xf]
      %v713 = vld [vmem:[%s467 + $0x30] sm:$0xf]
      %v714 = vld [vmem:[%s467 + $0x34] sm:$0xf]
      %v715 = vld [vmem:[%s467 + $0x38] sm:$0xf]
      %v716 = vld [vmem:[%s467 + $0x3c] sm:$0xf]
      %v717 = vld [vmem:[%s467 + $0x40] sm:$0xf]
      %v718 = vld [vmem:[%s467 + $0x44] sm:$0xf]
      %v719 = vld [vmem:[%s467 + $0x48] sm:$0xf]
      %v720 = vld [vmem:[%s467 + $0x4c] sm:$0xf]
      %v721 = vld [vmem:[%s467 + $0x50] sm:$0xf]
      %v722 = vld [vmem:[%s467 + $0x54] sm:$0xf]
      %v723 = vld [vmem:[%s467 + $0x58] sm:$0xf]
      %v724 = vld [vmem:[%s467 + $0x5c] sm:$0xf]
      %v725 = vld [vmem:[%s467 + $0x60] sm:$0xf]
      %v726 = vld [vmem:[%s467 + $0x64] sm:$0xf]
      %v727 = vld [vmem:[%s467 + $0x68] sm:$0xf]
      %v728 = vld [vmem:[%s467 + $0x6c] sm:$0xf]
      %v729 = vld [vmem:[%s467 + $0x70] sm:$0xf]
      %v730 = vld [vmem:[%s467 + $0x74] sm:$0xf]
      %v731 = vld [vmem:[%s467 + $0x78] sm:$0xf]
      %v732 = vld [vmem:[%s467 + $0x7c] sm:$0xf]
      %v734 = vshrl.u32 %v701, 16
      %v736 = vrot.slane %v734, 7
      %v737 = vshll.u32 %v701, 16
      %v739 = vor.u32 %v736, %v737
      %v740 = vrot.slane %v736, 4
      %v742 = vshrl.u32 %v702, 16
      %v744 = vrot.slane %v742, 7
      %v745 = vshll.u32 %v702, 16
      %v747 = vor.u32 %v744, %v745
      %v748 = vsel %vm673, %v740, %v747
      %v749 = vrot.slane %v744, 4
      %v751 = vshrl.u32 %v703, 16
      %v753 = vrot.slane %v751, 7
      %v754 = vshll.u32 %v703, 16
      %v756 = vor.u32 %v753, %v754
      %v757 = vrot.slane %v753, 4
      %v759 = vshrl.u32 %v704, 16
      %v761 = vrot.slane %v759, 7
      %v762 = vshll.u32 %v704, 16
      %v764 = vor.u32 %v761, %v762
      %v765 = vsel %vm673, %v757, %v764
      %v766 = vrot.slane %v761, 4
      %v768 = vshrl.u32 %v705, 16
      %v770 = vrot.slane %v768, 7
      %v771 = vshll.u32 %v705, 16
      %v773 = vor.u32 %v770, %v771
      %v774 = vrot.slane %v770, 4
      %v776 = vshrl.u32 %v706, 16
      %v778 = vrot.slane %v776, 7
      %v779 = vshll.u32 %v706, 16
      %v781 = vor.u32 %v778, %v779
      %v782 = vsel %vm673, %v774, %v781
      %v783 = vrot.slane %v778, 4
      %v785 = vshrl.u32 %v707, 16
      %v787 = vrot.slane %v785, 7
      %v788 = vshll.u32 %v707, 16
      %v790 = vor.u32 %v787, %v788
      %v791 = vrot.slane %v787, 4
      %v793 = vshrl.u32 %v708, 16
      %v795 = vrot.slane %v793, 7
      %v796 = vshll.u32 %v708, 16
      %v798 = vor.u32 %v795, %v796
      %v799 = vsel %vm673, %v791, %v798
      %v800 = vrot.slane %v795, 4
      %v802 = vshrl.u32 %v709, 16
      %v804 = vrot.slane %v802, 7
      %v805 = vshll.u32 %v709, 16
      %v807 = vor.u32 %v804, %v805
      %v808 = vrot.slane %v804, 4
      %v810 = vshrl.u32 %v710, 16
      %v812 = vrot.slane %v810, 7
      %v813 = vshll.u32 %v710, 16
      %v815 = vor.u32 %v812, %v813
      %v816 = vsel %vm673, %v808, %v815
      %v817 = vrot.slane %v812, 4
      %v819 = vshrl.u32 %v711, 16
      %v821 = vrot.slane %v819, 7
      %v822 = vshll.u32 %v711, 16
      %v824 = vor.u32 %v821, %v822
      %v825 = vrot.slane %v821, 4
      %v827 = vshrl.u32 %v712, 16
      %v829 = vrot.slane %v827, 7
      %v830 = vshll.u32 %v712, 16
      %v832 = vor.u32 %v829, %v830
      %v833 = vsel %vm673, %v825, %v832
      %v834 = vrot.slane %v829, 4
      %v836 = vshrl.u32 %v713, 16
      %v838 = vrot.slane %v836, 7
      %v839 = vshll.u32 %v713, 16
      %v841 = vor.u32 %v838, %v839
      %v842 = vrot.slane %v838, 4
      %v844 = vshrl.u32 %v714, 16
      %v846 = vrot.slane %v844, 7
      %v847 = vshll.u32 %v714, 16
      %v849 = vor.u32 %v846, %v847
      %v850 = vsel %vm673, %v842, %v849
      %v851 = vrot.slane %v846, 4
      %v853 = vshrl.u32 %v715, 16
      %v855 = vrot.slane %v853, 7
      %v856 = vshll.u32 %v715, 16
      %v858 = vor.u32 %v855, %v856
      %v859 = vrot.slane %v855, 4
      %v861 = vshrl.u32 %v716, 16
      %v863 = vrot.slane %v861, 7
      %v864 = vshll.u32 %v716, 16
      %v866 = vor.u32 %v863, %v864
      %v867 = vsel %vm673, %v859, %v866
      %v868 = vrot.slane %v863, 4
      %v870 = vshrl.u32 %v717, 16
      %v872 = vrot.slane %v870, 7
      %v873 = vshll.u32 %v717, 16
      %v875 = vor.u32 %v872, %v873
      %v876 = vrot.slane %v872, 4
      %v878 = vshrl.u32 %v718, 16
      %v880 = vrot.slane %v878, 7
      %v881 = vshll.u32 %v718, 16
      %v883 = vor.u32 %v880, %v881
      %v884 = vsel %vm673, %v876, %v883
      %v885 = vrot.slane %v880, 4
      %v887 = vshrl.u32 %v719, 16
      %v889 = vrot.slane %v887, 7
      %v890 = vshll.u32 %v719, 16
      %v892 = vor.u32 %v889, %v890
      %v893 = vrot.slane %v889, 4
      %v895 = vshrl.u32 %v720, 16
      %v897 = vrot.slane %v895, 7
      %v898 = vshll.u32 %v720, 16
      %v900 = vor.u32 %v897, %v898
      %v901 = vsel %vm673, %v893, %v900
      %v902 = vrot.slane %v897, 4
      %v904 = vshrl.u32 %v721, 16
      %v906 = vrot.slane %v904, 7
      %v907 = vshll.u32 %v721, 16
      %v909 = vor.u32 %v906, %v907
      %v910 = vrot.slane %v906, 4
      %v912 = vshrl.u32 %v722, 16
      %v914 = vrot.slane %v912, 7
      %v915 = vshll.u32 %v722, 16
      %v917 = vor.u32 %v914, %v915
      %v918 = vsel %vm673, %v910, %v917
      %v919 = vrot.slane %v914, 4
      %v921 = vshrl.u32 %v723, 16
      %v923 = vrot.slane %v921, 7
      %v924 = vshll.u32 %v723, 16
      %v926 = vor.u32 %v923, %v924
      %v927 = vrot.slane %v923, 4
      %v929 = vshrl.u32 %v724, 16
      %v931 = vrot.slane %v929, 7
      %v932 = vshll.u32 %v724, 16
      %v934 = vor.u32 %v931, %v932
      %v935 = vsel %vm673, %v927, %v934
      %v936 = vrot.slane %v931, 4
      %v938 = vshrl.u32 %v725, 16
      %v940 = vrot.slane %v938, 7
      %v941 = vshll.u32 %v725, 16
      %v943 = vor.u32 %v940, %v941
      %v944 = vrot.slane %v940, 4
      %v946 = vshrl.u32 %v726, 16
      %v948 = vrot.slane %v946, 7
      %v949 = vshll.u32 %v726, 16
      %v951 = vor.u32 %v948, %v949
      %v952 = vsel %vm673, %v944, %v951
      %v953 = vrot.slane %v948, 4
      %v955 = vshrl.u32 %v727, 16
      %v957 = vrot.slane %v955, 7
      %v958 = vshll.u32 %v727, 16
      %v960 = vor.u32 %v957, %v958
      %v961 = vrot.slane %v957, 4
      %v963 = vshrl.u32 %v728, 16
      %v965 = vrot.slane %v963, 7
      %v966 = vshll.u32 %v728, 16
      %v968 = vor.u32 %v965, %v966
      %v969 = vsel %vm673, %v961, %v968
      %v970 = vrot.slane %v965, 4
      %v972 = vshrl.u32 %v729, 16
      %v974 = vrot.slane %v972, 7
      %v975 = vshll.u32 %v729, 16
      %v977 = vor.u32 %v974, %v975
      %v978 = vrot.slane %v974, 4
      %v980 = vshrl.u32 %v730, 16
      %v982 = vrot.slane %v980, 7
      %v983 = vshll.u32 %v730, 16
      %v985 = vor.u32 %v982, %v983
      %v986 = vsel %vm673, %v978, %v985
      %v987 = vrot.slane %v982, 4
      %v989 = vshrl.u32 %v731, 16
      %v991 = vrot.slane %v989, 7
      %v992 = vshll.u32 %v731, 16
      %v994 = vor.u32 %v991, %v992
      %v995 = vrot.slane %v991, 4
      %v997 = vshrl.u32 %v732, 16
      %v999 = vrot.slane %v997, 7
      %v1000 = vshll.u32 %v732, 16
      %v1002 = vor.u32 %v999, %v1000
      %v1003 = vsel %vm673, %v995, %v1002
      %v1004 = vrot.slane %v999, 4
      %s1053 = scalar_lea.vmem [#allocation2], 16
      %v1054 = vld [vmem:[%s1053] sm:$0xf]
      %v1055 = vsel %vm596, %v739, %v1054
      %1056 = vst [vmem:[%s1053] sm:$0xf] %v1055
      %1057 = vst.msk [vmem:[%s1053 + $0x4] sm:$0xf] %vm600, %v748
      %v1058 = vld [vmem:[%s1053 + $0x8] sm:$0x1]
      %v1059 = vsel %vm539, %v749, %v1058
      %1060 = vst [vmem:[%s1053 + $0x8] sm:$0x1] %v1059
      %v1061 = vld [vmem:[%s1053 + $0x10] sm:$0xf]
      %v1062 = vsel %vm596, %v756, %v1061
      %1063 = vst [vmem:[%s1053 + $0x10] sm:$0xf] %v1062
      %1064 = vst.msk [vmem:[%s1053 + $0x14] sm:$0xf] %vm600, %v765
      %v1065 = vld [vmem:[%s1053 + $0x18] sm:$0x1]
      %v1066 = vsel %vm539, %v766, %v1065
      %1067 = vst [vmem:[%s1053 + $0x18] sm:$0x1] %v1066
      %v1068 = vld [vmem:[%s1053 + $0x20] sm:$0xf]
      %v1069 = vsel %vm596, %v773, %v1068
      %1070 = vst [vmem:[%s1053 + $0x20] sm:$0xf] %v1069
      %1071 = vst.msk [vmem:[%s1053 + $0x24] sm:$0xf] %vm600, %v782
      %v1072 = vld [vmem:[%s1053 + $0x28] sm:$0x1]
      %v1073 = vsel %vm539, %v783, %v1072
      %1074 = vst [vmem:[%s1053 + $0x28] sm:$0x1] %v1073
      %v1075 = vld [vmem:[%s1053 + $0x30] sm:$0xf]
      %v1076 = vsel %vm596, %v790, %v1075
      %1077 = vst [vmem:[%s1053 + $0x30] sm:$0xf] %v1076
      %1078 = vst.msk [vmem:[%s1053 + $0x34] sm:$0xf] %vm600, %v799
      %v1079 = vld [vmem:[%s1053 + $0x38] sm:$0x1]
      %v1080 = vsel %vm539, %v800, %v1079
      %1081 = vst [vmem:[%s1053 + $0x38] sm:$0x1] %v1080
      %v1082 = vld [vmem:[%s1053 + $0x40] sm:$0xf]
      %v1083 = vsel %vm596, %v807, %v1082
      %1084 = vst [vmem:[%s1053 + $0x40] sm:$0xf] %v1083
      %1085 = vst.msk [vmem:[%s1053 + $0x44] sm:$0xf] %vm600, %v816
      %v1086 = vld [vmem:[%s1053 + $0x48] sm:$0x1]
      %v1087 = vsel %vm539, %v817, %v1086
      %1088 = vst [vmem:[%s1053 + $0x48] sm:$0x1] %v1087
      %v1089 = vld [vmem:[%s1053 + $0x50] sm:$0xf]
      %v1090 = vsel %vm596, %v824, %v1089
      %1091 = vst [vmem:[%s1053 + $0x50] sm:$0xf] %v1090
      %1092 = vst.msk [vmem:[%s1053 + $0x54] sm:$0xf] %vm600, %v833
      %v1093 = vld [vmem:[%s1053 + $0x58] sm:$0x1]
      %v1094 = vsel %vm539, %v834, %v1093
      %1095 = vst [vmem:[%s1053 + $0x58] sm:$0x1] %v1094
      %v1096 = vld [vmem:[%s1053 + $0x60] sm:$0xf]
      %v1097 = vsel %vm596, %v841, %v1096
      %1098 = vst [vmem:[%s1053 + $0x60] sm:$0xf] %v1097
      %1099 = vst.msk [vmem:[%s1053 + $0x64] sm:$0xf] %vm600, %v850
      %v1100 = vld [vmem:[%s1053 + $0x68] sm:$0x1]
      %v1101 = vsel %vm539, %v851, %v1100
      %1102 = vst [vmem:[%s1053 + $0x68] sm:$0x1] %v1101
      %v1103 = vld [vmem:[%s1053 + $0x70] sm:$0xf]
      %v1104 = vsel %vm596, %v858, %v1103
      %1105 = vst [vmem:[%s1053 + $0x70] sm:$0xf] %v1104
      %1106 = vst.msk [vmem:[%s1053 + $0x74] sm:$0xf] %vm600, %v867
      %v1107 = vld [vmem:[%s1053 + $0x78] sm:$0x1]
      %v1108 = vsel %vm539, %v868, %v1107
      %1109 = vst [vmem:[%s1053 + $0x78] sm:$0x1] %v1108
      %v1110 = vld [vmem:[%s1053 + $0x80] sm:$0xf]
      %v1111 = vsel %vm596, %v875, %v1110
      %1112 = vst [vmem:[%s1053 + $0x80] sm:$0xf] %v1111
      %1113 = vst.msk [vmem:[%s1053 + $0x84] sm:$0xf] %vm600, %v884
      %v1114 = vld [vmem:[%s1053 + $0x88] sm:$0x1]
      %v1115 = vsel %vm539, %v885, %v1114
      %1116 = vst [vmem:[%s1053 + $0x88] sm:$0x1] %v1115
      %v1117 = vld [vmem:[%s1053 + $0x90] sm:$0xf]
      %v1118 = vsel %vm596, %v892, %v1117
      %1119 = vst [vmem:[%s1053 + $0x90] sm:$0xf] %v1118
      %1120 = vst.msk [vmem:[%s1053 + $0x94] sm:$0xf] %vm600, %v901
      %v1121 = vld [vmem:[%s1053 + $0x98] sm:$0x1]
      %v1122 = vsel %vm539, %v902, %v1121
      %1123 = vst [vmem:[%s1053 + $0x98] sm:$0x1] %v1122
      %v1124 = vld [vmem:[%s1053 + $0xa0] sm:$0xf]
      %v1125 = vsel %vm596, %v909, %v1124
      %1126 = vst [vmem:[%s1053 + $0xa0] sm:$0xf] %v1125
      %1127 = vst.msk [vmem:[%s1053 + $0xa4] sm:$0xf] %vm600, %v918
      %v1128 = vld [vmem:[%s1053 + $0xa8] sm:$0x1]
      %v1129 = vsel %vm539, %v919, %v1128
      %1130 = vst [vmem:[%s1053 + $0xa8] sm:$0x1] %v1129
      %v1131 = vld [vmem:[%s1053 + $0xb0] sm:$0xf]
      %v1132 = vsel %vm596, %v926, %v1131
      %1133 = vst [vmem:[%s1053 + $0xb0] sm:$0xf] %v1132
      %1134 = vst.msk [vmem:[%s1053 + $0xb4] sm:$0xf] %vm600, %v935
      %v1135 = vld [vmem:[%s1053 + $0xb8] sm:$0x1]
      %v1136 = vsel %vm539, %v936, %v1135
      %1137 = vst [vmem:[%s1053 + $0xb8] sm:$0x1] %v1136
      %v1138 = vld [vmem:[%s1053 + $0xc0] sm:$0xf]
      %v1139 = vsel %vm596, %v943, %v1138
      %1140 = vst [vmem:[%s1053 + $0xc0] sm:$0xf] %v1139
      %1141 = vst.msk [vmem:[%s1053 + $0xc4] sm:$0xf] %vm600, %v952
      %v1142 = vld [vmem:[%s1053 + $0xc8] sm:$0x1]
      %v1143 = vsel %vm539, %v953, %v1142
      %1144 = vst [vmem:[%s1053 + $0xc8] sm:$0x1] %v1143
      %v1145 = vld [vmem:[%s1053 + $0xd0] sm:$0xf]
      %v1146 = vsel %vm596, %v960, %v1145
      %1147 = vst [vmem:[%s1053 + $0xd0] sm:$0xf] %v1146
      %1148 = vst.msk [vmem:[%s1053 + $0xd4] sm:$0xf] %vm600, %v969
      %v1149 = vld [vmem:[%s1053 + $0xd8] sm:$0x1]
      %v1150 = vsel %vm539, %v970, %v1149
      %1151 = vst [vmem:[%s1053 + $0xd8] sm:$0x1] %v1150
      %v1152 = vld [vmem:[%s1053 + $0xe0] sm:$0xf]
      %v1153 = vsel %vm596, %v977, %v1152
      %1154 = vst [vmem:[%s1053 + $0xe0] sm:$0xf] %v1153
      %1155 = vst.msk [vmem:[%s1053 + $0xe4] sm:$0xf] %vm600, %v986
      %v1156 = vld [vmem:[%s1053 + $0xe8] sm:$0x1]
      %v1157 = vsel %vm539, %v987, %v1156
      %1158 = vst [vmem:[%s1053 + $0xe8] sm:$0x1] %v1157
      %v1159 = vld [vmem:[%s1053 + $0xf0] sm:$0xf]
      %v1160 = vsel %vm596, %v994, %v1159
      %1161 = vst [vmem:[%s1053 + $0xf0] sm:$0xf] %v1160
      %1162 = vst.msk [vmem:[%s1053 + $0xf4] sm:$0xf] %vm600, %v1003
      %v1163 = vld [vmem:[%s1053 + $0xf8] sm:$0x1]
      %v1164 = vsel %vm539, %v1004, %v1163
      %1165 = vst [vmem:[%s1053 + $0xf8] sm:$0x1] %v1164
      %v1166 = vld [vmem:[%s498] sm:$0xf]
      %v1167 = vld [vmem:[%s498 + $0x4] sm:$0xf]
      %v1169 = vshrl.u32 %v1166, 16
      %v1171 = vrot.slane %v1169, 7
      %v1172 = vshll.u32 %v1166, 16
      %v1174 = vor.u32 %v1171, %v1172
      %v1175 = vrot.slane %v1171, 4
      %v1177 = vshrl.u32 %v1167, 16
      %v1179 = vrot.slane %v1177, 7
      %v1180 = vshll.u32 %v1167, 16
      %v1182 = vor.u32 %v1179, %v1180
      %v1183 = vsel %vm673, %v1175, %v1182
      %v1184 = vrot.slane %v1179, 4
      %s1188 = scalar_lea.vmem [#allocation2], 272
      %v1189 = vld [vmem:[%s1188] sm:$0xf]
      %v1190 = vsel %vm596, %v1174, %v1189
      %1191 = vst [vmem:[%s1188] sm:$0xf] %v1190
      %1192 = vst.msk [vmem:[%s1188 + $0x4] sm:$0xf] %vm600, %v1183
      %v1193 = vld [vmem:[%s1188 + $0x8] sm:$0x1]
      %v1194 = vsel %vm539, %v1184, %v1193
      %1195 = vst [vmem:[%s1188 + $0x8] sm:$0x1] %v1194
      %p1196 = scmp.eq.s32.totalorder %s25, 0
      // Predicated region
      $region45: #{up_module_forward.2} parent=43 // pred_check
        %p1197 = pneg %p1196
      $region46: #{up_module_forward.2} parent=43 // pred_check_branch
        %1199 = sbr.rel (%p1197) target = $region48
      $region47: #{up_module_forward.2} parent=43 // pred_region
        %1200 = vst.msk [vmem:[#allocation2] sm:$0xf] %vm600, 0
        %1201 = vst.msk [vmem:[#allocation2 + $0x4] sm:$0xf] %vm600, 0
        %1202 = vst.msk [vmem:[#allocation2 + $0x8] sm:$0xf] %vm600, 0
        %1203 = vst.msk [vmem:[#allocation2 + $0xc] sm:$0xf] %vm600, 0
        %1204 = vst.msk [vmem:[%s1188] sm:$0xf] %vm600, 0
        %1205 = vst.msk [vmem:[%s1188 + $0x4] sm:$0xf] %vm600, 0
        %1206 = vst.msk [vmem:[%s1188 + $0x8] sm:$0xf] %vm600, 0
        %1207 = vst.msk [vmem:[%s1188 + $0xc] sm:$0xf] %vm600, 0
      $region48: #{up_module_forward.2} parent=43 // pred_fallthru
        _
      %1208 = vst [vmem:[#allocation3] sm:$0xff] 0.0
      %1209 = vst [vmem:[#allocation3 + $0x8] sm:$0xff] 0.0
      %1210 = vst [vmem:[#allocation3 + $0x10] sm:$0x3] 0.0
      %s1211 = smul.u32 %s25, 16
      %s1212 = scalar_lea.vmem %s507, %s1211
      %v1213 = vld [vmem:[%s1212] sm:$0xff]
      %v1214 = vld [vmem:[%s1212 + $0x8] sm:$0xff]
      %1217 = vrot.lane.b32.xlu0 %v1213, 1
      %v1218 = vpop.permute.xlu0 %1217
      %1219 = vrot.lane.b32.xlu0 %v1214, 1
      %v1220 = vpop.permute.xlu0 %1219
      %vm1223 = vcmask 138248
      %1224 = vst.msk [vmem:[#allocation3 + $0x1] sm:$0xff] %vm1223, %v1218
      %1225 = vst.msk [vmem:[#allocation3 + $0x9] sm:$0xff] %vm1223, %v1220
      %p1226 = scmp.gt.s32.totalorder %s25, 0
      // Predicated region
      $region49: #{up_module_forward.2} parent=43 // pred_check
        %p1227 = pneg %p1226
      $region50: #{up_module_forward.2} parent=43 // pred_check_branch
        %1229 = sbr.rel (%p1227) target = $region52
      $region51: #{up_module_forward.2} parent=43 // pred_region
        %s1230 = ssub.s32 %s1211, 1
        %s1231 = scalar_lea.vmem %s507, %s1230
        %v1232 = vld [vmem:[%s1231] sm:$0x1]
        %1234 = vrot.lane.b32.xlu0 %v1232, 1
        %v1235 = vpop.permute.xlu0 %1234
        %vm1237 = vcmask 131080
        %1238 = vst.msk [vmem:[#allocation3] sm:$0x1] %vm1237, %v1235
      $region52: #{up_module_forward.2} parent=43 // pred_fallthru
        _
      %p1239 = scmp.lt.s32.totalorder %s25, 0
      // Predicated region
      $region53: #{up_module_forward.2} parent=43 // pred_check
        %p1240 = pneg %p1239
      $region54: #{up_module_forward.2} parent=43 // pred_check_branch
        %1242 = sbr.rel (%p1240) target = $region56
      $region55: #{up_module_forward.2} parent=43 // pred_region
        %s1243 = sadd.s32 %s1211, 16
        %s1244 = scalar_lea.vmem %s507, %s1243
        %v1245 = vld [vmem:[%s1244] sm:$0x1]
        %1247 = vrot.lane.b32.xlu0 %v1245, 1
        %v1248 = vpop.permute.xlu0 %1247
        %vm1250 = vcmask 131080
        %1251 = vst.msk [vmem:[#allocation3 + $0x11] sm:$0x1] %vm1250, %v1248
      $region56: #{up_module_forward.2} parent=43 // pred_fallthru
        _
      %v1252 = vld [vmem:[#allocation2] sm:$0xf]
      %v1253 = vld [vmem:[#allocation2 + $0x4] sm:$0xf]
      %v1254 = vld [vmem:[#allocation2 + $0x8] sm:$0xf]
      %v1255 = vld [vmem:[#allocation2 + $0xc] sm:$0xf]
      %v1256 = vld [vmem:[#allocation2 + $0x10] sm:$0xf]
      %v1257 = vld [vmem:[#allocation2 + $0x14] sm:$0xf]
      %v1258 = vld [vmem:[#allocation2 + $0x18] sm:$0xf]
      %v1259 = vld [vmem:[#allocation2 + $0x1c] sm:$0xf]
      %v1260 = vld [vmem:[#allocation2 + $0x20] sm:$0xf]
      %v1261 = vld [vmem:[#allocation2 + $0x24] sm:$0xf]
      %v1262 = vld [vmem:[#allocation2 + $0x28] sm:$0xf]
      %v1263 = vld [vmem:[#allocation2 + $0x2c] sm:$0xf]
      %v1264 = vld [vmem:[#allocation2 + $0x30] sm:$0xf]
      %v1265 = vld [vmem:[#allocation2 + $0x34] sm:$0xf]
      %v1266 = vld [vmem:[#allocation2 + $0x38] sm:$0xf]
      %v1267 = vld [vmem:[#allocation2 + $0x3c] sm:$0xf]
      %v1268 = vld [vmem:[#allocation2 + $0x40] sm:$0xf]
      %v1269 = vld [vmem:[#allocation2 + $0x44] sm:$0xf]
      %v1270 = vld [vmem:[#allocation2 + $0x48] sm:$0xf]
      %v1271 = vld [vmem:[#allocation2 + $0x4c] sm:$0xf]
      %v1272 = vld [vmem:[#allocation2 + $0x50] sm:$0xf]
      %v1273 = vld [vmem:[#allocation2 + $0x54] sm:$0xf]
      %v1274 = vld [vmem:[#allocation2 + $0x58] sm:$0xf]
      %v1275 = vld [vmem:[#allocation2 + $0x5c] sm:$0xf]
      %v1276 = vld [vmem:[#allocation2 + $0x60] sm:$0xf]
      %v1277 = vld [vmem:[#allocation2 + $0x64] sm:$0xf]
      %v1278 = vld [vmem:[#allocation2 + $0x68] sm:$0xf]
      %v1279 = vld [vmem:[#allocation2 + $0x6c] sm:$0xf]
      %v1280 = vld [vmem:[#allocation2 + $0x70] sm:$0xf]
      %v1281 = vld [vmem:[#allocation2 + $0x74] sm:$0xf]
      %v1282 = vld [vmem:[#allocation2 + $0x78] sm:$0xf]
      %v1283 = vld [vmem:[#allocation2 + $0x7c] sm:$0xf]
      %v1284 = vld [vmem:[#allocation2 + $0x80] sm:$0xf]
      %v1285 = vld [vmem:[#allocation2 + $0x84] sm:$0xf]
      %v1286 = vld [vmem:[#allocation2 + $0x88] sm:$0xf]
      %v1287 = vld [vmem:[#allocation2 + $0x8c] sm:$0xf]
      %v1288 = vld [vmem:[#allocation2 + $0x90] sm:$0xf]
      %v1289 = vld [vmem:[#allocation2 + $0x94] sm:$0xf]
      %v1290 = vld [vmem:[#allocation2 + $0x98] sm:$0xf]
      %v1291 = vld [vmem:[#allocation2 + $0x9c] sm:$0xf]
      %v1292 = vld [vmem:[#allocation2 + $0xa0] sm:$0xf]
      %v1293 = vld [vmem:[#allocation2 + $0xa4] sm:$0xf]
      %v1294 = vld [vmem:[#allocation2 + $0xa8] sm:$0xf]
      %v1295 = vld [vmem:[#allocation2 + $0xac] sm:$0xf]
      %v1296 = vld [vmem:[#allocation2 + $0xb0] sm:$0xf]
      %v1297 = vld [vmem:[#allocation2 + $0xb4] sm:$0xf]
      %v1298 = vld [vmem:[#allocation2 + $0xb8] sm:$0xf]
      %v1299 = vld [vmem:[#allocation2 + $0xbc] sm:$0xf]
      %v1300 = vld [vmem:[#allocation2 + $0xc0] sm:$0xf]
      %v1301 = vld [vmem:[#allocation2 + $0xc4] sm:$0xf]
      %v1302 = vld [vmem:[#allocation2 + $0xc8] sm:$0xf]
      %v1303 = vld [vmem:[#allocation2 + $0xcc] sm:$0xf]
      %v1304 = vld [vmem:[#allocation2 + $0xd0] sm:$0xf]
      %v1305 = vld [vmem:[#allocation2 + $0xd4] sm:$0xf]
      %v1306 = vld [vmem:[#allocation2 + $0xd8] sm:$0xf]
      %v1307 = vld [vmem:[#allocation2 + $0xdc] sm:$0xf]
      %v1308 = vld [vmem:[#allocation2 + $0xe0] sm:$0xf]
      %v1309 = vld [vmem:[#allocation2 + $0xe4] sm:$0xf]
      %v1310 = vld [vmem:[#allocation2 + $0xe8] sm:$0xf]
      %v1311 = vld [vmem:[#allocation2 + $0xec] sm:$0xf]
      %v1312 = vld [vmem:[#allocation2 + $0xf0] sm:$0xf]
      %v1313 = vld [vmem:[#allocation2 + $0xf4] sm:$0xf]
      %v1314 = vld [vmem:[#allocation2 + $0xf8] sm:$0xf]
      %v1315 = vld [vmem:[#allocation2 + $0xfc] sm:$0xf]
      %v1316 = vld [vmem:[%s4] sm:$0xff]
      %v1317 = vld [vmem:[%s4 + $0x8] sm:$0xf]
      %v1382 = vunpack.c.l.b16 %v1252
      %v1383 = vunpack.c.l.b16 %v1253
      %v1384 = vunpack.c.l.b16 %v1254
      %v1385 = vunpack.c.l.b16 %v1255
      %v1386 = vunpack.c.l.b16 %v1256
      %v1387 = vunpack.c.l.b16 %v1257
      %v1388 = vunpack.c.l.b16 %v1258
      %v1389 = vunpack.c.l.b16 %v1259
      %v1390 = vunpack.c.l.b16 %v1260
      %v1391 = vunpack.c.l.b16 %v1261
      %v1392 = vunpack.c.l.b16 %v1262
      %v1393 = vunpack.c.l.b16 %v1263
      %v1394 = vunpack.c.l.b16 %v1264
      %v1395 = vunpack.c.l.b16 %v1265
      %v1396 = vunpack.c.l.b16 %v1266
      %v1397 = vunpack.c.l.b16 %v1267
      %v1398 = vunpack.c.l.b16 %v1268
      %v1399 = vunpack.c.l.b16 %v1269
      %v1400 = vunpack.c.l.b16 %v1270
      %v1401 = vunpack.c.l.b16 %v1271
      %v1402 = vunpack.c.l.b16 %v1272
      %v1403 = vunpack.c.l.b16 %v1273
      %v1404 = vunpack.c.l.b16 %v1274
      %v1405 = vunpack.c.l.b16 %v1275
      %v1406 = vunpack.c.l.b16 %v1276
      %v1407 = vunpack.c.l.b16 %v1277
      %v1408 = vunpack.c.l.b16 %v1278
      %v1409 = vunpack.c.l.b16 %v1279
      %v1410 = vunpack.c.l.b16 %v1280
      %v1411 = vunpack.c.l.b16 %v1281
      %v1412 = vunpack.c.l.b16 %v1282
      %v1413 = vunpack.c.l.b16 %v1283
      %v1414 = vunpack.c.l.b16 %v1284
      %v1415 = vunpack.c.l.b16 %v1285
      %v1416 = vunpack.c.l.b16 %v1286
      %v1417 = vunpack.c.l.b16 %v1287
      %v1418 = vunpack.c.l.b16 %v1288
      %v1419 = vunpack.c.l.b16 %v1289
      %v1420 = vunpack.c.l.b16 %v1290
      %v1421 = vunpack.c.l.b16 %v1291
      %v1422 = vunpack.c.l.b16 %v1292
      %v1423 = vunpack.c.l.b16 %v1293
      %v1424 = vunpack.c.l.b16 %v1294
      %v1425 = vunpack.c.l.b16 %v1295
      %v1426 = vunpack.c.l.b16 %v1296
      %v1427 = vunpack.c.l.b16 %v1297
      %v1428 = vunpack.c.l.b16 %v1298
      %v1429 = vunpack.c.l.b16 %v1299
      %v1430 = vunpack.c.l.b16 %v1300
      %v1431 = vunpack.c.l.b16 %v1301
      %v1432 = vunpack.c.l.b16 %v1302
      %v1433 = vunpack.c.l.b16 %v1303
      %v1434 = vunpack.c.l.b16 %v1304
      %v1435 = vunpack.c.l.b16 %v1305
      %v1436 = vunpack.c.l.b16 %v1306
      %v1437 = vunpack.c.l.b16 %v1307
      %v1438 = vunpack.c.l.b16 %v1308
      %v1439 = vunpack.c.l.b16 %v1309
      %v1440 = vunpack.c.l.b16 %v1310
      %v1441 = vunpack.c.l.b16 %v1311
      %v1442 = vunpack.c.l.b16 %v1312
      %v1443 = vunpack.c.l.b16 %v1313
      %v1444 = vunpack.c.l.b16 %v1314
      %v1445 = vunpack.c.l.b16 %v1315
      %v1446 = vpack.c.b16 %v1383, %v1382
      %v1447 = vpack.c.b16 %v1385, %v1384
      %v1448 = vpack.c.b16 %v1387, %v1386
      %v1449 = vpack.c.b16 %v1389, %v1388
      %v1450 = vpack.c.b16 %v1391, %v1390
      %v1451 = vpack.c.b16 %v1393, %v1392
      %v1452 = vpack.c.b16 %v1395, %v1394
      %v1453 = vpack.c.b16 %v1397, %v1396
      %v1454 = vpack.c.b16 %v1399, %v1398
      %v1455 = vpack.c.b16 %v1401, %v1400
      %v1456 = vpack.c.b16 %v1403, %v1402
      %v1457 = vpack.c.b16 %v1405, %v1404
      %v1458 = vpack.c.b16 %v1407, %v1406
      %v1459 = vpack.c.b16 %v1409, %v1408
      %v1460 = vpack.c.b16 %v1411, %v1410
      %v1461 = vpack.c.b16 %v1413, %v1412
      %v1462 = vpack.c.b16 %v1415, %v1414
      %v1463 = vpack.c.b16 %v1417, %v1416
      %v1464 = vpack.c.b16 %v1419, %v1418
      %v1465 = vpack.c.b16 %v1421, %v1420
      %v1466 = vpack.c.b16 %v1423, %v1422
      %v1467 = vpack.c.b16 %v1425, %v1424
      %v1468 = vpack.c.b16 %v1427, %v1426
      %v1469 = vpack.c.b16 %v1429, %v1428
      %v1470 = vpack.c.b16 %v1431, %v1430
      %v1471 = vpack.c.b16 %v1433, %v1432
      %v1472 = vpack.c.b16 %v1435, %v1434
      %v1473 = vpack.c.b16 %v1437, %v1436
      %v1474 = vpack.c.b16 %v1439, %v1438
      %v1475 = vpack.c.b16 %v1441, %v1440
      %v1476 = vpack.c.b16 %v1443, %v1442
      %v1477 = vpack.c.b16 %v1445, %v1444
      %v1480 = vunpack.c.l.b16 %v1316
      %v1481 = vunpack.c.h.b16 %v1316
      %v1482 = vunpack.c.l.b16 %v1317
      %v1483 = vpack.c.b16 %v1480, %v1480
      %v1484 = vpack.c.b16 %v1481, %v1481
      %v1485 = vpack.c.b16 %v1482, %v1482
      %vm1486 = vcmask 64512
      %v1488 = vsel %vm1486, %v1446, 0
      %v1491 = vsel %vm1486, %v1447, 0
      %v1494 = vsel %vm1486, %v1448, 0
      %v1497 = vsel %vm1486, %v1449, 0
      %v1500 = vsel %vm1486, %v1450, 0
      %v1503 = vsel %vm1486, %v1451, 0
      %v1506 = vsel %vm1486, %v1452, 0
      %v1509 = vsel %vm1486, %v1453, 0
      %v1512 = vsel %vm1486, %v1454, 0
      %v1515 = vsel %vm1486, %v1455, 0
      %v1518 = vsel %vm1486, %v1456, 0
      %v1521 = vsel %vm1486, %v1457, 0
      %v1524 = vsel %vm1486, %v1458, 0
      %v1527 = vsel %vm1486, %v1459, 0
      %v1530 = vsel %vm1486, %v1460, 0
      %v1533 = vsel %vm1486, %v1461, 0
      %v1536 = vsel %vm1486, %v1462, 0
      %v1539 = vsel %vm1486, %v1463, 0
      %v1542 = vsel %vm1486, %v1464, 0
      %v1545 = vsel %vm1486, %v1465, 0
      %v1548 = vsel %vm1486, %v1466, 0
      %v1551 = vsel %vm1486, %v1467, 0
      %v1554 = vsel %vm1486, %v1468, 0
      %v1557 = vsel %vm1486, %v1469, 0
      %v1560 = vsel %vm1486, %v1470, 0
      %v1563 = vsel %vm1486, %v1471, 0
      %v1566 = vsel %vm1486, %v1472, 0
      %v1569 = vsel %vm1486, %v1473, 0
      %v1572 = vsel %vm1486, %v1474, 0
      %v1575 = vsel %vm1486, %v1475, 0
      %v1578 = vsel %vm1486, %v1476, 0
      %v1581 = vsel %vm1486, %v1477, 0
      %vm1583 = vcmask 1043456
      %v1585 = vsel %vm1583, %v1483, 0
      %v1588 = vsel %vm1583, %v1484, 0
      %v1591 = vsel %vm1583, %v1485, 0
      %1593 = vmatpush.bf16.msra.mxu0 0
      %1594 = vmatpush.bf16.msra.mxu0 0
      %1595 = vmatpush.bf16.msra.mxu0 0
      %1596 = vmatpush.bf16.msra.mxu0 0
      %1597 = vmatpush.bf16.msra.mxu0 0
      %1598 = vmatpush.bf16.msra.mxu0 0
      %1599 = vmatpush.bf16.msra.mxu0 0
      %1600 = vmatpush.bf16.msra.mxu0 %v1585
      %1601 = vmatmul.bf16.gmra.mxu0 %v1488
      %v1602 = vpop.f32.mrf.mxu0
      %v1603 = vadd.f32 0.0, %v1602
      %v1604 = vpop.f32.mrf.mxu0
      %v1605 = vadd.f32 0.0, %v1604
      %1606 = vmatmul.bf16.gmra.mxu0 %v1491
      %v1607 = vpop.f32.mrf.mxu0
      %v1608 = vpop.f32.mrf.mxu0
      %1609 = vmatmul.bf16.gmra.mxu0 %v1494
      %v1610 = vpop.f32.mrf.mxu0
      %v1611 = vadd.f32 0.0, %v1610
      %v1612 = vpop.f32.mrf.mxu0
      %v1613 = vadd.f32 0.0, %v1612
      %1614 = vmatmul.bf16.gmra.mxu0 %v1497
      %v1615 = vpop.f32.mrf.mxu0
      %v1616 = vpop.f32.mrf.mxu0
      %1617 = vmatmul.bf16.gmra.mxu0 %v1500
      %v1618 = vpop.f32.mrf.mxu0
      %v1619 = vadd.f32 0.0, %v1618
      %v1620 = vpop.f32.mrf.mxu0
      %v1621 = vadd.f32 0.0, %v1620
      %1622 = vmatmul.bf16.gmra.mxu0 %v1503
      %v1623 = vpop.f32.mrf.mxu0
      %v1624 = vpop.f32.mrf.mxu0
      %1625 = vmatmul.bf16.gmra.mxu0 %v1506
      %v1626 = vpop.f32.mrf.mxu0
      %v1627 = vadd.f32 0.0, %v1626
      %v1628 = vpop.f32.mrf.mxu0
      %v1629 = vadd.f32 0.0, %v1628
      %1630 = vmatmul.bf16.gmra.mxu0 %v1509
      %v1631 = vpop.f32.mrf.mxu0
      %v1632 = vpop.f32.mrf.mxu0
      %1633 = vmatmul.bf16.gmra.mxu0 %v1512
      %v1634 = vpop.f32.mrf.mxu0
      %v1635 = vadd.f32 0.0, %v1634
      %v1636 = vpop.f32.mrf.mxu0
      %v1637 = vadd.f32 0.0, %v1636
      %1638 = vmatmul.bf16.gmra.mxu0 %v1515
      %v1639 = vpop.f32.mrf.mxu0
      %v1640 = vpop.f32.mrf.mxu0
      %1641 = vmatmul.bf16.gmra.mxu0 %v1518
      %v1642 = vpop.f32.mrf.mxu0
      %v1643 = vadd.f32 0.0, %v1642
      %v1644 = vpop.f32.mrf.mxu0
      %v1645 = vadd.f32 0.0, %v1644
      %1646 = vmatmul.bf16.gmra.mxu0 %v1521
      %v1647 = vpop.f32.mrf.mxu0
      %v1648 = vpop.f32.mrf.mxu0
      %1649 = vmatmul.bf16.gmra.mxu0 %v1524
      %v1650 = vpop.f32.mrf.mxu0
      %v1651 = vadd.f32 0.0, %v1650
      %v1652 = vpop.f32.mrf.mxu0
      %v1653 = vadd.f32 0.0, %v1652
      %1654 = vmatmul.bf16.gmra.mxu0 %v1527
      %v1655 = vpop.f32.mrf.mxu0
      %v1656 = vpop.f32.mrf.mxu0
      %1657 = vmatmul.bf16.gmra.mxu0 %v1530
      %v1658 = vpop.f32.mrf.mxu0
      %v1659 = vadd.f32 0.0, %v1658
      %v1660 = vpop.f32.mrf.mxu0
      %v1661 = vadd.f32 0.0, %v1660
      %1662 = vmatmul.bf16.gmra.mxu0 %v1533
      %v1663 = vpop.f32.mrf.mxu0
      %v1664 = vpop.f32.mrf.mxu0
      %1665 = vmatmul.bf16.gmra.mxu0 %v1536
      %v1666 = vpop.f32.mrf.mxu0
      %v1667 = vadd.f32 0.0, %v1666
      %v1668 = vpop.f32.mrf.mxu0
      %v1669 = vadd.f32 0.0, %v1668
      %1670 = vmatmul.bf16.gmra.mxu0 %v1539
      %v1671 = vpop.f32.mrf.mxu0
      %v1672 = vpop.f32.mrf.mxu0
      %1673 = vmatmul.bf16.gmra.mxu0 %v1542
      %v1674 = vpop.f32.mrf.mxu0
      %v1675 = vadd.f32 0.0, %v1674
      %v1676 = vpop.f32.mrf.mxu0
      %v1677 = vadd.f32 0.0, %v1676
      %1678 = vmatmul.bf16.gmra.mxu0 %v1545
      %v1679 = vpop.f32.mrf.mxu0
      %v1680 = vpop.f32.mrf.mxu0
      %1681 = vmatmul.bf16.gmra.mxu0 %v1548
      %v1682 = vpop.f32.mrf.mxu0
      %v1683 = vadd.f32 0.0, %v1682
      %v1684 = vpop.f32.mrf.mxu0
      %v1685 = vadd.f32 0.0, %v1684
      %1686 = vmatmul.bf16.gmra.mxu0 %v1551
      %v1687 = vpop.f32.mrf.mxu0
      %v1688 = vpop.f32.mrf.mxu0
      %1689 = vmatmul.bf16.gmra.mxu0 %v1554
      %v1690 = vpop.f32.mrf.mxu0
      %v1691 = vadd.f32 0.0, %v1690
      %v1692 = vpop.f32.mrf.mxu0
      %v1693 = vadd.f32 0.0, %v1692
      %1694 = vmatmul.bf16.gmra.mxu0 %v1557
      %v1695 = vpop.f32.mrf.mxu0
      %v1696 = vpop.f32.mrf.mxu0
      %1697 = vmatmul.bf16.gmra.mxu0 %v1560
      %v1698 = vpop.f32.mrf.mxu0
      %v1699 = vadd.f32 0.0, %v1698
      %v1700 = vpop.f32.mrf.mxu0
      %v1701 = vadd.f32 0.0, %v1700
      %1702 = vmatmul.bf16.gmra.mxu0 %v1563
      %v1703 = vpop.f32.mrf.mxu0
      %v1704 = vpop.f32.mrf.mxu0
      %1705 = vmatmul.bf16.gmra.mxu0 %v1566
      %v1706 = vpop.f32.mrf.mxu0
      %v1707 = vadd.f32 0.0, %v1706
      %v1708 = vpop.f32.mrf.mxu0
      %v1709 = vadd.f32 0.0, %v1708
      %1710 = vmatmul.bf16.gmra.mxu0 %v1569
      %v1711 = vpop.f32.mrf.mxu0
      %v1712 = vpop.f32.mrf.mxu0
      %1713 = vmatmul.bf16.gmra.mxu0 %v1572
      %v1714 = vpop.f32.mrf.mxu0
      %v1715 = vadd.f32 0.0, %v1714
      %v1716 = vpop.f32.mrf.mxu0
      %v1717 = vadd.f32 0.0, %v1716
      %1718 = vmatmul.bf16.gmra.mxu0 %v1575
      %v1719 = vpop.f32.mrf.mxu0
      %v1720 = vpop.f32.mrf.mxu0
      %1721 = vmatmul.bf16.gmra.mxu0 %v1578
      %v1722 = vpop.f32.mrf.mxu0
      %v1723 = vadd.f32 0.0, %v1722
      %v1724 = vpop.f32.mrf.mxu0
      %v1725 = vadd.f32 0.0, %v1724
      %1726 = vmatmul.bf16.gmra.mxu0 %v1581
      %v1727 = vpop.f32.mrf.mxu0
      %v1728 = vpop.f32.mrf.mxu0
      %1729 = vdwg.mxu0
      %1730 = vmatpush.bf16.msra.mxu0 0
      %1731 = vmatpush.bf16.msra.mxu0 0
      %1732 = vmatpush.bf16.msra.mxu0 0
      %1733 = vmatpush.bf16.msra.mxu0 0
      %1734 = vmatpush.bf16.msra.mxu0 0
      %1735 = vmatpush.bf16.msra.mxu0 0
      %1736 = vmatpush.bf16.msra.mxu0 0
      %1737 = vmatpush.bf16.msra.mxu0 %v1588
      %1738 = vmatmul.bf16.gmra.mxu0 %v1488
      %v1739 = vpop.f32.mrf.mxu0
      %v1740 = vadd.f32 0.0, %v1739
      %v1741 = vpop.f32.mrf.mxu0
      %v1742 = vadd.f32 0.0, %v1741
      %1743 = vmatmul.bf16.gmra.mxu0 %v1491
      %v1744 = vpop.f32.mrf.mxu0
      %v1745 = vadd.f32 0.0, %v1744
      %v1746 = vpop.f32.mrf.mxu0
      %1747 = vmatmul.bf16.gmra.mxu0 %v1494
      %v1748 = vpop.f32.mrf.mxu0
      %v1749 = vadd.f32 0.0, %v1748
      %v1750 = vpop.f32.mrf.mxu0
      %v1751 = vadd.f32 0.0, %v1750
      %1752 = vmatmul.bf16.gmra.mxu0 %v1497
      %v1753 = vpop.f32.mrf.mxu0
      %v1754 = vadd.f32 0.0, %v1753
      %v1755 = vpop.f32.mrf.mxu0
      %1756 = vmatmul.bf16.gmra.mxu0 %v1500
      %v1757 = vpop.f32.mrf.mxu0
      %v1758 = vadd.f32 0.0, %v1757
      %v1759 = vpop.f32.mrf.mxu0
      %v1760 = vadd.f32 0.0, %v1759
      %1761 = vmatmul.bf16.gmra.mxu0 %v1503
      %v1762 = vpop.f32.mrf.mxu0
      %v1763 = vadd.f32 0.0, %v1762
      %v1764 = vpop.f32.mrf.mxu0
      %1765 = vmatmul.bf16.gmra.mxu0 %v1506
      %v1766 = vpop.f32.mrf.mxu0
      %v1767 = vadd.f32 0.0, %v1766
      %v1768 = vpop.f32.mrf.mxu0
      %v1769 = vadd.f32 0.0, %v1768
      %1770 = vmatmul.bf16.gmra.mxu0 %v1509
      %v1771 = vpop.f32.mrf.mxu0
      %v1772 = vadd.f32 0.0, %v1771
      %v1773 = vpop.f32.mrf.mxu0
      %1774 = vmatmul.bf16.gmra.mxu0 %v1512
      %v1775 = vpop.f32.mrf.mxu0
      %v1776 = vadd.f32 0.0, %v1775
      %v1777 = vpop.f32.mrf.mxu0
      %v1778 = vadd.f32 0.0, %v1777
      %1779 = vmatmul.bf16.gmra.mxu0 %v1515
      %v1780 = vpop.f32.mrf.mxu0
      %v1781 = vadd.f32 0.0, %v1780
      %v1782 = vpop.f32.mrf.mxu0
      %1783 = vmatmul.bf16.gmra.mxu0 %v1518
      %v1784 = vpop.f32.mrf.mxu0
      %v1785 = vadd.f32 0.0, %v1784
      %v1786 = vpop.f32.mrf.mxu0
      %v1787 = vadd.f32 0.0, %v1786
      %1788 = vmatmul.bf16.gmra.mxu0 %v1521
      %v1789 = vpop.f32.mrf.mxu0
      %v1790 = vadd.f32 0.0, %v1789
      %v1791 = vpop.f32.mrf.mxu0
      %1792 = vmatmul.bf16.gmra.mxu0 %v1524
      %v1793 = vpop.f32.mrf.mxu0
      %v1794 = vadd.f32 0.0, %v1793
      %v1795 = vpop.f32.mrf.mxu0
      %v1796 = vadd.f32 0.0, %v1795
      %1797 = vmatmul.bf16.gmra.mxu0 %v1527
      %v1798 = vpop.f32.mrf.mxu0
      %v1799 = vadd.f32 0.0, %v1798
      %v1800 = vpop.f32.mrf.mxu0
      %1801 = vmatmul.bf16.gmra.mxu0 %v1530
      %v1802 = vpop.f32.mrf.mxu0
      %v1803 = vadd.f32 0.0, %v1802
      %v1804 = vpop.f32.mrf.mxu0
      %v1805 = vadd.f32 0.0, %v1804
      %1806 = vmatmul.bf16.gmra.mxu0 %v1533
      %v1807 = vpop.f32.mrf.mxu0
      %v1808 = vadd.f32 0.0, %v1807
      %v1809 = vpop.f32.mrf.mxu0
      %1810 = vmatmul.bf16.gmra.mxu0 %v1536
      %v1811 = vpop.f32.mrf.mxu0
      %v1812 = vadd.f32 0.0, %v1811
      %v1813 = vpop.f32.mrf.mxu0
      %v1814 = vadd.f32 0.0, %v1813
      %1815 = vmatmul.bf16.gmra.mxu0 %v1539
      %v1816 = vpop.f32.mrf.mxu0
      %v1817 = vadd.f32 0.0, %v1816
      %v1818 = vpop.f32.mrf.mxu0
      %1819 = vmatmul.bf16.gmra.mxu0 %v1542
      %v1820 = vpop.f32.mrf.mxu0
      %v1821 = vadd.f32 0.0, %v1820
      %v1822 = vpop.f32.mrf.mxu0
      %v1823 = vadd.f32 0.0, %v1822
      %1824 = vmatmul.bf16.gmra.mxu0 %v1545
      %v1825 = vpop.f32.mrf.mxu0
      %v1826 = vadd.f32 0.0, %v1825
      %v1827 = vpop.f32.mrf.mxu0
      %1828 = vmatmul.bf16.gmra.mxu0 %v1548
      %v1829 = vpop.f32.mrf.mxu0
      %v1830 = vadd.f32 0.0, %v1829
      %v1831 = vpop.f32.mrf.mxu0
      %v1832 = vadd.f32 0.0, %v1831
      %1833 = vmatmul.bf16.gmra.mxu0 %v1551
      %v1834 = vpop.f32.mrf.mxu0
      %v1835 = vadd.f32 0.0, %v1834
      %v1836 = vpop.f32.mrf.mxu0
      %1837 = vmatmul.bf16.gmra.mxu0 %v1554
      %v1838 = vpop.f32.mrf.mxu0
      %v1839 = vadd.f32 0.0, %v1838
      %v1840 = vpop.f32.mrf.mxu0
      %v1841 = vadd.f32 0.0, %v1840
      %1842 = vmatmul.bf16.gmra.mxu0 %v1557
      %v1843 = vpop.f32.mrf.mxu0
      %v1844 = vadd.f32 0.0, %v1843
      %v1845 = vpop.f32.mrf.mxu0
      %1846 = vmatmul.bf16.gmra.mxu0 %v1560
      %v1847 = vpop.f32.mrf.mxu0
      %v1848 = vadd.f32 0.0, %v1847
      %v1849 = vpop.f32.mrf.mxu0
      %v1850 = vadd.f32 0.0, %v1849
      %1851 = vmatmul.bf16.gmra.mxu0 %v1563
      %v1852 = vpop.f32.mrf.mxu0
      %v1853 = vadd.f32 0.0, %v1852
      %v1854 = vpop.f32.mrf.mxu0
      %1855 = vmatmul.bf16.gmra.mxu0 %v1566
      %v1856 = vpop.f32.mrf.mxu0
      %v1857 = vadd.f32 0.0, %v1856
      %v1858 = vpop.f32.mrf.mxu0
      %v1859 = vadd.f32 0.0, %v1858
      %1860 = vmatmul.bf16.gmra.mxu0 %v1569
      %v1861 = vpop.f32.mrf.mxu0
      %v1862 = vadd.f32 0.0, %v1861
      %v1863 = vpop.f32.mrf.mxu0
      %1864 = vmatmul.bf16.gmra.mxu0 %v1572
      %v1865 = vpop.f32.mrf.mxu0
      %v1866 = vadd.f32 0.0, %v1865
      %v1867 = vpop.f32.mrf.mxu0
      %v1868 = vadd.f32 0.0, %v1867
      %1869 = vmatmul.bf16.gmra.mxu0 %v1575
      %v1870 = vpop.f32.mrf.mxu0
      %v1871 = vadd.f32 0.0, %v1870
      %v1872 = vpop.f32.mrf.mxu0
      %1873 = vmatmul.bf16.gmra.mxu0 %v1578
      %v1874 = vpop.f32.mrf.mxu0
      %v1875 = vadd.f32 0.0, %v1874
      %v1876 = vpop.f32.mrf.mxu0
      %v1877 = vadd.f32 0.0, %v1876
      %1878 = vmatmul.bf16.gmra.mxu0 %v1581
      %v1879 = vpop.f32.mrf.mxu0
      %v1880 = vadd.f32 0.0, %v1879
      %v1881 = vpop.f32.mrf.mxu0
      %1882 = vdwg.mxu0
      %1883 = vmatpush.bf16.msra.mxu0 0
      %1884 = vmatpush.bf16.msra.mxu0 0
      %1885 = vmatpush.bf16.msra.mxu0 0
      %1886 = vmatpush.bf16.msra.mxu0 0
      %1887 = vmatpush.bf16.msra.mxu0 0
      %1888 = vmatpush.bf16.msra.mxu0 0
      %1889 = vmatpush.bf16.msra.mxu0 0
      %1890 = vmatpush.bf16.msra.mxu0 %v1591
      %1891 = vmatmul.bf16.gmra.mxu0 %v1488
      %v1892 = vpop.f32.mrf.mxu0
      %v1893 = vadd.f32 0.0, %v1892
      %v1894 = vpop.f32.mrf.mxu0
      %v1895 = vadd.f32 0.0, %v1894
      %1896 = vmatmul.bf16.gmra.mxu0 %v1491
      %v1897 = vpop.f32.mrf.mxu0
      %v1898 = vadd.f32 0.0, %v1897
      %v1899 = vpop.f32.mrf.mxu0
      %1900 = vmatmul.bf16.gmra.mxu0 %v1494
      %v1901 = vpop.f32.mrf.mxu0
      %v1902 = vadd.f32 0.0, %v1901
      %v1903 = vpop.f32.mrf.mxu0
      %v1904 = vadd.f32 0.0, %v1903
      %1905 = vmatmul.bf16.gmra.mxu0 %v1497
      %v1906 = vpop.f32.mrf.mxu0
      %v1907 = vadd.f32 0.0, %v1906
      %v1908 = vpop.f32.mrf.mxu0
      %1909 = vmatmul.bf16.gmra.mxu0 %v1500
      %v1910 = vpop.f32.mrf.mxu0
      %v1911 = vadd.f32 0.0, %v1910
      %v1912 = vpop.f32.mrf.mxu0
      %v1913 = vadd.f32 0.0, %v1912
      %1914 = vmatmul.bf16.gmra.mxu0 %v1503
      %v1915 = vpop.f32.mrf.mxu0
      %v1916 = vadd.f32 0.0, %v1915
      %v1917 = vpop.f32.mrf.mxu0
      %1918 = vmatmul.bf16.gmra.mxu0 %v1506
      %v1919 = vpop.f32.mrf.mxu0
      %v1920 = vadd.f32 0.0, %v1919
      %v1921 = vpop.f32.mrf.mxu0
      %v1922 = vadd.f32 0.0, %v1921
      %1923 = vmatmul.bf16.gmra.mxu0 %v1509
      %v1924 = vpop.f32.mrf.mxu0
      %v1925 = vadd.f32 0.0, %v1924
      %v1926 = vpop.f32.mrf.mxu0
      %1927 = vmatmul.bf16.gmra.mxu0 %v1512
      %v1928 = vpop.f32.mrf.mxu0
      %v1929 = vadd.f32 0.0, %v1928
      %v1930 = vpop.f32.mrf.mxu0
      %v1931 = vadd.f32 0.0, %v1930
      %1932 = vmatmul.bf16.gmra.mxu0 %v1515
      %v1933 = vpop.f32.mrf.mxu0
      %v1934 = vadd.f32 0.0, %v1933
      %v1935 = vpop.f32.mrf.mxu0
      %1936 = vmatmul.bf16.gmra.mxu0 %v1518
      %v1937 = vpop.f32.mrf.mxu0
      %v1938 = vadd.f32 0.0, %v1937
      %v1939 = vpop.f32.mrf.mxu0
      %v1940 = vadd.f32 0.0, %v1939
      %1941 = vmatmul.bf16.gmra.mxu0 %v1521
      %v1942 = vpop.f32.mrf.mxu0
      %v1943 = vadd.f32 0.0, %v1942
      %v1944 = vpop.f32.mrf.mxu0
      %1945 = vmatmul.bf16.gmra.mxu0 %v1524
      %v1946 = vpop.f32.mrf.mxu0
      %v1947 = vadd.f32 0.0, %v1946
      %v1948 = vpop.f32.mrf.mxu0
      %v1949 = vadd.f32 0.0, %v1948
      %1950 = vmatmul.bf16.gmra.mxu0 %v1527
      %v1951 = vpop.f32.mrf.mxu0
      %v1952 = vadd.f32 0.0, %v1951
      %v1953 = vpop.f32.mrf.mxu0
      %1954 = vmatmul.bf16.gmra.mxu0 %v1530
      %v1955 = vpop.f32.mrf.mxu0
      %v1956 = vadd.f32 0.0, %v1955
      %v1957 = vpop.f32.mrf.mxu0
      %v1958 = vadd.f32 0.0, %v1957
      %1959 = vmatmul.bf16.gmra.mxu0 %v1533
      %v1960 = vpop.f32.mrf.mxu0
      %v1961 = vadd.f32 0.0, %v1960
      %v1962 = vpop.f32.mrf.mxu0
      %1963 = vmatmul.bf16.gmra.mxu0 %v1536
      %v1964 = vpop.f32.mrf.mxu0
      %v1965 = vadd.f32 0.0, %v1964
      %v1966 = vpop.f32.mrf.mxu0
      %v1967 = vadd.f32 0.0, %v1966
      %1968 = vmatmul.bf16.gmra.mxu0 %v1539
      %v1969 = vpop.f32.mrf.mxu0
      %v1970 = vadd.f32 0.0, %v1969
      %v1971 = vpop.f32.mrf.mxu0
      %1972 = vmatmul.bf16.gmra.mxu0 %v1542
      %v1973 = vpop.f32.mrf.mxu0
      %v1974 = vadd.f32 0.0, %v1973
      %v1975 = vpop.f32.mrf.mxu0
      %v1976 = vadd.f32 0.0, %v1975
      %1977 = vmatmul.bf16.gmra.mxu0 %v1545
      %v1978 = vpop.f32.mrf.mxu0
      %v1979 = vadd.f32 0.0, %v1978
      %v1980 = vpop.f32.mrf.mxu0
      %1981 = vmatmul.bf16.gmra.mxu0 %v1548
      %v1982 = vpop.f32.mrf.mxu0
      %v1983 = vadd.f32 0.0, %v1982
      %v1984 = vpop.f32.mrf.mxu0
      %v1985 = vadd.f32 0.0, %v1984
      %1986 = vmatmul.bf16.gmra.mxu0 %v1551
      %v1987 = vpop.f32.mrf.mxu0
      %v1988 = vadd.f32 0.0, %v1987
      %v1989 = vpop.f32.mrf.mxu0
      %1990 = vmatmul.bf16.gmra.mxu0 %v1554
      %v1991 = vpop.f32.mrf.mxu0
      %v1992 = vadd.f32 0.0, %v1991
      %v1993 = vpop.f32.mrf.mxu0
      %v1994 = vadd.f32 0.0, %v1993
      %1995 = vmatmul.bf16.gmra.mxu0 %v1557
      %v1996 = vpop.f32.mrf.mxu0
      %v1997 = vadd.f32 0.0, %v1996
      %v1998 = vpop.f32.mrf.mxu0
      %1999 = vmatmul.bf16.gmra.mxu0 %v1560
      %v2000 = vpop.f32.mrf.mxu0
      %v2001 = vadd.f32 0.0, %v2000
      %v2002 = vpop.f32.mrf.mxu0
      %v2003 = vadd.f32 0.0, %v2002
      %2004 = vmatmul.bf16.gmra.mxu0 %v1563
      %v2005 = vpop.f32.mrf.mxu0
      %v2006 = vadd.f32 0.0, %v2005
      %v2007 = vpop.f32.mrf.mxu0
      %2008 = vmatmul.bf16.gmra.mxu0 %v1566
      %v2009 = vpop.f32.mrf.mxu0
      %v2010 = vadd.f32 0.0, %v2009
      %v2011 = vpop.f32.mrf.mxu0
      %v2012 = vadd.f32 0.0, %v2011
      %2013 = vmatmul.bf16.gmra.mxu0 %v1569
      %v2014 = vpop.f32.mrf.mxu0
      %v2015 = vadd.f32 0.0, %v2014
      %v2016 = vpop.f32.mrf.mxu0
      %2017 = vmatmul.bf16.gmra.mxu0 %v1572
      %v2018 = vpop.f32.mrf.mxu0
      %v2019 = vadd.f32 0.0, %v2018
      %v2020 = vpop.f32.mrf.mxu0
      %v2021 = vadd.f32 0.0, %v2020
      %2022 = vmatmul.bf16.gmra.mxu0 %v1575
      %v2023 = vpop.f32.mrf.mxu0
      %v2024 = vadd.f32 0.0, %v2023
      %v2025 = vpop.f32.mrf.mxu0
      %2026 = vmatmul.bf16.gmra.mxu0 %v1578
      %v2027 = vpop.f32.mrf.mxu0
      %v2028 = vadd.f32 0.0, %v2027
      %v2029 = vpop.f32.mrf.mxu0
      %v2030 = vadd.f32 0.0, %v2029
      %2031 = vmatmul.bf16.gmra.mxu0 %v1581
      %v2032 = vpop.f32.mrf.mxu0
      %v2033 = vadd.f32 0.0, %v2032
      %v2034 = vpop.f32.mrf.mxu0
      %2035 = vdwg.mxu0
      %2036 = vst [vmem:[#allocation4] sm:$0xff] %v1603
      %2037 = vst [vmem:[#allocation4 + $0x8] sm:$0xff] %v1605
      %2038 = vst [vmem:[#allocation4 + $0x10] sm:$0xff] %v1611
      %2039 = vst [vmem:[#allocation4 + $0x18] sm:$0xff] %v1613
      %2040 = vst [vmem:[#allocation4 + $0x20] sm:$0xff] %v1619
      %2041 = vst [vmem:[#allocation4 + $0x28] sm:$0xff] %v1621
      %2042 = vst [vmem:[#allocation4 + $0x30] sm:$0xff] %v1627
      %2043 = vst [vmem:[#allocation4 + $0x38] sm:$0xff] %v1629
      %2044 = vst [vmem:[#allocation4 + $0x40] sm:$0xff] %v1635
      %2045 = vst [vmem:[#allocation4 + $0x48] sm:$0xff] %v1637
      %2046 = vst [vmem:[#allocation4 + $0x50] sm:$0xff] %v1643
      %2047 = vst [vmem:[#allocation4 + $0x58] sm:$0xff] %v1645
      %2048 = vst [vmem:[#allocation4 + $0x60] sm:$0xff] %v1651
      %2049 = vst [vmem:[#allocation4 + $0x68] sm:$0xff] %v1653
      %2050 = vst [vmem:[#allocation4 + $0x70] sm:$0xff] %v1659
      %2051 = vst [vmem:[#allocation4 + $0x78] sm:$0xff] %v1661
      %2052 = vst [vmem:[#allocation4 + $0x80] sm:$0xff] %v1667
      %2053 = vst [vmem:[#allocation4 + $0x88] sm:$0xff] %v1669
      %2054 = vst [vmem:[#allocation4 + $0x90] sm:$0xff] %v1675
      %2055 = vst [vmem:[#allocation4 + $0x98] sm:$0xff] %v1677
      %2056 = vst [vmem:[#allocation4 + $0xa0] sm:$0xff] %v1683
      %2057 = vst [vmem:[#allocation4 + $0xa8] sm:$0xff] %v1685
      %2058 = vst [vmem:[#allocation4 + $0xb0] sm:$0xff] %v1691
      %2059 = vst [vmem:[#allocation4 + $0xb8] sm:$0xff] %v1693
      %2060 = vst [vmem:[#allocation4 + $0xc0] sm:$0xff] %v1699
      %2061 = vst [vmem:[#allocation4 + $0xc8] sm:$0xff] %v1701
      %2062 = vst [vmem:[#allocation4 + $0xd0] sm:$0xff] %v1707
      %2063 = vst [vmem:[#allocation4 + $0xd8] sm:$0xff] %v1709
      %2064 = vst [vmem:[#allocation4 + $0xe0] sm:$0xff] %v1715
      %2065 = vst [vmem:[#allocation4 + $0xe8] sm:$0xff] %v1717
      %2066 = vst [vmem:[#allocation4 + $0xf0] sm:$0xff] %v1723
      %2067 = vst [vmem:[#allocation4 + $0xf8] sm:$0xff] %v1725
      %v2068 = vld [vmem:[#allocation4] sm:$0xff]
      %v2069 = vld [vmem:[#allocation4 + $0x8] sm:$0xff]
      %v2070 = vld [vmem:[#allocation4 + $0x10] sm:$0xff]
      %v2071 = vld [vmem:[#allocation4 + $0x18] sm:$0xff]
      %v2072 = vld [vmem:[#allocation4 + $0x20] sm:$0xff]
      %v2073 = vld [vmem:[#allocation4 + $0x28] sm:$0xff]
      %v2074 = vld [vmem:[#allocation4 + $0x30] sm:$0xff]
      %v2075 = vld [vmem:[#allocation4 + $0x38] sm:$0xff]
      %v2076 = vld [vmem:[#allocation4 + $0x40] sm:$0xff]
      %v2077 = vld [vmem:[#allocation4 + $0x48] sm:$0xff]
      %v2078 = vld [vmem:[#allocation4 + $0x50] sm:$0xff]
      %v2079 = vld [vmem:[#allocation4 + $0x58] sm:$0xff]
      %v2080 = vld [vmem:[#allocation4 + $0x60] sm:$0xff]
      %v2081 = vld [vmem:[#allocation4 + $0x68] sm:$0xff]
      %v2082 = vld [vmem:[#allocation4 + $0x70] sm:$0xff]
      %v2083 = vld [vmem:[#allocation4 + $0x78] sm:$0xff]
      %v2084 = vld [vmem:[#allocation4 + $0x80] sm:$0xff]
      %v2085 = vld [vmem:[#allocation4 + $0x88] sm:$0xff]
      %v2086 = vld [vmem:[#allocation4 + $0x90] sm:$0xff]
      %v2087 = vld [vmem:[#allocation4 + $0x98] sm:$0xff]
      %v2088 = vld [vmem:[#allocation4 + $0xa0] sm:$0xff]
      %v2089 = vld [vmem:[#allocation4 + $0xa8] sm:$0xff]
      %v2090 = vld [vmem:[#allocation4 + $0xb0] sm:$0xff]
      %v2091 = vld [vmem:[#allocation4 + $0xb8] sm:$0xff]
      %v2092 = vld [vmem:[#allocation4 + $0xc0] sm:$0xff]
      %v2093 = vld [vmem:[#allocation4 + $0xc8] sm:$0xff]
      %v2094 = vld [vmem:[#allocation4 + $0xd0] sm:$0xff]
      %v2095 = vld [vmem:[#allocation4 + $0xd8] sm:$0xff]
      %v2096 = vld [vmem:[#allocation4 + $0xe0] sm:$0xff]
      %v2097 = vld [vmem:[#allocation4 + $0xe8] sm:$0xff]
      %v2098 = vld [vmem:[#allocation4 + $0xf0] sm:$0xff]
      %v2099 = vld [vmem:[#allocation4 + $0xf8] sm:$0xff]
      %vm2148 = vcmask 1046528
      %v2149 = vrot.slane %v1740, 1
      %v2150 = vrot.slane %v1742, 1
      %v2151 = vsel %vm2148, %v2149, %v2150
      %v2152 = vrot.slane %v1745, 1
      %v2153 = vsel %vm2148, %v2150, %v2152
      %v2154 = vrot.slane %v1749, 1
      %v2155 = vrot.slane %v1751, 1
      %v2156 = vsel %vm2148, %v2154, %v2155
      %v2157 = vrot.slane %v1754, 1
      %v2158 = vsel %vm2148, %v2155, %v2157
      %v2159 = vrot.slane %v1758, 1
      %v2160 = vrot.slane %v1760, 1
      %v2161 = vsel %vm2148, %v2159, %v2160
      %v2162 = vrot.slane %v1763, 1
      %v2163 = vsel %vm2148, %v2160, %v2162
      %v2164 = vrot.slane %v1767, 1
      %v2165 = vrot.slane %v1769, 1
      %v2166 = vsel %vm2148, %v2164, %v2165
      %v2167 = vrot.slane %v1772, 1
      %v2168 = vsel %vm2148, %v2165, %v2167
      %v2169 = vrot.slane %v1776, 1
      %v2170 = vrot.slane %v1778, 1
      %v2171 = vsel %vm2148, %v2169, %v2170
      %v2172 = vrot.slane %v1781, 1
      %v2173 = vsel %vm2148, %v2170, %v2172
      %v2174 = vrot.slane %v1785, 1
      %v2175 = vrot.slane %v1787, 1
      %v2176 = vsel %vm2148, %v2174, %v2175
      %v2177 = vrot.slane %v1790, 1
      %v2178 = vsel %vm2148, %v2175, %v2177
      %v2179 = vrot.slane %v1794, 1
      %v2180 = vrot.slane %v1796, 1
      %v2181 = vsel %vm2148, %v2179, %v2180
      %v2182 = vrot.slane %v1799, 1
      %v2183 = vsel %vm2148, %v2180, %v2182
      %v2184 = vrot.slane %v1803, 1
      %v2185 = vrot.slane %v1805, 1
      %v2186 = vsel %vm2148, %v2184, %v2185
      %v2187 = vrot.slane %v1808, 1
      %v2188 = vsel %vm2148, %v2185, %v2187
      %v2189 = vrot.slane %v1812, 1
      %v2190 = vrot.slane %v1814, 1
      %v2191 = vsel %vm2148, %v2189, %v2190
      %v2192 = vrot.slane %v1817, 1
      %v2193 = vsel %vm2148, %v2190, %v2192
      %v2194 = vrot.slane %v1821, 1
      %v2195 = vrot.slane %v1823, 1
      %v2196 = vsel %vm2148, %v2194, %v2195
      %v2197 = vrot.slane %v1826, 1
      %v2198 = vsel %vm2148, %v2195, %v2197
      %v2199 = vrot.slane %v1830, 1
      %v2200 = vrot.slane %v1832, 1
      %v2201 = vsel %vm2148, %v2199, %v2200
      %v2202 = vrot.slane %v1835, 1
      %v2203 = vsel %vm2148, %v2200, %v2202
      %v2204 = vrot.slane %v1839, 1
      %v2205 = vrot.slane %v1841, 1
      %v2206 = vsel %vm2148, %v2204, %v2205
      %v2207 = vrot.slane %v1844, 1
      %v2208 = vsel %vm2148, %v2205, %v2207
      %v2209 = vrot.slane %v1848, 1
      %v2210 = vrot.slane %v1850, 1
      %v2211 = vsel %vm2148, %v2209, %v2210
      %v2212 = vrot.slane %v1853, 1
      %v2213 = vsel %vm2148, %v2210, %v2212
      %v2214 = vrot.slane %v1857, 1
      %v2215 = vrot.slane %v1859, 1
      %v2216 = vsel %vm2148, %v2214, %v2215
      %v2217 = vrot.slane %v1862, 1
      %v2218 = vsel %vm2148, %v2215, %v2217
      %v2219 = vrot.slane %v1866, 1
      %v2220 = vrot.slane %v1868, 1
      %v2221 = vsel %vm2148, %v2219, %v2220
      %v2222 = vrot.slane %v1871, 1
      %v2223 = vsel %vm2148, %v2220, %v2222
      %v2224 = vrot.slane %v1875, 1
      %v2225 = vrot.slane %v1877, 1
      %v2226 = vsel %vm2148, %v2224, %v2225
      %v2227 = vrot.slane %v1880, 1
      %v2228 = vsel %vm2148, %v2225, %v2227
      %v2261 = vadd.f32 %v2068, %v2151
      %v2262 = vadd.f32 %v2069, %v2153
      %v2263 = vadd.f32 %v2070, %v2156
      %v2264 = vadd.f32 %v2071, %v2158
      %v2265 = vadd.f32 %v2072, %v2161
      %v2266 = vadd.f32 %v2073, %v2163
      %v2267 = vadd.f32 %v2074, %v2166
      %v2268 = vadd.f32 %v2075, %v2168
      %v2269 = vadd.f32 %v2076, %v2171
      %v2270 = vadd.f32 %v2077, %v2173
      %v2271 = vadd.f32 %v2078, %v2176
      %v2272 = vadd.f32 %v2079, %v2178
      %v2273 = vadd.f32 %v2080, %v2181
      %v2274 = vadd.f32 %v2081, %v2183
      %v2275 = vadd.f32 %v2082, %v2186
      %v2276 = vadd.f32 %v2083, %v2188
      %v2277 = vadd.f32 %v2084, %v2191
      %v2278 = vadd.f32 %v2085, %v2193
      %v2279 = vadd.f32 %v2086, %v2196
      %v2280 = vadd.f32 %v2087, %v2198
      %v2281 = vadd.f32 %v2088, %v2201
      %v2282 = vadd.f32 %v2089, %v2203
      %v2283 = vadd.f32 %v2090, %v2206
      %v2284 = vadd.f32 %v2091, %v2208
      %v2285 = vadd.f32 %v2092, %v2211
      %v2286 = vadd.f32 %v2093, %v2213
      %v2287 = vadd.f32 %v2094, %v2216
      %v2288 = vadd.f32 %v2095, %v2218
      %v2289 = vadd.f32 %v2096, %v2221
      %v2290 = vadd.f32 %v2097, %v2223
      %v2291 = vadd.f32 %v2098, %v2226
      %v2292 = vadd.f32 %v2099, %v2228
      %2293 = vst [vmem:[#allocation4] sm:$0xff] %v2261
      %2294 = vst [vmem:[#allocation4 + $0x8] sm:$0xff] %v2262
      %2295 = vst [vmem:[#allocation4 + $0x10] sm:$0xff] %v2263
      %2296 = vst [vmem:[#allocation4 + $0x18] sm:$0xff] %v2264
      %2297 = vst [vmem:[#allocation4 + $0x20] sm:$0xff] %v2265
      %2298 = vst [vmem:[#allocation4 + $0x28] sm:$0xff] %v2266
      %2299 = vst [vmem:[#allocation4 + $0x30] sm:$0xff] %v2267
      %2300 = vst [vmem:[#allocation4 + $0x38] sm:$0xff] %v2268
      %2301 = vst [vmem:[#allocation4 + $0x40] sm:$0xff] %v2269
      %2302 = vst [vmem:[#allocation4 + $0x48] sm:$0xff] %v2270
      %2303 = vst [vmem:[#allocation4 + $0x50] sm:$0xff] %v2271
      %2304 = vst [vmem:[#allocation4 + $0x58] sm:$0xff] %v2272
      %2305 = vst [vmem:[#allocation4 + $0x60] sm:$0xff] %v2273
      %2306 = vst [vmem:[#allocation4 + $0x68] sm:$0xff] %v2274
      %2307 = vst [vmem:[#allocation4 + $0x70] sm:$0xff] %v2275
      %2308 = vst [vmem:[#allocation4 + $0x78] sm:$0xff] %v2276
      %2309 = vst [vmem:[#allocation4 + $0x80] sm:$0xff] %v2277
      %2310 = vst [vmem:[#allocation4 + $0x88] sm:$0xff] %v2278
      %2311 = vst [vmem:[#allocation4 + $0x90] sm:$0xff] %v2279
      %2312 = vst [vmem:[#allocation4 + $0x98] sm:$0xff] %v2280
      %2313 = vst [vmem:[#allocation4 + $0xa0] sm:$0xff] %v2281
      %2314 = vst [vmem:[#allocation4 + $0xa8] sm:$0xff] %v2282
      %2315 = vst [vmem:[#allocation4 + $0xb0] sm:$0xff] %v2283
      %2316 = vst [vmem:[#allocation4 + $0xb8] sm:$0xff] %v2284
      %2317 = vst [vmem:[#allocation4 + $0xc0] sm:$0xff] %v2285
      %2318 = vst [vmem:[#allocation4 + $0xc8] sm:$0xff] %v2286
      %2319 = vst [vmem:[#allocation4 + $0xd0] sm:$0xff] %v2287
      %2320 = vst [vmem:[#allocation4 + $0xd8] sm:$0xff] %v2288
      %2321 = vst [vmem:[#allocation4 + $0xe0] sm:$0xff] %v2289
      %2322 = vst [vmem:[#allocation4 + $0xe8] sm:$0xff] %v2290
      %2323 = vst [vmem:[#allocation4 + $0xf0] sm:$0xff] %v2291
      %2324 = vst [vmem:[#allocation4 + $0xf8] sm:$0xff] %v2292
      %v2325 = vld [vmem:[#allocation4] sm:$0xff]
      %v2326 = vld [vmem:[#allocation4 + $0x8] sm:$0xff]
      %v2327 = vld [vmem:[#allocation4 + $0x10] sm:$0xff]
      %v2328 = vld [vmem:[#allocation4 + $0x18] sm:$0xff]
      %v2329 = vld [vmem:[#allocation4 + $0x20] sm:$0xff]
      %v2330 = vld [vmem:[#allocation4 + $0x28] sm:$0xff]
      %v2331 = vld [vmem:[#allocation4 + $0x30] sm:$0xff]
      %v2332 = vld [vmem:[#allocation4 + $0x38] sm:$0xff]
      %v2333 = vld [vmem:[#allocation4 + $0x40] sm:$0xff]
      %v2334 = vld [vmem:[#allocation4 + $0x48] sm:$0xff]
      %v2335 = vld [vmem:[#allocation4 + $0x50] sm:$0xff]
      %v2336 = vld [vmem:[#allocation4 + $0x58] sm:$0xff]
      %v2337 = vld [vmem:[#allocation4 + $0x60] sm:$0xff]
      %v2338 = vld [vmem:[#allocation4 + $0x68] sm:$0xff]
      %v2339 = vld [vmem:[#allocation4 + $0x70] sm:$0xff]
      %v2340 = vld [vmem:[#allocation4 + $0x78] sm:$0xff]
      %v2341 = vld [vmem:[#allocation4 + $0x80] sm:$0xff]
      %v2342 = vld [vmem:[#allocation4 + $0x88] sm:$0xff]
      %v2343 = vld [vmem:[#allocation4 + $0x90] sm:$0xff]
      %v2344 = vld [vmem:[#allocation4 + $0x98] sm:$0xff]
      %v2345 = vld [vmem:[#allocation4 + $0xa0] sm:$0xff]
      %v2346 = vld [vmem:[#allocation4 + $0xa8] sm:$0xff]
      %v2347 = vld [vmem:[#allocation4 + $0xb0] sm:$0xff]
      %v2348 = vld [vmem:[#allocation4 + $0xb8] sm:$0xff]
      %v2349 = vld [vmem:[#allocation4 + $0xc0] sm:$0xff]
      %v2350 = vld [vmem:[#allocation4 + $0xc8] sm:$0xff]
      %v2351 = vld [vmem:[#allocation4 + $0xd0] sm:$0xff]
      %v2352 = vld [vmem:[#allocation4 + $0xd8] sm:$0xff]
      %v2353 = vld [vmem:[#allocation4 + $0xe0] sm:$0xff]
      %v2354 = vld [vmem:[#allocation4 + $0xe8] sm:$0xff]
      %v2355 = vld [vmem:[#allocation4 + $0xf0] sm:$0xff]
      %v2356 = vld [vmem:[#allocation4 + $0xf8] sm:$0xff]
      %vm2405 = vcmask 1045504
      %v2406 = vrot.slane %v1893, 2
      %v2407 = vrot.slane %v1895, 2
      %v2408 = vsel %vm2405, %v2406, %v2407
      %v2409 = vrot.slane %v1898, 2
      %v2410 = vsel %vm2405, %v2407, %v2409
      %v2411 = vrot.slane %v1902, 2
      %v2412 = vrot.slane %v1904, 2
      %v2413 = vsel %vm2405, %v2411, %v2412
      %v2414 = vrot.slane %v1907, 2
      %v2415 = vsel %vm2405, %v2412, %v2414
      %v2416 = vrot.slane %v1911, 2
      %v2417 = vrot.slane %v1913, 2
      %v2418 = vsel %vm2405, %v2416, %v2417
      %v2419 = vrot.slane %v1916, 2
      %v2420 = vsel %vm2405, %v2417, %v2419
      %v2421 = vrot.slane %v1920, 2
      %v2422 = vrot.slane %v1922, 2
      %v2423 = vsel %vm2405, %v2421, %v2422
      %v2424 = vrot.slane %v1925, 2
      %v2425 = vsel %vm2405, %v2422, %v2424
      %v2426 = vrot.slane %v1929, 2
      %v2427 = vrot.slane %v1931, 2
      %v2428 = vsel %vm2405, %v2426, %v2427
      %v2429 = vrot.slane %v1934, 2
      %v2430 = vsel %vm2405, %v2427, %v2429
      %v2431 = vrot.slane %v1938, 2
      %v2432 = vrot.slane %v1940, 2
      %v2433 = vsel %vm2405, %v2431, %v2432
      %v2434 = vrot.slane %v1943, 2
      %v2435 = vsel %vm2405, %v2432, %v2434
      %v2436 = vrot.slane %v1947, 2
      %v2437 = vrot.slane %v1949, 2
      %v2438 = vsel %vm2405, %v2436, %v2437
      %v2439 = vrot.slane %v1952, 2
      %v2440 = vsel %vm2405, %v2437, %v2439
      %v2441 = vrot.slane %v1956, 2
      %v2442 = vrot.slane %v1958, 2
      %v2443 = vsel %vm2405, %v2441, %v2442
      %v2444 = vrot.slane %v1961, 2
      %v2445 = vsel %vm2405, %v2442, %v2444
      %v2446 = vrot.slane %v1965, 2
      %v2447 = vrot.slane %v1967, 2
      %v2448 = vsel %vm2405, %v2446, %v2447
      %v2449 = vrot.slane %v1970, 2
      %v2450 = vsel %vm2405, %v2447, %v2449
      %v2451 = vrot.slane %v1974, 2
      %v2452 = vrot.slane %v1976, 2
      %v2453 = vsel %vm2405, %v2451, %v2452
      %v2454 = vrot.slane %v1979, 2
      %v2455 = vsel %vm2405, %v2452, %v2454
      %v2456 = vrot.slane %v1983, 2
      %v2457 = vrot.slane %v1985, 2
      %v2458 = vsel %vm2405, %v2456, %v2457
      %v2459 = vrot.slane %v1988, 2
      %v2460 = vsel %vm2405, %v2457, %v2459
      %v2461 = vrot.slane %v1992, 2
      %v2462 = vrot.slane %v1994, 2
      %v2463 = vsel %vm2405, %v2461, %v2462
      %v2464 = vrot.slane %v1997, 2
      %v2465 = vsel %vm2405, %v2462, %v2464
      %v2466 = vrot.slane %v2001, 2
      %v2467 = vrot.slane %v2003, 2
      %v2468 = vsel %vm2405, %v2466, %v2467
      %v2469 = vrot.slane %v2006, 2
      %v2470 = vsel %vm2405, %v2467, %v2469
      %v2471 = vrot.slane %v2010, 2
      %v2472 = vrot.slane %v2012, 2
      %v2473 = vsel %vm2405, %v2471, %v2472
      %v2474 = vrot.slane %v2015, 2
      %v2475 = vsel %vm2405, %v2472, %v2474
      %v2476 = vrot.slane %v2019, 2
      %v2477 = vrot.slane %v2021, 2
      %v2478 = vsel %vm2405, %v2476, %v2477
      %v2479 = vrot.slane %v2024, 2
      %v2480 = vsel %vm2405, %v2477, %v2479
      %v2481 = vrot.slane %v2028, 2
      %v2482 = vrot.slane %v2030, 2
      %v2483 = vsel %vm2405, %v2481, %v2482
      %v2484 = vrot.slane %v2033, 2
      %v2485 = vsel %vm2405, %v2482, %v2484
      %v2518 = vadd.f32 %v2325, %v2408
      %v2519 = vadd.f32 %v2326, %v2410
      %v2520 = vadd.f32 %v2327, %v2413
      %v2521 = vadd.f32 %v2328, %v2415
      %v2522 = vadd.f32 %v2329, %v2418
      %v2523 = vadd.f32 %v2330, %v2420
      %v2524 = vadd.f32 %v2331, %v2423
      %v2525 = vadd.f32 %v2332, %v2425
      %v2526 = vadd.f32 %v2333, %v2428
      %v2527 = vadd.f32 %v2334, %v2430
      %v2528 = vadd.f32 %v2335, %v2433
      %v2529 = vadd.f32 %v2336, %v2435
      %v2530 = vadd.f32 %v2337, %v2438
      %v2531 = vadd.f32 %v2338, %v2440
      %v2532 = vadd.f32 %v2339, %v2443
      %v2533 = vadd.f32 %v2340, %v2445
      %v2534 = vadd.f32 %v2341, %v2448
      %v2535 = vadd.f32 %v2342, %v2450
      %v2536 = vadd.f32 %v2343, %v2453
      %v2537 = vadd.f32 %v2344, %v2455
      %v2538 = vadd.f32 %v2345, %v2458
      %v2539 = vadd.f32 %v2346, %v2460
      %v2540 = vadd.f32 %v2347, %v2463
      %v2541 = vadd.f32 %v2348, %v2465
      %v2542 = vadd.f32 %v2349, %v2468
      %v2543 = vadd.f32 %v2350, %v2470
      %v2544 = vadd.f32 %v2351, %v2473
      %v2545 = vadd.f32 %v2352, %v2475
      %v2546 = vadd.f32 %v2353, %v2478
      %v2547 = vadd.f32 %v2354, %v2480
      %v2548 = vadd.f32 %v2355, %v2483
      %v2549 = vadd.f32 %v2356, %v2485
      %2550 = vst [vmem:[#allocation4] sm:$0xff] %v2518
      %2551 = vst [vmem:[#allocation4 + $0x8] sm:$0xff] %v2519
      %2552 = vst [vmem:[#allocation4 + $0x10] sm:$0xff] %v2520
      %2553 = vst [vmem:[#allocation4 + $0x18] sm:$0xff] %v2521
      %2554 = vst [vmem:[#allocation4 + $0x20] sm:$0xff] %v2522
      %2555 = vst [vmem:[#allocation4 + $0x28] sm:$0xff] %v2523
      %2556 = vst [vmem:[#allocation4 + $0x30] sm:$0xff] %v2524
      %2557 = vst [vmem:[#allocation4 + $0x38] sm:$0xff] %v2525
      %2558 = vst [vmem:[#allocation4 + $0x40] sm:$0xff] %v2526
      %2559 = vst [vmem:[#allocation4 + $0x48] sm:$0xff] %v2527
      %2560 = vst [vmem:[#allocation4 + $0x50] sm:$0xff] %v2528
      %2561 = vst [vmem:[#allocation4 + $0x58] sm:$0xff] %v2529
      %2562 = vst [vmem:[#allocation4 + $0x60] sm:$0xff] %v2530
      %2563 = vst [vmem:[#allocation4 + $0x68] sm:$0xff] %v2531
      %2564 = vst [vmem:[#allocation4 + $0x70] sm:$0xff] %v2532
      %2565 = vst [vmem:[#allocation4 + $0x78] sm:$0xff] %v2533
      %2566 = vst [vmem:[#allocation4 + $0x80] sm:$0xff] %v2534
      %2567 = vst [vmem:[#allocation4 + $0x88] sm:$0xff] %v2535
      %2568 = vst [vmem:[#allocation4 + $0x90] sm:$0xff] %v2536
      %2569 = vst [vmem:[#allocation4 + $0x98] sm:$0xff] %v2537
      %2570 = vst [vmem:[#allocation4 + $0xa0] sm:$0xff] %v2538
      %2571 = vst [vmem:[#allocation4 + $0xa8] sm:$0xff] %v2539
      %2572 = vst [vmem:[#allocation4 + $0xb0] sm:$0xff] %v2540
      %2573 = vst [vmem:[#allocation4 + $0xb8] sm:$0xff] %v2541
      %2574 = vst [vmem:[#allocation4 + $0xc0] sm:$0xff] %v2542
      %2575 = vst [vmem:[#allocation4 + $0xc8] sm:$0xff] %v2543
      %2576 = vst [vmem:[#allocation4 + $0xd0] sm:$0xff] %v2544
      %2577 = vst [vmem:[#allocation4 + $0xd8] sm:$0xff] %v2545
      %2578 = vst [vmem:[#allocation4 + $0xe0] sm:$0xff] %v2546
      %2579 = vst [vmem:[#allocation4 + $0xe8] sm:$0xff] %v2547
      %2580 = vst [vmem:[#allocation4 + $0xf0] sm:$0xff] %v2548
      %2581 = vst [vmem:[#allocation4 + $0xf8] sm:$0xff] %v2549
      %v2582 = vld [vmem:[%s1053] sm:$0xf]
      %v2583 = vld [vmem:[%s1053 + $0x4] sm:$0xf]
      %v2584 = vld [vmem:[%s1053 + $0x8] sm:$0xf]
      %v2585 = vld [vmem:[%s1053 + $0xc] sm:$0xf]
      %v2586 = vld [vmem:[%s1053 + $0x10] sm:$0xf]
      %v2587 = vld [vmem:[%s1053 + $0x14] sm:$0xf]
      %v2588 = vld [vmem:[%s1053 + $0x18] sm:$0xf]
      %v2589 = vld [vmem:[%s1053 + $0x1c] sm:$0xf]
      %v2590 = vld [vmem:[%s1053 + $0x20] sm:$0xf]
      %v2591 = vld [vmem:[%s1053 + $0x24] sm:$0xf]
      %v2592 = vld [vmem:[%s1053 + $0x28] sm:$0xf]
      %v2593 = vld [vmem:[%s1053 + $0x2c] sm:$0xf]
      %v2594 = vld [vmem:[%s1053 + $0x30] sm:$0xf]
      %v2595 = vld [vmem:[%s1053 + $0x34] sm:$0xf]
      %v2596 = vld [vmem:[%s1053 + $0x38] sm:$0xf]
      %v2597 = vld [vmem:[%s1053 + $0x3c] sm:$0xf]
      %v2598 = vld [vmem:[%s1053 + $0x40] sm:$0xf]
      %v2599 = vld [vmem:[%s1053 + $0x44] sm:$0xf]
      %v2600 = vld [vmem:[%s1053 + $0x48] sm:$0xf]
      %v2601 = vld [vmem:[%s1053 + $0x4c] sm:$0xf]
      %v2602 = vld [vmem:[%s1053 + $0x50] sm:$0xf]
      %v2603 = vld [vmem:[%s1053 + $0x54] sm:$0xf]
      %v2604 = vld [vmem:[%s1053 + $0x58] sm:$0xf]
      %v2605 = vld [vmem:[%s1053 + $0x5c] sm:$0xf]
      %v2606 = vld [vmem:[%s1053 + $0x60] sm:$0xf]
      %v2607 = vld [vmem:[%s1053 + $0x64] sm:$0xf]
      %v2608 = vld [vmem:[%s1053 + $0x68] sm:$0xf]
      %v2609 = vld [vmem:[%s1053 + $0x6c] sm:$0xf]
      %v2610 = vld [vmem:[%s1053 + $0x70] sm:$0xf]
      %v2611 = vld [vmem:[%s1053 + $0x74] sm:$0xf]
      %v2612 = vld [vmem:[%s1053 + $0x78] sm:$0xf]
      %v2613 = vld [vmem:[%s1053 + $0x7c] sm:$0xf]
      %v2614 = vld [vmem:[%s1053 + $0x80] sm:$0xf]
      %v2615 = vld [vmem:[%s1053 + $0x84] sm:$0xf]
      %v2616 = vld [vmem:[%s1053 + $0x88] sm:$0xf]
      %v2617 = vld [vmem:[%s1053 + $0x8c] sm:$0xf]
      %v2618 = vld [vmem:[%s1053 + $0x90] sm:$0xf]
      %v2619 = vld [vmem:[%s1053 + $0x94] sm:$0xf]
      %v2620 = vld [vmem:[%s1053 + $0x98] sm:$0xf]
      %v2621 = vld [vmem:[%s1053 + $0x9c] sm:$0xf]
      %v2622 = vld [vmem:[%s1053 + $0xa0] sm:$0xf]
      %v2623 = vld [vmem:[%s1053 + $0xa4] sm:$0xf]
      %v2624 = vld [vmem:[%s1053 + $0xa8] sm:$0xf]
      %v2625 = vld [vmem:[%s1053 + $0xac] sm:$0xf]
      %v2626 = vld [vmem:[%s1053 + $0xb0] sm:$0xf]
      %v2627 = vld [vmem:[%s1053 + $0xb4] sm:$0xf]
      %v2628 = vld [vmem:[%s1053 + $0xb8] sm:$0xf]
      %v2629 = vld [vmem:[%s1053 + $0xbc] sm:$0xf]
      %v2630 = vld [vmem:[%s1053 + $0xc0] sm:$0xf]
      %v2631 = vld [vmem:[%s1053 + $0xc4] sm:$0xf]
      %v2632 = vld [vmem:[%s1053 + $0xc8] sm:$0xf]
      %v2633 = vld [vmem:[%s1053 + $0xcc] sm:$0xf]
      %v2634 = vld [vmem:[%s1053 + $0xd0] sm:$0xf]
      %v2635 = vld [vmem:[%s1053 + $0xd4] sm:$0xf]
      %v2636 = vld [vmem:[%s1053 + $0xd8] sm:$0xf]
      %v2637 = vld [vmem:[%s1053 + $0xdc] sm:$0xf]
      %v2638 = vld [vmem:[%s1053 + $0xe0] sm:$0xf]
      %v2639 = vld [vmem:[%s1053 + $0xe4] sm:$0xf]
      %v2640 = vld [vmem:[%s1053 + $0xe8] sm:$0xf]
      %v2641 = vld [vmem:[%s1053 + $0xec] sm:$0xf]
      %v2642 = vld [vmem:[%s1053 + $0xf0] sm:$0xf]
      %v2643 = vld [vmem:[%s1053 + $0xf4] sm:$0xf]
      %v2644 = vld [vmem:[%s1053 + $0xf8] sm:$0xf]
      %v2645 = vld [vmem:[%s1053 + $0xfc] sm:$0xf]
      %s2646 = scalar_lea.vmem %s4, 12
      %v2647 = vld [vmem:[%s2646] sm:$0xff]
      %v2648 = vld [vmem:[%s2646 + $0x8] sm:$0xf]
      %v2713 = vunpack.c.l.b16 %v2582
      %v2714 = vunpack.c.l.b16 %v2583
      %v2715 = vunpack.c.l.b16 %v2584
      %v2716 = vunpack.c.l.b16 %v2585
      %v2717 = vunpack.c.l.b16 %v2586
      %v2718 = vunpack.c.l.b16 %v2587
      %v2719 = vunpack.c.l.b16 %v2588
      %v2720 = vunpack.c.l.b16 %v2589
      %v2721 = vunpack.c.l.b16 %v2590
      %v2722 = vunpack.c.l.b16 %v2591
      %v2723 = vunpack.c.l.b16 %v2592
      %v2724 = vunpack.c.l.b16 %v2593
      %v2725 = vunpack.c.l.b16 %v2594
      %v2726 = vunpack.c.l.b16 %v2595
      %v2727 = vunpack.c.l.b16 %v2596
      %v2728 = vunpack.c.l.b16 %v2597
      %v2729 = vunpack.c.l.b16 %v2598
      %v2730 = vunpack.c.l.b16 %v2599
      %v2731 = vunpack.c.l.b16 %v2600
      %v2732 = vunpack.c.l.b16 %v2601
      %v2733 = vunpack.c.l.b16 %v2602
      %v2734 = vunpack.c.l.b16 %v2603
      %v2735 = vunpack.c.l.b16 %v2604
      %v2736 = vunpack.c.l.b16 %v2605
      %v2737 = vunpack.c.l.b16 %v2606
      %v2738 = vunpack.c.l.b16 %v2607
      %v2739 = vunpack.c.l.b16 %v2608
      %v2740 = vunpack.c.l.b16 %v2609
      %v2741 = vunpack.c.l.b16 %v2610
      %v2742 = vunpack.c.l.b16 %v2611
      %v2743 = vunpack.c.l.b16 %v2612
      %v2744 = vunpack.c.l.b16 %v2613
      %v2745 = vunpack.c.l.b16 %v2614
      %v2746 = vunpack.c.l.b16 %v2615
      %v2747 = vunpack.c.l.b16 %v2616
      %v2748 = vunpack.c.l.b16 %v2617
      %v2749 = vunpack.c.l.b16 %v2618
      %v2750 = vunpack.c.l.b16 %v2619
      %v2751 = vunpack.c.l.b16 %v2620
      %v2752 = vunpack.c.l.b16 %v2621
      %v2753 = vunpack.c.l.b16 %v2622
      %v2754 = vunpack.c.l.b16 %v2623
      %v2755 = vunpack.c.l.b16 %v2624
      %v2756 = vunpack.c.l.b16 %v2625
      %v2757 = vunpack.c.l.b16 %v2626
      %v2758 = vunpack.c.l.b16 %v2627
      %v2759 = vunpack.c.l.b16 %v2628
      %v2760 = vunpack.c.l.b16 %v2629
      %v2761 = vunpack.c.l.b16 %v2630
      %v2762 = vunpack.c.l.b16 %v2631
      %v2763 = vunpack.c.l.b16 %v2632
      %v2764 = vunpack.c.l.b16 %v2633
      %v2765 = vunpack.c.l.b16 %v2634
      %v2766 = vunpack.c.l.b16 %v2635
      %v2767 = vunpack.c.l.b16 %v2636
      %v2768 = vunpack.c.l.b16 %v2637
      %v2769 = vunpack.c.l.b16 %v2638
      %v2770 = vunpack.c.l.b16 %v2639
      %v2771 = vunpack.c.l.b16 %v2640
      %v2772 = vunpack.c.l.b16 %v2641
      %v2773 = vunpack.c.l.b16 %v2642
      %v2774 = vunpack.c.l.b16 %v2643
      %v2775 = vunpack.c.l.b16 %v2644
      %v2776 = vunpack.c.l.b16 %v2645
      %v2777 = vpack.c.b16 %v2714, %v2713
      %v2778 = vpack.c.b16 %v2716, %v2715
      %v2779 = vpack.c.b16 %v2718, %v2717
      %v2780 = vpack.c.b16 %v2720, %v2719
      %v2781 = vpack.c.b16 %v2722, %v2721
      %v2782 = vpack.c.b16 %v2724, %v2723
      %v2783 = vpack.c.b16 %v2726, %v2725
      %v2784 = vpack.c.b16 %v2728, %v2727
      %v2785 = vpack.c.b16 %v2730, %v2729
      %v2786 = vpack.c.b16 %v2732, %v2731
      %v2787 = vpack.c.b16 %v2734, %v2733
      %v2788 = vpack.c.b16 %v2736, %v2735
      %v2789 = vpack.c.b16 %v2738, %v2737
      %v2790 = vpack.c.b16 %v2740, %v2739
      %v2791 = vpack.c.b16 %v2742, %v2741
      %v2792 = vpack.c.b16 %v2744, %v2743
      %v2793 = vpack.c.b16 %v2746, %v2745
      %v2794 = vpack.c.b16 %v2748, %v2747
      %v2795 = vpack.c.b16 %v2750, %v2749
      %v2796 = vpack.c.b16 %v2752, %v2751
      %v2797 = vpack.c.b16 %v2754, %v2753
      %v2798 = vpack.c.b16 %v2756, %v2755
      %v2799 = vpack.c.b16 %v2758, %v2757
      %v2800 = vpack.c.b16 %v2760, %v2759
      %v2801 = vpack.c.b16 %v2762, %v2761
      %v2802 = vpack.c.b16 %v2764, %v2763
      %v2803 = vpack.c.b16 %v2766, %v2765
      %v2804 = vpack.c.b16 %v2768, %v2767
      %v2805 = vpack.c.b16 %v2770, %v2769
      %v2806 = vpack.c.b16 %v2772, %v2771
      %v2807 = vpack.c.b16 %v2774, %v2773
      %v2808 = vpack.c.b16 %v2776, %v2775
      %v2811 = vunpack.c.l.b16 %v2647
      %v2812 = vunpack.c.h.b16 %v2647
      %v2813 = vunpack.c.l.b16 %v2648
      %v2814 = vpack.c.b16 %v2811, %v2811
      %v2815 = vpack.c.b16 %v2812, %v2812
      %v2816 = vpack.c.b16 %v2813, %v2813
      %v2818 = vsel %vm1486, %v2777, 0
      %v2821 = vsel %vm1486, %v2778, 0
      %v2824 = vsel %vm1486, %v2779, 0
      %v2827 = vsel %vm1486, %v2780, 0
      %v2830 = vsel %vm1486, %v2781, 0
      %v2833 = vsel %vm1486, %v2782, 0
      %v2836 = vsel %vm1486, %v2783, 0
      %v2839 = vsel %vm1486, %v2784, 0
      %v2842 = vsel %vm1486, %v2785, 0
      %v2845 = vsel %vm1486, %v2786, 0
      %v2848 = vsel %vm1486, %v2787, 0
      %v2851 = vsel %vm1486, %v2788, 0
      %v2854 = vsel %vm1486, %v2789, 0
      %v2857 = vsel %vm1486, %v2790, 0
      %v2860 = vsel %vm1486, %v2791, 0
      %v2863 = vsel %vm1486, %v2792, 0
      %v2866 = vsel %vm1486, %v2793, 0
      %v2869 = vsel %vm1486, %v2794, 0
      %v2872 = vsel %vm1486, %v2795, 0
      %v2875 = vsel %vm1486, %v2796, 0
      %v2878 = vsel %vm1486, %v2797, 0
      %v2881 = vsel %vm1486, %v2798, 0
      %v2884 = vsel %vm1486, %v2799, 0
      %v2887 = vsel %vm1486, %v2800, 0
      %v2890 = vsel %vm1486, %v2801, 0
      %v2893 = vsel %vm1486, %v2802, 0
      %v2896 = vsel %vm1486, %v2803, 0
      %v2899 = vsel %vm1486, %v2804, 0
      %v2902 = vsel %vm1486, %v2805, 0
      %v2905 = vsel %vm1486, %v2806, 0
      %v2908 = vsel %vm1486, %v2807, 0
      %v2911 = vsel %vm1486, %v2808, 0
      %v2914 = vsel %vm1583, %v2814, 0
      %v2917 = vsel %vm1583, %v2815, 0
      %v2920 = vsel %vm1583, %v2816, 0
      %2922 = vmatpush.bf16.msra.mxu0 0
      %2923 = vmatpush.bf16.msra.mxu0 0
      %2924 = vmatpush.bf16.msra.mxu0 0
      %2925 = vmatpush.bf16.msra.mxu0 0
      %2926 = vmatpush.bf16.msra.mxu0 0
      %2927 = vmatpush.bf16.msra.mxu0 0
      %2928 = vmatpush.bf16.msra.mxu0 0
      %2929 = vmatpush.bf16.msra.mxu0 %v2914
      %2930 = vmatmul.bf16.gmra.mxu0 %v2818
      %v2931 = vpop.f32.mrf.mxu0
      %v2932 = vadd.f32 0.0, %v2931
      %v2933 = vpop.f32.mrf.mxu0
      %v2934 = vadd.f32 0.0, %v2933
      %2935 = vmatmul.bf16.gmra.mxu0 %v2821
      %v2936 = vpop.f32.mrf.mxu0
      %v2937 = vpop.f32.mrf.mxu0
      %2938 = vmatmul.bf16.gmra.mxu0 %v2824
      %v2939 = vpop.f32.mrf.mxu0
      %v2940 = vadd.f32 0.0, %v2939
      %v2941 = vpop.f32.mrf.mxu0
      %v2942 = vadd.f32 0.0, %v2941
      %2943 = vmatmul.bf16.gmra.mxu0 %v2827
      %v2944 = vpop.f32.mrf.mxu0
      %v2945 = vpop.f32.mrf.mxu0
      %2946 = vmatmul.bf16.gmra.mxu0 %v2830
      %v2947 = vpop.f32.mrf.mxu0
      %v2948 = vadd.f32 0.0, %v2947
      %v2949 = vpop.f32.mrf.mxu0
      %v2950 = vadd.f32 0.0, %v2949
      %2951 = vmatmul.bf16.gmra.mxu0 %v2833
      %v2952 = vpop.f32.mrf.mxu0
      %v2953 = vpop.f32.mrf.mxu0
      %2954 = vmatmul.bf16.gmra.mxu0 %v2836
      %v2955 = vpop.f32.mrf.mxu0
      %v2956 = vadd.f32 0.0, %v2955
      %v2957 = vpop.f32.mrf.mxu0
      %v2958 = vadd.f32 0.0, %v2957
      %2959 = vmatmul.bf16.gmra.mxu0 %v2839
      %v2960 = vpop.f32.mrf.mxu0
      %v2961 = vpop.f32.mrf.mxu0
      %2962 = vmatmul.bf16.gmra.mxu0 %v2842
      %v2963 = vpop.f32.mrf.mxu0
      %v2964 = vadd.f32 0.0, %v2963
      %v2965 = vpop.f32.mrf.mxu0
      %v2966 = vadd.f32 0.0, %v2965
      %2967 = vmatmul.bf16.gmra.mxu0 %v2845
      %v2968 = vpop.f32.mrf.mxu0
      %v2969 = vpop.f32.mrf.mxu0
      %2970 = vmatmul.bf16.gmra.mxu0 %v2848
      %v2971 = vpop.f32.mrf.mxu0
      %v2972 = vadd.f32 0.0, %v2971
      %v2973 = vpop.f32.mrf.mxu0
      %v2974 = vadd.f32 0.0, %v2973
      %2975 = vmatmul.bf16.gmra.mxu0 %v2851
      %v2976 = vpop.f32.mrf.mxu0
      %v2977 = vpop.f32.mrf.mxu0
      %2978 = vmatmul.bf16.gmra.mxu0 %v2854
      %v2979 = vpop.f32.mrf.mxu0
      %v2980 = vadd.f32 0.0, %v2979
      %v2981 = vpop.f32.mrf.mxu0
      %v2982 = vadd.f32 0.0, %v2981
      %2983 = vmatmul.bf16.gmra.mxu0 %v2857
      %v2984 = vpop.f32.mrf.mxu0
      %v2985 = vpop.f32.mrf.mxu0
      %2986 = vmatmul.bf16.gmra.mxu0 %v2860
      %v2987 = vpop.f32.mrf.mxu0
      %v2988 = vadd.f32 0.0, %v2987
      %v2989 = vpop.f32.mrf.mxu0
      %v2990 = vadd.f32 0.0, %v2989
      %2991 = vmatmul.bf16.gmra.mxu0 %v2863
      %v2992 = vpop.f32.mrf.mxu0
      %v2993 = vpop.f32.mrf.mxu0
      %2994 = vmatmul.bf16.gmra.mxu0 %v2866
      %v2995 = vpop.f32.mrf.mxu0
      %v2996 = vadd.f32 0.0, %v2995
      %v2997 = vpop.f32.mrf.mxu0
      %v2998 = vadd.f32 0.0, %v2997
      %2999 = vmatmul.bf16.gmra.mxu0 %v2869
      %v3000 = vpop.f32.mrf.mxu0
      %v3001 = vpop.f32.mrf.mxu0
      %3002 = vmatmul.bf16.gmra.mxu0 %v2872
      %v3003 = vpop.f32.mrf.mxu0
      %v3004 = vadd.f32 0.0, %v3003
      %v3005 = vpop.f32.mrf.mxu0
      %v3006 = vadd.f32 0.0, %v3005
      %3007 = vmatmul.bf16.gmra.mxu0 %v2875
      %v3008 = vpop.f32.mrf.mxu0
      %v3009 = vpop.f32.mrf.mxu0
      %3010 = vmatmul.bf16.gmra.mxu0 %v2878
      %v3011 = vpop.f32.mrf.mxu0
      %v3012 = vadd.f32 0.0, %v3011
      %v3013 = vpop.f32.mrf.mxu0
      %v3014 = vadd.f32 0.0, %v3013
      %3015 = vmatmul.bf16.gmra.mxu0 %v2881
      %v3016 = vpop.f32.mrf.mxu0
      %v3017 = vpop.f32.mrf.mxu0
      %3018 = vmatmul.bf16.gmra.mxu0 %v2884
      %v3019 = vpop.f32.mrf.mxu0
      %v3020 = vadd.f32 0.0, %v3019
      %v3021 = vpop.f32.mrf.mxu0
      %v3022 = vadd.f32 0.0, %v3021
      %3023 = vmatmul.bf16.gmra.mxu0 %v2887
      %v3024 = vpop.f32.mrf.mxu0
      %v3025 = vpop.f32.mrf.mxu0
      %3026 = vmatmul.bf16.gmra.mxu0 %v2890
      %v3027 = vpop.f32.mrf.mxu0
      %v3028 = vadd.f32 0.0, %v3027
      %v3029 = vpop.f32.mrf.mxu0
      %v3030 = vadd.f32 0.0, %v3029
      %3031 = vmatmul.bf16.gmra.mxu0 %v2893
      %v3032 = vpop.f32.mrf.mxu0
      %v3033 = vpop.f32.mrf.mxu0
      %3034 = vmatmul.bf16.gmra.mxu0 %v2896
      %v3035 = vpop.f32.mrf.mxu0
      %v3036 = vadd.f32 0.0, %v3035
      %v3037 = vpop.f32.mrf.mxu0
      %v3038 = vadd.f32 0.0, %v3037
      %3039 = vmatmul.bf16.gmra.mxu0 %v2899
      %v3040 = vpop.f32.mrf.mxu0
      %v3041 = vpop.f32.mrf.mxu0
      %3042 = vmatmul.bf16.gmra.mxu0 %v2902
      %v3043 = vpop.f32.mrf.mxu0
      %v3044 = vadd.f32 0.0, %v3043
      %v3045 = vpop.f32.mrf.mxu0
      %v3046 = vadd.f32 0.0, %v3045
      %3047 = vmatmul.bf16.gmra.mxu0 %v2905
      %v3048 = vpop.f32.mrf.mxu0
      %v3049 = vpop.f32.mrf.mxu0
      %3050 = vmatmul.bf16.gmra.mxu0 %v2908
      %v3051 = vpop.f32.mrf.mxu0
      %v3052 = vadd.f32 0.0, %v3051
      %v3053 = vpop.f32.mrf.mxu0
      %v3054 = vadd.f32 0.0, %v3053
      %3055 = vmatmul.bf16.gmra.mxu0 %v2911
      %v3056 = vpop.f32.mrf.mxu0
      %v3057 = vpop.f32.mrf.mxu0
      %3058 = vdwg.mxu0
      %3059 = vmatpush.bf16.msra.mxu0 0
      %3060 = vmatpush.bf16.msra.mxu0 0
      %3061 = vmatpush.bf16.msra.mxu0 0
      %3062 = vmatpush.bf16.msra.mxu0 0
      %3063 = vmatpush.bf16.msra.mxu0 0
      %3064 = vmatpush.bf16.msra.mxu0 0
      %3065 = vmatpush.bf16.msra.mxu0 0
      %3066 = vmatpush.bf16.msra.mxu0 %v2917
      %3067 = vmatmul.bf16.gmra.mxu0 %v2818
      %v3068 = vpop.f32.mrf.mxu0
      %v3069 = vadd.f32 0.0, %v3068
      %v3070 = vpop.f32.mrf.mxu0
      %v3071 = vadd.f32 0.0, %v3070
      %3072 = vmatmul.bf16.gmra.mxu0 %v2821
      %v3073 = vpop.f32.mrf.mxu0
      %v3074 = vadd.f32 0.0, %v3073
      %v3075 = vpop.f32.mrf.mxu0
      %3076 = vmatmul.bf16.gmra.mxu0 %v2824
      %v3077 = vpop.f32.mrf.mxu0
      %v3078 = vadd.f32 0.0, %v3077
      %v3079 = vpop.f32.mrf.mxu0
      %v3080 = vadd.f32 0.0, %v3079
      %3081 = vmatmul.bf16.gmra.mxu0 %v2827
      %v3082 = vpop.f32.mrf.mxu0
      %v3083 = vadd.f32 0.0, %v3082
      %v3084 = vpop.f32.mrf.mxu0
      %3085 = vmatmul.bf16.gmra.mxu0 %v2830
      %v3086 = vpop.f32.mrf.mxu0
      %v3087 = vadd.f32 0.0, %v3086
      %v3088 = vpop.f32.mrf.mxu0
      %v3089 = vadd.f32 0.0, %v3088
      %3090 = vmatmul.bf16.gmra.mxu0 %v2833
      %v3091 = vpop.f32.mrf.mxu0
      %v3092 = vadd.f32 0.0, %v3091
      %v3093 = vpop.f32.mrf.mxu0
      %3094 = vmatmul.bf16.gmra.mxu0 %v2836
      %v3095 = vpop.f32.mrf.mxu0
      %v3096 = vadd.f32 0.0, %v3095
      %v3097 = vpop.f32.mrf.mxu0
      %v3098 = vadd.f32 0.0, %v3097
      %3099 = vmatmul.bf16.gmra.mxu0 %v2839
      %v3100 = vpop.f32.mrf.mxu0
      %v3101 = vadd.f32 0.0, %v3100
      %v3102 = vpop.f32.mrf.mxu0
      %3103 = vmatmul.bf16.gmra.mxu0 %v2842
      %v3104 = vpop.f32.mrf.mxu0
      %v3105 = vadd.f32 0.0, %v3104
      %v3106 = vpop.f32.mrf.mxu0
      %v3107 = vadd.f32 0.0, %v3106
      %3108 = vmatmul.bf16.gmra.mxu0 %v2845
      %v3109 = vpop.f32.mrf.mxu0
      %v3110 = vadd.f32 0.0, %v3109
      %v3111 = vpop.f32.mrf.mxu0
      %3112 = vmatmul.bf16.gmra.mxu0 %v2848
      %v3113 = vpop.f32.mrf.mxu0
      %v3114 = vadd.f32 0.0, %v3113
      %v3115 = vpop.f32.mrf.mxu0
      %v3116 = vadd.f32 0.0, %v3115
      %3117 = vmatmul.bf16.gmra.mxu0 %v2851
      %v3118 = vpop.f32.mrf.mxu0
      %v3119 = vadd.f32 0.0, %v3118
      %v3120 = vpop.f32.mrf.mxu0
      %3121 = vmatmul.bf16.gmra.mxu0 %v2854
      %v3122 = vpop.f32.mrf.mxu0
      %v3123 = vadd.f32 0.0, %v3122
      %v3124 = vpop.f32.mrf.mxu0
      %v3125 = vadd.f32 0.0, %v3124
      %3126 = vmatmul.bf16.gmra.mxu0 %v2857
      %v3127 = vpop.f32.mrf.mxu0
      %v3128 = vadd.f32 0.0, %v3127
      %v3129 = vpop.f32.mrf.mxu0
      %3130 = vmatmul.bf16.gmra.mxu0 %v2860
      %v3131 = vpop.f32.mrf.mxu0
      %v3132 = vadd.f32 0.0, %v3131
      %v3133 = vpop.f32.mrf.mxu0
      %v3134 = vadd.f32 0.0, %v3133
      %3135 = vmatmul.bf16.gmra.mxu0 %v2863
      %v3136 = vpop.f32.mrf.mxu0
      %v3137 = vadd.f32 0.0, %v3136
      %v3138 = vpop.f32.mrf.mxu0
      %3139 = vmatmul.bf16.gmra.mxu0 %v2866
      %v3140 = vpop.f32.mrf.mxu0
      %v3141 = vadd.f32 0.0, %v3140
      %v3142 = vpop.f32.mrf.mxu0
      %v3143 = vadd.f32 0.0, %v3142
      %3144 = vmatmul.bf16.gmra.mxu0 %v2869
      %v3145 = vpop.f32.mrf.mxu0
      %v3146 = vadd.f32 0.0, %v3145
      %v3147 = vpop.f32.mrf.mxu0
      %3148 = vmatmul.bf16.gmra.mxu0 %v2872
      %v3149 = vpop.f32.mrf.mxu0
      %v3150 = vadd.f32 0.0, %v3149
      %v3151 = vpop.f32.mrf.mxu0
      %v3152 = vadd.f32 0.0, %v3151
      %3153 = vmatmul.bf16.gmra.mxu0 %v2875
      %v3154 = vpop.f32.mrf.mxu0
      %v3155 = vadd.f32 0.0, %v3154
      %v3156 = vpop.f32.mrf.mxu0
      %3157 = vmatmul.bf16.gmra.mxu0 %v2878
      %v3158 = vpop.f32.mrf.mxu0
      %v3159 = vadd.f32 0.0, %v3158
      %v3160 = vpop.f32.mrf.mxu0
      %v3161 = vadd.f32 0.0, %v3160
      %3162 = vmatmul.bf16.gmra.mxu0 %v2881
      %v3163 = vpop.f32.mrf.mxu0
      %v3164 = vadd.f32 0.0, %v3163
      %v3165 = vpop.f32.mrf.mxu0
      %3166 = vmatmul.bf16.gmra.mxu0 %v2884
      %v3167 = vpop.f32.mrf.mxu0
      %v3168 = vadd.f32 0.0, %v3167
      %v3169 = vpop.f32.mrf.mxu0
      %v3170 = vadd.f32 0.0, %v3169
      %3171 = vmatmul.bf16.gmra.mxu0 %v2887
      %v3172 = vpop.f32.mrf.mxu0
      %v3173 = vadd.f32 0.0, %v3172
      %v3174 = vpop.f32.mrf.mxu0
      %3175 = vmatmul.bf16.gmra.mxu0 %v2890
      %v3176 = vpop.f32.mrf.mxu0
      %v3177 = vadd.f32 0.0, %v3176
      %v3178 = vpop.f32.mrf.mxu0
      %v3179 = vadd.f32 0.0, %v3178
      %3180 = vmatmul.bf16.gmra.mxu0 %v2893
      %v3181 = vpop.f32.mrf.mxu0
      %v3182 = vadd.f32 0.0, %v3181
      %v3183 = vpop.f32.mrf.mxu0
      %3184 = vmatmul.bf16.gmra.mxu0 %v2896
      %v3185 = vpop.f32.mrf.mxu0
      %v3186 = vadd.f32 0.0, %v3185
      %v3187 = vpop.f32.mrf.mxu0
      %v3188 = vadd.f32 0.0, %v3187
      %3189 = vmatmul.bf16.gmra.mxu0 %v2899
      %v3190 = vpop.f32.mrf.mxu0
      %v3191 = vadd.f32 0.0, %v3190
      %v3192 = vpop.f32.mrf.mxu0
      %3193 = vmatmul.bf16.gmra.mxu0 %v2902
      %v3194 = vpop.f32.mrf.mxu0
      %v3195 = vadd.f32 0.0, %v3194
      %v3196 = vpop.f32.mrf.mxu0
      %v3197 = vadd.f32 0.0, %v3196
      %3198 = vmatmul.bf16.gmra.mxu0 %v2905
      %v3199 = vpop.f32.mrf.mxu0
      %v3200 = vadd.f32 0.0, %v3199
      %v3201 = vpop.f32.mrf.mxu0
      %3202 = vmatmul.bf16.gmra.mxu0 %v2908
      %v3203 = vpop.f32.mrf.mxu0
      %v3204 = vadd.f32 0.0, %v3203
      %v3205 = vpop.f32.mrf.mxu0
      %v3206 = vadd.f32 0.0, %v3205
      %3207 = vmatmul.bf16.gmra.mxu0 %v2911
      %v3208 = vpop.f32.mrf.mxu0
      %v3209 = vadd.f32 0.0, %v3208
      %v3210 = vpop.f32.mrf.mxu0
      %3211 = vdwg.mxu0
      %3212 = vmatpush.bf16.msra.mxu0 0
      %3213 = vmatpush.bf16.msra.mxu0 0
      %3214 = vmatpush.bf16.msra.mxu0 0
      %3215 = vmatpush.bf16.msra.mxu0 0
      %3216 = vmatpush.bf16.msra.mxu0 0
      %3217 = vmatpush.bf16.msra.mxu0 0
      %3218 = vmatpush.bf16.msra.mxu0 0
      %3219 = vmatpush.bf16.msra.mxu0 %v2920
      %3220 = vmatmul.bf16.gmra.mxu0 %v2818
      %v3221 = vpop.f32.mrf.mxu0
      %v3222 = vadd.f32 0.0, %v3221
      %v3223 = vpop.f32.mrf.mxu0
      %v3224 = vadd.f32 0.0, %v3223
      %3225 = vmatmul.bf16.gmra.mxu0 %v2821
      %v3226 = vpop.f32.mrf.mxu0
      %v3227 = vadd.f32 0.0, %v3226
      %v3228 = vpop.f32.mrf.mxu0
      %3229 = vmatmul.bf16.gmra.mxu0 %v2824
      %v3230 = vpop.f32.mrf.mxu0
      %v3231 = vadd.f32 0.0, %v3230
      %v3232 = vpop.f32.mrf.mxu0
      %v3233 = vadd.f32 0.0, %v3232
      %3234 = vmatmul.bf16.gmra.mxu0 %v2827
      %v3235 = vpop.f32.mrf.mxu0
      %v3236 = vadd.f32 0.0, %v3235
      %v3237 = vpop.f32.mrf.mxu0
      %3238 = vmatmul.bf16.gmra.mxu0 %v2830
      %v3239 = vpop.f32.mrf.mxu0
      %v3240 = vadd.f32 0.0, %v3239
      %v3241 = vpop.f32.mrf.mxu0
      %v3242 = vadd.f32 0.0, %v3241
      %3243 = vmatmul.bf16.gmra.mxu0 %v2833
      %v3244 = vpop.f32.mrf.mxu0
      %v3245 = vadd.f32 0.0, %v3244
      %v3246 = vpop.f32.mrf.mxu0
      %3247 = vmatmul.bf16.gmra.mxu0 %v2836
      %v3248 = vpop.f32.mrf.mxu0
      %v3249 = vadd.f32 0.0, %v3248
      %v3250 = vpop.f32.mrf.mxu0
      %v3251 = vadd.f32 0.0, %v3250
      %3252 = vmatmul.bf16.gmra.mxu0 %v2839
      %v3253 = vpop.f32.mrf.mxu0
      %v3254 = vadd.f32 0.0, %v3253
      %v3255 = vpop.f32.mrf.mxu0
      %3256 = vmatmul.bf16.gmra.mxu0 %v2842
      %v3257 = vpop.f32.mrf.mxu0
      %v3258 = vadd.f32 0.0, %v3257
      %v3259 = vpop.f32.mrf.mxu0
      %v3260 = vadd.f32 0.0, %v3259
      %3261 = vmatmul.bf16.gmra.mxu0 %v2845
      %v3262 = vpop.f32.mrf.mxu0
      %v3263 = vadd.f32 0.0, %v3262
      %v3264 = vpop.f32.mrf.mxu0
      %3265 = vmatmul.bf16.gmra.mxu0 %v2848
      %v3266 = vpop.f32.mrf.mxu0
      %v3267 = vadd.f32 0.0, %v3266
      %v3268 = vpop.f32.mrf.mxu0
      %v3269 = vadd.f32 0.0, %v3268
      %3270 = vmatmul.bf16.gmra.mxu0 %v2851
      %v3271 = vpop.f32.mrf.mxu0
      %v3272 = vadd.f32 0.0, %v3271
      %v3273 = vpop.f32.mrf.mxu0
      %3274 = vmatmul.bf16.gmra.mxu0 %v2854
      %v3275 = vpop.f32.mrf.mxu0
      %v3276 = vadd.f32 0.0, %v3275
      %v3277 = vpop.f32.mrf.mxu0
      %v3278 = vadd.f32 0.0, %v3277
      %3279 = vmatmul.bf16.gmra.mxu0 %v2857
      %v3280 = vpop.f32.mrf.mxu0
      %v3281 = vadd.f32 0.0, %v3280
      %v3282 = vpop.f32.mrf.mxu0
      %3283 = vmatmul.bf16.gmra.mxu0 %v2860
      %v3284 = vpop.f32.mrf.mxu0
      %v3285 = vadd.f32 0.0, %v3284
      %v3286 = vpop.f32.mrf.mxu0
      %v3287 = vadd.f32 0.0, %v3286
      %3288 = vmatmul.bf16.gmra.mxu0 %v2863
      %v3289 = vpop.f32.mrf.mxu0
      %v3290 = vadd.f32 0.0, %v3289
      %v3291 = vpop.f32.mrf.mxu0
      %3292 = vmatmul.bf16.gmra.mxu0 %v2866
      %v3293 = vpop.f32.mrf.mxu0
      %v3294 = vadd.f32 0.0, %v3293
      %v3295 = vpop.f32.mrf.mxu0
      %v3296 = vadd.f32 0.0, %v3295
      %3297 = vmatmul.bf16.gmra.mxu0 %v2869
      %v3298 = vpop.f32.mrf.mxu0
      %v3299 = vadd.f32 0.0, %v3298
      %v3300 = vpop.f32.mrf.mxu0
      %3301 = vmatmul.bf16.gmra.mxu0 %v2872
      %v3302 = vpop.f32.mrf.mxu0
      %v3303 = vadd.f32 0.0, %v3302
      %v3304 = vpop.f32.mrf.mxu0
      %v3305 = vadd.f32 0.0, %v3304
      %3306 = vmatmul.bf16.gmra.mxu0 %v2875
      %v3307 = vpop.f32.mrf.mxu0
      %v3308 = vadd.f32 0.0, %v3307
      %v3309 = vpop.f32.mrf.mxu0
      %3310 = vmatmul.bf16.gmra.mxu0 %v2878
      %v3311 = vpop.f32.mrf.mxu0
      %v3312 = vadd.f32 0.0, %v3311
      %v3313 = vpop.f32.mrf.mxu0
      %v3314 = vadd.f32 0.0, %v3313
      %3315 = vmatmul.bf16.gmra.mxu0 %v2881
      %v3316 = vpop.f32.mrf.mxu0
      %v3317 = vadd.f32 0.0, %v3316
      %v3318 = vpop.f32.mrf.mxu0
      %3319 = vmatmul.bf16.gmra.mxu0 %v2884
      %v3320 = vpop.f32.mrf.mxu0
      %v3321 = vadd.f32 0.0, %v3320
      %v3322 = vpop.f32.mrf.mxu0
      %v3323 = vadd.f32 0.0, %v3322
      %3324 = vmatmul.bf16.gmra.mxu0 %v2887
      %v3325 = vpop.f32.mrf.mxu0
      %v3326 = vadd.f32 0.0, %v3325
      %v3327 = vpop.f32.mrf.mxu0
      %3328 = vmatmul.bf16.gmra.mxu0 %v2890
      %v3329 = vpop.f32.mrf.mxu0
      %v3330 = vadd.f32 0.0, %v3329
      %v3331 = vpop.f32.mrf.mxu0
      %v3332 = vadd.f32 0.0, %v3331
      %3333 = vmatmul.bf16.gmra.mxu0 %v2893
      %v3334 = vpop.f32.mrf.mxu0
      %v3335 = vadd.f32 0.0, %v3334
      %v3336 = vpop.f32.mrf.mxu0
      %3337 = vmatmul.bf16.gmra.mxu0 %v2896
      %v3338 = vpop.f32.mrf.mxu0
      %v3339 = vadd.f32 0.0, %v3338
      %v3340 = vpop.f32.mrf.mxu0
      %v3341 = vadd.f32 0.0, %v3340
      %3342 = vmatmul.bf16.gmra.mxu0 %v2899
      %v3343 = vpop.f32.mrf.mxu0
      %v3344 = vadd.f32 0.0, %v3343
      %v3345 = vpop.f32.mrf.mxu0
      %3346 = vmatmul.bf16.gmra.mxu0 %v2902
      %v3347 = vpop.f32.mrf.mxu0
      %v3348 = vadd.f32 0.0, %v3347
      %v3349 = vpop.f32.mrf.mxu0
      %v3350 = vadd.f32 0.0, %v3349
      %3351 = vmatmul.bf16.gmra.mxu0 %v2905
      %v3352 = vpop.f32.mrf.mxu0
      %v3353 = vadd.f32 0.0, %v3352
      %v3354 = vpop.f32.mrf.mxu0
      %3355 = vmatmul.bf16.gmra.mxu0 %v2908
      %v3356 = vpop.f32.mrf.mxu0
      %v3357 = vadd.f32 0.0, %v3356
      %v3358 = vpop.f32.mrf.mxu0
      %v3359 = vadd.f32 0.0, %v3358
      %3360 = vmatmul.bf16.gmra.mxu0 %v2911
      %v3361 = vpop.f32.mrf.mxu0
      %v3362 = vadd.f32 0.0, %v3361
      %v3363 = vpop.f32.mrf.mxu0
      %3364 = vdwg.mxu0
      %v3365 = vld [vmem:[#allocation4] sm:$0xff]
      %v3366 = vld [vmem:[#allocation4 + $0x8] sm:$0xff]
      %v3367 = vld [vmem:[#allocation4 + $0x10] sm:$0xff]
      %v3368 = vld [vmem:[#allocation4 + $0x18] sm:$0xff]
      %v3369 = vld [vmem:[#allocation4 + $0x20] sm:$0xff]
      %v3370 = vld [vmem:[#allocation4 + $0x28] sm:$0xff]
      %v3371 = vld [vmem:[#allocation4 + $0x30] sm:$0xff]
      %v3372 = vld [vmem:[#allocation4 + $0x38] sm:$0xff]
      %v3373 = vld [vmem:[#allocation4 + $0x40] sm:$0xff]
      %v3374 = vld [vmem:[#allocation4 + $0x48] sm:$0xff]
      %v3375 = vld [vmem:[#allocation4 + $0x50] sm:$0xff]
      %v3376 = vld [vmem:[#allocation4 + $0x58] sm:$0xff]
      %v3377 = vld [vmem:[#allocation4 + $0x60] sm:$0xff]
      %v3378 = vld [vmem:[#allocation4 + $0x68] sm:$0xff]
      %v3379 = vld [vmem:[#allocation4 + $0x70] sm:$0xff]
      %v3380 = vld [vmem:[#allocation4 + $0x78] sm:$0xff]
      %v3381 = vld [vmem:[#allocation4 + $0x80] sm:$0xff]
      %v3382 = vld [vmem:[#allocation4 + $0x88] sm:$0xff]
      %v3383 = vld [vmem:[#allocation4 + $0x90] sm:$0xff]
      %v3384 = vld [vmem:[#allocation4 + $0x98] sm:$0xff]
      %v3385 = vld [vmem:[#allocation4 + $0xa0] sm:$0xff]
      %v3386 = vld [vmem:[#allocation4 + $0xa8] sm:$0xff]
      %v3387 = vld [vmem:[#allocation4 + $0xb0] sm:$0xff]
      %v3388 = vld [vmem:[#allocation4 + $0xb8] sm:$0xff]
      %v3389 = vld [vmem:[#allocation4 + $0xc0] sm:$0xff]
      %v3390 = vld [vmem:[#allocation4 + $0xc8] sm:$0xff]
      %v3391 = vld [vmem:[#allocation4 + $0xd0] sm:$0xff]
      %v3392 = vld [vmem:[#allocation4 + $0xd8] sm:$0xff]
      %v3393 = vld [vmem:[#allocation4 + $0xe0] sm:$0xff]
      %v3394 = vld [vmem:[#allocation4 + $0xe8] sm:$0xff]
      %v3395 = vld [vmem:[#allocation4 + $0xf0] sm:$0xff]
      %v3396 = vld [vmem:[#allocation4 + $0xf8] sm:$0xff]
      %v3397 = vadd.f32 %v3365, %v2932
      %v3398 = vadd.f32 %v3366, %v2934
      %v3399 = vadd.f32 %v3367, %v2940
      %v3400 = vadd.f32 %v3368, %v2942
      %v3401 = vadd.f32 %v3369, %v2948
      %v3402 = vadd.f32 %v3370, %v2950
      %v3403 = vadd.f32 %v3371, %v2956
      %v3404 = vadd.f32 %v3372, %v2958
      %v3405 = vadd.f32 %v3373, %v2964
      %v3406 = vadd.f32 %v3374, %v2966
      %v3407 = vadd.f32 %v3375, %v2972
      %v3408 = vadd.f32 %v3376, %v2974
      %v3409 = vadd.f32 %v3377, %v2980
      %v3410 = vadd.f32 %v3378, %v2982
      %v3411 = vadd.f32 %v3379, %v2988
      %v3412 = vadd.f32 %v3380, %v2990
      %v3413 = vadd.f32 %v3381, %v2996
      %v3414 = vadd.f32 %v3382, %v2998
      %v3415 = vadd.f32 %v3383, %v3004
      %v3416 = vadd.f32 %v3384, %v3006
      %v3417 = vadd.f32 %v3385, %v3012
      %v3418 = vadd.f32 %v3386, %v3014
      %v3419 = vadd.f32 %v3387, %v3020
      %v3420 = vadd.f32 %v3388, %v3022
      %v3421 = vadd.f32 %v3389, %v3028
      %v3422 = vadd.f32 %v3390, %v3030
      %v3423 = vadd.f32 %v3391, %v3036
      %v3424 = vadd.f32 %v3392, %v3038
      %v3425 = vadd.f32 %v3393, %v3044
      %v3426 = vadd.f32 %v3394, %v3046
      %v3427 = vadd.f32 %v3395, %v3052
      %v3428 = vadd.f32 %v3396, %v3054
      %3429 = vst [vmem:[#allocation4] sm:$0xff] %v3397
      %3430 = vst [vmem:[#allocation4 + $0x8] sm:$0xff] %v3398
      %3431 = vst [vmem:[#allocation4 + $0x10] sm:$0xff] %v3399
      %3432 = vst [vmem:[#allocation4 + $0x18] sm:$0xff] %v3400
      %3433 = vst [vmem:[#allocation4 + $0x20] sm:$0xff] %v3401
      %3434 = vst [vmem:[#allocation4 + $0x28] sm:$0xff] %v3402
      %3435 = vst [vmem:[#allocation4 + $0x30] sm:$0xff] %v3403
      %3436 = vst [vmem:[#allocation4 + $0x38] sm:$0xff] %v3404
      %3437 = vst [vmem:[#allocation4 + $0x40] sm:$0xff] %v3405
      %3438 = vst [vmem:[#allocation4 + $0x48] sm:$0xff] %v3406
      %3439 = vst [vmem:[#allocation4 + $0x50] sm:$0xff] %v3407
      %3440 = vst [vmem:[#allocation4 + $0x58] sm:$0xff] %v3408
      %3441 = vst [vmem:[#allocation4 + $0x60] sm:$0xff] %v3409
      %3442 = vst [vmem:[#allocation4 + $0x68] sm:$0xff] %v3410
      %3443 = vst [vmem:[#allocation4 + $0x70] sm:$0xff] %v3411
      %3444 = vst [vmem:[#allocation4 + $0x78] sm:$0xff] %v3412
      %3445 = vst [vmem:[#allocation4 + $0x80] sm:$0xff] %v3413
      %3446 = vst [vmem:[#allocation4 + $0x88] sm:$0xff] %v3414
      %3447 = vst [vmem:[#allocation4 + $0x90] sm:$0xff] %v3415
      %3448 = vst [vmem:[#allocation4 + $0x98] sm:$0xff] %v3416
      %3449 = vst [vmem:[#allocation4 + $0xa0] sm:$0xff] %v3417
      %3450 = vst [vmem:[#allocation4 + $0xa8] sm:$0xff] %v3418
      %3451 = vst [vmem:[#allocation4 + $0xb0] sm:$0xff] %v3419
      %3452 = vst [vmem:[#allocation4 + $0xb8] sm:$0xff] %v3420
      %3453 = vst [vmem:[#allocation4 + $0xc0] sm:$0xff] %v3421
      %3454 = vst [vmem:[#allocation4 + $0xc8] sm:$0xff] %v3422
      %3455 = vst [vmem:[#allocation4 + $0xd0] sm:$0xff] %v3423
      %3456 = vst [vmem:[#allocation4 + $0xd8] sm:$0xff] %v3424
      %3457 = vst [vmem:[#allocation4 + $0xe0] sm:$0xff] %v3425
      %3458 = vst [vmem:[#allocation4 + $0xe8] sm:$0xff] %v3426
      %3459 = vst [vmem:[#allocation4 + $0xf0] sm:$0xff] %v3427
      %3460 = vst [vmem:[#allocation4 + $0xf8] sm:$0xff] %v3428
      %v3461 = vld [vmem:[#allocation4] sm:$0xff]
      %v3462 = vld [vmem:[#allocation4 + $0x8] sm:$0xff]
      %v3463 = vld [vmem:[#allocation4 + $0x10] sm:$0xff]
      %v3464 = vld [vmem:[#allocation4 + $0x18] sm:$0xff]
      %v3465 = vld [vmem:[#allocation4 + $0x20] sm:$0xff]
      %v3466 = vld [vmem:[#allocation4 + $0x28] sm:$0xff]
      %v3467 = vld [vmem:[#allocation4 + $0x30] sm:$0xff]
      %v3468 = vld [vmem:[#allocation4 + $0x38] sm:$0xff]
      %v3469 = vld [vmem:[#allocation4 + $0x40] sm:$0xff]
      %v3470 = vld [vmem:[#allocation4 + $0x48] sm:$0xff]
      %v3471 = vld [vmem:[#allocation4 + $0x50] sm:$0xff]
      %v3472 = vld [vmem:[#allocation4 + $0x58] sm:$0xff]
      %v3473 = vld [vmem:[#allocation4 + $0x60] sm:$0xff]
      %v3474 = vld [vmem:[#allocation4 + $0x68] sm:$0xff]
      %v3475 = vld [vmem:[#allocation4 + $0x70] sm:$0xff]
      %v3476 = vld [vmem:[#allocation4 + $0x78] sm:$0xff]
      %v3477 = vld [vmem:[#allocation4 + $0x80] sm:$0xff]
      %v3478 = vld [vmem:[#allocation4 + $0x88] sm:$0xff]
      %v3479 = vld [vmem:[#allocation4 + $0x90] sm:$0xff]
      %v3480 = vld [vmem:[#allocation4 + $0x98] sm:$0xff]
      %v3481 = vld [vmem:[#allocation4 + $0xa0] sm:$0xff]
      %v3482 = vld [vmem:[#allocation4 + $0xa8] sm:$0xff]
      %v3483 = vld [vmem:[#allocation4 + $0xb0] sm:$0xff]
      %v3484 = vld [vmem:[#allocation4 + $0xb8] sm:$0xff]
      %v3485 = vld [vmem:[#allocation4 + $0xc0] sm:$0xff]
      %v3486 = vld [vmem:[#allocation4 + $0xc8] sm:$0xff]
      %v3487 = vld [vmem:[#allocation4 + $0xd0] sm:$0xff]
      %v3488 = vld [vmem:[#allocation4 + $0xd8] sm:$0xff]
      %v3489 = vld [vmem:[#allocation4 + $0xe0] sm:$0xff]
      %v3490 = vld [vmem:[#allocation4 + $0xe8] sm:$0xff]
      %v3491 = vld [vmem:[#allocation4 + $0xf0] sm:$0xff]
      %v3492 = vld [vmem:[#allocation4 + $0xf8] sm:$0xff]
      %v3541 = vrot.slane %v3069, 1
      %v3542 = vrot.slane %v3071, 1
      %v3543 = vsel %vm2148, %v3541, %v3542
      %v3544 = vrot.slane %v3074, 1
      %v3545 = vsel %vm2148, %v3542, %v3544
      %v3546 = vrot.slane %v3078, 1
      %v3547 = vrot.slane %v3080, 1
      %v3548 = vsel %vm2148, %v3546, %v3547
      %v3549 = vrot.slane %v3083, 1
      %v3550 = vsel %vm2148, %v3547, %v3549
      %v3551 = vrot.slane %v3087, 1
      %v3552 = vrot.slane %v3089, 1
      %v3553 = vsel %vm2148, %v3551, %v3552
      %v3554 = vrot.slane %v3092, 1
      %v3555 = vsel %vm2148, %v3552, %v3554
      %v3556 = vrot.slane %v3096, 1
      %v3557 = vrot.slane %v3098, 1
      %v3558 = vsel %vm2148, %v3556, %v3557
      %v3559 = vrot.slane %v3101, 1
      %v3560 = vsel %vm2148, %v3557, %v3559
      %v3561 = vrot.slane %v3105, 1
      %v3562 = vrot.slane %v3107, 1
      %v3563 = vsel %vm2148, %v3561, %v3562
      %v3564 = vrot.slane %v3110, 1
      %v3565 = vsel %vm2148, %v3562, %v3564
      %v3566 = vrot.slane %v3114, 1
      %v3567 = vrot.slane %v3116, 1
      %v3568 = vsel %vm2148, %v3566, %v3567
      %v3569 = vrot.slane %v3119, 1
      %v3570 = vsel %vm2148, %v3567, %v3569
      %v3571 = vrot.slane %v3123, 1
      %v3572 = vrot.slane %v3125, 1
      %v3573 = vsel %vm2148, %v3571, %v3572
      %v3574 = vrot.slane %v3128, 1
      %v3575 = vsel %vm2148, %v3572, %v3574
      %v3576 = vrot.slane %v3132, 1
      %v3577 = vrot.slane %v3134, 1
      %v3578 = vsel %vm2148, %v3576, %v3577
      %v3579 = vrot.slane %v3137, 1
      %v3580 = vsel %vm2148, %v3577, %v3579
      %v3581 = vrot.slane %v3141, 1
      %v3582 = vrot.slane %v3143, 1
      %v3583 = vsel %vm2148, %v3581, %v3582
      %v3584 = vrot.slane %v3146, 1
      %v3585 = vsel %vm2148, %v3582, %v3584
      %v3586 = vrot.slane %v3150, 1
      %v3587 = vrot.slane %v3152, 1
      %v3588 = vsel %vm2148, %v3586, %v3587
      %v3589 = vrot.slane %v3155, 1
      %v3590 = vsel %vm2148, %v3587, %v3589
      %v3591 = vrot.slane %v3159, 1
      %v3592 = vrot.slane %v3161, 1
      %v3593 = vsel %vm2148, %v3591, %v3592
      %v3594 = vrot.slane %v3164, 1
      %v3595 = vsel %vm2148, %v3592, %v3594
      %v3596 = vrot.slane %v3168, 1
      %v3597 = vrot.slane %v3170, 1
      %v3598 = vsel %vm2148, %v3596, %v3597
      %v3599 = vrot.slane %v3173, 1
      %v3600 = vsel %vm2148, %v3597, %v3599
      %v3601 = vrot.slane %v3177, 1
      %v3602 = vrot.slane %v3179, 1
      %v3603 = vsel %vm2148, %v3601, %v3602
      %v3604 = vrot.slane %v3182, 1
      %v3605 = vsel %vm2148, %v3602, %v3604
      %v3606 = vrot.slane %v3186, 1
      %v3607 = vrot.slane %v3188, 1
      %v3608 = vsel %vm2148, %v3606, %v3607
      %v3609 = vrot.slane %v3191, 1
      %v3610 = vsel %vm2148, %v3607, %v3609
      %v3611 = vrot.slane %v3195, 1
      %v3612 = vrot.slane %v3197, 1
      %v3613 = vsel %vm2148, %v3611, %v3612
      %v3614 = vrot.slane %v3200, 1
      %v3615 = vsel %vm2148, %v3612, %v3614
      %v3616 = vrot.slane %v3204, 1
      %v3617 = vrot.slane %v3206, 1
      %v3618 = vsel %vm2148, %v3616, %v3617
      %v3619 = vrot.slane %v3209, 1
      %v3620 = vsel %vm2148, %v3617, %v3619
      %v3653 = vadd.f32 %v3461, %v3543
      %v3654 = vadd.f32 %v3462, %v3545
      %v3655 = vadd.f32 %v3463, %v3548
      %v3656 = vadd.f32 %v3464, %v3550
      %v3657 = vadd.f32 %v3465, %v3553
      %v3658 = vadd.f32 %v3466, %v3555
      %v3659 = vadd.f32 %v3467, %v3558
      %v3660 = vadd.f32 %v3468, %v3560
      %v3661 = vadd.f32 %v3469, %v3563
      %v3662 = vadd.f32 %v3470, %v3565
      %v3663 = vadd.f32 %v3471, %v3568
      %v3664 = vadd.f32 %v3472, %v3570
      %v3665 = vadd.f32 %v3473, %v3573
      %v3666 = vadd.f32 %v3474, %v3575
      %v3667 = vadd.f32 %v3475, %v3578
      %v3668 = vadd.f32 %v3476, %v3580
      %v3669 = vadd.f32 %v3477, %v3583
      %v3670 = vadd.f32 %v3478, %v3585
      %v3671 = vadd.f32 %v3479, %v3588
      %v3672 = vadd.f32 %v3480, %v3590
      %v3673 = vadd.f32 %v3481, %v3593
      %v3674 = vadd.f32 %v3482, %v3595
      %v3675 = vadd.f32 %v3483, %v3598
      %v3676 = vadd.f32 %v3484, %v3600
      %v3677 = vadd.f32 %v3485, %v3603
      %v3678 = vadd.f32 %v3486, %v3605
      %v3679 = vadd.f32 %v3487, %v3608
      %v3680 = vadd.f32 %v3488, %v3610
      %v3681 = vadd.f32 %v3489, %v3613
      %v3682 = vadd.f32 %v3490, %v3615
      %v3683 = vadd.f32 %v3491, %v3618
      %v3684 = vadd.f32 %v3492, %v3620
      %3685 = vst [vmem:[#allocation4] sm:$0xff] %v3653
      %3686 = vst [vmem:[#allocation4 + $0x8] sm:$0xff] %v3654
      %3687 = vst [vmem:[#allocation4 + $0x10] sm:$0xff] %v3655
      %3688 = vst [vmem:[#allocation4 + $0x18] sm:$0xff] %v3656
      %3689 = vst [vmem:[#allocation4 + $0x20] sm:$0xff] %v3657
      %3690 = vst [vmem:[#allocation4 + $0x28] sm:$0xff] %v3658
      %3691 = vst [vmem:[#allocation4 + $0x30] sm:$0xff] %v3659
      %3692 = vst [vmem:[#allocation4 + $0x38] sm:$0xff] %v3660
      %3693 = vst [vmem:[#allocation4 + $0x40] sm:$0xff] %v3661
      %3694 = vst [vmem:[#allocation4 + $0x48] sm:$0xff] %v3662
      %3695 = vst [vmem:[#allocation4 + $0x50] sm:$0xff] %v3663
      %3696 = vst [vmem:[#allocation4 + $0x58] sm:$0xff] %v3664
      %3697 = vst [vmem:[#allocation4 + $0x60] sm:$0xff] %v3665
      %3698 = vst [vmem:[#allocation4 + $0x68] sm:$0xff] %v3666
      %3699 = vst [vmem:[#allocation4 + $0x70] sm:$0xff] %v3667
      %3700 = vst [vmem:[#allocation4 + $0x78] sm:$0xff] %v3668
      %3701 = vst [vmem:[#allocation4 + $0x80] sm:$0xff] %v3669
      %3702 = vst [vmem:[#allocation4 + $0x88] sm:$0xff] %v3670
      %3703 = vst [vmem:[#allocation4 + $0x90] sm:$0xff] %v3671
      %3704 = vst [vmem:[#allocation4 + $0x98] sm:$0xff] %v3672
      %3705 = vst [vmem:[#allocation4 + $0xa0] sm:$0xff] %v3673
      %3706 = vst [vmem:[#allocation4 + $0xa8] sm:$0xff] %v3674
      %3707 = vst [vmem:[#allocation4 + $0xb0] sm:$0xff] %v3675
      %3708 = vst [vmem:[#allocation4 + $0xb8] sm:$0xff] %v3676
      %3709 = vst [vmem:[#allocation4 + $0xc0] sm:$0xff] %v3677
      %3710 = vst [vmem:[#allocation4 + $0xc8] sm:$0xff] %v3678
      %3711 = vst [vmem:[#allocation4 + $0xd0] sm:$0xff] %v3679
      %3712 = vst [vmem:[#allocation4 + $0xd8] sm:$0xff] %v3680
      %3713 = vst [vmem:[#allocation4 + $0xe0] sm:$0xff] %v3681
      %3714 = vst [vmem:[#allocation4 + $0xe8] sm:$0xff] %v3682
      %3715 = vst [vmem:[#allocation4 + $0xf0] sm:$0xff] %v3683
      %3716 = vst [vmem:[#allocation4 + $0xf8] sm:$0xff] %v3684
      %v3717 = vld [vmem:[#allocation4] sm:$0xff]
      %v3718 = vld [vmem:[#allocation4 + $0x8] sm:$0xff]
      %v3719 = vld [vmem:[#allocation4 + $0x10] sm:$0xff]
      %v3720 = vld [vmem:[#allocation4 + $0x18] sm:$0xff]
      %v3721 = vld [vmem:[#allocation4 + $0x20] sm:$0xff]
      %v3722 = vld [vmem:[#allocation4 + $0x28] sm:$0xff]
      %v3723 = vld [vmem:[#allocation4 + $0x30] sm:$0xff]
      %v3724 = vld [vmem:[#allocation4 + $0x38] sm:$0xff]
      %v3725 = vld [vmem:[#allocation4 + $0x40] sm:$0xff]
      %v3726 = vld [vmem:[#allocation4 + $0x48] sm:$0xff]
      %v3727 = vld [vmem:[#allocation4 + $0x50] sm:$0xff]
      %v3728 = vld [vmem:[#allocation4 + $0x58] sm:$0xff]
      %v3729 = vld [vmem:[#allocation4 + $0x60] sm:$0xff]
      %v3730 = vld [vmem:[#allocation4 + $0x68] sm:$0xff]
      %v3731 = vld [vmem:[#allocation4 + $0x70] sm:$0xff]
      %v3732 = vld [vmem:[#allocation4 + $0x78] sm:$0xff]
      %v3733 = vld [vmem:[#allocation4 + $0x80] sm:$0xff]
      %v3734 = vld [vmem:[#allocation4 + $0x88] sm:$0xff]
      %v3735 = vld [vmem:[#allocation4 + $0x90] sm:$0xff]
      %v3736 = vld [vmem:[#allocation4 + $0x98] sm:$0xff]
      %v3737 = vld [vmem:[#allocation4 + $0xa0] sm:$0xff]
      %v3738 = vld [vmem:[#allocation4 + $0xa8] sm:$0xff]
      %v3739 = vld [vmem:[#allocation4 + $0xb0] sm:$0xff]
      %v3740 = vld [vmem:[#allocation4 + $0xb8] sm:$0xff]
      %v3741 = vld [vmem:[#allocation4 + $0xc0] sm:$0xff]
      %v3742 = vld [vmem:[#allocation4 + $0xc8] sm:$0xff]
      %v3743 = vld [vmem:[#allocation4 + $0xd0] sm:$0xff]
      %v3744 = vld [vmem:[#allocation4 + $0xd8] sm:$0xff]
      %v3745 = vld [vmem:[#allocation4 + $0xe0] sm:$0xff]
      %v3746 = vld [vmem:[#allocation4 + $0xe8] sm:$0xff]
      %v3747 = vld [vmem:[#allocation4 + $0xf0] sm:$0xff]
      %v3748 = vld [vmem:[#allocation4 + $0xf8] sm:$0xff]
      %v3797 = vrot.slane %v3222, 2
      %v3798 = vrot.slane %v3224, 2
      %v3799 = vsel %vm2405, %v3797, %v3798
      %v3800 = vrot.slane %v3227, 2
      %v3801 = vsel %vm2405, %v3798, %v3800
      %v3802 = vrot.slane %v3231, 2
      %v3803 = vrot.slane %v3233, 2
      %v3804 = vsel %vm2405, %v3802, %v3803
      %v3805 = vrot.slane %v3236, 2
      %v3806 = vsel %vm2405, %v3803, %v3805
      %v3807 = vrot.slane %v3240, 2
      %v3808 = vrot.slane %v3242, 2
      %v3809 = vsel %vm2405, %v3807, %v3808
      %v3810 = vrot.slane %v3245, 2
      %v3811 = vsel %vm2405, %v3808, %v3810
      %v3812 = vrot.slane %v3249, 2
      %v3813 = vrot.slane %v3251, 2
      %v3814 = vsel %vm2405, %v3812, %v3813
      %v3815 = vrot.slane %v3254, 2
      %v3816 = vsel %vm2405, %v3813, %v3815
      %v3817 = vrot.slane %v3258, 2
      %v3818 = vrot.slane %v3260, 2
      %v3819 = vsel %vm2405, %v3817, %v3818
      %v3820 = vrot.slane %v3263, 2
      %v3821 = vsel %vm2405, %v3818, %v3820
      %v3822 = vrot.slane %v3267, 2
      %v3823 = vrot.slane %v3269, 2
      %v3824 = vsel %vm2405, %v3822, %v3823
      %v3825 = vrot.slane %v3272, 2
      %v3826 = vsel %vm2405, %v3823, %v3825
      %v3827 = vrot.slane %v3276, 2
      %v3828 = vrot.slane %v3278, 2
      %v3829 = vsel %vm2405, %v3827, %v3828
      %v3830 = vrot.slane %v3281, 2
      %v3831 = vsel %vm2405, %v3828, %v3830
      %v3832 = vrot.slane %v3285, 2
      %v3833 = vrot.slane %v3287, 2
      %v3834 = vsel %vm2405, %v3832, %v3833
      %v3835 = vrot.slane %v3290, 2
      %v3836 = vsel %vm2405, %v3833, %v3835
      %v3837 = vrot.slane %v3294, 2
      %v3838 = vrot.slane %v3296, 2
      %v3839 = vsel %vm2405, %v3837, %v3838
      %v3840 = vrot.slane %v3299, 2
      %v3841 = vsel %vm2405, %v3838, %v3840
      %v3842 = vrot.slane %v3303, 2
      %v3843 = vrot.slane %v3305, 2
      %v3844 = vsel %vm2405, %v3842, %v3843
      %v3845 = vrot.slane %v3308, 2
      %v3846 = vsel %vm2405, %v3843, %v3845
      %v3847 = vrot.slane %v3312, 2
      %v3848 = vrot.slane %v3314, 2
      %v3849 = vsel %vm2405, %v3847, %v3848
      %v3850 = vrot.slane %v3317, 2
      %v3851 = vsel %vm2405, %v3848, %v3850
      %v3852 = vrot.slane %v3321, 2
      %v3853 = vrot.slane %v3323, 2
      %v3854 = vsel %vm2405, %v3852, %v3853
      %v3855 = vrot.slane %v3326, 2
      %v3856 = vsel %vm2405, %v3853, %v3855
      %v3857 = vrot.slane %v3330, 2
      %v3858 = vrot.slane %v3332, 2
      %v3859 = vsel %vm2405, %v3857, %v3858
      %v3860 = vrot.slane %v3335, 2
      %v3861 = vsel %vm2405, %v3858, %v3860
      %v3862 = vrot.slane %v3339, 2
      %v3863 = vrot.slane %v3341, 2
      %v3864 = vsel %vm2405, %v3862, %v3863
      %v3865 = vrot.slane %v3344, 2
      %v3866 = vsel %vm2405, %v3863, %v3865
      %v3867 = vrot.slane %v3348, 2
      %v3868 = vrot.slane %v3350, 2
      %v3869 = vsel %vm2405, %v3867, %v3868
      %v3870 = vrot.slane %v3353, 2
      %v3871 = vsel %vm2405, %v3868, %v3870
      %v3872 = vrot.slane %v3357, 2
      %v3873 = vrot.slane %v3359, 2
      %v3874 = vsel %vm2405, %v3872, %v3873
      %v3875 = vrot.slane %v3362, 2
      %v3876 = vsel %vm2405, %v3873, %v3875
      %v3909 = vadd.f32 %v3717, %v3799
      %v3910 = vadd.f32 %v3718, %v3801
      %v3911 = vadd.f32 %v3719, %v3804
      %v3912 = vadd.f32 %v3720, %v3806
      %v3913 = vadd.f32 %v3721, %v3809
      %v3914 = vadd.f32 %v3722, %v3811
      %v3915 = vadd.f32 %v3723, %v3814
      %v3916 = vadd.f32 %v3724, %v3816
      %v3917 = vadd.f32 %v3725, %v3819
      %v3918 = vadd.f32 %v3726, %v3821
      %v3919 = vadd.f32 %v3727, %v3824
      %v3920 = vadd.f32 %v3728, %v3826
      %v3921 = vadd.f32 %v3729, %v3829
      %v3922 = vadd.f32 %v3730, %v3831
      %v3923 = vadd.f32 %v3731, %v3834
      %v3924 = vadd.f32 %v3732, %v3836
      %v3925 = vadd.f32 %v3733, %v3839
      %v3926 = vadd.f32 %v3734, %v3841
      %v3927 = vadd.f32 %v3735, %v3844
      %v3928 = vadd.f32 %v3736, %v3846
      %v3929 = vadd.f32 %v3737, %v3849
      %v3930 = vadd.f32 %v3738, %v3851
      %v3931 = vadd.f32 %v3739, %v3854
      %v3932 = vadd.f32 %v3740, %v3856
      %v3933 = vadd.f32 %v3741, %v3859
      %v3934 = vadd.f32 %v3742, %v3861
      %v3935 = vadd.f32 %v3743, %v3864
      %v3936 = vadd.f32 %v3744, %v3866
      %v3937 = vadd.f32 %v3745, %v3869
      %v3938 = vadd.f32 %v3746, %v3871
      %v3939 = vadd.f32 %v3747, %v3874
      %v3940 = vadd.f32 %v3748, %v3876
      %3941 = vst [vmem:[#allocation4] sm:$0xff] %v3909
      %3942 = vst [vmem:[#allocation4 + $0x8] sm:$0xff] %v3910
      %3943 = vst [vmem:[#allocation4 + $0x10] sm:$0xff] %v3911
      %3944 = vst [vmem:[#allocation4 + $0x18] sm:$0xff] %v3912
      %3945 = vst [vmem:[#allocation4 + $0x20] sm:$0xff] %v3913
      %3946 = vst [vmem:[#allocation4 + $0x28] sm:$0xff] %v3914
      %3947 = vst [vmem:[#allocation4 + $0x30] sm:$0xff] %v3915
      %3948 = vst [vmem:[#allocation4 + $0x38] sm:$0xff] %v3916
      %3949 = vst [vmem:[#allocation4 + $0x40] sm:$0xff] %v3917
      %3950 = vst [vmem:[#allocation4 + $0x48] sm:$0xff] %v3918
      %3951 = vst [vmem:[#allocation4 + $0x50] sm:$0xff] %v3919
      %3952 = vst [vmem:[#allocation4 + $0x58] sm:$0xff] %v3920
      %3953 = vst [vmem:[#allocation4 + $0x60] sm:$0xff] %v3921
      %3954 = vst [vmem:[#allocation4 + $0x68] sm:$0xff] %v3922
      %3955 = vst [vmem:[#allocation4 + $0x70] sm:$0xff] %v3923
      %3956 = vst [vmem:[#allocation4 + $0x78] sm:$0xff] %v3924
      %3957 = vst [vmem:[#allocation4 + $0x80] sm:$0xff] %v3925
      %3958 = vst [vmem:[#allocation4 + $0x88] sm:$0xff] %v3926
      %3959 = vst [vmem:[#allocation4 + $0x90] sm:$0xff] %v3927
      %3960 = vst [vmem:[#allocation4 + $0x98] sm:$0xff] %v3928
      %3961 = vst [vmem:[#allocation4 + $0xa0] sm:$0xff] %v3929
      %3962 = vst [vmem:[#allocation4 + $0xa8] sm:$0xff] %v3930
      %3963 = vst [vmem:[#allocation4 + $0xb0] sm:$0xff] %v3931
      %3964 = vst [vmem:[#allocation4 + $0xb8] sm:$0xff] %v3932
      %3965 = vst [vmem:[#allocation4 + $0xc0] sm:$0xff] %v3933
      %3966 = vst [vmem:[#allocation4 + $0xc8] sm:$0xff] %v3934
      %3967 = vst [vmem:[#allocation4 + $0xd0] sm:$0xff] %v3935
      %3968 = vst [vmem:[#allocation4 + $0xd8] sm:$0xff] %v3936
      %3969 = vst [vmem:[#allocation4 + $0xe0] sm:$0xff] %v3937
      %3970 = vst [vmem:[#allocation4 + $0xe8] sm:$0xff] %v3938
      %3971 = vst [vmem:[#allocation4 + $0xf0] sm:$0xff] %v3939
      %3972 = vst [vmem:[#allocation4 + $0xf8] sm:$0xff] %v3940
      %s3973 = scalar_lea.vmem [#allocation2], 32
      %v3974 = vld [vmem:[%s3973] sm:$0xf]
      %v3975 = vld [vmem:[%s3973 + $0x4] sm:$0xf]
      %v3976 = vld [vmem:[%s3973 + $0x8] sm:$0xf]
      %v3977 = vld [vmem:[%s3973 + $0xc] sm:$0xf]
      %v3978 = vld [vmem:[%s3973 + $0x10] sm:$0xf]
      %v3979 = vld [vmem:[%s3973 + $0x14] sm:$0xf]
      %v3980 = vld [vmem:[%s3973 + $0x18] sm:$0xf]
      %v3981 = vld [vmem:[%s3973 + $0x1c] sm:$0xf]
      %v3982 = vld [vmem:[%s3973 + $0x20] sm:$0xf]
      %v3983 = vld [vmem:[%s3973 + $0x24] sm:$0xf]
      %v3984 = vld [vmem:[%s3973 + $0x28] sm:$0xf]
      %v3985 = vld [vmem:[%s3973 + $0x2c] sm:$0xf]
      %v3986 = vld [vmem:[%s3973 + $0x30] sm:$0xf]
      %v3987 = vld [vmem:[%s3973 + $0x34] sm:$0xf]
      %v3988 = vld [vmem:[%s3973 + $0x38] sm:$0xf]
      %v3989 = vld [vmem:[%s3973 + $0x3c] sm:$0xf]
      %v3990 = vld [vmem:[%s3973 + $0x40] sm:$0xf]
      %v3991 = vld [vmem:[%s3973 + $0x44] sm:$0xf]
      %v3992 = vld [vmem:[%s3973 + $0x48] sm:$0xf]
      %v3993 = vld [vmem:[%s3973 + $0x4c] sm:$0xf]
      %v3994 = vld [vmem:[%s3973 + $0x50] sm:$0xf]
      %v3995 = vld [vmem:[%s3973 + $0x54] sm:$0xf]
      %v3996 = vld [vmem:[%s3973 + $0x58] sm:$0xf]
      %v3997 = vld [vmem:[%s3973 + $0x5c] sm:$0xf]
      %v3998 = vld [vmem:[%s3973 + $0x60] sm:$0xf]
      %v3999 = vld [vmem:[%s3973 + $0x64] sm:$0xf]
      %v4000 = vld [vmem:[%s3973 + $0x68] sm:$0xf]
      %v4001 = vld [vmem:[%s3973 + $0x6c] sm:$0xf]
      %v4002 = vld [vmem:[%s3973 + $0x70] sm:$0xf]
      %v4003 = vld [vmem:[%s3973 + $0x74] sm:$0xf]
      %v4004 = vld [vmem:[%s3973 + $0x78] sm:$0xf]
      %v4005 = vld [vmem:[%s3973 + $0x7c] sm:$0xf]
      %v4006 = vld [vmem:[%s3973 + $0x80] sm:$0xf]
      %v4007 = vld [vmem:[%s3973 + $0x84] sm:$0xf]
      %v4008 = vld [vmem:[%s3973 + $0x88] sm:$0xf]
      %v4009 = vld [vmem:[%s3973 + $0x8c] sm:$0xf]
      %v4010 = vld [vmem:[%s3973 + $0x90] sm:$0xf]
      %v4011 = vld [vmem:[%s3973 + $0x94] sm:$0xf]
      %v4012 = vld [vmem:[%s3973 + $0x98] sm:$0xf]
      %v4013 = vld [vmem:[%s3973 + $0x9c] sm:$0xf]
      %v4014 = vld [vmem:[%s3973 + $0xa0] sm:$0xf]
      %v4015 = vld [vmem:[%s3973 + $0xa4] sm:$0xf]
      %v4016 = vld [vmem:[%s3973 + $0xa8] sm:$0xf]
      %v4017 = vld [vmem:[%s3973 + $0xac] sm:$0xf]
      %v4018 = vld [vmem:[%s3973 + $0xb0] sm:$0xf]
      %v4019 = vld [vmem:[%s3973 + $0xb4] sm:$0xf]
      %v4020 = vld [vmem:[%s3973 + $0xb8] sm:$0xf]
      %v4021 = vld [vmem:[%s3973 + $0xbc] sm:$0xf]
      %v4022 = vld [vmem:[%s3973 + $0xc0] sm:$0xf]
      %v4023 = vld [vmem:[%s3973 + $0xc4] sm:$0xf]
      %v4024 = vld [vmem:[%s3973 + $0xc8] sm:$0xf]
      %v4025 = vld [vmem:[%s3973 + $0xcc] sm:$0xf]
      %v4026 = vld [vmem:[%s3973 + $0xd0] sm:$0xf]
      %v4027 = vld [vmem:[%s3973 + $0xd4] sm:$0xf]
      %v4028 = vld [vmem:[%s3973 + $0xd8] sm:$0xf]
      %v4029 = vld [vmem:[%s3973 + $0xdc] sm:$0xf]
      %v4030 = vld [vmem:[%s3973 + $0xe0] sm:$0xf]
      %v4031 = vld [vmem:[%s3973 + $0xe4] sm:$0xf]
      %v4032 = vld [vmem:[%s3973 + $0xe8] sm:$0xf]
      %v4033 = vld [vmem:[%s3973 + $0xec] sm:$0xf]
      %v4034 = vld [vmem:[%s3973 + $0xf0] sm:$0xf]
      %v4035 = vld [vmem:[%s3973 + $0xf4] sm:$0xf]
      %v4036 = vld [vmem:[%s3973 + $0xf8] sm:$0xf]
      %v4037 = vld [vmem:[%s3973 + $0xfc] sm:$0xf]
      %s4038 = scalar_lea.vmem %s4, 24
      %v4039 = vld [vmem:[%s4038] sm:$0xff]
      %v4040 = vld [vmem:[%s4038 + $0x8] sm:$0xf]
      %v4105 = vunpack.c.l.b16 %v3974
      %v4106 = vunpack.c.l.b16 %v3975
      %v4107 = vunpack.c.l.b16 %v3976
      %v4108 = vunpack.c.l.b16 %v3977
      %v4109 = vunpack.c.l.b16 %v3978
      %v4110 = vunpack.c.l.b16 %v3979
      %v4111 = vunpack.c.l.b16 %v3980
      %v4112 = vunpack.c.l.b16 %v3981
      %v4113 = vunpack.c.l.b16 %v3982
      %v4114 = vunpack.c.l.b16 %v3983
      %v4115 = vunpack.c.l.b16 %v3984
      %v4116 = vunpack.c.l.b16 %v3985
      %v4117 = vunpack.c.l.b16 %v3986
      %v4118 = vunpack.c.l.b16 %v3987
      %v4119 = vunpack.c.l.b16 %v3988
      %v4120 = vunpack.c.l.b16 %v3989
      %v4121 = vunpack.c.l.b16 %v3990
      %v4122 = vunpack.c.l.b16 %v3991
      %v4123 = vunpack.c.l.b16 %v3992
      %v4124 = vunpack.c.l.b16 %v3993
      %v4125 = vunpack.c.l.b16 %v3994
      %v4126 = vunpack.c.l.b16 %v3995
      %v4127 = vunpack.c.l.b16 %v3996
      %v4128 = vunpack.c.l.b16 %v3997
      %v4129 = vunpack.c.l.b16 %v3998
      %v4130 = vunpack.c.l.b16 %v3999
      %v4131 = vunpack.c.l.b16 %v4000
      %v4132 = vunpack.c.l.b16 %v4001
      %v4133 = vunpack.c.l.b16 %v4002
      %v4134 = vunpack.c.l.b16 %v4003
      %v4135 = vunpack.c.l.b16 %v4004
      %v4136 = vunpack.c.l.b16 %v4005
      %v4137 = vunpack.c.l.b16 %v4006
      %v4138 = vunpack.c.l.b16 %v4007
      %v4139 = vunpack.c.l.b16 %v4008
      %v4140 = vunpack.c.l.b16 %v4009
      %v4141 = vunpack.c.l.b16 %v4010
      %v4142 = vunpack.c.l.b16 %v4011
      %v4143 = vunpack.c.l.b16 %v4012
      %v4144 = vunpack.c.l.b16 %v4013
      %v4145 = vunpack.c.l.b16 %v4014
      %v4146 = vunpack.c.l.b16 %v4015
      %v4147 = vunpack.c.l.b16 %v4016
      %v4148 = vunpack.c.l.b16 %v4017
      %v4149 = vunpack.c.l.b16 %v4018
      %v4150 = vunpack.c.l.b16 %v4019
      %v4151 = vunpack.c.l.b16 %v4020
      %v4152 = vunpack.c.l.b16 %v4021
      %v4153 = vunpack.c.l.b16 %v4022
      %v4154 = vunpack.c.l.b16 %v4023
      %v4155 = vunpack.c.l.b16 %v4024
      %v4156 = vunpack.c.l.b16 %v4025
      %v4157 = vunpack.c.l.b16 %v4026
      %v4158 = vunpack.c.l.b16 %v4027
      %v4159 = vunpack.c.l.b16 %v4028
      %v4160 = vunpack.c.l.b16 %v4029
      %v4161 = vunpack.c.l.b16 %v4030
      %v4162 = vunpack.c.l.b16 %v4031
      %v4163 = vunpack.c.l.b16 %v4032
      %v4164 = vunpack.c.l.b16 %v4033
      %v4165 = vunpack.c.l.b16 %v4034
      %v4166 = vunpack.c.l.b16 %v4035
      %v4167 = vunpack.c.l.b16 %v4036
      %v4168 = vunpack.c.l.b16 %v4037
      %v4169 = vpack.c.b16 %v4106, %v4105
      %v4170 = vpack.c.b16 %v4108, %v4107
      %v4171 = vpack.c.b16 %v4110, %v4109
      %v4172 = vpack.c.b16 %v4112, %v4111
      %v4173 = vpack.c.b16 %v4114, %v4113
      %v4174 = vpack.c.b16 %v4116, %v4115
      %v4175 = vpack.c.b16 %v4118, %v4117
      %v4176 = vpack.c.b16 %v4120, %v4119
      %v4177 = vpack.c.b16 %v4122, %v4121
      %v4178 = vpack.c.b16 %v4124, %v4123
      %v4179 = vpack.c.b16 %v4126, %v4125
      %v4180 = vpack.c.b16 %v4128, %v4127
      %v4181 = vpack.c.b16 %v4130, %v4129
      %v4182 = vpack.c.b16 %v4132, %v4131
      %v4183 = vpack.c.b16 %v4134, %v4133
      %v4184 = vpack.c.b16 %v4136, %v4135
      %v4185 = vpack.c.b16 %v4138, %v4137
      %v4186 = vpack.c.b16 %v4140, %v4139
      %v4187 = vpack.c.b16 %v4142, %v4141
      %v4188 = vpack.c.b16 %v4144, %v4143
      %v4189 = vpack.c.b16 %v4146, %v4145
      %v4190 = vpack.c.b16 %v4148, %v4147
      %v4191 = vpack.c.b16 %v4150, %v4149
      %v4192 = vpack.c.b16 %v4152, %v4151
      %v4193 = vpack.c.b16 %v4154, %v4153
      %v4194 = vpack.c.b16 %v4156, %v4155
      %v4195 = vpack.c.b16 %v4158, %v4157
      %v4196 = vpack.c.b16 %v4160, %v4159
      %v4197 = vpack.c.b16 %v4162, %v4161
      %v4198 = vpack.c.b16 %v4164, %v4163
      %v4199 = vpack.c.b16 %v4166, %v4165
      %v4200 = vpack.c.b16 %v4168, %v4167
      %v4203 = vunpack.c.l.b16 %v4039
      %v4204 = vunpack.c.h.b16 %v4039
      %v4205 = vunpack.c.l.b16 %v4040
      %v4206 = vpack.c.b16 %v4203, %v4203
      %v4207 = vpack.c.b16 %v4204, %v4204
      %v4208 = vpack.c.b16 %v4205, %v4205
      %v4210 = vsel %vm1486, %v4169, 0
      %v4213 = vsel %vm1486, %v4170, 0
      %v4216 = vsel %vm1486, %v4171, 0
      %v4219 = vsel %vm1486, %v4172, 0
      %v4222 = vsel %vm1486, %v4173, 0
      %v4225 = vsel %vm1486, %v4174, 0
      %v4228 = vsel %vm1486, %v4175, 0
      %v4231 = vsel %vm1486, %v4176, 0
      %v4234 = vsel %vm1486, %v4177, 0
      %v4237 = vsel %vm1486, %v4178, 0
      %v4240 = vsel %vm1486, %v4179, 0
      %v4243 = vsel %vm1486, %v4180, 0
      %v4246 = vsel %vm1486, %v4181, 0
      %v4249 = vsel %vm1486, %v4182, 0
      %v4252 = vsel %vm1486, %v4183, 0
      %v4255 = vsel %vm1486, %v4184, 0
      %v4258 = vsel %vm1486, %v4185, 0
      %v4261 = vsel %vm1486, %v4186, 0
      %v4264 = vsel %vm1486, %v4187, 0
      %v4267 = vsel %vm1486, %v4188, 0
      %v4270 = vsel %vm1486, %v4189, 0
      %v4273 = vsel %vm1486, %v4190, 0
      %v4276 = vsel %vm1486, %v4191, 0
      %v4279 = vsel %vm1486, %v4192, 0
      %v4282 = vsel %vm1486, %v4193, 0
      %v4285 = vsel %vm1486, %v4194, 0
      %v4288 = vsel %vm1486, %v4195, 0
      %v4291 = vsel %vm1486, %v4196, 0
      %v4294 = vsel %vm1486, %v4197, 0
      %v4297 = vsel %vm1486, %v4198, 0
      %v4300 = vsel %vm1486, %v4199, 0
      %v4303 = vsel %vm1486, %v4200, 0
      %v4306 = vsel %vm1583, %v4206, 0
      %v4309 = vsel %vm1583, %v4207, 0
      %v4312 = vsel %vm1583, %v4208, 0
      %4314 = vmatpush.bf16.msra.mxu0 0
      %4315 = vmatpush.bf16.msra.mxu0 0
      %4316 = vmatpush.bf16.msra.mxu0 0
      %4317 = vmatpush.bf16.msra.mxu0 0
      %4318 = vmatpush.bf16.msra.mxu0 0
      %4319 = vmatpush.bf16.msra.mxu0 0
      %4320 = vmatpush.bf16.msra.mxu0 0
      %4321 = vmatpush.bf16.msra.mxu0 %v4306
      %4322 = vmatmul.bf16.gmra.mxu0 %v4210
      %v4323 = vpop.f32.mrf.mxu0
      %v4324 = vadd.f32 0.0, %v4323
      %v4325 = vpop.f32.mrf.mxu0
      %v4326 = vadd.f32 0.0, %v4325
      %4327 = vmatmul.bf16.gmra.mxu0 %v4213
      %v4328 = vpop.f32.mrf.mxu0
      %v4329 = vpop.f32.mrf.mxu0
      %4330 = vmatmul.bf16.gmra.mxu0 %v4216
      %v4331 = vpop.f32.mrf.mxu0
      %v4332 = vadd.f32 0.0, %v4331
      %v4333 = vpop.f32.mrf.mxu0
      %v4334 = vadd.f32 0.0, %v4333
      %4335 = vmatmul.bf16.gmra.mxu0 %v4219
      %v4336 = vpop.f32.mrf.mxu0
      %v4337 = vpop.f32.mrf.mxu0
      %4338 = vmatmul.bf16.gmra.mxu0 %v4222
      %v4339 = vpop.f32.mrf.mxu0
      %v4340 = vadd.f32 0.0, %v4339
      %v4341 = vpop.f32.mrf.mxu0
      %v4342 = vadd.f32 0.0, %v4341
      %4343 = vmatmul.bf16.gmra.mxu0 %v4225
      %v4344 = vpop.f32.mrf.mxu0
      %v4345 = vpop.f32.mrf.mxu0
      %4346 = vmatmul.bf16.gmra.mxu0 %v4228
      %v4347 = vpop.f32.mrf.mxu0
      %v4348 = vadd.f32 0.0, %v4347
      %v4349 = vpop.f32.mrf.mxu0
      %v4350 = vadd.f32 0.0, %v4349
      %4351 = vmatmul.bf16.gmra.mxu0 %v4231
      %v4352 = vpop.f32.mrf.mxu0
      %v4353 = vpop.f32.mrf.mxu0
      %4354 = vmatmul.bf16.gmra.mxu0 %v4234
      %v4355 = vpop.f32.mrf.mxu0
      %v4356 = vadd.f32 0.0, %v4355
      %v4357 = vpop.f32.mrf.mxu0
      %v4358 = vadd.f32 0.0, %v4357
      %4359 = vmatmul.bf16.gmra.mxu0 %v4237
      %v4360 = vpop.f32.mrf.mxu0
      %v4361 = vpop.f32.mrf.mxu0
      %4362 = vmatmul.bf16.gmra.mxu0 %v4240
      %v4363 = vpop.f32.mrf.mxu0
      %v4364 = vadd.f32 0.0, %v4363
      %v4365 = vpop.f32.mrf.mxu0
      %v4366 = vadd.f32 0.0, %v4365
      %4367 = vmatmul.bf16.gmra.mxu0 %v4243
      %v4368 = vpop.f32.mrf.mxu0
      %v4369 = vpop.f32.mrf.mxu0
      %4370 = vmatmul.bf16.gmra.mxu0 %v4246
      %v4371 = vpop.f32.mrf.mxu0
      %v4372 = vadd.f32 0.0, %v4371
      %v4373 = vpop.f32.mrf.mxu0
      %v4374 = vadd.f32 0.0, %v4373
      %4375 = vmatmul.bf16.gmra.mxu0 %v4249
      %v4376 = vpop.f32.mrf.mxu0
      %v4377 = vpop.f32.mrf.mxu0
      %4378 = vmatmul.bf16.gmra.mxu0 %v4252
      %v4379 = vpop.f32.mrf.mxu0
      %v4380 = vadd.f32 0.0, %v4379
      %v4381 = vpop.f32.mrf.mxu0
      %v4382 = vadd.f32 0.0, %v4381
      %4383 = vmatmul.bf16.gmra.mxu0 %v4255
      %v4384 = vpop.f32.mrf.mxu0
      %v4385 = vpop.f32.mrf.mxu0
      %4386 = vmatmul.bf16.gmra.mxu0 %v4258
      %v4387 = vpop.f32.mrf.mxu0
      %v4388 = vadd.f32 0.0, %v4387
      %v4389 = vpop.f32.mrf.mxu0
      %v4390 = vadd.f32 0.0, %v4389
      %4391 = vmatmul.bf16.gmra.mxu0 %v4261
      %v4392 = vpop.f32.mrf.mxu0
      %v4393 = vpop.f32.mrf.mxu0
      %4394 = vmatmul.bf16.gmra.mxu0 %v4264
      %v4395 = vpop.f32.mrf.mxu0
      %v4396 = vadd.f32 0.0, %v4395
      %v4397 = vpop.f32.mrf.mxu0
      %v4398 = vadd.f32 0.0, %v4397
      %4399 = vmatmul.bf16.gmra.mxu0 %v4267
      %v4400 = vpop.f32.mrf.mxu0
      %v4401 = vpop.f32.mrf.mxu0
      %4402 = vmatmul.bf16.gmra.mxu0 %v4270
      %v4403 = vpop.f32.mrf.mxu0
      %v4404 = vadd.f32 0.0, %v4403
      %v4405 = vpop.f32.mrf.mxu0
      %v4406 = vadd.f32 0.0, %v4405
      %4407 = vmatmul.bf16.gmra.mxu0 %v4273
      %v4408 = vpop.f32.mrf.mxu0
      %v4409 = vpop.f32.mrf.mxu0
      %4410 = vmatmul.bf16.gmra.mxu0 %v4276
      %v4411 = vpop.f32.mrf.mxu0
      %v4412 = vadd.f32 0.0, %v4411
      %v4413 = vpop.f32.mrf.mxu0
      %v4414 = vadd.f32 0.0, %v4413
      %4415 = vmatmul.bf16.gmra.mxu0 %v4279
      %v4416 = vpop.f32.mrf.mxu0
      %v4417 = vpop.f32.mrf.mxu0
      %4418 = vmatmul.bf16.gmra.mxu0 %v4282
      %v4419 = vpop.f32.mrf.mxu0
      %v4420 = vadd.f32 0.0, %v4419
      %v4421 = vpop.f32.mrf.mxu0
      %v4422 = vadd.f32 0.0, %v4421
      %4423 = vmatmul.bf16.gmra.mxu0 %v4285
      %v4424 = vpop.f32.mrf.mxu0
      %v4425 = vpop.f32.mrf.mxu0
      %4426 = vmatmul.bf16.gmra.mxu0 %v4288
      %v4427 = vpop.f32.mrf.mxu0
      %v4428 = vadd.f32 0.0, %v4427
      %v4429 = vpop.f32.mrf.mxu0
      %v4430 = vadd.f32 0.0, %v4429
      %4431 = vmatmul.bf16.gmra.mxu0 %v4291
      %v4432 = vpop.f32.mrf.mxu0
      %v4433 = vpop.f32.mrf.mxu0
      %4434 = vmatmul.bf16.gmra.mxu0 %v4294
      %v4435 = vpop.f32.mrf.mxu0
      %v4436 = vadd.f32 0.0, %v4435
      %v4437 = vpop.f32.mrf.mxu0
      %v4438 = vadd.f32 0.0, %v4437
      %4439 = vmatmul.bf16.gmra.mxu0 %v4297
      %v4440 = vpop.f32.mrf.mxu0
      %v4441 = vpop.f32.mrf.mxu0
      %4442 = vmatmul.bf16.gmra.mxu0 %v4300
      %v4443 = vpop.f32.mrf.mxu0
      %v4444 = vadd.f32 0.0, %v4443
      %v4445 = vpop.f32.mrf.mxu0
      %v4446 = vadd.f32 0.0, %v4445
      %4447 = vmatmul.bf16.gmra.mxu0 %v4303
      %v4448 = vpop.f32.mrf.mxu0
      %v4449 = vpop.f32.mrf.mxu0
      %4450 = vdwg.mxu0
      %4451 = vmatpush.bf16.msra.mxu0 0
      %4452 = vmatpush.bf16.msra.mxu0 0
      %4453 = vmatpush.bf16.msra.mxu0 0
      %4454 = vmatpush.bf16.msra.mxu0 0
      %4455 = vmatpush.bf16.msra.mxu0 0
      %4456 = vmatpush.bf16.msra.mxu0 0
      %4457 = vmatpush.bf16.msra.mxu0 0
      %4458 = vmatpush.bf16.msra.mxu0 %v4309
      %4459 = vmatmul.bf16.gmra.mxu0 %v4210
      %v4460 = vpop.f32.mrf.mxu0
      %v4461 = vadd.f32 0.0, %v4460
      %v4462 = vpop.f32.mrf.mxu0
      %v4463 = vadd.f32 0.0, %v4462
      %4464 = vmatmul.bf16.gmra.mxu0 %v4213
      %v4465 = vpop.f32.mrf.mxu0
      %v4466 = vadd.f32 0.0, %v4465
      %v4467 = vpop.f32.mrf.mxu0
      %4468 = vmatmul.bf16.gmra.mxu0 %v4216
      %v4469 = vpop.f32.mrf.mxu0
      %v4470 = vadd.f32 0.0, %v4469
      %v4471 = vpop.f32.mrf.mxu0
      %v4472 = vadd.f32 0.0, %v4471
      %4473 = vmatmul.bf16.gmra.mxu0 %v4219
      %v4474 = vpop.f32.mrf.mxu0
      %v4475 = vadd.f32 0.0, %v4474
      %v4476 = vpop.f32.mrf.mxu0
      %4477 = vmatmul.bf16.gmra.mxu0 %v4222
      %v4478 = vpop.f32.mrf.mxu0
      %v4479 = vadd.f32 0.0, %v4478
      %v4480 = vpop.f32.mrf.mxu0
      %v4481 = vadd.f32 0.0, %v4480
      %4482 = vmatmul.bf16.gmra.mxu0 %v4225
      %v4483 = vpop.f32.mrf.mxu0
      %v4484 = vadd.f32 0.0, %v4483
      %v4485 = vpop.f32.mrf.mxu0
      %4486 = vmatmul.bf16.gmra.mxu0 %v4228
      %v4487 = vpop.f32.mrf.mxu0
      %v4488 = vadd.f32 0.0, %v4487
      %v4489 = vpop.f32.mrf.mxu0
      %v4490 = vadd.f32 0.0, %v4489
      %4491 = vmatmul.bf16.gmra.mxu0 %v4231
      %v4492 = vpop.f32.mrf.mxu0
      %v4493 = vadd.f32 0.0, %v4492
      %v4494 = vpop.f32.mrf.mxu0
      %4495 = vmatmul.bf16.gmra.mxu0 %v4234
      %v4496 = vpop.f32.mrf.mxu0
      %v4497 = vadd.f32 0.0, %v4496
      %v4498 = vpop.f32.mrf.mxu0
      %v4499 = vadd.f32 0.0, %v4498
      %4500 = vmatmul.bf16.gmra.mxu0 %v4237
      %v4501 = vpop.f32.mrf.mxu0
      %v4502 = vadd.f32 0.0, %v4501
      %v4503 = vpop.f32.mrf.mxu0
      %4504 = vmatmul.bf16.gmra.mxu0 %v4240
      %v4505 = vpop.f32.mrf.mxu0
      %v4506 = vadd.f32 0.0, %v4505
      %v4507 = vpop.f32.mrf.mxu0
      %v4508 = vadd.f32 0.0, %v4507
      %4509 = vmatmul.bf16.gmra.mxu0 %v4243
      %v4510 = vpop.f32.mrf.mxu0
      %v4511 = vadd.f32 0.0, %v4510
      %v4512 = vpop.f32.mrf.mxu0
      %4513 = vmatmul.bf16.gmra.mxu0 %v4246
      %v4514 = vpop.f32.mrf.mxu0
      %v4515 = vadd.f32 0.0, %v4514
      %v4516 = vpop.f32.mrf.mxu0
      %v4517 = vadd.f32 0.0, %v4516
      %4518 = vmatmul.bf16.gmra.mxu0 %v4249
      %v4519 = vpop.f32.mrf.mxu0
      %v4520 = vadd.f32 0.0, %v4519
      %v4521 = vpop.f32.mrf.mxu0
      %4522 = vmatmul.bf16.gmra.mxu0 %v4252
      %v4523 = vpop.f32.mrf.mxu0
      %v4524 = vadd.f32 0.0, %v4523
      %v4525 = vpop.f32.mrf.mxu0
      %v4526 = vadd.f32 0.0, %v4525
      %4527 = vmatmul.bf16.gmra.mxu0 %v4255
      %v4528 = vpop.f32.mrf.mxu0
      %v4529 = vadd.f32 0.0, %v4528
      %v4530 = vpop.f32.mrf.mxu0
      %4531 = vmatmul.bf16.gmra.mxu0 %v4258
      %v4532 = vpop.f32.mrf.mxu0
      %v4533 = vadd.f32 0.0, %v4532
      %v4534 = vpop.f32.mrf.mxu0
      %v4535 = vadd.f32 0.0, %v4534
      %4536 = vmatmul.bf16.gmra.mxu0 %v4261
      %v4537 = vpop.f32.mrf.mxu0
      %v4538 = vadd.f32 0.0, %v4537
      %v4539 = vpop.f32.mrf.mxu0
      %4540 = vmatmul.bf16.gmra.mxu0 %v4264
      %v4541 = vpop.f32.mrf.mxu0
      %v4542 = vadd.f32 0.0, %v4541
      %v4543 = vpop.f32.mrf.mxu0
      %v4544 = vadd.f32 0.0, %v4543
      %4545 = vmatmul.bf16.gmra.mxu0 %v4267
      %v4546 = vpop.f32.mrf.mxu0
      %v4547 = vadd.f32 0.0, %v4546
      %v4548 = vpop.f32.mrf.mxu0
      %4549 = vmatmul.bf16.gmra.mxu0 %v4270
      %v4550 = vpop.f32.mrf.mxu0
      %v4551 = vadd.f32 0.0, %v4550
      %v4552 = vpop.f32.mrf.mxu0
      %v4553 = vadd.f32 0.0, %v4552
      %4554 = vmatmul.bf16.gmra.mxu0 %v4273
      %v4555 = vpop.f32.mrf.mxu0
      %v4556 = vadd.f32 0.0, %v4555
      %v4557 = vpop.f32.mrf.mxu0
      %4558 = vmatmul.bf16.gmra.mxu0 %v4276
      %v4559 = vpop.f32.mrf.mxu0
      %v4560 = vadd.f32 0.0, %v4559
      %v4561 = vpop.f32.mrf.mxu0
      %v4562 = vadd.f32 0.0, %v4561
      %4563 = vmatmul.bf16.gmra.mxu0 %v4279
      %v4564 = vpop.f32.mrf.mxu0
      %v4565 = vadd.f32 0.0, %v4564
      %v4566 = vpop.f32.mrf.mxu0
      %4567 = vmatmul.bf16.gmra.mxu0 %v4282
      %v4568 = vpop.f32.mrf.mxu0
      %v4569 = vadd.f32 0.0, %v4568
      %v4570 = vpop.f32.mrf.mxu0
      %v4571 = vadd.f32 0.0, %v4570
      %4572 = vmatmul.bf16.gmra.mxu0 %v4285
      %v4573 = vpop.f32.mrf.mxu0
      %v4574 = vadd.f32 0.0, %v4573
      %v4575 = vpop.f32.mrf.mxu0
      %4576 = vmatmul.bf16.gmra.mxu0 %v4288
      %v4577 = vpop.f32.mrf.mxu0
      %v4578 = vadd.f32 0.0, %v4577
      %v4579 = vpop.f32.mrf.mxu0
      %v4580 = vadd.f32 0.0, %v4579
      %4581 = vmatmul.bf16.gmra.mxu0 %v4291
      %v4582 = vpop.f32.mrf.mxu0
      %v4583 = vadd.f32 0.0, %v4582
      %v4584 = vpop.f32.mrf.mxu0
      %4585 = vmatmul.bf16.gmra.mxu0 %v4294
      %v4586 = vpop.f32.mrf.mxu0
      %v4587 = vadd.f32 0.0, %v4586
      %v4588 = vpop.f32.mrf.mxu0
      %v4589 = vadd.f32 0.0, %v4588
      %4590 = vmatmul.bf16.gmra.mxu0 %v4297
      %v4591 = vpop.f32.mrf.mxu0
      %v4592 = vadd.f32 0.0, %v4591
      %v4593 = vpop.f32.mrf.mxu0
      %4594 = vmatmul.bf16.gmra.mxu0 %v4300
      %v4595 = vpop.f32.mrf.mxu0
      %v4596 = vadd.f32 0.0, %v4595
      %v4597 = vpop.f32.mrf.mxu0
      %v4598 = vadd.f32 0.0, %v4597
      %4599 = vmatmul.bf16.gmra.mxu0 %v4303
      %v4600 = vpop.f32.mrf.mxu0
      %v4601 = vadd.f32 0.0, %v4600
      %v4602 = vpop.f32.mrf.mxu0
      %4603 = vdwg.mxu0
      %4604 = vmatpush.bf16.msra.mxu0 0
      %4605 = vmatpush.bf16.msra.mxu0 0
      %4606 = vmatpush.bf16.msra.mxu0 0
      %4607 = vmatpush.bf16.msra.mxu0 0
      %4608 = vmatpush.bf16.msra.mxu0 0
      %4609 = vmatpush.bf16.msra.mxu0 0
      %4610 = vmatpush.bf16.msra.mxu0 0
      %4611 = vmatpush.bf16.msra.mxu0 %v4312
      %4612 = vmatmul.bf16.gmra.mxu0 %v4210
      %v4613 = vpop.f32.mrf.mxu0
      %v4614 = vadd.f32 0.0, %v4613
      %v4615 = vpop.f32.mrf.mxu0
      %v4616 = vadd.f32 0.0, %v4615
      %4617 = vmatmul.bf16.gmra.mxu0 %v4213
      %v4618 = vpop.f32.mrf.mxu0
      %v4619 = vadd.f32 0.0, %v4618
      %v4620 = vpop.f32.mrf.mxu0
      %4621 = vmatmul.bf16.gmra.mxu0 %v4216
      %v4622 = vpop.f32.mrf.mxu0
      %v4623 = vadd.f32 0.0, %v4622
      %v4624 = vpop.f32.mrf.mxu0
      %v4625 = vadd.f32 0.0, %v4624
      %4626 = vmatmul.bf16.gmra.mxu0 %v4219
      %v4627 = vpop.f32.mrf.mxu0
      %v4628 = vadd.f32 0.0, %v4627
      %v4629 = vpop.f32.mrf.mxu0
      %4630 = vmatmul.bf16.gmra.mxu0 %v4222
      %v4631 = vpop.f32.mrf.mxu0
      %v4632 = vadd.f32 0.0, %v4631
      %v4633 = vpop.f32.mrf.mxu0
      %v4634 = vadd.f32 0.0, %v4633
      %4635 = vmatmul.bf16.gmra.mxu0 %v4225
      %v4636 = vpop.f32.mrf.mxu0
      %v4637 = vadd.f32 0.0, %v4636
      %v4638 = vpop.f32.mrf.mxu0
      %4639 = vmatmul.bf16.gmra.mxu0 %v4228
      %v4640 = vpop.f32.mrf.mxu0
      %v4641 = vadd.f32 0.0, %v4640
      %v4642 = vpop.f32.mrf.mxu0
      %v4643 = vadd.f32 0.0, %v4642
      %4644 = vmatmul.bf16.gmra.mxu0 %v4231
      %v4645 = vpop.f32.mrf.mxu0
      %v4646 = vadd.f32 0.0, %v4645
      %v4647 = vpop.f32.mrf.mxu0
      %4648 = vmatmul.bf16.gmra.mxu0 %v4234
      %v4649 = vpop.f32.mrf.mxu0
      %v4650 = vadd.f32 0.0, %v4649
      %v4651 = vpop.f32.mrf.mxu0
      %v4652 = vadd.f32 0.0, %v4651
      %4653 = vmatmul.bf16.gmra.mxu0 %v4237
      %v4654 = vpop.f32.mrf.mxu0
      %v4655 = vadd.f32 0.0, %v4654
      %v4656 = vpop.f32.mrf.mxu0
      %4657 = vmatmul.bf16.gmra.mxu0 %v4240
      %v4658 = vpop.f32.mrf.mxu0
      %v4659 = vadd.f32 0.0, %v4658
      %v4660 = vpop.f32.mrf.mxu0
      %v4661 = vadd.f32 0.0, %v4660
      %4662 = vmatmul.bf16.gmra.mxu0 %v4243
      %v4663 = vpop.f32.mrf.mxu0
      %v4664 = vadd.f32 0.0, %v4663
      %v4665 = vpop.f32.mrf.mxu0
      %4666 = vmatmul.bf16.gmra.mxu0 %v4246
      %v4667 = vpop.f32.mrf.mxu0
      %v4668 = vadd.f32 0.0, %v4667
      %v4669 = vpop.f32.mrf.mxu0
      %v4670 = vadd.f32 0.0, %v4669
      %4671 = vmatmul.bf16.gmra.mxu0 %v4249
      %v4672 = vpop.f32.mrf.mxu0
      %v4673 = vadd.f32 0.0, %v4672
      %v4674 = vpop.f32.mrf.mxu0
      %4675 = vmatmul.bf16.gmra.mxu0 %v4252
      %v4676 = vpop.f32.mrf.mxu0
      %v4677 = vadd.f32 0.0, %v4676
      %v4678 = vpop.f32.mrf.mxu0
      %v4679 = vadd.f32 0.0, %v4678
      %4680 = vmatmul.bf16.gmra.mxu0 %v4255
      %v4681 = vpop.f32.mrf.mxu0
      %v4682 = vadd.f32 0.0, %v4681
      %v4683 = vpop.f32.mrf.mxu0
      %4684 = vmatmul.bf16.gmra.mxu0 %v4258
      %v4685 = vpop.f32.mrf.mxu0
      %v4686 = vadd.f32 0.0, %v4685
      %v4687 = vpop.f32.mrf.mxu0
      %v4688 = vadd.f32 0.0, %v4687
      %4689 = vmatmul.bf16.gmra.mxu0 %v4261
      %v4690 = vpop.f32.mrf.mxu0
      %v4691 = vadd.f32 0.0, %v4690
      %v4692 = vpop.f32.mrf.mxu0
      %4693 = vmatmul.bf16.gmra.mxu0 %v4264
      %v4694 = vpop.f32.mrf.mxu0
      %v4695 = vadd.f32 0.0, %v4694
      %v4696 = vpop.f32.mrf.mxu0
      %v4697 = vadd.f32 0.0, %v4696
      %4698 = vmatmul.bf16.gmra.mxu0 %v4267
      %v4699 = vpop.f32.mrf.mxu0
      %v4700 = vadd.f32 0.0, %v4699
      %v4701 = vpop.f32.mrf.mxu0
      %4702 = vmatmul.bf16.gmra.mxu0 %v4270
      %v4703 = vpop.f32.mrf.mxu0
      %v4704 = vadd.f32 0.0, %v4703
      %v4705 = vpop.f32.mrf.mxu0
      %v4706 = vadd.f32 0.0, %v4705
      %4707 = vmatmul.bf16.gmra.mxu0 %v4273
      %v4708 = vpop.f32.mrf.mxu0
      %v4709 = vadd.f32 0.0, %v4708
      %v4710 = vpop.f32.mrf.mxu0
      %4711 = vmatmul.bf16.gmra.mxu0 %v4276
      %v4712 = vpop.f32.mrf.mxu0
      %v4713 = vadd.f32 0.0, %v4712
      %v4714 = vpop.f32.mrf.mxu0
      %v4715 = vadd.f32 0.0, %v4714
      %4716 = vmatmul.bf16.gmra.mxu0 %v4279
      %v4717 = vpop.f32.mrf.mxu0
      %v4718 = vadd.f32 0.0, %v4717
      %v4719 = vpop.f32.mrf.mxu0
      %4720 = vmatmul.bf16.gmra.mxu0 %v4282
      %v4721 = vpop.f32.mrf.mxu0
      %v4722 = vadd.f32 0.0, %v4721
      %v4723 = vpop.f32.mrf.mxu0
      %v4724 = vadd.f32 0.0, %v4723
      %4725 = vmatmul.bf16.gmra.mxu0 %v4285
      %v4726 = vpop.f32.mrf.mxu0
      %v4727 = vadd.f32 0.0, %v4726
      %v4728 = vpop.f32.mrf.mxu0
      %4729 = vmatmul.bf16.gmra.mxu0 %v4288
      %v4730 = vpop.f32.mrf.mxu0
      %v4731 = vadd.f32 0.0, %v4730
      %v4732 = vpop.f32.mrf.mxu0
      %v4733 = vadd.f32 0.0, %v4732
      %4734 = vmatmul.bf16.gmra.mxu0 %v4291
      %v4735 = vpop.f32.mrf.mxu0
      %v4736 = vadd.f32 0.0, %v4735
      %v4737 = vpop.f32.mrf.mxu0
      %4738 = vmatmul.bf16.gmra.mxu0 %v4294
      %v4739 = vpop.f32.mrf.mxu0
      %v4740 = vadd.f32 0.0, %v4739
      %v4741 = vpop.f32.mrf.mxu0
      %v4742 = vadd.f32 0.0, %v4741
      %4743 = vmatmul.bf16.gmra.mxu0 %v4297
      %v4744 = vpop.f32.mrf.mxu0
      %v4745 = vadd.f32 0.0, %v4744
      %v4746 = vpop.f32.mrf.mxu0
      %4747 = vmatmul.bf16.gmra.mxu0 %v4300
      %v4748 = vpop.f32.mrf.mxu0
      %v4749 = vadd.f32 0.0, %v4748
      %v4750 = vpop.f32.mrf.mxu0
      %v4751 = vadd.f32 0.0, %v4750
      %4752 = vmatmul.bf16.gmra.mxu0 %v4303
      %v4753 = vpop.f32.mrf.mxu0
      %v4754 = vadd.f32 0.0, %v4753
      %v4755 = vpop.f32.mrf.mxu0
      %4756 = vdwg.mxu0
      %v4757 = vld [vmem:[#allocation4] sm:$0xff]
      %v4758 = vld [vmem:[#allocation4 + $0x8] sm:$0xff]
      %v4759 = vld [vmem:[#allocation4 + $0x10] sm:$0xff]
      %v4760 = vld [vmem:[#allocation4 + $0x18] sm:$0xff]
      %v4761 = vld [vmem:[#allocation4 + $0x20] sm:$0xff]
      %v4762 = vld [vmem:[#allocation4 + $0x28] sm:$0xff]
      %v4763 = vld [vmem:[#allocation4 + $0x30] sm:$0xff]
      %v4764 = vld [vmem:[#allocation4 + $0x38] sm:$0xff]
      %v4765 = vld [vmem:[#allocation4 + $0x40] sm:$0xff]
      %v4766 = vld [vmem:[#allocation4 + $0x48] sm:$0xff]
      %v4767 = vld [vmem:[#allocation4 + $0x50] sm:$0xff]
      %v4768 = vld [vmem:[#allocation4 + $0x58] sm:$0xff]
      %v4769 = vld [vmem:[#allocation4 + $0x60] sm:$0xff]
      %v4770 = vld [vmem:[#allocation4 + $0x68] sm:$0xff]
      %v4771 = vld [vmem:[#allocation4 + $0x70] sm:$0xff]
      %v4772 = vld [vmem:[#allocation4 + $0x78] sm:$0xff]
      %v4773 = vld [vmem:[#allocation4 + $0x80] sm:$0xff]
      %v4774 = vld [vmem:[#allocation4 + $0x88] sm:$0xff]
      %v4775 = vld [vmem:[#allocation4 + $0x90] sm:$0xff]
      %v4776 = vld [vmem:[#allocation4 + $0x98] sm:$0xff]
      %v4777 = vld [vmem:[#allocation4 + $0xa0] sm:$0xff]
      %v4778 = vld [vmem:[#allocation4 + $0xa8] sm:$0xff]
      %v4779 = vld [vmem:[#allocation4 + $0xb0] sm:$0xff]
      %v4780 = vld [vmem:[#allocation4 + $0xb8] sm:$0xff]
      %v4781 = vld [vmem:[#allocation4 + $0xc0] sm:$0xff]
      %v4782 = vld [vmem:[#allocation4 + $0xc8] sm:$0xff]
      %v4783 = vld [vmem:[#allocation4 + $0xd0] sm:$0xff]
      %v4784 = vld [vmem:[#allocation4 + $0xd8] sm:$0xff]
      %v4785 = vld [vmem:[#allocation4 + $0xe0] sm:$0xff]
      %v4786 = vld [vmem:[#allocation4 + $0xe8] sm:$0xff]
      %v4787 = vld [vmem:[#allocation4 + $0xf0] sm:$0xff]
      %v4788 = vld [vmem:[#allocation4 + $0xf8] sm:$0xff]
      %v4789 = vadd.f32 %v4757, %v4324
      %v4790 = vadd.f32 %v4758, %v4326
      %v4791 = vadd.f32 %v4759, %v4332
      %v4792 = vadd.f32 %v4760, %v4334
      %v4793 = vadd.f32 %v4761, %v4340
      %v4794 = vadd.f32 %v4762, %v4342
      %v4795 = vadd.f32 %v4763, %v4348
      %v4796 = vadd.f32 %v4764, %v4350
      %v4797 = vadd.f32 %v4765, %v4356
      %v4798 = vadd.f32 %v4766, %v4358
      %v4799 = vadd.f32 %v4767, %v4364
      %v4800 = vadd.f32 %v4768, %v4366
      %v4801 = vadd.f32 %v4769, %v4372
      %v4802 = vadd.f32 %v4770, %v4374
      %v4803 = vadd.f32 %v4771, %v4380
      %v4804 = vadd.f32 %v4772, %v4382
      %v4805 = vadd.f32 %v4773, %v4388
      %v4806 = vadd.f32 %v4774, %v4390
      %v4807 = vadd.f32 %v4775, %v4396
      %v4808 = vadd.f32 %v4776, %v4398
      %v4809 = vadd.f32 %v4777, %v4404
      %v4810 = vadd.f32 %v4778, %v4406
      %v4811 = vadd.f32 %v4779, %v4412
      %v4812 = vadd.f32 %v4780, %v4414
      %v4813 = vadd.f32 %v4781, %v4420
      %v4814 = vadd.f32 %v4782, %v4422
      %v4815 = vadd.f32 %v4783, %v4428
      %v4816 = vadd.f32 %v4784, %v4430
      %v4817 = vadd.f32 %v4785, %v4436
      %v4818 = vadd.f32 %v4786, %v4438
      %v4819 = vadd.f32 %v4787, %v4444
      %v4820 = vadd.f32 %v4788, %v4446
      %4821 = vst [vmem:[#allocation4] sm:$0xff] %v4789
      %4822 = vst [vmem:[#allocation4 + $0x8] sm:$0xff] %v4790
      %4823 = vst [vmem:[#allocation4 + $0x10] sm:$0xff] %v4791
      %4824 = vst [vmem:[#allocation4 + $0x18] sm:$0xff] %v4792
      %4825 = vst [vmem:[#allocation4 + $0x20] sm:$0xff] %v4793
      %4826 = vst [vmem:[#allocation4 + $0x28] sm:$0xff] %v4794
      %4827 = vst [vmem:[#allocation4 + $0x30] sm:$0xff] %v4795
      %4828 = vst [vmem:[#allocation4 + $0x38] sm:$0xff] %v4796
      %4829 = vst [vmem:[#allocation4 + $0x40] sm:$0xff] %v4797
      %4830 = vst [vmem:[#allocation4 + $0x48] sm:$0xff] %v4798
      %4831 = vst [vmem:[#allocation4 + $0x50] sm:$0xff] %v4799
      %4832 = vst [vmem:[#allocation4 + $0x58] sm:$0xff] %v4800
      %4833 = vst [vmem:[#allocation4 + $0x60] sm:$0xff] %v4801
      %4834 = vst [vmem:[#allocation4 + $0x68] sm:$0xff] %v4802
      %4835 = vst [vmem:[#allocation4 + $0x70] sm:$0xff] %v4803
      %4836 = vst [vmem:[#allocation4 + $0x78] sm:$0xff] %v4804
      %4837 = vst [vmem:[#allocation4 + $0x80] sm:$0xff] %v4805
      %4838 = vst [vmem:[#allocation4 + $0x88] sm:$0xff] %v4806
      %4839 = vst [vmem:[#allocation4 + $0x90] sm:$0xff] %v4807
      %4840 = vst [vmem:[#allocation4 + $0x98] sm:$0xff] %v4808
      %4841 = vst [vmem:[#allocation4 + $0xa0] sm:$0xff] %v4809
      %4842 = vst [vmem:[#allocation4 + $0xa8] sm:$0xff] %v4810
      %4843 = vst [vmem:[#allocation4 + $0xb0] sm:$0xff] %v4811
      %4844 = vst [vmem:[#allocation4 + $0xb8] sm:$0xff] %v4812
      %4845 = vst [vmem:[#allocation4 + $0xc0] sm:$0xff] %v4813
      %4846 = vst [vmem:[#allocation4 + $0xc8] sm:$0xff] %v4814
      %4847 = vst [vmem:[#allocation4 + $0xd0] sm:$0xff] %v4815
      %4848 = vst [vmem:[#allocation4 + $0xd8] sm:$0xff] %v4816
      %4849 = vst [vmem:[#allocation4 + $0xe0] sm:$0xff] %v4817
      %4850 = vst [vmem:[#allocation4 + $0xe8] sm:$0xff] %v4818
      %4851 = vst [vmem:[#allocation4 + $0xf0] sm:$0xff] %v4819
      %4852 = vst [vmem:[#allocation4 + $0xf8] sm:$0xff] %v4820
      %v4853 = vld [vmem:[#allocation4] sm:$0xff]
      %v4854 = vld [vmem:[#allocation4 + $0x8] sm:$0xff]
      %v4855 = vld [vmem:[#allocation4 + $0x10] sm:$0xff]
      %v4856 = vld [vmem:[#allocation4 + $0x18] sm:$0xff]
      %v4857 = vld [vmem:[#allocation4 + $0x20] sm:$0xff]
      %v4858 = vld [vmem:[#allocation4 + $0x28] sm:$0xff]
      %v4859 = vld [vmem:[#allocation4 + $0x30] sm:$0xff]
      %v4860 = vld [vmem:[#allocation4 + $0x38] sm:$0xff]
      %v4861 = vld [vmem:[#allocation4 + $0x40] sm:$0xff]
      %v4862 = vld [vmem:[#allocation4 + $0x48] sm:$0xff]
      %v4863 = vld [vmem:[#allocation4 + $0x50] sm:$0xff]
      %v4864 = vld [vmem:[#allocation4 + $0x58] sm:$0xff]
      %v4865 = vld [vmem:[#allocation4 + $0x60] sm:$0xff]
      %v4866 = vld [vmem:[#allocation4 + $0x68] sm:$0xff]
      %v4867 = vld [vmem:[#allocation4 + $0x70] sm:$0xff]
      %v4868 = vld [vmem:[#allocation4 + $0x78] sm:$0xff]
      %v4869 = vld [vmem:[#allocation4 + $0x80] sm:$0xff]
      %v4870 = vld [vmem:[#allocation4 + $0x88] sm:$0xff]
      %v4871 = vld [vmem:[#allocation4 + $0x90] sm:$0xff]
      %v4872 = vld [vmem:[#allocation4 + $0x98] sm:$0xff]
      %v4873 = vld [vmem:[#allocation4 + $0xa0] sm:$0xff]
      %v4874 = vld [vmem:[#allocation4 + $0xa8] sm:$0xff]
      %v4875 = vld [vmem:[#allocation4 + $0xb0] sm:$0xff]
      %v4876 = vld [vmem:[#allocation4 + $0xb8] sm:$0xff]
      %v4877 = vld [vmem:[#allocation4 + $0xc0] sm:$0xff]
      %v4878 = vld [vmem:[#allocation4 + $0xc8] sm:$0xff]
      %v4879 = vld [vmem:[#allocation4 + $0xd0] sm:$0xff]
      %v4880 = vld [vmem:[#allocation4 + $0xd8] sm:$0xff]
      %v4881 = vld [vmem:[#allocation4 + $0xe0] sm:$0xff]
      %v4882 = vld [vmem:[#allocation4 + $0xe8] sm:$0xff]
      %v4883 = vld [vmem:[#allocation4 + $0xf0] sm:$0xff]
      %v4884 = vld [vmem:[#allocation4 + $0xf8] sm:$0xff]
      %v4933 = vrot.slane %v4461, 1
      %v4934 = vrot.slane %v4463, 1
      %v4935 = vsel %vm2148, %v4933, %v4934
      %v4936 = vrot.slane %v4466, 1
      %v4937 = vsel %vm2148, %v4934, %v4936
      %v4938 = vrot.slane %v4470, 1
      %v4939 = vrot.slane %v4472, 1
      %v4940 = vsel %vm2148, %v4938, %v4939
      %v4941 = vrot.slane %v4475, 1
      %v4942 = vsel %vm2148, %v4939, %v4941
      %v4943 = vrot.slane %v4479, 1
      %v4944 = vrot.slane %v4481, 1
      %v4945 = vsel %vm2148, %v4943, %v4944
      %v4946 = vrot.slane %v4484, 1
      %v4947 = vsel %vm2148, %v4944, %v4946
      %v4948 = vrot.slane %v4488, 1
      %v4949 = vrot.slane %v4490, 1
      %v4950 = vsel %vm2148, %v4948, %v4949
      %v4951 = vrot.slane %v4493, 1
      %v4952 = vsel %vm2148, %v4949, %v4951
      %v4953 = vrot.slane %v4497, 1
      %v4954 = vrot.slane %v4499, 1
      %v4955 = vsel %vm2148, %v4953, %v4954
      %v4956 = vrot.slane %v4502, 1
      %v4957 = vsel %vm2148, %v4954, %v4956
      %v4958 = vrot.slane %v4506, 1
      %v4959 = vrot.slane %v4508, 1
      %v4960 = vsel %vm2148, %v4958, %v4959
      %v4961 = vrot.slane %v4511, 1
      %v4962 = vsel %vm2148, %v4959, %v4961
      %v4963 = vrot.slane %v4515, 1
      %v4964 = vrot.slane %v4517, 1
      %v4965 = vsel %vm2148, %v4963, %v4964
      %v4966 = vrot.slane %v4520, 1
      %v4967 = vsel %vm2148, %v4964, %v4966
      %v4968 = vrot.slane %v4524, 1
      %v4969 = vrot.slane %v4526, 1
      %v4970 = vsel %vm2148, %v4968, %v4969
      %v4971 = vrot.slane %v4529, 1
      %v4972 = vsel %vm2148, %v4969, %v4971
      %v4973 = vrot.slane %v4533, 1
      %v4974 = vrot.slane %v4535, 1
      %v4975 = vsel %vm2148, %v4973, %v4974
      %v4976 = vrot.slane %v4538, 1
      %v4977 = vsel %vm2148, %v4974, %v4976
      %v4978 = vrot.slane %v4542, 1
      %v4979 = vrot.slane %v4544, 1
      %v4980 = vsel %vm2148, %v4978, %v4979
      %v4981 = vrot.slane %v4547, 1
      %v4982 = vsel %vm2148, %v4979, %v4981
      %v4983 = vrot.slane %v4551, 1
      %v4984 = vrot.slane %v4553, 1
      %v4985 = vsel %vm2148, %v4983, %v4984
      %v4986 = vrot.slane %v4556, 1
      %v4987 = vsel %vm2148, %v4984, %v4986
      %v4988 = vrot.slane %v4560, 1
      %v4989 = vrot.slane %v4562, 1
      %v4990 = vsel %vm2148, %v4988, %v4989
      %v4991 = vrot.slane %v4565, 1
      %v4992 = vsel %vm2148, %v4989, %v4991
      %v4993 = vrot.slane %v4569, 1
      %v4994 = vrot.slane %v4571, 1
      %v4995 = vsel %vm2148, %v4993, %v4994
      %v4996 = vrot.slane %v4574, 1
      %v4997 = vsel %vm2148, %v4994, %v4996
      %v4998 = vrot.slane %v4578, 1
      %v4999 = vrot.slane %v4580, 1
      %v5000 = vsel %vm2148, %v4998, %v4999
      %v5001 = vrot.slane %v4583, 1
      %v5002 = vsel %vm2148, %v4999, %v5001
      %v5003 = vrot.slane %v4587, 1
      %v5004 = vrot.slane %v4589, 1
      %v5005 = vsel %vm2148, %v5003, %v5004
      %v5006 = vrot.slane %v4592, 1
      %v5007 = vsel %vm2148, %v5004, %v5006
      %v5008 = vrot.slane %v4596, 1
      %v5009 = vrot.slane %v4598, 1
      %v5010 = vsel %vm2148, %v5008, %v5009
      %v5011 = vrot.slane %v4601, 1
      %v5012 = vsel %vm2148, %v5009, %v5011
      %v5045 = vadd.f32 %v4853, %v4935
      %v5046 = vadd.f32 %v4854, %v4937
      %v5047 = vadd.f32 %v4855, %v4940
      %v5048 = vadd.f32 %v4856, %v4942
      %v5049 = vadd.f32 %v4857, %v4945
      %v5050 = vadd.f32 %v4858, %v4947
      %v5051 = vadd.f32 %v4859, %v4950
      %v5052 = vadd.f32 %v4860, %v4952
      %v5053 = vadd.f32 %v4861, %v4955
      %v5054 = vadd.f32 %v4862, %v4957
      %v5055 = vadd.f32 %v4863, %v4960
      %v5056 = vadd.f32 %v4864, %v4962
      %v5057 = vadd.f32 %v4865, %v4965
      %v5058 = vadd.f32 %v4866, %v4967
      %v5059 = vadd.f32 %v4867, %v4970
      %v5060 = vadd.f32 %v4868, %v4972
      %v5061 = vadd.f32 %v4869, %v4975
      %v5062 = vadd.f32 %v4870, %v4977
      %v5063 = vadd.f32 %v4871, %v4980
      %v5064 = vadd.f32 %v4872, %v4982
      %v5065 = vadd.f32 %v4873, %v4985
      %v5066 = vadd.f32 %v4874, %v4987
      %v5067 = vadd.f32 %v4875, %v4990
      %v5068 = vadd.f32 %v4876, %v4992
      %v5069 = vadd.f32 %v4877, %v4995
      %v5070 = vadd.f32 %v4878, %v4997
      %v5071 = vadd.f32 %v4879, %v5000
      %v5072 = vadd.f32 %v4880, %v5002
      %v5073 = vadd.f32 %v4881, %v5005
      %v5074 = vadd.f32 %v4882, %v5007
      %v5075 = vadd.f32 %v4883, %v5010
      %v5076 = vadd.f32 %v4884, %v5012
      %5077 = vst [vmem:[#allocation4] sm:$0xff] %v5045
      %5078 = vst [vmem:[#allocation4 + $0x8] sm:$0xff] %v5046
      %5079 = vst [vmem:[#allocation4 + $0x10] sm:$0xff] %v5047
      %5080 = vst [vmem:[#allocation4 + $0x18] sm:$0xff] %v5048
      %5081 = vst [vmem:[#allocation4 + $0x20] sm:$0xff] %v5049
      %5082 = vst [vmem:[#allocation4 + $0x28] sm:$0xff] %v5050
      %5083 = vst [vmem:[#allocation4 + $0x30] sm:$0xff] %v5051
      %5084 = vst [vmem:[#allocation4 + $0x38] sm:$0xff] %v5052
      %5085 = vst [vmem:[#allocation4 + $0x40] sm:$0xff] %v5053
      %5086 = vst [vmem:[#allocation4 + $0x48] sm:$0xff] %v5054
      %5087 = vst [vmem:[#allocation4 + $0x50] sm:$0xff] %v5055
      %5088 = vst [vmem:[#allocation4 + $0x58] sm:$0xff] %v5056
      %5089 = vst [vmem:[#allocation4 + $0x60] sm:$0xff] %v5057
      %5090 = vst [vmem:[#allocation4 + $0x68] sm:$0xff] %v5058
      %5091 = vst [vmem:[#allocation4 + $0x70] sm:$0xff] %v5059
      %5092 = vst [vmem:[#allocation4 + $0x78] sm:$0xff] %v5060
      %5093 = vst [vmem:[#allocation4 + $0x80] sm:$0xff] %v5061
      %5094 = vst [vmem:[#allocation4 + $0x88] sm:$0xff] %v5062
      %5095 = vst [vmem:[#allocation4 + $0x90] sm:$0xff] %v5063
      %5096 = vst [vmem:[#allocation4 + $0x98] sm:$0xff] %v5064
      %5097 = vst [vmem:[#allocation4 + $0xa0] sm:$0xff] %v5065
      %5098 = vst [vmem:[#allocation4 + $0xa8] sm:$0xff] %v5066
      %5099 = vst [vmem:[#allocation4 + $0xb0] sm:$0xff] %v5067
      %5100 = vst [vmem:[#allocation4 + $0xb8] sm:$0xff] %v5068
      %5101 = vst [vmem:[#allocation4 + $0xc0] sm:$0xff] %v5069
      %5102 = vst [vmem:[#allocation4 + $0xc8] sm:$0xff] %v5070
      %5103 = vst [vmem:[#allocation4 + $0xd0] sm:$0xff] %v5071
      %5104 = vst [vmem:[#allocation4 + $0xd8] sm:$0xff] %v5072
      %5105 = vst [vmem:[#allocation4 + $0xe0] sm:$0xff] %v5073
      %5106 = vst [vmem:[#allocation4 + $0xe8] sm:$0xff] %v5074
      %5107 = vst [vmem:[#allocation4 + $0xf0] sm:$0xff] %v5075
      %5108 = vst [vmem:[#allocation4 + $0xf8] sm:$0xff] %v5076
      %v5109 = vld [vmem:[#allocation4] sm:$0xff]
      %v5110 = vld [vmem:[#allocation4 + $0x8] sm:$0xff]
      %v5111 = vld [vmem:[#allocation4 + $0x10] sm:$0xff]
      %v5112 = vld [vmem:[#allocation4 + $0x18] sm:$0xff]
      %v5113 = vld [vmem:[#allocation4 + $0x20] sm:$0xff]
      %v5114 = vld [vmem:[#allocation4 + $0x28] sm:$0xff]
      %v5115 = vld [vmem:[#allocation4 + $0x30] sm:$0xff]
      %v5116 = vld [vmem:[#allocation4 + $0x38] sm:$0xff]
      %v5117 = vld [vmem:[#allocation4 + $0x40] sm:$0xff]
      %v5118 = vld [vmem:[#allocation4 + $0x48] sm:$0xff]
      %v5119 = vld [vmem:[#allocation4 + $0x50] sm:$0xff]
      %v5120 = vld [vmem:[#allocation4 + $0x58] sm:$0xff]
      %v5121 = vld [vmem:[#allocation4 + $0x60] sm:$0xff]
      %v5122 = vld [vmem:[#allocation4 + $0x68] sm:$0xff]
      %v5123 = vld [vmem:[#allocation4 + $0x70] sm:$0xff]
      %v5124 = vld [vmem:[#allocation4 + $0x78] sm:$0xff]
      %v5125 = vld [vmem:[#allocation4 + $0x80] sm:$0xff]
      %v5126 = vld [vmem:[#allocation4 + $0x88] sm:$0xff]
      %v5127 = vld [vmem:[#allocation4 + $0x90] sm:$0xff]
      %v5128 = vld [vmem:[#allocation4 + $0x98] sm:$0xff]
      %v5129 = vld [vmem:[#allocation4 + $0xa0] sm:$0xff]
      %v5130 = vld [vmem:[#allocation4 + $0xa8] sm:$0xff]
      %v5131 = vld [vmem:[#allocation4 + $0xb0] sm:$0xff]
      %v5132 = vld [vmem:[#allocation4 + $0xb8] sm:$0xff]
      %v5133 = vld [vmem:[#allocation4 + $0xc0] sm:$0xff]
      %v5134 = vld [vmem:[#allocation4 + $0xc8] sm:$0xff]
      %v5135 = vld [vmem:[#allocation4 + $0xd0] sm:$0xff]
      %v5136 = vld [vmem:[#allocation4 + $0xd8] sm:$0xff]
      %v5137 = vld [vmem:[#allocation4 + $0xe0] sm:$0xff]
      %v5138 = vld [vmem:[#allocation4 + $0xe8] sm:$0xff]
      %v5139 = vld [vmem:[#allocation4 + $0xf0] sm:$0xff]
      %v5140 = vld [vmem:[#allocation4 + $0xf8] sm:$0xff]
      %v5189 = vrot.slane %v4614, 2
      %v5190 = vrot.slane %v4616, 2
      %v5191 = vsel %vm2405, %v5189, %v5190
      %v5192 = vrot.slane %v4619, 2
      %v5193 = vsel %vm2405, %v5190, %v5192
      %v5194 = vrot.slane %v4623, 2
      %v5195 = vrot.slane %v4625, 2
      %v5196 = vsel %vm2405, %v5194, %v5195
      %v5197 = vrot.slane %v4628, 2
      %v5198 = vsel %vm2405, %v5195, %v5197
      %v5199 = vrot.slane %v4632, 2
      %v5200 = vrot.slane %v4634, 2
      %v5201 = vsel %vm2405, %v5199, %v5200
      %v5202 = vrot.slane %v4637, 2
      %v5203 = vsel %vm2405, %v5200, %v5202
      %v5204 = vrot.slane %v4641, 2
      %v5205 = vrot.slane %v4643, 2
      %v5206 = vsel %vm2405, %v5204, %v5205
      %v5207 = vrot.slane %v4646, 2
      %v5208 = vsel %vm2405, %v5205, %v5207
      %v5209 = vrot.slane %v4650, 2
      %v5210 = vrot.slane %v4652, 2
      %v5211 = vsel %vm2405, %v5209, %v5210
      %v5212 = vrot.slane %v4655, 2
      %v5213 = vsel %vm2405, %v5210, %v5212
      %v5214 = vrot.slane %v4659, 2
      %v5215 = vrot.slane %v4661, 2
      %v5216 = vsel %vm2405, %v5214, %v5215
      %v5217 = vrot.slane %v4664, 2
      %v5218 = vsel %vm2405, %v5215, %v5217
      %v5219 = vrot.slane %v4668, 2
      %v5220 = vrot.slane %v4670, 2
      %v5221 = vsel %vm2405, %v5219, %v5220
      %v5222 = vrot.slane %v4673, 2
      %v5223 = vsel %vm2405, %v5220, %v5222
      %v5224 = vrot.slane %v4677, 2
      %v5225 = vrot.slane %v4679, 2
      %v5226 = vsel %vm2405, %v5224, %v5225
      %v5227 = vrot.slane %v4682, 2
      %v5228 = vsel %vm2405, %v5225, %v5227
      %v5229 = vrot.slane %v4686, 2
      %v5230 = vrot.slane %v4688, 2
      %v5231 = vsel %vm2405, %v5229, %v5230
      %v5232 = vrot.slane %v4691, 2
      %v5233 = vsel %vm2405, %v5230, %v5232
      %v5234 = vrot.slane %v4695, 2
      %v5235 = vrot.slane %v4697, 2
      %v5236 = vsel %vm2405, %v5234, %v5235
      %v5237 = vrot.slane %v4700, 2
      %v5238 = vsel %vm2405, %v5235, %v5237
      %v5239 = vrot.slane %v4704, 2
      %v5240 = vrot.slane %v4706, 2
      %v5241 = vsel %vm2405, %v5239, %v5240
      %v5242 = vrot.slane %v4709, 2
      %v5243 = vsel %vm2405, %v5240, %v5242
      %v5244 = vrot.slane %v4713, 2
      %v5245 = vrot.slane %v4715, 2
      %v5246 = vsel %vm2405, %v5244, %v5245
      %v5247 = vrot.slane %v4718, 2
      %v5248 = vsel %vm2405, %v5245, %v5247
      %v5249 = vrot.slane %v4722, 2
      %v5250 = vrot.slane %v4724, 2
      %v5251 = vsel %vm2405, %v5249, %v5250
      %v5252 = vrot.slane %v4727, 2
      %v5253 = vsel %vm2405, %v5250, %v5252
      %v5254 = vrot.slane %v4731, 2
      %v5255 = vrot.slane %v4733, 2
      %v5256 = vsel %vm2405, %v5254, %v5255
      %v5257 = vrot.slane %v4736, 2
      %v5258 = vsel %vm2405, %v5255, %v5257
      %v5259 = vrot.slane %v4740, 2
      %v5260 = vrot.slane %v4742, 2
      %v5261 = vsel %vm2405, %v5259, %v5260
      %v5262 = vrot.slane %v4745, 2
      %v5263 = vsel %vm2405, %v5260, %v5262
      %v5264 = vrot.slane %v4749, 2
      %v5265 = vrot.slane %v4751, 2
      %v5266 = vsel %vm2405, %v5264, %v5265
      %v5267 = vrot.slane %v4754, 2
      %v5268 = vsel %vm2405, %v5265, %v5267
      %v5301 = vadd.f32 %v5109, %v5191
      %v5302 = vadd.f32 %v5110, %v5193
      %v5303 = vadd.f32 %v5111, %v5196
      %v5304 = vadd.f32 %v5112, %v5198
      %v5305 = vadd.f32 %v5113, %v5201
      %v5306 = vadd.f32 %v5114, %v5203
      %v5307 = vadd.f32 %v5115, %v5206
      %v5308 = vadd.f32 %v5116, %v5208
      %v5309 = vadd.f32 %v5117, %v5211
      %v5310 = vadd.f32 %v5118, %v5213
      %v5311 = vadd.f32 %v5119, %v5216
      %v5312 = vadd.f32 %v5120, %v5218
      %v5313 = vadd.f32 %v5121, %v5221
      %v5314 = vadd.f32 %v5122, %v5223
      %v5315 = vadd.f32 %v5123, %v5226
      %v5316 = vadd.f32 %v5124, %v5228
      %v5317 = vadd.f32 %v5125, %v5231
      %v5318 = vadd.f32 %v5126, %v5233
      %v5319 = vadd.f32 %v5127, %v5236
      %v5320 = vadd.f32 %v5128, %v5238
      %v5321 = vadd.f32 %v5129, %v5241
      %v5322 = vadd.f32 %v5130, %v5243
      %v5323 = vadd.f32 %v5131, %v5246
      %v5324 = vadd.f32 %v5132, %v5248
      %v5325 = vadd.f32 %v5133, %v5251
      %v5326 = vadd.f32 %v5134, %v5253
      %v5327 = vadd.f32 %v5135, %v5256
      %v5328 = vadd.f32 %v5136, %v5258
      %v5329 = vadd.f32 %v5137, %v5261
      %v5330 = vadd.f32 %v5138, %v5263
      %v5331 = vadd.f32 %v5139, %v5266
      %v5332 = vadd.f32 %v5140, %v5268
      %5333 = vst [vmem:[#allocation4] sm:$0xff] %v5301
      %5334 = vst [vmem:[#allocation4 + $0x8] sm:$0xff] %v5302
      %5335 = vst [vmem:[#allocation4 + $0x10] sm:$0xff] %v5303
      %5336 = vst [vmem:[#allocation4 + $0x18] sm:$0xff] %v5304
      %5337 = vst [vmem:[#allocation4 + $0x20] sm:$0xff] %v5305
      %5338 = vst [vmem:[#allocation4 + $0x28] sm:$0xff] %v5306
      %5339 = vst [vmem:[#allocation4 + $0x30] sm:$0xff] %v5307
      %5340 = vst [vmem:[#allocation4 + $0x38] sm:$0xff] %v5308
      %5341 = vst [vmem:[#allocation4 + $0x40] sm:$0xff] %v5309
      %5342 = vst [vmem:[#allocation4 + $0x48] sm:$0xff] %v5310
      %5343 = vst [vmem:[#allocation4 + $0x50] sm:$0xff] %v5311
      %5344 = vst [vmem:[#allocation4 + $0x58] sm:$0xff] %v5312
      %5345 = vst [vmem:[#allocation4 + $0x60] sm:$0xff] %v5313
      %5346 = vst [vmem:[#allocation4 + $0x68] sm:$0xff] %v5314
      %5347 = vst [vmem:[#allocation4 + $0x70] sm:$0xff] %v5315
      %5348 = vst [vmem:[#allocation4 + $0x78] sm:$0xff] %v5316
      %5349 = vst [vmem:[#allocation4 + $0x80] sm:$0xff] %v5317
      %5350 = vst [vmem:[#allocation4 + $0x88] sm:$0xff] %v5318
      %5351 = vst [vmem:[#allocation4 + $0x90] sm:$0xff] %v5319
      %5352 = vst [vmem:[#allocation4 + $0x98] sm:$0xff] %v5320
      %5353 = vst [vmem:[#allocation4 + $0xa0] sm:$0xff] %v5321
      %5354 = vst [vmem:[#allocation4 + $0xa8] sm:$0xff] %v5322
      %5355 = vst [vmem:[#allocation4 + $0xb0] sm:$0xff] %v5323
      %5356 = vst [vmem:[#allocation4 + $0xb8] sm:$0xff] %v5324
      %5357 = vst [vmem:[#allocation4 + $0xc0] sm:$0xff] %v5325
      %5358 = vst [vmem:[#allocation4 + $0xc8] sm:$0xff] %v5326
      %5359 = vst [vmem:[#allocation4 + $0xd0] sm:$0xff] %v5327
      %5360 = vst [vmem:[#allocation4 + $0xd8] sm:$0xff] %v5328
      %5361 = vst [vmem:[#allocation4 + $0xe0] sm:$0xff] %v5329
      %5362 = vst [vmem:[#allocation4 + $0xe8] sm:$0xff] %v5330
      %5363 = vst [vmem:[#allocation4 + $0xf0] sm:$0xff] %v5331
      %5364 = vst [vmem:[#allocation4 + $0xf8] sm:$0xff] %v5332
      %v5365 = vld [vmem:[#allocation3] sm:$0xff]
      %v5366 = vld [vmem:[#allocation3 + $0x8] sm:$0xff]
      %5369 = vrot.lane.b32.xlu0 %v5365, 127
      %v5370 = vpop.permute.xlu0 %5369
      %5371 = vrot.lane.b32.xlu0 %v5366, 127
      %v5372 = vpop.permute.xlu0 %5371
      %v5375 = vadd.f32 %v5365, %v5370
      %v5376 = vadd.f32 %v5366, %v5372
      %5377 = vrot.lane.b32.xlu0 %v5365, 126
      %v5378 = vpop.permute.xlu0 %5377
      %5379 = vrot.lane.b32.xlu0 %v5366, 126
      %v5380 = vpop.permute.xlu0 %5379
      %v5383 = vadd.f32 %v5375, %v5378
      %v5384 = vadd.f32 %v5376, %v5380
      %v5385 = vld [vmem:[#allocation3 + $0x1] sm:$0xff]
      %v5386 = vld [vmem:[#allocation3 + $0x9] sm:$0xff]
      %v5387 = vadd.f32 %v5383, %v5385
      %v5388 = vadd.f32 %v5384, %v5386
      %5391 = vrot.lane.b32.xlu0 %v5385, 127
      %v5392 = vpop.permute.xlu0 %5391
      %5393 = vrot.lane.b32.xlu0 %v5386, 127
      %v5394 = vpop.permute.xlu0 %5393
      %v5397 = vadd.f32 %v5387, %v5392
      %v5398 = vadd.f32 %v5388, %v5394
      %5399 = vrot.lane.b32.xlu0 %v5385, 126
      %v5400 = vpop.permute.xlu0 %5399
      %5401 = vrot.lane.b32.xlu0 %v5386, 126
      %v5402 = vpop.permute.xlu0 %5401
      %v5405 = vadd.f32 %v5397, %v5400
      %v5406 = vadd.f32 %v5398, %v5402
      %v5407 = vld [vmem:[#allocation3 + $0x2] sm:$0xff]
      %v5408 = vld [vmem:[#allocation3 + $0xa] sm:$0xff]
      %v5409 = vadd.f32 %v5405, %v5407
      %v5410 = vadd.f32 %v5406, %v5408
      %5413 = vrot.lane.b32.xlu0 %v5407, 127
      %v5414 = vpop.permute.xlu0 %5413
      %5415 = vrot.lane.b32.xlu0 %v5408, 127
      %v5416 = vpop.permute.xlu0 %5415
      %v5419 = vadd.f32 %v5409, %v5414
      %v5420 = vadd.f32 %v5410, %v5416
      %5421 = vrot.lane.b32.xlu0 %v5407, 126
      %v5422 = vpop.permute.xlu0 %5421
      %5423 = vrot.lane.b32.xlu0 %v5408, 126
      %v5424 = vpop.permute.xlu0 %5423
      %v5427 = vadd.f32 %v5419, %v5422
      %v5428 = vadd.f32 %v5420, %v5424
      %vm5429 = vcmp.ne.f32.partialorder %v5427, 0.0
      %vm5430 = vcmp.ne.f32.partialorder %v5428, 0.0
      %v5431 = vsel %vm5429, %v5427, 1.0
      %v5432 = vsel %vm5430, %v5428, 1.0
      %v5433 = vrcp.pop %v5431
      %v5434 = vmul.f32 %v5431, %v5433
      %v5435 = vsub.f32 1.0, %v5434
      %v5436 = vmul.f32 %v5433, %v5435
      %v5437 = vadd.f32 %v5433, %v5436
      %vm5438 = vweird.f32 %v5431
      %vm5439 = vweird.f32 %v5433
      %vm5440 = vmor %vm5438, %vm5439
      %v5441 = vsel %vm5440, %v5433, %v5437
      %v5442 = vand.u32 2147483647, %v5431
      %vm5443 = vcmp.eq.f32.partialorder %v5442, 8.507059e+37
      %v5444 = vand.u32 %v5431, 2147483648
      %v5445 = vor.u32 1.1754944e-38, %v5444
      %v5446 = vsel %vm5443, %v5445, %v5441
      %v5447 = vmul.f32 1.0, %v5446
      %v5448 = vrcp.pop %v5432
      %v5449 = vmul.f32 %v5432, %v5448
      %v5450 = vsub.f32 1.0, %v5449
      %v5451 = vmul.f32 %v5448, %v5450
      %v5452 = vadd.f32 %v5448, %v5451
      %vm5453 = vweird.f32 %v5432
      %vm5454 = vweird.f32 %v5448
      %vm5455 = vmor %vm5453, %vm5454
      %v5456 = vsel %vm5455, %v5448, %v5452
      %v5457 = vand.u32 2147483647, %v5432
      %vm5458 = vcmp.eq.f32.partialorder %v5457, 8.507059e+37
      %v5459 = vand.u32 %v5432, 2147483648
      %v5460 = vor.u32 1.1754944e-38, %v5459
      %v5461 = vsel %vm5458, %v5460, %v5456
      %v5462 = vmul.f32 1.0, %v5461
      %v5463 = vsel %vm5429, %v5447, 0.0
      %v5464 = vsel %vm5430, %v5462, 0.0
      %v5465 = vld [vmem:[#allocation4] sm:$0xff]
      %v5466 = vld [vmem:[#allocation4 + $0x8] sm:$0xff]
      %v5467 = vld [vmem:[#allocation4 + $0x10] sm:$0xff]
      %v5468 = vld [vmem:[#allocation4 + $0x18] sm:$0xff]
      %v5469 = vld [vmem:[#allocation4 + $0x20] sm:$0xff]
      %v5470 = vld [vmem:[#allocation4 + $0x28] sm:$0xff]
      %v5471 = vld [vmem:[#allocation4 + $0x30] sm:$0xff]
      %v5472 = vld [vmem:[#allocation4 + $0x38] sm:$0xff]
      %v5473 = vld [vmem:[#allocation4 + $0x40] sm:$0xff]
      %v5474 = vld [vmem:[#allocation4 + $0x48] sm:$0xff]
      %v5475 = vld [vmem:[#allocation4 + $0x50] sm:$0xff]
      %v5476 = vld [vmem:[#allocation4 + $0x58] sm:$0xff]
      %v5477 = vld [vmem:[#allocation4 + $0x60] sm:$0xff]
      %v5478 = vld [vmem:[#allocation4 + $0x68] sm:$0xff]
      %v5479 = vld [vmem:[#allocation4 + $0x70] sm:$0xff]
      %v5480 = vld [vmem:[#allocation4 + $0x78] sm:$0xff]
      %v5481 = vld [vmem:[#allocation4 + $0x80] sm:$0xff]
      %v5482 = vld [vmem:[#allocation4 + $0x88] sm:$0xff]
      %v5483 = vld [vmem:[#allocation4 + $0x90] sm:$0xff]
      %v5484 = vld [vmem:[#allocation4 + $0x98] sm:$0xff]
      %v5485 = vld [vmem:[#allocation4 + $0xa0] sm:$0xff]
      %v5486 = vld [vmem:[#allocation4 + $0xa8] sm:$0xff]
      %v5487 = vld [vmem:[#allocation4 + $0xb0] sm:$0xff]
      %v5488 = vld [vmem:[#allocation4 + $0xb8] sm:$0xff]
      %v5489 = vld [vmem:[#allocation4 + $0xc0] sm:$0xff]
      %v5490 = vld [vmem:[#allocation4 + $0xc8] sm:$0xff]
      %v5491 = vld [vmem:[#allocation4 + $0xd0] sm:$0xff]
      %v5492 = vld [vmem:[#allocation4 + $0xd8] sm:$0xff]
      %v5493 = vld [vmem:[#allocation4 + $0xe0] sm:$0xff]
      %v5494 = vld [vmem:[#allocation4 + $0xe8] sm:$0xff]
      %v5495 = vld [vmem:[#allocation4 + $0xf0] sm:$0xff]
      %v5496 = vld [vmem:[#allocation4 + $0xf8] sm:$0xff]
      %v5497 = vld [vmem:[%s5] sm:$0x1]
      %v5499 = vperm.slane %v5497, 0
      %v5501 = vadd.f32 %v5465, %v5499
      %v5502 = vadd.f32 %v5466, %v5499
      %v5503 = vadd.f32 %v5467, %v5499
      %v5504 = vadd.f32 %v5468, %v5499
      %v5505 = vadd.f32 %v5469, %v5499
      %v5506 = vadd.f32 %v5470, %v5499
      %v5507 = vadd.f32 %v5471, %v5499
      %v5508 = vadd.f32 %v5472, %v5499
      %v5509 = vadd.f32 %v5473, %v5499
      %v5510 = vadd.f32 %v5474, %v5499
      %v5511 = vadd.f32 %v5475, %v5499
      %v5512 = vadd.f32 %v5476, %v5499
      %v5513 = vadd.f32 %v5477, %v5499
      %v5514 = vadd.f32 %v5478, %v5499
      %v5515 = vadd.f32 %v5479, %v5499
      %v5516 = vadd.f32 %v5480, %v5499
      %v5517 = vadd.f32 %v5481, %v5499
      %v5518 = vadd.f32 %v5482, %v5499
      %v5519 = vadd.f32 %v5483, %v5499
      %v5520 = vadd.f32 %v5484, %v5499
      %v5521 = vadd.f32 %v5485, %v5499
      %v5522 = vadd.f32 %v5486, %v5499
      %v5523 = vadd.f32 %v5487, %v5499
      %v5524 = vadd.f32 %v5488, %v5499
      %v5525 = vadd.f32 %v5489, %v5499
      %v5526 = vadd.f32 %v5490, %v5499
      %v5527 = vadd.f32 %v5491, %v5499
      %v5528 = vadd.f32 %v5492, %v5499
      %v5529 = vadd.f32 %v5493, %v5499
      %v5530 = vadd.f32 %v5494, %v5499
      %v5531 = vadd.f32 %v5495, %v5499
      %v5532 = vadd.f32 %v5496, %v5499
      %v5533 = vperm.slane %v5463, 0
      %v5534 = vlaneseq
      %v5535 = vshrl.u32 %v5534, 7
      %5537 = vset.pattern.permute.xlu0 %v5535
      %5538 = vperm.xlu0 %5537, %v5533
      %v5539 = vpop.permute.xlu0 %5538
      %v5540 = vlaneseq
      %v5541 = vshrl.u32 %v5540, 7
      %v5542 = vadd.s32 %v5541, 8
      %5543 = vset.pattern.permute.xlu0 %v5542
      %5544 = vperm.xlu0 %5543, %v5533
      %v5545 = vpop.permute.xlu0 %5544
      %v5546 = vperm.slane %v5463, 1
      %v5547 = vlaneseq
      %v5548 = vshrl.u32 %v5547, 7
      %5550 = vset.pattern.permute.xlu0 %v5548
      %5551 = vperm.xlu0 %5550, %v5546
      %v5552 = vpop.permute.xlu0 %5551
      %v5553 = vlaneseq
      %v5554 = vshrl.u32 %v5553, 7
      %v5555 = vadd.s32 %v5554, 8
      %5556 = vset.pattern.permute.xlu0 %v5555
      %5557 = vperm.xlu0 %5556, %v5546
      %v5558 = vpop.permute.xlu0 %5557
      %v5559 = vperm.slane %v5463, 2
      %v5560 = vlaneseq
      %v5561 = vshrl.u32 %v5560, 7
      %5563 = vset.pattern.permute.xlu0 %v5561
      %5564 = vperm.xlu0 %5563, %v5559
      %v5565 = vpop.permute.xlu0 %5564
      %v5566 = vlaneseq
      %v5567 = vshrl.u32 %v5566, 7
      %v5568 = vadd.s32 %v5567, 8
      %5569 = vset.pattern.permute.xlu0 %v5568
      %5570 = vperm.xlu0 %5569, %v5559
      %v5571 = vpop.permute.xlu0 %5570
      %v5572 = vperm.slane %v5463, 3
      %v5573 = vlaneseq
      %v5574 = vshrl.u32 %v5573, 7
      %5576 = vset.pattern.permute.xlu0 %v5574
      %5577 = vperm.xlu0 %5576, %v5572
      %v5578 = vpop.permute.xlu0 %5577
      %v5579 = vlaneseq
      %v5580 = vshrl.u32 %v5579, 7
      %v5581 = vadd.s32 %v5580, 8
      %5582 = vset.pattern.permute.xlu0 %v5581
      %5583 = vperm.xlu0 %5582, %v5572
      %v5584 = vpop.permute.xlu0 %5583
      %v5585 = vperm.slane %v5463, 4
      %v5586 = vlaneseq
      %v5587 = vshrl.u32 %v5586, 7
      %5589 = vset.pattern.permute.xlu0 %v5587
      %5590 = vperm.xlu0 %5589, %v5585
      %v5591 = vpop.permute.xlu0 %5590
      %v5592 = vlaneseq
      %v5593 = vshrl.u32 %v5592, 7
      %v5594 = vadd.s32 %v5593, 8
      %5595 = vset.pattern.permute.xlu0 %v5594
      %5596 = vperm.xlu0 %5595, %v5585
      %v5597 = vpop.permute.xlu0 %5596
      %v5598 = vperm.slane %v5463, 5
      %v5599 = vlaneseq
      %v5600 = vshrl.u32 %v5599, 7
      %5602 = vset.pattern.permute.xlu0 %v5600
      %5603 = vperm.xlu0 %5602, %v5598
      %v5604 = vpop.permute.xlu0 %5603
      %v5605 = vlaneseq
      %v5606 = vshrl.u32 %v5605, 7
      %v5607 = vadd.s32 %v5606, 8
      %5608 = vset.pattern.permute.xlu0 %v5607
      %5609 = vperm.xlu0 %5608, %v5598
      %v5610 = vpop.permute.xlu0 %5609
      %v5611 = vperm.slane %v5463, 6
      %v5612 = vlaneseq
      %v5613 = vshrl.u32 %v5612, 7
      %5615 = vset.pattern.permute.xlu0 %v5613
      %5616 = vperm.xlu0 %5615, %v5611
      %v5617 = vpop.permute.xlu0 %5616
      %v5618 = vlaneseq
      %v5619 = vshrl.u32 %v5618, 7
      %v5620 = vadd.s32 %v5619, 8
      %5621 = vset.pattern.permute.xlu0 %v5620
      %5622 = vperm.xlu0 %5621, %v5611
      %v5623 = vpop.permute.xlu0 %5622
      %v5624 = vperm.slane %v5463, 7
      %v5625 = vlaneseq
      %v5626 = vshrl.u32 %v5625, 7
      %5628 = vset.pattern.permute.xlu0 %v5626
      %5629 = vperm.xlu0 %5628, %v5624
      %v5630 = vpop.permute.xlu0 %5629
      %v5631 = vlaneseq
      %v5632 = vshrl.u32 %v5631, 7
      %v5633 = vadd.s32 %v5632, 8
      %5634 = vset.pattern.permute.xlu0 %v5633
      %5635 = vperm.xlu0 %5634, %v5624
      %v5636 = vpop.permute.xlu0 %5635
      %v5637 = vperm.slane %v5464, 0
      %v5638 = vlaneseq
      %v5639 = vshrl.u32 %v5638, 7
      %5641 = vset.pattern.permute.xlu0 %v5639
      %5642 = vperm.xlu0 %5641, %v5637
      %v5643 = vpop.permute.xlu0 %5642
      %v5644 = vlaneseq
      %v5645 = vshrl.u32 %v5644, 7
      %v5646 = vadd.s32 %v5645, 8
      %5647 = vset.pattern.permute.xlu0 %v5646
      %5648 = vperm.xlu0 %5647, %v5637
      %v5649 = vpop.permute.xlu0 %5648
      %v5650 = vperm.slane %v5464, 1
      %v5651 = vlaneseq
      %v5652 = vshrl.u32 %v5651, 7
      %5654 = vset.pattern.permute.xlu0 %v5652
      %5655 = vperm.xlu0 %5654, %v5650
      %v5656 = vpop.permute.xlu0 %5655
      %v5657 = vlaneseq
      %v5658 = vshrl.u32 %v5657, 7
      %v5659 = vadd.s32 %v5658, 8
      %5660 = vset.pattern.permute.xlu0 %v5659
      %5661 = vperm.xlu0 %5660, %v5650
      %v5662 = vpop.permute.xlu0 %5661
      %v5663 = vperm.slane %v5464, 2
      %v5664 = vlaneseq
      %v5665 = vshrl.u32 %v5664, 7
      %5667 = vset.pattern.permute.xlu0 %v5665
      %5668 = vperm.xlu0 %5667, %v5663
      %v5669 = vpop.permute.xlu0 %5668
      %v5670 = vlaneseq
      %v5671 = vshrl.u32 %v5670, 7
      %v5672 = vadd.s32 %v5671, 8
      %5673 = vset.pattern.permute.xlu0 %v5672
      %5674 = vperm.xlu0 %5673, %v5663
      %v5675 = vpop.permute.xlu0 %5674
      %v5676 = vperm.slane %v5464, 3
      %v5677 = vlaneseq
      %v5678 = vshrl.u32 %v5677, 7
      %5680 = vset.pattern.permute.xlu0 %v5678
      %5681 = vperm.xlu0 %5680, %v5676
      %v5682 = vpop.permute.xlu0 %5681
      %v5683 = vlaneseq
      %v5684 = vshrl.u32 %v5683, 7
      %v5685 = vadd.s32 %v5684, 8
      %5686 = vset.pattern.permute.xlu0 %v5685
      %5687 = vperm.xlu0 %5686, %v5676
      %v5688 = vpop.permute.xlu0 %5687
      %v5689 = vperm.slane %v5464, 4
      %v5690 = vlaneseq
      %v5691 = vshrl.u32 %v5690, 7
      %5693 = vset.pattern.permute.xlu0 %v5691
      %5694 = vperm.xlu0 %5693, %v5689
      %v5695 = vpop.permute.xlu0 %5694
      %v5696 = vlaneseq
      %v5697 = vshrl.u32 %v5696, 7
      %v5698 = vadd.s32 %v5697, 8
      %5699 = vset.pattern.permute.xlu0 %v5698
      %5700 = vperm.xlu0 %5699, %v5689
      %v5701 = vpop.permute.xlu0 %5700
      %v5702 = vperm.slane %v5464, 5
      %v5703 = vlaneseq
      %v5704 = vshrl.u32 %v5703, 7
      %5706 = vset.pattern.permute.xlu0 %v5704
      %5707 = vperm.xlu0 %5706, %v5702
      %v5708 = vpop.permute.xlu0 %5707
      %v5709 = vlaneseq
      %v5710 = vshrl.u32 %v5709, 7
      %v5711 = vadd.s32 %v5710, 8
      %5712 = vset.pattern.permute.xlu0 %v5711
      %5713 = vperm.xlu0 %5712, %v5702
      %v5714 = vpop.permute.xlu0 %5713
      %v5715 = vperm.slane %v5464, 6
      %v5716 = vlaneseq
      %v5717 = vshrl.u32 %v5716, 7
      %5719 = vset.pattern.permute.xlu0 %v5717
      %5720 = vperm.xlu0 %5719, %v5715
      %v5721 = vpop.permute.xlu0 %5720
      %v5722 = vlaneseq
      %v5723 = vshrl.u32 %v5722, 7
      %v5724 = vadd.s32 %v5723, 8
      %5725 = vset.pattern.permute.xlu0 %v5724
      %5726 = vperm.xlu0 %5725, %v5715
      %v5727 = vpop.permute.xlu0 %5726
      %v5728 = vperm.slane %v5464, 7
      %v5729 = vlaneseq
      %v5730 = vshrl.u32 %v5729, 7
      %5732 = vset.pattern.permute.xlu0 %v5730
      %5733 = vperm.xlu0 %5732, %v5728
      %v5734 = vpop.permute.xlu0 %5733
      %v5735 = vlaneseq
      %v5736 = vshrl.u32 %v5735, 7
      %v5737 = vadd.s32 %v5736, 8
      %5738 = vset.pattern.permute.xlu0 %v5737
      %5739 = vperm.xlu0 %5738, %v5728
      %v5740 = vpop.permute.xlu0 %5739
      %v5741 = vmul.f32 %v5501, %v5539
      %v5742 = vmul.f32 %v5502, %v5545
      %v5743 = vmul.f32 %v5503, %v5552
      %v5744 = vmul.f32 %v5504, %v5558
      %v5745 = vmul.f32 %v5505, %v5565
      %v5746 = vmul.f32 %v5506, %v5571
      %v5747 = vmul.f32 %v5507, %v5578
      %v5748 = vmul.f32 %v5508, %v5584
      %v5749 = vmul.f32 %v5509, %v5591
      %v5750 = vmul.f32 %v5510, %v5597
      %v5751 = vmul.f32 %v5511, %v5604
      %v5752 = vmul.f32 %v5512, %v5610
      %v5753 = vmul.f32 %v5513, %v5617
      %v5754 = vmul.f32 %v5514, %v5623
      %v5755 = vmul.f32 %v5515, %v5630
      %v5756 = vmul.f32 %v5516, %v5636
      %v5757 = vmul.f32 %v5517, %v5643
      %v5758 = vmul.f32 %v5518, %v5649
      %v5759 = vmul.f32 %v5519, %v5656
      %v5760 = vmul.f32 %v5520, %v5662
      %v5761 = vmul.f32 %v5521, %v5669
      %v5762 = vmul.f32 %v5522, %v5675
      %v5763 = vmul.f32 %v5523, %v5682
      %v5764 = vmul.f32 %v5524, %v5688
      %v5765 = vmul.f32 %v5525, %v5695
      %v5766 = vmul.f32 %v5526, %v5701
      %v5767 = vmul.f32 %v5527, %v5708
      %v5768 = vmul.f32 %v5528, %v5714
      %v5769 = vmul.f32 %v5529, %v5721
      %v5770 = vmul.f32 %v5530, %v5727
      %v5771 = vmul.f32 %v5531, %v5734
      %v5772 = vmul.f32 %v5532, %v5740
      %v5773 = vsel %vm1486, %v5741, 0.0
      %v5774 = vsel %vm1486, %v5742, 0.0
      %v5775 = vadd.f32 %v5773, %v5774
      %v5776 = vsel %vm1486, %v5743, 0.0
      %v5777 = vadd.f32 %v5775, %v5776
      %v5778 = vsel %vm1486, %v5744, 0.0
      %v5779 = vadd.f32 %v5777, %v5778
      %v5780 = vsel %vm1486, %v5745, 0.0
      %v5781 = vadd.f32 %v5779, %v5780
      %v5782 = vsel %vm1486, %v5746, 0.0
      %v5783 = vadd.f32 %v5781, %v5782
      %v5784 = vsel %vm1486, %v5747, 0.0
      %v5785 = vadd.f32 %v5783, %v5784
      %v5786 = vsel %vm1486, %v5748, 0.0
      %v5787 = vadd.f32 %v5785, %v5786
      %v5788 = vsel %vm1486, %v5749, 0.0
      %v5789 = vadd.f32 %v5787, %v5788
      %v5790 = vsel %vm1486, %v5750, 0.0
      %v5791 = vadd.f32 %v5789, %v5790
      %v5792 = vsel %vm1486, %v5751, 0.0
      %v5793 = vadd.f32 %v5791, %v5792
      %v5794 = vsel %vm1486, %v5752, 0.0
      %v5795 = vadd.f32 %v5793, %v5794
      %v5796 = vsel %vm1486, %v5753, 0.0
      %v5797 = vadd.f32 %v5795, %v5796
      %v5798 = vsel %vm1486, %v5754, 0.0
      %v5799 = vadd.f32 %v5797, %v5798
      %v5800 = vsel %vm1486, %v5755, 0.0
      %v5801 = vadd.f32 %v5799, %v5800
      %v5802 = vsel %vm1486, %v5756, 0.0
      %v5803 = vadd.f32 %v5801, %v5802
      %v5804 = vsel %vm1486, %v5757, 0.0
      %v5805 = vadd.f32 %v5803, %v5804
      %v5806 = vsel %vm1486, %v5758, 0.0
      %v5807 = vadd.f32 %v5805, %v5806
      %v5808 = vsel %vm1486, %v5759, 0.0
      %v5809 = vadd.f32 %v5807, %v5808
      %v5810 = vsel %vm1486, %v5760, 0.0
      %v5811 = vadd.f32 %v5809, %v5810
      %v5812 = vsel %vm1486, %v5761, 0.0
      %v5813 = vadd.f32 %v5811, %v5812
      %v5814 = vsel %vm1486, %v5762, 0.0
      %v5815 = vadd.f32 %v5813, %v5814
      %v5816 = vsel %vm1486, %v5763, 0.0
      %v5817 = vadd.f32 %v5815, %v5816
      %v5818 = vsel %vm1486, %v5764, 0.0
      %v5819 = vadd.f32 %v5817, %v5818
      %v5820 = vsel %vm1486, %v5765, 0.0
      %v5821 = vadd.f32 %v5819, %v5820
      %v5822 = vsel %vm1486, %v5766, 0.0
      %v5823 = vadd.f32 %v5821, %v5822
      %v5824 = vsel %vm1486, %v5767, 0.0
      %v5825 = vadd.f32 %v5823, %v5824
      %v5826 = vsel %vm1486, %v5768, 0.0
      %v5827 = vadd.f32 %v5825, %v5826
      %v5828 = vsel %vm1486, %v5769, 0.0
      %v5829 = vadd.f32 %v5827, %v5828
      %v5830 = vsel %vm1486, %v5770, 0.0
      %v5831 = vadd.f32 %v5829, %v5830
      %v5832 = vsel %vm1486, %v5771, 0.0
      %v5833 = vadd.f32 %v5831, %v5832
      %v5834 = vsel %vm1486, %v5772, 0.0
      %v5835 = vadd.f32 %v5833, %v5834
      %v5836 = vrot.slane %v5835, 4
      %v5837 = vadd.f32 %v5835, %v5836
      %v5838 = vrot.slane %v5837, 2
      %v5839 = vadd.f32 %v5837, %v5838
      %v5840 = vrot.slane %v5839, 1
      %v5841 = vadd.f32 %v5839, %v5840
      %vm5842 = vcmask 57344
      %5843 = vst.msk [vmem:[%s535] sm:$0x1] %vm5842, %v5841
      %v5844 = vmul.f32 %v5741, %v5741
      %v5845 = vmul.f32 %v5742, %v5742
      %v5846 = vmul.f32 %v5743, %v5743
      %v5847 = vmul.f32 %v5744, %v5744
      %v5848 = vmul.f32 %v5745, %v5745
      %v5849 = vmul.f32 %v5746, %v5746
      %v5850 = vmul.f32 %v5747, %v5747
      %v5851 = vmul.f32 %v5748, %v5748
      %v5852 = vmul.f32 %v5749, %v5749
      %v5853 = vmul.f32 %v5750, %v5750
      %v5854 = vmul.f32 %v5751, %v5751
      %v5855 = vmul.f32 %v5752, %v5752
      %v5856 = vmul.f32 %v5753, %v5753
      %v5857 = vmul.f32 %v5754, %v5754
      %v5858 = vmul.f32 %v5755, %v5755
      %v5859 = vmul.f32 %v5756, %v5756
      %v5860 = vmul.f32 %v5757, %v5757
      %v5861 = vmul.f32 %v5758, %v5758
      %v5862 = vmul.f32 %v5759, %v5759
      %v5863 = vmul.f32 %v5760, %v5760
      %v5864 = vmul.f32 %v5761, %v5761
      %v5865 = vmul.f32 %v5762, %v5762
      %v5866 = vmul.f32 %v5763, %v5763
      %v5867 = vmul.f32 %v5764, %v5764
      %v5868 = vmul.f32 %v5765, %v5765
      %v5869 = vmul.f32 %v5766, %v5766
      %v5870 = vmul.f32 %v5767, %v5767
      %v5871 = vmul.f32 %v5768, %v5768
      %v5872 = vmul.f32 %v5769, %v5769
      %v5873 = vmul.f32 %v5770, %v5770
      %v5874 = vmul.f32 %v5771, %v5771
      %v5875 = vmul.f32 %v5772, %v5772
      %v5876 = vsel %vm1486, %v5844, 0.0
      %v5877 = vsel %vm1486, %v5845, 0.0
      %v5878 = vadd.f32 %v5876, %v5877
      %v5879 = vsel %vm1486, %v5846, 0.0
      %v5880 = vadd.f32 %v5878, %v5879
      %v5881 = vsel %vm1486, %v5847, 0.0
      %v5882 = vadd.f32 %v5880, %v5881
      %v5883 = vsel %vm1486, %v5848, 0.0
      %v5884 = vadd.f32 %v5882, %v5883
      %v5885 = vsel %vm1486, %v5849, 0.0
      %v5886 = vadd.f32 %v5884, %v5885
      %v5887 = vsel %vm1486, %v5850, 0.0
      %v5888 = vadd.f32 %v5886, %v5887
      %v5889 = vsel %vm1486, %v5851, 0.0
      %v5890 = vadd.f32 %v5888, %v5889
      %v5891 = vsel %vm1486, %v5852, 0.0
      %v5892 = vadd.f32 %v5890, %v5891
      %v5893 = vsel %vm1486, %v5853, 0.0
      %v5894 = vadd.f32 %v5892, %v5893
      %v5895 = vsel %vm1486, %v5854, 0.0
      %v5896 = vadd.f32 %v5894, %v5895
      %v5897 = vsel %vm1486, %v5855, 0.0
      %v5898 = vadd.f32 %v5896, %v5897
      %v5899 = vsel %vm1486, %v5856, 0.0
      %v5900 = vadd.f32 %v5898, %v5899
      %v5901 = vsel %vm1486, %v5857, 0.0
      %v5902 = vadd.f32 %v5900, %v5901
      %v5903 = vsel %vm1486, %v5858, 0.0
      %v5904 = vadd.f32 %v5902, %v5903
      %v5905 = vsel %vm1486, %v5859, 0.0
      %v5906 = vadd.f32 %v5904, %v5905
      %v5907 = vsel %vm1486, %v5860, 0.0
      %v5908 = vadd.f32 %v5906, %v5907
      %v5909 = vsel %vm1486, %v5861, 0.0
      %v5910 = vadd.f32 %v5908, %v5909
      %v5911 = vsel %vm1486, %v5862, 0.0
      %v5912 = vadd.f32 %v5910, %v5911
      %v5913 = vsel %vm1486, %v5863, 0.0
      %v5914 = vadd.f32 %v5912, %v5913
      %v5915 = vsel %vm1486, %v5864, 0.0
      %v5916 = vadd.f32 %v5914, %v5915
      %v5917 = vsel %vm1486, %v5865, 0.0
      %v5918 = vadd.f32 %v5916, %v5917
      %v5919 = vsel %vm1486, %v5866, 0.0
      %v5920 = vadd.f32 %v5918, %v5919
      %v5921 = vsel %vm1486, %v5867, 0.0
      %v5922 = vadd.f32 %v5920, %v5921
      %v5923 = vsel %vm1486, %v5868, 0.0
      %v5924 = vadd.f32 %v5922, %v5923
      %v5925 = vsel %vm1486, %v5869, 0.0
      %v5926 = vadd.f32 %v5924, %v5925
      %v5927 = vsel %vm1486, %v5870, 0.0
      %v5928 = vadd.f32 %v5926, %v5927
      %v5929 = vsel %vm1486, %v5871, 0.0
      %v5930 = vadd.f32 %v5928, %v5929
      %v5931 = vsel %vm1486, %v5872, 0.0
      %v5932 = vadd.f32 %v5930, %v5931
      %v5933 = vsel %vm1486, %v5873, 0.0
      %v5934 = vadd.f32 %v5932, %v5933
      %v5935 = vsel %vm1486, %v5874, 0.0
      %v5936 = vadd.f32 %v5934, %v5935
      %v5937 = vsel %vm1486, %v5875, 0.0
      %v5938 = vadd.f32 %v5936, %v5937
      %v5939 = vrot.slane %v5938, 4
      %v5940 = vadd.f32 %v5938, %v5939
      %v5941 = vrot.slane %v5940, 2
      %v5942 = vadd.f32 %v5940, %v5941
      %v5943 = vrot.slane %v5942, 1
      %v5944 = vadd.f32 %v5942, %v5943
      %5945 = vst.msk [vmem:[%s535 + $0x1] sm:$0x1] %vm5842, %v5944
      %v5946 = vpack.c.bf16 %v5741, %v5741
      %v5947 = vpack.c.bf16 %v5742, %v5742
      %v5948 = vpack.c.bf16 %v5743, %v5743
      %v5949 = vpack.c.bf16 %v5744, %v5744
      %v5950 = vpack.c.bf16 %v5745, %v5745
      %v5951 = vpack.c.bf16 %v5746, %v5746
      %v5952 = vpack.c.bf16 %v5747, %v5747
      %v5953 = vpack.c.bf16 %v5748, %v5748
      %v5954 = vpack.c.bf16 %v5749, %v5749
      %v5955 = vpack.c.bf16 %v5750, %v5750
      %v5956 = vpack.c.bf16 %v5751, %v5751
      %v5957 = vpack.c.bf16 %v5752, %v5752
      %v5958 = vpack.c.bf16 %v5753, %v5753
      %v5959 = vpack.c.bf16 %v5754, %v5754
      %v5960 = vpack.c.bf16 %v5755, %v5755
      %v5961 = vpack.c.bf16 %v5756, %v5756
      %v5962 = vpack.c.bf16 %v5757, %v5757
      %v5963 = vpack.c.bf16 %v5758, %v5758
      %v5964 = vpack.c.bf16 %v5759, %v5759
      %v5965 = vpack.c.bf16 %v5760, %v5760
      %v5966 = vpack.c.bf16 %v5761, %v5761
      %v5967 = vpack.c.bf16 %v5762, %v5762
      %v5968 = vpack.c.bf16 %v5763, %v5763
      %v5969 = vpack.c.bf16 %v5764, %v5764
      %v5970 = vpack.c.bf16 %v5765, %v5765
      %v5971 = vpack.c.bf16 %v5766, %v5766
      %v5972 = vpack.c.bf16 %v5767, %v5767
      %v5973 = vpack.c.bf16 %v5768, %v5768
      %v5974 = vpack.c.bf16 %v5769, %v5769
      %v5975 = vpack.c.bf16 %v5770, %v5770
      %v5976 = vpack.c.bf16 %v5771, %v5771
      %v5977 = vpack.c.bf16 %v5772, %v5772
      %5978 = vst.msk [vmem:[%s517] sm:$0xf] %vm600, %v5946
      %5979 = vst.msk [vmem:[%s517 + $0x4] sm:$0xf] %vm600, %v5947
      %5980 = vst.msk [vmem:[%s517 + $0x8] sm:$0xf] %vm600, %v5948
      %5981 = vst.msk [vmem:[%s517 + $0xc] sm:$0xf] %vm600, %v5949
      %5982 = vst.msk [vmem:[%s517 + $0x10] sm:$0xf] %vm600, %v5950
      %5983 = vst.msk [vmem:[%s517 + $0x14] sm:$0xf] %vm600, %v5951
      %5984 = vst.msk [vmem:[%s517 + $0x18] sm:$0xf] %vm600, %v5952
      %5985 = vst.msk [vmem:[%s517 + $0x1c] sm:$0xf] %vm600, %v5953
      %5986 = vst.msk [vmem:[%s517 + $0x20] sm:$0xf] %vm600, %v5954
      %5987 = vst.msk [vmem:[%s517 + $0x24] sm:$0xf] %vm600, %v5955
      %5988 = vst.msk [vmem:[%s517 + $0x28] sm:$0xf] %vm600, %v5956
      %5989 = vst.msk [vmem:[%s517 + $0x2c] sm:$0xf] %vm600, %v5957
      %5990 = vst.msk [vmem:[%s517 + $0x30] sm:$0xf] %vm600, %v5958
      %5991 = vst.msk [vmem:[%s517 + $0x34] sm:$0xf] %vm600, %v5959
      %5992 = vst.msk [vmem:[%s517 + $0x38] sm:$0xf] %vm600, %v5960
      %5993 = vst.msk [vmem:[%s517 + $0x3c] sm:$0xf] %vm600, %v5961
      %5994 = vst.msk [vmem:[%s517 + $0x40] sm:$0xf] %vm600, %v5962
      %5995 = vst.msk [vmem:[%s517 + $0x44] sm:$0xf] %vm600, %v5963
      %5996 = vst.msk [vmem:[%s517 + $0x48] sm:$0xf] %vm600, %v5964
      %5997 = vst.msk [vmem:[%s517 + $0x4c] sm:$0xf] %vm600, %v5965
      %5998 = vst.msk [vmem:[%s517 + $0x50] sm:$0xf] %vm600, %v5966
      %5999 = vst.msk [vmem:[%s517 + $0x54] sm:$0xf] %vm600, %v5967
      %6000 = vst.msk [vmem:[%s517 + $0x58] sm:$0xf] %vm600, %v5968
      %6001 = vst.msk [vmem:[%s517 + $0x5c] sm:$0xf] %vm600, %v5969
      %6002 = vst.msk [vmem:[%s517 + $0x60] sm:$0xf] %vm600, %v5970
      %6003 = vst.msk [vmem:[%s517 + $0x64] sm:$0xf] %vm600, %v5971
      %6004 = vst.msk [vmem:[%s517 + $0x68] sm:$0xf] %vm600, %v5972
      %6005 = vst.msk [vmem:[%s517 + $0x6c] sm:$0xf] %vm600, %v5973
      %6006 = vst.msk [vmem:[%s517 + $0x70] sm:$0xf] %vm600, %v5974
      %6007 = vst.msk [vmem:[%s517 + $0x74] sm:$0xf] %vm600, %v5975
      %6008 = vst.msk [vmem:[%s517 + $0x78] sm:$0xf] %vm600, %v5976
      %6009 = vst.msk [vmem:[%s517 + $0x7c] sm:$0xf] %vm600, %v5977
      %v6010 = vsel %vm5429, 1, 0
      %v6011 = vsel %vm5430, 1, 0
      %v6012 = vcvt.s32.f32 %v6010
      %v6013 = vcvt.s32.f32 %v6011
      %vm6014 = vcmask 130048
      %6015 = vst.msk [vmem:[%s527] sm:$0xff] %vm6014, %v6012
      %6016 = vst.msk [vmem:[%s527 + $0x8] sm:$0xff] %vm6014, %v6013
      %s6017 = smul.u32 16, %s25
      %p6018 = scmp.lt.s32.totalorder %s24, 1
      %s6019 = scalar_select %p6018, %s24, 1
      %p6020 = scmp.lt.s32.totalorder %s6017, 15
      %s6021 = scalar_select %p6020, %s6017, 15
      %s6022 = smul.addr %s6021, 2
      %s6023 = smul.addr %s6019, 32
      %s6024 = sadd.s32 %s6022, %s6023
      %s6025 = smul.addr %s6024, 4
      %s6026 = scalar_lea.vmem %s6, %s6025
      %s6027 = smul.u32 2, %s25
      %p6028 = scmp.lt.s32.totalorder %s24, 1
      %s6029 = scalar_select %p6028, %s24, 1
      %p6030 = scmp.lt.s32.totalorder %s6027, 1
      %s6031 = scalar_select %p6030, %s6027, 1
      %s6032 = smul.addr %s6029, 2
      %s6033 = sadd.s32 %s6031, %s6032
      %s6034 = smul.addr %s6033, 8
      %s6035 = scalar_lea.vmem %s7, %s6034
      %p6036 = scmp.lt.s32.totalorder %s24, 1
      %s6037 = scalar_select %p6036, %s24, 1
      %p6038 = scmp.lt.s32.totalorder %s25, 0
      %s6039 = scalar_select %p6038, %s25, 0
      %s6040 = sadd.s32 %s6039, %s6037
      %s6041 = smul.addr %s6040, 2
      %s6042 = scalar_lea.vmem %s8, %s6041
      // Predicated region
      $region57: #{up_module_forward.2} parent=43 // pred_check
        %p6043 = pneg %p220
      $region58: #{up_module_forward.2} parent=43 // pred_check_branch
        %6045 = sbr.rel (%p6043) target = $region60
      $region59: #{up_module_forward.2} parent=43 // pred_region
        %s6046 = smul.u32 16, %s25
      $region60: #{up_module_forward.2} parent=43 // pred_fallthru
        _
      // Predicated region
      $region61: #{up_module_forward.2} parent=43 // pred_check
        %p6047 = pneg %p248
      $region62: #{up_module_forward.2} parent=43 // pred_check_branch
        %6049 = sbr.rel (%p6047) target = $region64
      $region63: #{up_module_forward.2} parent=43 // pred_region
        %s6050 = smul.u32 2, %s25
      $region64: #{up_module_forward.2} parent=43 // pred_fallthru
        _
      // Predicated region
      $region65: #{up_module_forward.2} parent=43 // pred_check
        %p6051 = pneg %p276
      $region66: #{up_module_forward.2} parent=43 // pred_check_branch
        %6053 = sbr.rel (%p6051) target = $region68
      $region67: #{up_module_forward.2} parent=43 // pred_region
        _
      $region68: #{up_module_forward.2} parent=43 // pred_fallthru
        _
    $region44: #{up_module_forward.2} parent=5 // pred_fallthru
      _
    %p6054 = scmp.le.s32.totalorder 2, %s15
    // Predicated region
    $region69: #{up_module_forward.2} parent=5 // pred_check
      %p6055 = pneg %p6054
    $region70: #{up_module_forward.2} parent=5 // pred_check_branch
      %6057 = sbr.rel (%p6055) target = $region72
    $region71: #{up_module_forward.2} parent=5 // pred_region
      %s6058 = ssub.s32 %s15, 2
      // Predicated region
      $region73: #{up_module_forward.2} parent=71 // pred_check
        %p6059 = pneg %p226
      $region74: #{up_module_forward.2} parent=71 // pred_check_branch
        %6061 = sbr.rel (%p6059) target = $region76
      $region75: #{up_module_forward.2} parent=71 // pred_region
        %s6062 = smul.u32 16, %s27
        %p6063 = scmp.lt.s32.totalorder %s26, 1
        %s6064 = scalar_select %p6063, %s26, 1
        %p6065 = scmp.lt.s32.totalorder %s6062, 15
        %s6066 = scalar_select %p6065, %s6062, 15
        %s6067 = smul.addr %s6066, 2
        %s6068 = smul.addr %s6064, 32
        %s6069 = sadd.s32 %s6067, %s6068
        %s6070 = smul.addr %s6069, 4
        %s6071 = scalar_lea.vmem %s6, %s6070
      $region76: #{up_module_forward.2} parent=71 // pred_fallthru
        _
      // Predicated region
      $region77: #{up_module_forward.2} parent=71 // pred_check
        %p6072 = pneg %p254
      $region78: #{up_module_forward.2} parent=71 // pred_check_branch
        %6074 = sbr.rel (%p6072) target = $region80
      $region79: #{up_module_forward.2} parent=71 // pred_region
        %s6075 = smul.u32 2, %s27
        %p6076 = scmp.lt.s32.totalorder %s26, 1
        %s6077 = scalar_select %p6076, %s26, 1
        %p6078 = scmp.lt.s32.totalorder %s6075, 1
        %s6079 = scalar_select %p6078, %s6075, 1
        %s6080 = smul.addr %s6077, 2
        %s6081 = sadd.s32 %s6079, %s6080
        %s6082 = smul.addr %s6081, 8
        %s6083 = scalar_lea.vmem %s7, %s6082
      $region80: #{up_module_forward.2} parent=71 // pred_fallthru
        _
      // Predicated region
      $region81: #{up_module_forward.2} parent=71 // pred_check
        %p6084 = pneg %p282
      $region82: #{up_module_forward.2} parent=71 // pred_check_branch
        %6086 = sbr.rel (%p6084) target = $region84
      $region83: #{up_module_forward.2} parent=71 // pred_region
        %p6087 = scmp.lt.s32.totalorder %s26, 1
        %s6088 = scalar_select %p6087, %s26, 1
        %p6089 = scmp.lt.s32.totalorder %s27, 0
        %s6090 = scalar_select %p6089, %s27, 0
        %s6091 = sadd.s32 %s6090, %s6088
        %s6092 = smul.addr %s6091, 2
        %s6093 = scalar_lea.vmem %s8, %s6092
      $region84: #{up_module_forward.2} parent=71 // pred_fallthru
        _
    $region72: #{up_module_forward.2} parent=5 // pred_fallthru
      _
  $region6: #{up_module_forward.2} parent=0 // loop_footer
    %s19 = sadd.s32 1, %s15
  $region7: #{up_module_forward.2} parent=0 // loop_footer_branch
    %14 = sbr.rel target = $region3
  $region8: #{up_module_forward.2} parent=0 // loop_exit
    _

</llo_original>
